<compile_context>
chip_gen: v7x
topology: tpu7x:2x2x1
jax: 0.10.0
libtpu: 0.0.40
codegen_flags: <defaults>
</compile_context>

<pallas_src>
import functools
import math

import jax
import jax.numpy as jnp
from jax.experimental import pallas as pl
from jax.experimental.pallas import tpu as pltpu

# 48 MiB: fits under v7x's 64 MiB/TC physical VMEM; v5e/v6e (128 MiB) have headroom.
_VMEM_LIMIT = 48 * 1024 * 1024


# ----------------------------- helpers -----------------------------

def _gelu(y):
    # TODO(synk): PyTorch F.gelu defaults to exact erf GELU; tanh approximation used here.
    c = jnp.float32(math.sqrt(2.0 / math.pi))
    return 0.5 * y * (1.0 + jnp.tanh(c * (y + 0.044715 * y * y * y)))


# ----------------------------- linear (matmul) kernels -----------------------------

def _linear_fused_kernel(*refs, activation, has_residual, has_ln, eps):
    """Single-K-tile matmul: optional fused LayerNorm prologue, bias/GELU/residual epilogue."""
    x_ref, w_ref, b_ref = refs[0], refs[1], refs[2]
    i = 3
    if has_ln:
        g_ref, bt_ref = refs[i], refs[i + 1]
        i += 2
    if has_residual:
        r_ref = refs[i]
        i += 1
    o_ref = refs[i]

    x = x_ref[...]                                       # (tm, K) bf16
    if has_ln:
        xf = x.astype(jnp.float32)
        mu = jnp.mean(xf, axis=-1, keepdims=True)
        xc = xf - mu
        var = jnp.mean(xc * xc, axis=-1, keepdims=True)
        xn = xc * jax.lax.rsqrt(var + eps)
        x = (xn * g_ref[...] + bt_ref[...]).astype(w_ref.dtype)

    y = jnp.dot(x, w_ref[...], preferred_element_type=jnp.float32) + b_ref[...]
    if activation == "gelu":
        y = _gelu(y)
    if has_residual:
        y = y + r_ref[...].astype(jnp.float32)
    o_ref[...] = y.astype(o_ref.dtype)


def _linear_acc_kernel(*refs, activation, has_residual):
    """Multi-K-step matmul with f32 VMEM accumulator (used only when K > tk)."""
    if has_residual:
        x_ref, w_ref, b_ref, r_ref, o_ref, acc_ref = refs
    else:
        x_ref, w_ref, b_ref, o_ref, acc_ref = refs
        r_ref = None

    k = pl.program_id(2)

    @pl.when(k == 0)
    def _init():
        acc_ref[...] = jnp.zeros_like(acc_ref)

    acc_ref[...] += jnp.dot(x_ref[...], w_ref[...], preferred_element_type=jnp.float32)

    @pl.when(k == pl.num_programs(2) - 1)
    def _finalize():
        y = acc_ref[...] + b_ref[...]
        if activation == "gelu":
            y = _gelu(y)
        if has_residual:
            y = y + r_ref[...].astype(jnp.float32)
        o_ref[...] = y.astype(o_ref.dtype)


def _layernorm_kernel(x_ref, g_ref, b_ref, o_ref, *, eps):
    x = x_ref[...].astype(jnp.float32)
    mu = jnp.mean(x, axis=-1, keepdims=True)
    xc = x - mu
    var = jnp.mean(xc * xc, axis=-1, keepdims=True)
    xn = xc * jax.lax.rsqrt(var + eps)
    o_ref[...] = (xn * g_ref[...] + b_ref[...]).astype(o_ref.dtype)


def layernorm(x2d, g, b, *, eps=1e-5, tm=512):
    """Standalone LayerNorm (only used when it cannot be fused into a matmul)."""
    M, D = x2d.shape
    tm = min(tm, M)
    return pl.pallas_call(
        functools.partial(_layernorm_kernel, eps=eps),
        out_shape=jax.ShapeDtypeStruct((M, D), x2d.dtype),
        grid=(pl.cdiv(M, tm),),
        in_specs=[pl.BlockSpec((tm, D), lambda i: (i, 0)),
                  pl.BlockSpec((1, D), lambda i: (0, 0)),
                  pl.BlockSpec((1, D), lambda i: (0, 0))],
        out_specs=pl.BlockSpec((tm, D), lambda i: (i, 0)),
        compiler_params=pltpu.CompilerParams(
            dimension_semantics=("parallel",), vmem_limit_bytes=_VMEM_LIMIT),
    )(x2d, g.reshape(1, D), b.reshape(1, D))


def linear(x2d, w, b, *, ln=None, activation=None, residual=None,
           out_dtype=jnp.bfloat16, tm=512, tn=512, tk=1024, eps=1e-5):
    """y = (LN(x) if ln else x) @ w + b, with optional fused GELU and residual add.

    x2d / w / residual are bf16 in HBM; accumulation & LN stats in f32.
    ln = (gamma, beta) fuses the LayerNorm prologue when the full K row fits one tile.
    """
    M, K = x2d.shape
    N = w.shape[1]
    tm = min(tm, M)
    tn = min(tn, N)
    b2 = b.reshape(1, N)

    single_k = K <= tk
    if not single_k and K % tk != 0:
        for cand in (512, 256, 128):
            if K % cand == 0:
                tk = cand
                break
        else:
            single_k = True  # TODO(synk): odd large K falls back to a whole-K tile (VMEM heavy).

    if single_k:
        in_specs = [pl.BlockSpec((tm, K), lambda i, j: (i, 0)),
                    pl.BlockSpec((K, tn), lambda i, j: (0, j)),
                    pl.BlockSpec((1, tn), lambda i, j: (0, j))]
        args = [x2d, w, b2]
        if ln is not None:
            g, beta = ln
            in_specs += [pl.BlockSpec((1, K), lambda i, j: (0, 0)),
                         pl.BlockSpec((1, K), lambda i, j: (0, 0))]
            args += [g.reshape(1, K), beta.reshape(1, K)]
        if residual is not None:
            in_specs.append(pl.BlockSpec((tm, tn), lambda i, j: (i, j)))
            args.append(residual)
        return pl.pallas_call(
            functools.partial(_linear_fused_kernel, activation=activation,
                              has_residual=residual is not None,
                              has_ln=ln is not None, eps=eps),
            out_shape=jax.ShapeDtypeStruct((M, N), out_dtype),
            grid=(pl.cdiv(M, tm), pl.cdiv(N, tn)),
            in_specs=in_specs,
            out_specs=pl.BlockSpec((tm, tn), lambda i, j: (i, j)),
            compiler_params=pltpu.CompilerParams(
                dimension_semantics=("parallel", "parallel"),
                vmem_limit_bytes=_VMEM_LIMIT),
        )(*args)

    # --- multi K-step path (large K); LN cannot be fused here ---
    if ln is not None:
        g, beta = ln
        x2d = layernorm(x2d, g, beta, eps=eps)
    in_specs = [pl.BlockSpec((tm, tk), lambda i, j, k: (i, k)),
                pl.BlockSpec((tk, tn), lambda i, j, k: (k, j)),
                pl.BlockSpec((1, tn), lambda i, j, k: (0, j))]
    args = [x2d, w, b2]
    if residual is not None:
        in_specs.append(pl.BlockSpec((tm, tn), lambda i, j, k: (i, j)))
        args.append(residual)
    return pl.pallas_call(
        functools.partial(_linear_acc_kernel, activation=activation,
                          has_residual=residual is not None),
        out_shape=jax.ShapeDtypeStruct((M, N), out_dtype),
        grid=(pl.cdiv(M, tm), pl.cdiv(N, tn), K // tk),
        in_specs=in_specs,
        out_specs=pl.BlockSpec((tm, tn), lambda i, j, k: (i, j)),
        scratch_shapes=[pltpu.VMEM((tm, tn), jnp.float32)],
        compiler_params=pltpu.CompilerParams(
            dimension_semantics=("parallel", "parallel", "arbitrary"),
            vmem_limit_bytes=_VMEM_LIMIT),
    )(*args)


# ----------------------------- attention kernel -----------------------------

def _attention_kernel(q_ref, k_ref, v_ref, o_ref, *, heads, head_dim, scale,
                      k_off, v_off):
    """Processes `heads` heads whose q/k/v live in the given (1, S, W) blocks.

    Head i occupies columns [i*head_dim, (i+1)*head_dim) of q_ref (plus k_off /
    v_off for k_ref / v_ref).  Output is written directly in 'b s (h d)' layout.
    """
    for i in range(heads):                       # small static loop (heads per block)
        c = i * head_dim
        q = q_ref[0, :, c:c + head_dim] * scale  # fold softmax scale into q (S*Dh muls)
        k = k_ref[0, :, k_off + c:k_off + c + head_dim]
        v = v_ref[0, :, v_off + c:v_off + c + head_dim]
        # scores = (q*scale) @ k^T  (contract over head dim; no transpose needed)
        s = jax.lax.dot_general(q, k, (((1,), (1,)), ((), ())),
                                preferred_element_type=jnp.float32)
        m = jnp.max(s, axis=-1, keepdims=True)
        p = jnp.exp(s - m)
        l = jnp.sum(p, axis=-1, keepdims=True)
        p = p * pl.reciprocal(l, approx=True)    # EUP reciprocal, frees the VALU divide
        o = jnp.dot(p.astype(v.dtype), v, preferred_element_type=jnp.float32)
        o_ref[0, :, c:c + head_dim] = o.astype(o_ref.dtype)


def attention(qkv, num_heads):
    """qkv: (B, S, 3*D) bf16 with column layout (q|k|v, head, head_dim). Returns (B, S, D)."""
    B, S, D3 = qkv.shape
    D = D3 // 3
    Dh = D // num_heads
    scale = 1.0 / math.sqrt(Dh)

    # Pick the smallest head group so each q/k/v block is lane-aligned (width % 128 == 0).
    hpb = None
    for cand in range(1, num_heads + 1):
        if num_heads % cand == 0 and (cand * Dh) % 128 == 0:
            hpb = cand
            break

    if hpb is not None:
        G = num_heads // hpb
        W = hpb * Dh
        grid = (B, G)
        in_specs = [
            pl.BlockSpec((1, S, W), lambda b, g: (b, 0, g)),          # q heads of group g
            pl.BlockSpec((1, S, W), lambda b, g: (b, 0, G + g)),      # k heads of group g
            pl.BlockSpec((1, S, W), lambda b, g: (b, 0, 2 * G + g)),  # v heads of group g
        ]
        out_spec = pl.BlockSpec((1, S, W), lambda b, g: (b, 0, g))
        kernel = functools.partial(_attention_kernel, heads=hpb, head_dim=Dh,
                                   scale=scale, k_off=0, v_off=0)
        sem = ("parallel", "parallel")
    else:
        # TODO(synk): head_dim not lane-alignable (tiny d_model); fall back to full-row blocks.
        grid = (B,)
        full = pl.BlockSpec((1, S, D3), lambda b: (b, 0, 0))
        in_specs = [full, full, full]
        out_spec = pl.BlockSpec((1, S, D), lambda b: (b, 0, 0))
        kernel = functools.partial(_attention_kernel, heads=num_heads, head_dim=Dh,
                                   scale=scale, k_off=D, v_off=2 * D)
        sem = ("parallel",)

    return pl.pallas_call(
        kernel,
        out_shape=jax.ShapeDtypeStruct((B, S, D), qkv.dtype),
        grid=grid,
        in_specs=in_specs,
        out_specs=out_spec,
        compiler_params=pltpu.CompilerParams(
            dimension_semantics=sem, vmem_limit_bytes=_VMEM_LIMIT),
    )(qkv, qkv, qkv)


# ----------------------------- model wiring -----------------------------

def init_params(key, *, image_size, patch_size, num_classes, d_model,
                num_heads, num_layers, d_ff):
    num_patches = (image_size // patch_size) ** 2
    patch_dim = 3 * patch_size ** 2
    keys = iter(jax.random.split(key, 8 + 8 * num_layers))

    def lin(k, din, dout):
        kw, kb = jax.random.split(k)
        w = (jax.random.normal(kw, (din, dout), jnp.float32) * 0.02).astype(jnp.bfloat16)
        b = jax.random.normal(kb, (dout,), jnp.float32) * 0.02
        return w, b

    params = {}
    params["patch_w"], params["patch_b"] = lin(next(keys), patch_dim, d_model)
    params["pos"] = (jax.random.normal(next(keys), (1, num_patches + 1, d_model),
                                       jnp.float32) * 0.02).astype(jnp.bfloat16)
    params["cls"] = (jax.random.normal(next(keys), (1, 1, d_model),
                                       jnp.float32) * 0.02).astype(jnp.bfloat16)
    layers = []
    for _ in range(num_layers):
        lp = {}
        # NOTE: qkv column layout is (q|k|v, head, head_dim) — matches the attention kernel.
        lp["qkv_w"], lp["qkv_b"] = lin(next(keys), d_model, 3 * d_model)
        lp["out_w"], lp["out_b"] = lin(next(keys), d_model, d_model)
        lp["fc1_w"], lp["fc1_b"] = lin(next(keys), d_model, d_ff)
        lp["fc2_w"], lp["fc2_b"] = lin(next(keys), d_ff, d_model)
        lp["ln1_g"] = jnp.ones((d_model,), jnp.float32)
        lp["ln1_b"] = jnp.zeros((d_model,), jnp.float32)
        lp["ln2_g"] = jnp.ones((d_model,), jnp.float32)
        lp["ln2_b"] = jnp.zeros((d_model,), jnp.float32)
        layers.append(lp)
    params["layers"] = layers
    params["ln_g"] = jnp.ones((d_model,), jnp.float32)
    params["ln_b"] = jnp.zeros((d_model,), jnp.float32)
    params["fc_w"], params["fc_b"] = lin(next(keys), d_model, num_classes)
    return params


def encoder_block(lp, x, num_heads):
    B, S, D = x.shape
    x2 = x.reshape(B * S, D)                                        # bf16

    # --- attention sublayer (pre-LN); LN1 fused into qkv projection prologue ---
    qkv = linear(x2, lp["qkv_w"], lp["qkv_b"], ln=(lp["ln1_g"], lp["ln1_b"]))
    attn = attention(qkv.reshape(B, S, 3 * D), num_heads)           # (B, S, D)
    x2 = linear(attn.reshape(B * S, D), lp["out_w"], lp["out_b"],
                residual=x2)                                        # dropout == identity

    # --- MLP sublayer (pre-LN); LN2 fused into fc1 prologue, residual into fc2 epilogue ---
    h = linear(x2, lp["fc1_w"], lp["fc1_b"], ln=(lp["ln2_g"], lp["ln2_b"]),
               activation="gelu")
    x2 = linear(h, lp["fc2_w"], lp["fc2_b"], residual=x2)           # dropout == identity
    return x2.reshape(B, S, D)


def vit_forward(params, x, *, patch_size, num_heads):
    B, C, H, W = x.shape
    p = patch_size
    hN, wN = H // p, W // p
    # 'b c (h p1) (w p2) -> b (h w) (p1 p2 c)'
    patches = (x.reshape(B, C, hN, p, wN, p)
                 .transpose(0, 2, 4, 3, 5, 1)
                 .reshape(B, hN * wN, p * p * C)).astype(jnp.bfloat16)
    N = hN * wN
    D = params["patch_w"].shape[1]

    tok = linear(patches.reshape(B * N, p * p * C),
                 params["patch_w"], params["patch_b"]).reshape(B, N, D)
    cls = jnp.broadcast_to(params["cls"], (B, 1, D))
    x = jnp.concatenate([cls, tok], axis=1) + params["pos"]
    # dropout == identity (eval)

    for lp in params["layers"]:
        x = encoder_block(lp, x, num_heads)

    # Final LayerNorm is per-row, so applying it only to the cls rows is equivalent.
    cls_out = x[:, 0]                                               # (B, D) bf16

    # Classifier head: pad N up to a lane-dense multiple of 128, slice after.
    num_classes = params["fc_w"].shape[1]
    n_pad = (-num_classes) % 128
    if n_pad:
        fc_w = jnp.pad(params["fc_w"], ((0, 0), (0, n_pad)))
        fc_b = jnp.pad(params["fc_b"], ((0, n_pad),))
    else:
        fc_w, fc_b = params["fc_w"], params["fc_b"]
    logits = linear(cls_out, fc_w, fc_b, ln=(params["ln_g"], params["ln_b"]),
                    out_dtype=jnp.float32)[:, :num_classes]
    return logits


# ----------------------------- main -----------------------------

if __name__ == "__main__":
    image_size = 16
    patch_size = 4           # -> 16 patches + cls = 17 tokens
    num_classes = 8
    d_model = 256            # head_dim = 64 -> lane-aligned head pairs in attention
    num_heads = 4
    num_layers = 2
    d_ff = 512
    batch = 2

    key = jax.random.PRNGKey(0)
    kp, kx = jax.random.split(key)
    params = init_params(kp, image_size=image_size, patch_size=patch_size,
                         num_classes=num_classes, d_model=d_model,
                         num_heads=num_heads, num_layers=num_layers, d_ff=d_ff)
    x = jax.random.normal(kx, (batch, 3, image_size, image_size), jnp.float32)

    fwd = jax.jit(functools.partial(vit_forward, patch_size=patch_size,
                                    num_heads=num_heads))
    logits = fwd(params, x)
    jax.block_until_ready(logits)
    assert logits.shape == (batch, num_classes)
    assert logits.dtype == jnp.float32
    assert bool(jnp.all(jnp.isfinite(logits)))
    print("KERNEL_OK")
</pallas_src>

<mosaic_0001>
module attributes {stable_mosaic.version = 11 : i64} {
  func.func @_linear_fused_kernel(%arg0: i32, %arg1: i32, %arg2: memref<32x48xbf16, #tpu.memory_space<vmem>>, %arg3: memref<48x256xbf16, #tpu.memory_space<vmem>>, %arg4: memref<1x256xf32, #tpu.memory_space<vmem>>, %arg5: memref<32x256xbf16, #tpu.memory_space<vmem>>) attributes {dimension_semantics = [#tpu.dimension_semantics<parallel>, #tpu.dimension_semantics<parallel>], iteration_bounds = array<i64: 1, 1>, scalar_prefetch = 0 : i64, scratch_operands = 0 : i64, tpu.core_type = #tpu.core_type<tc>, window_params = [{transform_indices = @transform_0, window_bounds = array<i64: 32, 48>}, {transform_indices = @transform_1, window_bounds = array<i64: 48, 256>}, {transform_indices = @transform_2, window_bounds = array<i64: 1, 256>}, {transform_indices = @transform_3, window_bounds = array<i64: 32, 256>}]} {
    %c0 = arith.constant 0 : index
    %c0_0 = arith.constant 0 : index
    %0 = vector.load %arg2[%c0, %c0_0] : memref<32x48xbf16, #tpu.memory_space<vmem>>, vector<32x48xbf16>
    %c0_1 = arith.constant 0 : index
    %c0_2 = arith.constant 0 : index
    %1 = vector.load %arg3[%c0_1, %c0_2] : memref<48x256xbf16, #tpu.memory_space<vmem>>, vector<48x256xbf16>
    %cst = arith.constant dense<0.000000e+00> : vector<32x256xf32>
    %2 = tpu.matmul %0, %1, %cst {dimension_numbers = #tpu.dot_dimension_numbers<[1], [0], [0], [1], [0, 0, 1, 1], [], []>} : vector<32x48xbf16>, vector<48x256xbf16>, vector<32x256xf32> -> vector<32x256xf32>
    %c0_3 = arith.constant 0 : index
    %c0_4 = arith.constant 0 : index
    %3 = vector.load %arg4[%c0_3, %c0_4] : memref<1x256xf32, #tpu.memory_space<vmem>>, vector<1x256xf32>
    %4 = vector.broadcast %3 : vector<1x256xf32> to vector<32x256xf32>
    %5 = arith.addf %2, %4 : vector<32x256xf32>
    %6 = arith.truncf %5 : vector<32x256xf32> to vector<32x256xbf16>
    %c0_5 = arith.constant 0 : index
    %c0_6 = arith.constant 0 : index
    %7 = vector.load %arg5[%c0_5, %c0_6] : memref<32x256xbf16, #tpu.memory_space<vmem>>, vector<32x256xbf16>
    tpu.vector_store %arg5[%c0_5, %c0_6], %6 {strides = array<i32>} : memref<32x256xbf16, #tpu.memory_space<vmem>>, vector<32x256xbf16>,
    return
  }
  func.func @transform_0(%arg0: i32, %arg1: i32) -> (i32, i32) {
    %c0_i32 = arith.constant 0 : i32
    %c0_i32_0 = arith.constant 0 : i32
    return %arg0, %c0_i32 : i32, i32
  }
  func.func @transform_1(%arg0: i32, %arg1: i32) -> (i32, i32) {
    %c0_i32 = arith.constant 0 : i32
    %c0_i32_0 = arith.constant 0 : i32
    return %c0_i32, %arg1 : i32, i32
  }
  func.func @transform_2(%arg0: i32, %arg1: i32) -> (i32, i32) {
    %c0_i32 = arith.constant 0 : i32
    %c0_i32_0 = arith.constant 0 : i32
    return %c0_i32, %arg1 : i32, i32
  }
  func.func @transform_3(%arg0: i32, %arg1: i32) -> (i32, i32) {
    %c0_i32 = arith.constant 0 : i32
    return %arg0, %arg1 : i32, i32
  }
}

module attributes {stable_mosaic.version = 11 : i64} {
  func.func @_linear_fused_kernel(%arg0: i32, %arg1: i32, %arg2: memref<34x256xbf16, #tpu.memory_space<vmem>>, %arg3: memref<256x512xbf16, #tpu.memory_space<vmem>>, %arg4: memref<1x512xf32, #tpu.memory_space<vmem>>, %arg5: memref<1x256xf32, #tpu.memory_space<vmem>>, %arg6: memref<1x256xf32, #tpu.memory_space<vmem>>, %arg7: memref<34x512xbf16, #tpu.memory_space<vmem>>) attributes {dimension_semantics = [#tpu.dimension_semantics<parallel>, #tpu.dimension_semantics<parallel>], iteration_bounds = array<i64: 1, 2>, scalar_prefetch = 0 : i64, scratch_operands = 0 : i64, tpu.core_type = #tpu.core_type<tc>, window_params = [{transform_indices = @transform_0, window_bounds = array<i64: 34, 256>}, {transform_indices = @transform_1, window_bounds = array<i64: 256, 512>}, {transform_indices = @transform_2, window_bounds = array<i64: 1, 512>}, {pipeline_mode = #tpu.pipeline_mode<synchronous>, transform_indices = @transform_3, window_bounds = array<i64: 1, 256>}, {pipeline_mode = #tpu.pipeline_mode<synchronous>, transform_indices = @transform_4, window_bounds = array<i64: 1, 256>}, {transform_indices = @transform_5, window_bounds = array<i64: 34, 512>}]} {
    %c0 = arith.constant 0 : index
    %c0_0 = arith.constant 0 : index
    %0 = vector.load %arg2[%c0, %c0_0] : memref<34x256xbf16, #tpu.memory_space<vmem>>, vector<34x256xbf16>
    %1 = arith.extf %0 : vector<34x256xbf16> to vector<34x256xf32>
    %cst = arith.constant dense<0.000000e+00> : vector<34xf32>
    %2 = vector.multi_reduction <add>, %1, %cst [1] : vector<34x256xf32> to vector<34xf32>
    %3 = vector.shape_cast %2 : vector<34xf32> to vector<34x1xf32>
    %cst_1 = arith.constant 2.560000e+02 : f32
    %4 = vector.broadcast %cst_1 : f32 to vector<34x1xf32>
    %5 = arith.divf %3, %4 : vector<34x1xf32>
    %6 = vector.broadcast %5 : vector<34x1xf32> to vector<34x256xf32>
    %7 = arith.subf %1, %6 : vector<34x256xf32>
    %8 = arith.mulf %7, %7 : vector<34x256xf32>
    %cst_2 = arith.constant dense<0.000000e+00> : vector<34xf32>
    %9 = vector.multi_reduction <add>, %8, %cst_2 [1] : vector<34x256xf32> to vector<34xf32>
    %10 = vector.shape_cast %9 : vector<34xf32> to vector<34x1xf32>
    %cst_3 = arith.constant 2.560000e+02 : f32
    %11 = vector.broadcast %cst_3 : f32 to vector<34x1xf32>
    %12 = arith.divf %10, %11 : vector<34x1xf32>
    %cst_4 = arith.constant 9.99999974E-6 : f32
    %13 = vector.broadcast %cst_4 : f32 to vector<34x1xf32>
    %14 = arith.addf %12, %13 : vector<34x1xf32>
    %15 = math.rsqrt %14 : vector<34x1xf32>
    %16 = vector.broadcast %15 : vector<34x1xf32> to vector<34x256xf32>
    %17 = arith.mulf %7, %16 : vector<34x256xf32>
    %c0_5 = arith.constant 0 : index
    %c0_6 = arith.constant 0 : index
    %18 = vector.load %arg5[%c0_5, %c0_6] : memref<1x256xf32, #tpu.memory_space<vmem>>, vector<1x256xf32>
    %19 = vector.broadcast %18 : vector<1x256xf32> to vector<34x256xf32>
    %20 = arith.mulf %17, %19 : vector<34x256xf32>
    %c0_7 = arith.constant 0 : index
    %c0_8 = arith.constant 0 : index
    %21 = vector.load %arg6[%c0_7, %c0_8] : memref<1x256xf32, #tpu.memory_space<vmem>>, vector<1x256xf32>
    %22 = vector.broadcast %21 : vector<1x256xf32> to vector<34x256xf32>
    %23 = arith.addf %20, %22 : vector<34x256xf32>
    %24 = arith.truncf %23 : vector<34x256xf32> to vector<34x256xbf16>
    %c0_9 = arith.constant 0 : index
    %c0_10 = arith.constant 0 : index
    %25 = vector.load %arg3[%c0_9, %c0_10] : memref<256x512xbf16, #tpu.memory_space<vmem>>, vector<256x512xbf16>
    %cst_11 = arith.constant dense<0.000000e+00> : vector<34x512xf32>
    %26 = tpu.matmul %24, %25, %cst_11 {dimension_numbers = #tpu.dot_dimension_numbers<[1], [0], [0], [1], [0, 0, 1, 1], [], []>} : vector<34x256xbf16>, vector<256x512xbf16>, vector<34x512xf32> -> vector<34x512xf32>
    %c0_12 = arith.constant 0 : index
    %c0_13 = arith.constant 0 : index
    %27 = vector.load %arg4[%c0_12, %c0_13] : memref<1x512xf32, #tpu.memory_space<vmem>>, vector<1x512xf32>
    %28 = vector.broadcast %27 : vector<1x512xf32> to vector<34x512xf32>
    %29 = arith.addf %26, %28 : vector<34x512xf32>
    %30 = arith.truncf %29 : vector<34x512xf32> to vector<34x512xbf16>
    %c0_14 = arith.constant 0 : index
    %c0_15 = arith.constant 0 : index
    %31 = vector.load %arg7[%c0_14, %c0_15] : memref<34x512xbf16, #tpu.memory_space<vmem>>, vector<34x512xbf16>
    tpu.vector_store %arg7[%c0_14, %c0_15], %30 {strides = array<i32>} : memref<34x512xbf16, #tpu.memory_space<vmem>>, vector<34x512xbf16>,
    return
  }
  func.func @transform_0(%arg0: i32, %arg1: i32) -> (i32, i32) {
    %c0_i32 = arith.constant 0 : i32
    %c0_i32_0 = arith.constant 0 : i32
    return %arg0, %c0_i32 : i32, i32
  }
  func.func @transform_1(%arg0: i32, %arg1: i32) -> (i32, i32) {
    %c0_i32 = arith.constant 0 : i32
    %c0_i32_0 = arith.constant 0 : i32
    return %c0_i32, %arg1 : i32, i32
  }
  func.func @transform_2(%arg0: i32, %arg1: i32) -> (i32, i32) {
    %c0_i32 = arith.constant 0 : i32
    %c0_i32_0 = arith.constant 0 : i32
    return %c0_i32, %arg1 : i32, i32
  }
  func.func @transform_3(%arg0: i32, %arg1: i32) -> (i32, i32) {
    %c0_i32 = arith.constant 0 : i32
    %c0_i32_0 = arith.constant 0 : i32
    %c0_i32_1 = arith.constant 0 : i32
    return %c0_i32, %c0_i32_0 : i32, i32
  }
  func.func @transform_4(%arg0: i32, %arg1: i32) -> (i32, i32) {
    %c0_i32 = arith.constant 0 : i32
    %c0_i32_0 = arith.constant 0 : i32
    %c0_i32_1 = arith.constant 0 : i32
    return %c0_i32, %c0_i32_0 : i32, i32
  }
  func.func @transform_5(%arg0: i32, %arg1: i32) -> (i32, i32) {
    %c0_i32 = arith.constant 0 : i32
    return %arg0, %arg1 : i32, i32
  }
}

module attributes {stable_mosaic.version = 11 : i64} {
  func.func @_attention_kernel(%arg0: i32, %arg1: i32, %arg2: memref<1x17x128xbf16, #tpu.memory_space<vmem>>, %arg3: memref<1x17x128xbf16, #tpu.memory_space<vmem>>, %arg4: memref<1x17x128xbf16, #tpu.memory_space<vmem>>, %arg5: memref<1x17x128xbf16, #tpu.memory_space<vmem>>) attributes {dimension_semantics = [#tpu.dimension_semantics<parallel>, #tpu.dimension_semantics<parallel>], iteration_bounds = array<i64: 2, 2>, scalar_prefetch = 0 : i64, scratch_operands = 0 : i64, tpu.core_type = #tpu.core_type<tc>, window_params = [{transform_indices = @transform_0, window_bounds = array<i64: 1, 17, 128>}, {transform_indices = @transform_1, window_bounds = array<i64: 1, 17, 128>}, {transform_indices = @transform_2, window_bounds = array<i64: 1, 17, 128>}, {transform_indices = @transform_3, window_bounds = array<i64: 1, 17, 128>}]} {
    %c0 = arith.constant 0 : index
    %c0_0 = arith.constant 0 : index
    %c0_1 = arith.constant 0 : index
    %0 = vector.load %arg2[%c0, %c0_0, %c0_1] : memref<1x17x128xbf16, #tpu.memory_space<vmem>>, vector<1x17x64xbf16>
    %1 = vector.shape_cast %0 : vector<1x17x64xbf16> to vector<17x64xbf16>
    %cst = arith.constant 1.250000e-01 : bf16
    %2 = vector.broadcast %cst : bf16 to vector<17x64xbf16>
    %3 = arith.mulf %1, %2 : vector<17x64xbf16>
    %c0_2 = arith.constant 0 : index
    %c0_3 = arith.constant 0 : index
    %c0_4 = arith.constant 0 : index
    %4 = vector.load %arg3[%c0_2, %c0_3, %c0_4] : memref<1x17x128xbf16, #tpu.memory_space<vmem>>, vector<1x17x64xbf16>
    %5 = vector.shape_cast %4 : vector<1x17x64xbf16> to vector<17x64xbf16>
    %c0_5 = arith.constant 0 : index
    %c0_6 = arith.constant 0 : index
    %c0_7 = arith.constant 0 : index
    %6 = vector.load %arg4[%c0_5, %c0_6, %c0_7] : memref<1x17x128xbf16, #tpu.memory_space<vmem>>, vector<1x17x64xbf16>
    %7 = vector.shape_cast %6 : vector<1x17x64xbf16> to vector<17x64xbf16>
    %cst_8 = arith.constant dense<0.000000e+00> : vector<17x17xf32>
    %8 = tpu.matmul %3, %5, %cst_8 {dimension_numbers = #tpu.dot_dimension_numbers<[1], [1], [0], [0], [0, 0, 1, 0], [], []>} : vector<17x64xbf16>, vector<17x64xbf16>, vector<17x17xf32> -> vector<17x17xf32>
    %cst_9 = arith.constant dense<0xFF800000> : vector<17xf32>
    %9 = vector.multi_reduction <maximumf>, %8, %cst_9 [1] : vector<17x17xf32> to vector<17xf32>
    %10 = vector.shape_cast %9 : vector<17xf32> to vector<17x1xf32>
    %11 = vector.broadcast %10 : vector<17x1xf32> to vector<17x17xf32>
    %12 = arith.subf %8, %11 : vector<17x17xf32>
    %13 = math.exp %12 : vector<17x17xf32>
    %cst_10 = arith.constant dense<0.000000e+00> : vector<17xf32>
    %14 = vector.multi_reduction <add>, %13, %cst_10 [1] : vector<17x17xf32> to vector<17xf32>
    %15 = vector.shape_cast %14 : vector<17xf32> to vector<17x1xf32>
    %16 = tpu.reciprocal %15 {approx = true} : vector<17x1xf32> -> vector<17x1xf32>
    %17 = vector.broadcast %16 : vector<17x1xf32> to vector<17x17xf32>
    %18 = arith.mulf %13, %17 : vector<17x17xf32>
    %19 = arith.truncf %18 : vector<17x17xf32> to vector<17x17xbf16>
    %cst_11 = arith.constant dense<0.000000e+00> : vector<17x64xf32>
    %20 = tpu.matmul %19, %7, %cst_11 {dimension_numbers = #tpu.dot_dimension_numbers<[1], [0], [0], [1], [0, 0, 1, 1], [], []>} : vector<17x17xbf16>, vector<17x64xbf16>, vector<17x64xf32> -> vector<17x64xf32>
    %21 = arith.truncf %20 : vector<17x64xf32> to vector<17x64xbf16>
    %c0_12 = arith.constant 0 : index
    %c0_13 = arith.constant 0 : index
    %c0_14 = arith.constant 0 : index
    %22 = vector.load %arg5[%c0_12, %c0_13, %c0_14] : memref<1x17x128xbf16, #tpu.memory_space<vmem>>, vector<1x17x64xbf16>
    %23 = vector.shape_cast %22 : vector<1x17x64xbf16> to vector<17x64xbf16>
    %24 = vector.shape_cast %21 : vector<17x64xbf16> to vector<1x17x64xbf16>
    tpu.vector_store %arg5[%c0_12, %c0_13, %c0_14], %24 {strides = array<i32>} : memref<1x17x128xbf16, #tpu.memory_space<vmem>>, vector<1x17x64xbf16>,
    %c0_15 = arith.constant 0 : index
    %c0_16 = arith.constant 0 : index
    %c64 = arith.constant 64 : index
    %25 = vector.load %arg2[%c0_15, %c0_16, %c64] : memref<1x17x128xbf16, #tpu.memory_space<vmem>>, vector<1x17x64xbf16>
    %26 = vector.shape_cast %25 : vector<1x17x64xbf16> to vector<17x64xbf16>
    %cst_17 = arith.constant 1.250000e-01 : bf16
    %27 = vector.broadcast %cst_17 : bf16 to vector<17x64xbf16>
    %28 = arith.mulf %26, %27 : vector<17x64xbf16>
    %c0_18 = arith.constant 0 : index
    %c0_19 = arith.constant 0 : index
    %c64_20 = arith.constant 64 : index
    %29 = vector.load %arg3[%c0_18, %c0_19, %c64_20] : memref<1x17x128xbf16, #tpu.memory_space<vmem>>, vector<1x17x64xbf16>
    %30 = vector.shape_cast %29 : vector<1x17x64xbf16> to vector<17x64xbf16>
    %c0_21 = arith.constant 0 : index
    %c0_22 = arith.constant 0 : index
    %c64_23 = arith.constant 64 : index
    %31 = vector.load %arg4[%c0_21, %c0_22, %c64_23] : memref<1x17x128xbf16, #tpu.memory_space<vmem>>, vector<1x17x64xbf16>
    %32 = vector.shape_cast %31 : vector<1x17x64xbf16> to vector<17x64xbf16>
    %cst_24 = arith.constant dense<0.000000e+00> : vector<17x17xf32>
    %33 = tpu.matmul %28, %30, %cst_24 {dimension_numbers = #tpu.dot_dimension_numbers<[1], [1], [0], [0], [0, 0, 1, 0], [], []>} : vector<17x64xbf16>, vector<17x64xbf16>, vector<17x17xf32> -> vector<17x17xf32>
    %cst_25 = arith.constant dense<0xFF800000> : vector<17xf32>
    %34 = vector.multi_reduction <maximumf>, %33, %cst_25 [1] : vector<17x17xf32> to vector<17xf32>
    %35 = vector.shape_cast %34 : vector<17xf32> to vector<17x1xf32>
    %36 = vector.broadcast %35 : vector<17x1xf32> to vector<17x17xf32>
    %37 = arith.subf %33, %36 : vector<17x17xf32>
    %38 = math.exp %37 : vector<17x17xf32>
    %cst_26 = arith.constant dense<0.000000e+00> : vector<17xf32>
    %39 = vector.multi_reduction <add>, %38, %cst_26 [1] : vector<17x17xf32> to vector<17xf32>
    %40 = vector.shape_cast %39 : vector<17xf32> to vector<17x1xf32>
    %41 = tpu.reciprocal %40 {approx = true} : vector<17x1xf32> -> vector<17x1xf32>
    %42 = vector.broadcast %41 : vector<17x1xf32> to vector<17x17xf32>
    %43 = arith.mulf %38, %42 : vector<17x17xf32>
    %44 = arith.truncf %43 : vector<17x17xf32> to vector<17x17xbf16>
    %cst_27 = arith.constant dense<0.000000e+00> : vector<17x64xf32>
    %45 = tpu.matmul %44, %32, %cst_27 {dimension_numbers = #tpu.dot_dimension_numbers<[1], [0], [0], [1], [0, 0, 1, 1], [], []>} : vector<17x17xbf16>, vector<17x64xbf16>, vector<17x64xf32> -> vector<17x64xf32>
    %46 = arith.truncf %45 : vector<17x64xf32> to vector<17x64xbf16>
    %c0_28 = arith.constant 0 : index
    %c0_29 = arith.constant 0 : index
    %c64_30 = arith.constant 64 : index
    %47 = vector.load %arg5[%c0_28, %c0_29, %c64_30] : memref<1x17x128xbf16, #tpu.memory_space<vmem>>, vector<1x17x64xbf16>
    %48 = vector.shape_cast %47 : vector<1x17x64xbf16> to vector<17x64xbf16>
    %49 = vector.shape_cast %46 : vector<17x64xbf16> to vector<1x17x64xbf16>
    tpu.vector_store %arg5[%c0_28, %c0_29, %c64_30], %49 {strides = array<i32>} : memref<1x17x128xbf16, #tpu.memory_space<vmem>>, vector<1x17x64xbf16>,
    return
  }
  func.func @transform_0(%arg0: i32, %arg1: i32) -> (i32, i32, i32) {
    %c0_i32 = arith.constant 0 : i32
    %c0_i32_0 = arith.constant 0 : i32
    return %arg0, %c0_i32, %arg1 : i32, i32, i32
  }
  func.func @transform_1(%arg0: i32, %arg1: i32) -> (i32, i32, i32) {
    %c2_i32 = arith.constant 2 : i32
    %0 = arith.addi %c2_i32, %arg1 : i32
    %c0_i32 = arith.constant 0 : i32
    %c0_i32_0 = arith.constant 0 : i32
    return %arg0, %c0_i32, %0 : i32, i32, i32
  }
  func.func @transform_2(%arg0: i32, %arg1: i32) -> (i32, i32, i32) {
    %c4_i32 = arith.constant 4 : i32
    %0 = arith.addi %c4_i32, %arg1 : i32
    %c0_i32 = arith.constant 0 : i32
    %c0_i32_0 = arith.constant 0 : i32
    return %arg0, %c0_i32, %0 : i32, i32, i32
  }
  func.func @transform_3(%arg0: i32, %arg1: i32) -> (i32, i32, i32) {
    %c0_i32 = arith.constant 0 : i32
    %c0_i32_0 = arith.constant 0 : i32
    return %arg0, %c0_i32, %arg1 : i32, i32, i32
  }
}

module attributes {stable_mosaic.version = 11 : i64} {
  func.func @_linear_fused_kernel(%arg0: i32, %arg1: i32, %arg2: memref<34x256xbf16, #tpu.memory_space<vmem>>, %arg3: memref<256x256xbf16, #tpu.memory_space<vmem>>, %arg4: memref<1x256xf32, #tpu.memory_space<vmem>>, %arg5: memref<34x256xbf16, #tpu.memory_space<vmem>>, %arg6: memref<34x256xbf16, #tpu.memory_space<vmem>>) attributes {dimension_semantics = [#tpu.dimension_semantics<parallel>, #tpu.dimension_semantics<parallel>], iteration_bounds = array<i64: 1, 1>, scalar_prefetch = 0 : i64, scratch_operands = 0 : i64, tpu.core_type = #tpu.core_type<tc>, window_params = [{transform_indices = @transform_0, window_bounds = array<i64: 34, 256>}, {transform_indices = @transform_1, window_bounds = array<i64: 256, 256>}, {transform_indices = @transform_2, window_bounds = array<i64: 1, 256>}, {transform_indices = @transform_3, window_bounds = array<i64: 34, 256>}, {transform_indices = @transform_4, window_bounds = array<i64: 34, 256>}]} {
    %c0 = arith.constant 0 : index
    %c0_0 = arith.constant 0 : index
    %0 = vector.load %arg2[%c0, %c0_0] : memref<34x256xbf16, #tpu.memory_space<vmem>>, vector<34x256xbf16>
    %c0_1 = arith.constant 0 : index
    %c0_2 = arith.constant 0 : index
    %1 = vector.load %arg3[%c0_1, %c0_2] : memref<256x256xbf16, #tpu.memory_space<vmem>>, vector<256x256xbf16>
    %cst = arith.constant dense<0.000000e+00> : vector<34x256xf32>
    %2 = tpu.matmul %0, %1, %cst {dimension_numbers = #tpu.dot_dimension_numbers<[1], [0], [0], [1], [0, 0, 1, 1], [], []>} : vector<34x256xbf16>, vector<256x256xbf16>, vector<34x256xf32> -> vector<34x256xf32>
    %c0_3 = arith.constant 0 : index
    %c0_4 = arith.constant 0 : index
    %3 = vector.load %arg4[%c0_3, %c0_4] : memref<1x256xf32, #tpu.memory_space<vmem>>, vector<1x256xf32>
    %4 = vector.broadcast %3 : vector<1x256xf32> to vector<34x256xf32>
    %5 = arith.addf %2, %4 : vector<34x256xf32>
    %c0_5 = arith.constant 0 : index
    %c0_6 = arith.constant 0 : index
    %6 = vector.load %arg5[%c0_5, %c0_6] : memref<34x256xbf16, #tpu.memory_space<vmem>>, vector<34x256xbf16>
    %7 = arith.extf %6 : vector<34x256xbf16> to vector<34x256xf32>
    %8 = arith.addf %5, %7 : vector<34x256xf32>
    %9 = arith.truncf %8 : vector<34x256xf32> to vector<34x256xbf16>
    %c0_7 = arith.constant 0 : index
    %c0_8 = arith.constant 0 : index
    %10 = vector.load %arg6[%c0_7, %c0_8] : memref<34x256xbf16, #tpu.memory_space<vmem>>, vector<34x256xbf16>
    tpu.vector_store %arg6[%c0_7, %c0_8], %9 {strides = array<i32>} : memref<34x256xbf16, #tpu.memory_space<vmem>>, vector<34x256xbf16>,
    return
  }
  func.func @transform_0(%arg0: i32, %arg1: i32) -> (i32, i32) {
    %c0_i32 = arith.constant 0 : i32
    %c0_i32_0 = arith.constant 0 : i32
    return %arg0, %c0_i32 : i32, i32
  }
  func.func @transform_1(%arg0: i32, %arg1: i32) -> (i32, i32) {
    %c0_i32 = arith.constant 0 : i32
    %c0_i32_0 = arith.constant 0 : i32
    return %c0_i32, %arg1 : i32, i32
  }
  func.func @transform_2(%arg0: i32, %arg1: i32) -> (i32, i32) {
    %c0_i32 = arith.constant 0 : i32
    %c0_i32_0 = arith.constant 0 : i32
    return %c0_i32, %arg1 : i32, i32
  }
  func.func @transform_3(%arg0: i32, %arg1: i32) -> (i32, i32) {
    %c0_i32 = arith.constant 0 : i32
    return %arg0, %arg1 : i32, i32
  }
  func.func @transform_4(%arg0: i32, %arg1: i32) -> (i32, i32) {
    %c0_i32 = arith.constant 0 : i32
    return %arg0, %arg1 : i32, i32
  }
}

module attributes {stable_mosaic.version = 11 : i64} {
  func.func @_linear_fused_kernel(%arg0: i32, %arg1: i32, %arg2: memref<34x256xbf16, #tpu.memory_space<vmem>>, %arg3: memref<256x512xbf16, #tpu.memory_space<vmem>>, %arg4: memref<1x512xf32, #tpu.memory_space<vmem>>, %arg5: memref<1x256xf32, #tpu.memory_space<vmem>>, %arg6: memref<1x256xf32, #tpu.memory_space<vmem>>, %arg7: memref<34x512xbf16, #tpu.memory_space<vmem>>) attributes {dimension_semantics = [#tpu.dimension_semantics<parallel>, #tpu.dimension_semantics<parallel>], iteration_bounds = array<i64: 1, 1>, scalar_prefetch = 0 : i64, scratch_operands = 0 : i64, tpu.core_type = #tpu.core_type<tc>, window_params = [{transform_indices = @transform_0, window_bounds = array<i64: 34, 256>}, {transform_indices = @transform_1, window_bounds = array<i64: 256, 512>}, {transform_indices = @transform_2, window_bounds = array<i64: 1, 512>}, {pipeline_mode = #tpu.pipeline_mode<synchronous>, transform_indices = @transform_3, window_bounds = array<i64: 1, 256>}, {pipeline_mode = #tpu.pipeline_mode<synchronous>, transform_indices = @transform_4, window_bounds = array<i64: 1, 256>}, {transform_indices = @transform_5, window_bounds = array<i64: 34, 512>}]} {
    %c0 = arith.constant 0 : index
    %c0_0 = arith.constant 0 : index
    %0 = vector.load %arg2[%c0, %c0_0] : memref<34x256xbf16, #tpu.memory_space<vmem>>, vector<34x256xbf16>
    %1 = arith.extf %0 : vector<34x256xbf16> to vector<34x256xf32>
    %cst = arith.constant dense<0.000000e+00> : vector<34xf32>
    %2 = vector.multi_reduction <add>, %1, %cst [1] : vector<34x256xf32> to vector<34xf32>
    %3 = vector.shape_cast %2 : vector<34xf32> to vector<34x1xf32>
    %cst_1 = arith.constant 2.560000e+02 : f32
    %4 = vector.broadcast %cst_1 : f32 to vector<34x1xf32>
    %5 = arith.divf %3, %4 : vector<34x1xf32>
    %6 = vector.broadcast %5 : vector<34x1xf32> to vector<34x256xf32>
    %7 = arith.subf %1, %6 : vector<34x256xf32>
    %8 = arith.mulf %7, %7 : vector<34x256xf32>
    %cst_2 = arith.constant dense<0.000000e+00> : vector<34xf32>
    %9 = vector.multi_reduction <add>, %8, %cst_2 [1] : vector<34x256xf32> to vector<34xf32>
    %10 = vector.shape_cast %9 : vector<34xf32> to vector<34x1xf32>
    %cst_3 = arith.constant 2.560000e+02 : f32
    %11 = vector.broadcast %cst_3 : f32 to vector<34x1xf32>
    %12 = arith.divf %10, %11 : vector<34x1xf32>
    %cst_4 = arith.constant 9.99999974E-6 : f32
    %13 = vector.broadcast %cst_4 : f32 to vector<34x1xf32>
    %14 = arith.addf %12, %13 : vector<34x1xf32>
    %15 = math.rsqrt %14 : vector<34x1xf32>
    %16 = vector.broadcast %15 : vector<34x1xf32> to vector<34x256xf32>
    %17 = arith.mulf %7, %16 : vector<34x256xf32>
    %c0_5 = arith.constant 0 : index
    %c0_6 = arith.constant 0 : index
    %18 = vector.load %arg5[%c0_5, %c0_6] : memref<1x256xf32, #tpu.memory_space<vmem>>, vector<1x256xf32>
    %19 = vector.broadcast %18 : vector<1x256xf32> to vector<34x256xf32>
    %20 = arith.mulf %17, %19 : vector<34x256xf32>
    %c0_7 = arith.constant 0 : index
    %c0_8 = arith.constant 0 : index
    %21 = vector.load %arg6[%c0_7, %c0_8] : memref<1x256xf32, #tpu.memory_space<vmem>>, vector<1x256xf32>
    %22 = vector.broadcast %21 : vector<1x256xf32> to vector<34x256xf32>
    %23 = arith.addf %20, %22 : vector<34x256xf32>
    %24 = arith.truncf %23 : vector<34x256xf32> to vector<34x256xbf16>
    %c0_9 = arith.constant 0 : index
    %c0_10 = arith.constant 0 : index
    %25 = vector.load %arg3[%c0_9, %c0_10] : memref<256x512xbf16, #tpu.memory_space<vmem>>, vector<256x512xbf16>
    %cst_11 = arith.constant dense<0.000000e+00> : vector<34x512xf32>
    %26 = tpu.matmul %24, %25, %cst_11 {dimension_numbers = #tpu.dot_dimension_numbers<[1], [0], [0], [1], [0, 0, 1, 1], [], []>} : vector<34x256xbf16>, vector<256x512xbf16>, vector<34x512xf32> -> vector<34x512xf32>
    %c0_12 = arith.constant 0 : index
    %c0_13 = arith.constant 0 : index
    %27 = vector.load %arg4[%c0_12, %c0_13] : memref<1x512xf32, #tpu.memory_space<vmem>>, vector<1x512xf32>
    %28 = vector.broadcast %27 : vector<1x512xf32> to vector<34x512xf32>
    %29 = arith.addf %26, %28 : vector<34x512xf32>
    %cst_14 = arith.constant 5.000000e-01 : f32
    %30 = vector.broadcast %cst_14 : f32 to vector<34x512xf32>
    %31 = arith.mulf %30, %29 : vector<34x512xf32>
    %cst_15 = arith.constant 4.471500e-02 : f32
    %32 = vector.broadcast %cst_15 : f32 to vector<34x512xf32>
    %33 = arith.mulf %32, %29 : vector<34x512xf32>
    %34 = arith.mulf %33, %29 : vector<34x512xf32>
    %35 = arith.mulf %34, %29 : vector<34x512xf32>
    %36 = arith.addf %29, %35 : vector<34x512xf32>
    %cst_16 = arith.constant 0.797884583 : f32
    %37 = vector.broadcast %cst_16 : f32 to vector<34x512xf32>
    %38 = arith.mulf %37, %36 : vector<34x512xf32>
    %39 = math.tanh %38 : vector<34x512xf32>
    %cst_17 = arith.constant 1.000000e+00 : f32
    %40 = vector.broadcast %cst_17 : f32 to vector<34x512xf32>
    %41 = arith.addf %40, %39 : vector<34x512xf32>
    %42 = arith.mulf %31, %41 : vector<34x512xf32>
    %43 = arith.truncf %42 : vector<34x512xf32> to vector<34x512xbf16>
    %c0_18 = arith.constant 0 : index
    %c0_19 = arith.constant 0 : index
    %44 = vector.load %arg7[%c0_18, %c0_19] : memref<34x512xbf16, #tpu.memory_space<vmem>>, vector<34x512xbf16>
    tpu.vector_store %arg7[%c0_18, %c0_19], %43 {strides = array<i32>} : memref<34x512xbf16, #tpu.memory_space<vmem>>, vector<34x512xbf16>,
    return
  }
  func.func @transform_0(%arg0: i32, %arg1: i32) -> (i32, i32) {
    %c0_i32 = arith.constant 0 : i32
    %c0_i32_0 = arith.constant 0 : i32
    return %arg0, %c0_i32 : i32, i32
  }
  func.func @transform_1(%arg0: i32, %arg1: i32) -> (i32, i32) {
    %c0_i32 = arith.constant 0 : i32
    %c0_i32_0 = arith.constant 0 : i32
    return %c0_i32, %arg1 : i32, i32
  }
  func.func @transform_2(%arg0: i32, %arg1: i32) -> (i32, i32) {
    %c0_i32 = arith.constant 0 : i32
    %c0_i32_0 = arith.constant 0 : i32
    return %c0_i32, %arg1 : i32, i32
  }
  func.func @transform_3(%arg0: i32, %arg1: i32) -> (i32, i32) {
    %c0_i32 = arith.constant 0 : i32
    %c0_i32_0 = arith.constant 0 : i32
    %c0_i32_1 = arith.constant 0 : i32
    return %c0_i32, %c0_i32_0 : i32, i32
  }
  func.func @transform_4(%arg0: i32, %arg1: i32) -> (i32, i32) {
    %c0_i32 = arith.constant 0 : i32
    %c0_i32_0 = arith.constant 0 : i32
    %c0_i32_1 = arith.constant 0 : i32
    return %c0_i32, %c0_i32_0 : i32, i32
  }
  func.func @transform_5(%arg0: i32, %arg1: i32) -> (i32, i32) {
    %c0_i32 = arith.constant 0 : i32
    return %arg0, %arg1 : i32, i32
  }
}

module attributes {stable_mosaic.version = 11 : i64} {
  func.func @_linear_fused_kernel(%arg0: i32, %arg1: i32, %arg2: memref<34x512xbf16, #tpu.memory_space<vmem>>, %arg3: memref<512x256xbf16, #tpu.memory_space<vmem>>, %arg4: memref<1x256xf32, #tpu.memory_space<vmem>>, %arg5: memref<34x256xbf16, #tpu.memory_space<vmem>>, %arg6: memref<34x256xbf16, #tpu.memory_space<vmem>>) attributes {dimension_semantics = [#tpu.dimension_semantics<parallel>, #tpu.dimension_semantics<parallel>], iteration_bounds = array<i64: 1, 1>, scalar_prefetch = 0 : i64, scratch_operands = 0 : i64, tpu.core_type = #tpu.core_type<tc>, window_params = [{transform_indices = @transform_0, window_bounds = array<i64: 34, 512>}, {transform_indices = @transform_1, window_bounds = array<i64: 512, 256>}, {transform_indices = @transform_2, window_bounds = array<i64: 1, 256>}, {transform_indices = @transform_3, window_bounds = array<i64: 34, 256>}, {transform_indices = @transform_4, window_bounds = array<i64: 34, 256>}]} {
    %c0 = arith.constant 0 : index
    %c0_0 = arith.constant 0 : index
    %0 = vector.load %arg2[%c0, %c0_0] : memref<34x512xbf16, #tpu.memory_space<vmem>>, vector<34x512xbf16>
    %c0_1 = arith.constant 0 : index
    %c0_2 = arith.constant 0 : index
    %1 = vector.load %arg3[%c0_1, %c0_2] : memref<512x256xbf16, #tpu.memory_space<vmem>>, vector<512x256xbf16>
    %cst = arith.constant dense<0.000000e+00> : vector<34x256xf32>
    %2 = tpu.matmul %0, %1, %cst {dimension_numbers = #tpu.dot_dimension_numbers<[1], [0], [0], [1], [0, 0, 1, 1], [], []>} : vector<34x512xbf16>, vector<512x256xbf16>, vector<34x256xf32> -> vector<34x256xf32>
    %c0_3 = arith.constant 0 : index
    %c0_4 = arith.constant 0 : index
    %3 = vector.load %arg4[%c0_3, %c0_4] : memref<1x256xf32, #tpu.memory_space<vmem>>, vector<1x256xf32>
    %4 = vector.broadcast %3 : vector<1x256xf32> to vector<34x256xf32>
    %5 = arith.addf %2, %4 : vector<34x256xf32>
    %c0_5 = arith.constant 0 : index
    %c0_6 = arith.constant 0 : index
    %6 = vector.load %arg5[%c0_5, %c0_6] : memref<34x256xbf16, #tpu.memory_space<vmem>>, vector<34x256xbf16>
    %7 = arith.extf %6 : vector<34x256xbf16> to vector<34x256xf32>
    %8 = arith.addf %5, %7 : vector<34x256xf32>
    %9 = arith.truncf %8 : vector<34x256xf32> to vector<34x256xbf16>
    %c0_7 = arith.constant 0 : index
    %c0_8 = arith.constant 0 : index
    %10 = vector.load %arg6[%c0_7, %c0_8] : memref<34x256xbf16, #tpu.memory_space<vmem>>, vector<34x256xbf16>
    tpu.vector_store %arg6[%c0_7, %c0_8], %9 {strides = array<i32>} : memref<34x256xbf16, #tpu.memory_space<vmem>>, vector<34x256xbf16>,
    return
  }
  func.func @transform_0(%arg0: i32, %arg1: i32) -> (i32, i32) {
    %c0_i32 = arith.constant 0 : i32
    %c0_i32_0 = arith.constant 0 : i32
    return %arg0, %c0_i32 : i32, i32
  }
  func.func @transform_1(%arg0: i32, %arg1: i32) -> (i32, i32) {
    %c0_i32 = arith.constant 0 : i32
    %c0_i32_0 = arith.constant 0 : i32
    return %c0_i32, %arg1 : i32, i32
  }
  func.func @transform_2(%arg0: i32, %arg1: i32) -> (i32, i32) {
    %c0_i32 = arith.constant 0 : i32
    %c0_i32_0 = arith.constant 0 : i32
    return %c0_i32, %arg1 : i32, i32
  }
  func.func @transform_3(%arg0: i32, %arg1: i32) -> (i32, i32) {
    %c0_i32 = arith.constant 0 : i32
    return %arg0, %arg1 : i32, i32
  }
  func.func @transform_4(%arg0: i32, %arg1: i32) -> (i32, i32) {
    %c0_i32 = arith.constant 0 : i32
    return %arg0, %arg1 : i32, i32
  }
}

module attributes {stable_mosaic.version = 11 : i64} {
  func.func @_linear_fused_kernel(%arg0: i32, %arg1: i32, %arg2: memref<2x256xbf16, #tpu.memory_space<vmem>>, %arg3: memref<256x128xbf16, #tpu.memory_space<vmem>>, %arg4: memref<1x128xf32, #tpu.memory_space<vmem>>, %arg5: memref<1x256xf32, #tpu.memory_space<vmem>>, %arg6: memref<1x256xf32, #tpu.memory_space<vmem>>, %arg7: memref<2x128xf32, #tpu.memory_space<vmem>>) attributes {dimension_semantics = [#tpu.dimension_semantics<parallel>, #tpu.dimension_semantics<parallel>], iteration_bounds = array<i64: 1, 1>, scalar_prefetch = 0 : i64, scratch_operands = 0 : i64, tpu.core_type = #tpu.core_type<tc>, window_params = [{transform_indices = @transform_0, window_bounds = array<i64: 2, 256>}, {transform_indices = @transform_1, window_bounds = array<i64: 256, 128>}, {transform_indices = @transform_2, window_bounds = array<i64: 1, 128>}, {pipeline_mode = #tpu.pipeline_mode<synchronous>, transform_indices = @transform_3, window_bounds = array<i64: 1, 256>}, {pipeline_mode = #tpu.pipeline_mode<synchronous>, transform_indices = @transform_4, window_bounds = array<i64: 1, 256>}, {transform_indices = @transform_5, window_bounds = array<i64: 2, 128>}]} {
    %c0 = arith.constant 0 : index
    %c0_0 = arith.constant 0 : index
    %0 = vector.load %arg2[%c0, %c0_0] : memref<2x256xbf16, #tpu.memory_space<vmem>>, vector<2x256xbf16>
    %1 = arith.extf %0 : vector<2x256xbf16> to vector<2x256xf32>
    %cst = arith.constant dense<0.000000e+00> : vector<2xf32>
    %2 = vector.multi_reduction <add>, %1, %cst [1] : vector<2x256xf32> to vector<2xf32>
    %3 = vector.shape_cast %2 : vector<2xf32> to vector<2x1xf32>
    %cst_1 = arith.constant 2.560000e+02 : f32
    %4 = vector.broadcast %cst_1 : f32 to vector<2x1xf32>
    %5 = arith.divf %3, %4 : vector<2x1xf32>
    %6 = vector.broadcast %5 : vector<2x1xf32> to vector<2x256xf32>
    %7 = arith.subf %1, %6 : vector<2x256xf32>
    %8 = arith.mulf %7, %7 : vector<2x256xf32>
    %cst_2 = arith.constant dense<0.000000e+00> : vector<2xf32>
    %9 = vector.multi_reduction <add>, %8, %cst_2 [1] : vector<2x256xf32> to vector<2xf32>
    %10 = vector.shape_cast %9 : vector<2xf32> to vector<2x1xf32>
    %cst_3 = arith.constant 2.560000e+02 : f32
    %11 = vector.broadcast %cst_3 : f32 to vector<2x1xf32>
    %12 = arith.divf %10, %11 : vector<2x1xf32>
    %cst_4 = arith.constant 9.99999974E-6 : f32
    %13 = vector.broadcast %cst_4 : f32 to vector<2x1xf32>
    %14 = arith.addf %12, %13 : vector<2x1xf32>
    %15 = math.rsqrt %14 : vector<2x1xf32>
    %16 = vector.broadcast %15 : vector<2x1xf32> to vector<2x256xf32>
    %17 = arith.mulf %7, %16 : vector<2x256xf32>
    %c0_5 = arith.constant 0 : index
    %c0_6 = arith.constant 0 : index
    %18 = vector.load %arg5[%c0_5, %c0_6] : memref<1x256xf32, #tpu.memory_space<vmem>>, vector<1x256xf32>
    %19 = vector.broadcast %18 : vector<1x256xf32> to vector<2x256xf32>
    %20 = arith.mulf %17, %19 : vector<2x256xf32>
    %c0_7 = arith.constant 0 : index
    %c0_8 = arith.constant 0 : index
    %21 = vector.load %arg6[%c0_7, %c0_8] : memref<1x256xf32, #tpu.memory_space<vmem>>, vector<1x256xf32>
    %22 = vector.broadcast %21 : vector<1x256xf32> to vector<2x256xf32>
    %23 = arith.addf %20, %22 : vector<2x256xf32>
    %24 = arith.truncf %23 : vector<2x256xf32> to vector<2x256xbf16>
    %c0_9 = arith.constant 0 : index
    %c0_10 = arith.constant 0 : index
    %25 = vector.load %arg3[%c0_9, %c0_10] : memref<256x128xbf16, #tpu.memory_space<vmem>>, vector<256x128xbf16>
    %cst_11 = arith.constant dense<0.000000e+00> : vector<2x128xf32>
    %26 = tpu.matmul %24, %25, %cst_11 {dimension_numbers = #tpu.dot_dimension_numbers<[1], [0], [0], [1], [0, 0, 1, 1], [], []>} : vector<2x256xbf16>, vector<256x128xbf16>, vector<2x128xf32> -> vector<2x128xf32>
    %c0_12 = arith.constant 0 : index
    %c0_13 = arith.constant 0 : index
    %27 = vector.load %arg4[%c0_12, %c0_13] : memref<1x128xf32, #tpu.memory_space<vmem>>, vector<1x128xf32>
    %28 = vector.broadcast %27 : vector<1x128xf32> to vector<2x128xf32>
    %29 = arith.addf %26, %28 : vector<2x128xf32>
    %c0_14 = arith.constant 0 : index
    %c0_15 = arith.constant 0 : index
    %30 = vector.load %arg7[%c0_14, %c0_15] : memref<2x128xf32, #tpu.memory_space<vmem>>, vector<2x128xf32>
    tpu.vector_store %arg7[%c0_14, %c0_15], %29 {strides = array<i32>} : memref<2x128xf32, #tpu.memory_space<vmem>>, vector<2x128xf32>,
    return
  }
  func.func @transform_0(%arg0: i32, %arg1: i32) -> (i32, i32) {
    %c0_i32 = arith.constant 0 : i32
    %c0_i32_0 = arith.constant 0 : i32
    return %arg0, %c0_i32 : i32, i32
  }
  func.func @transform_1(%arg0: i32, %arg1: i32) -> (i32, i32) {
    %c0_i32 = arith.constant 0 : i32
    %c0_i32_0 = arith.constant 0 : i32
    return %c0_i32, %arg1 : i32, i32
  }
  func.func @transform_2(%arg0: i32, %arg1: i32) -> (i32, i32) {
    %c0_i32 = arith.constant 0 : i32
    %c0_i32_0 = arith.constant 0 : i32
    return %c0_i32, %arg1 : i32, i32
  }
  func.func @transform_3(%arg0: i32, %arg1: i32) -> (i32, i32) {
    %c0_i32 = arith.constant 0 : i32
    %c0_i32_0 = arith.constant 0 : i32
    %c0_i32_1 = arith.constant 0 : i32
    return %c0_i32, %c0_i32_0 : i32, i32
  }
  func.func @transform_4(%arg0: i32, %arg1: i32) -> (i32, i32) {
    %c0_i32 = arith.constant 0 : i32
    %c0_i32_0 = arith.constant 0 : i32
    %c0_i32_1 = arith.constant 0 : i32
    return %c0_i32, %c0_i32_0 : i32, i32
  }
  func.func @transform_5(%arg0: i32, %arg1: i32) -> (i32, i32) {
    %c0_i32 = arith.constant 0 : i32
    return %arg0, %arg1 : i32, i32
  }
}

</mosaic_0001>

<llo_original>
// kernel: vit_forward.12
$region0: #{vit_forward.12}
  #allocation0 [shape = 'u32[]', space=smem, size = 0x4, offset = 0x4, fixed_abs, tag = 'smem constant byte address 0x4 - core index']
  #allocation1 [shape = 'u32[144,128]{1,0:T(1,128)}', space=vmem, size = 0x12000, scoped, tag = 'internal scratch']
  %s0 = inlined_call_operand.vmem [shape: bf16[32,48], index: 0, kind: input, shape index: {}]
  %s1 = inlined_call_operand.vmem [shape: bf16[48,256], index: 1, kind: input, shape index: {}]
  %s2 = inlined_call_operand.vmem [shape: f32[1,256], index: 2, kind: input, shape index: {}]
  %s3 = inlined_call_operand.vmem [shape: bf16[32,256], index: 3, kind: output, shape index: {}]
  %s4 = sld [smem:[#allocation0]]
  $region22: #{vit_forward.12} parent=0
    _
  %s6 = ssub.s32 1, %s4
  %s7 = scalar_select 0, %s6, %s4
  // Predicated region
  $region2: #{vit_forward.12} parent=0 // pred_check
    _
  $region3: #{vit_forward.12} parent=0 // pred_check_branch
    %9 = sbr.rel (0) target = $region5
  $region4: #{vit_forward.12} parent=0 // pred_region
    _
  $region5: #{vit_forward.12} parent=0 // pred_fallthru
    _
  // Predicated region
  $region6: #{vit_forward.12} parent=0 // pred_check
    _
  $region7: #{vit_forward.12} parent=0 // pred_check_branch
    %11 = sbr.rel (0) target = $region9
  $region8: #{vit_forward.12} parent=0 // pred_region
    _
  $region9: #{vit_forward.12} parent=0 // pred_fallthru
    _
  // Predicated region
  $region10: #{vit_forward.12} parent=0 // pred_check
    _
  $region11: #{vit_forward.12} parent=0 // pred_check_branch
    %13 = sbr.rel (0) target = $region13
  $region12: #{vit_forward.12} parent=0 // pred_region
    _
  $region13: #{vit_forward.12} parent=0 // pred_fallthru
    _
  %v15 = vld [vmem:[%s0] sm:$0xf]
  %v16 = vld [vmem:[%s0 + $0x4] sm:$0xf]
  %v17 = vld [vmem:[%s0 + $0x8] sm:$0xf]
  %v18 = vld [vmem:[%s0 + $0xc] sm:$0xf]
  %v19 = vld [vmem:[%s1] sm:$0xff]
  %v20 = vld [vmem:[%s1 + $0x8] sm:$0xff]
  %v21 = vld [vmem:[%s1 + $0x10] sm:$0xff]
  %v22 = vld [vmem:[%s1 + $0x18] sm:$0xff]
  %v23 = vld [vmem:[%s1 + $0x20] sm:$0xff]
  %v24 = vld [vmem:[%s1 + $0x28] sm:$0xff]
  %v25 = vld [vmem:[%s2] sm:$0x3]
  %v27 = vlaneseq
  %v28 = vshrl.u32 %v27, 7
  %v29 = vsub.s32 0, %v28
  %v30 = vrot.slane %v25, %v29
  %v31 = vlaneseq
  %v32 = vshrl.u32 %v31, 7
  %v33 = vsub.s32 1, %v32
  %v34 = vrot.slane %v25, %v33
  %v41 = vunpack.c.l.b16 %v15
  %v42 = vunpack.c.l.b16 %v16
  %v43 = vunpack.c.l.b16 %v17
  %v44 = vunpack.c.l.b16 %v18
  %v45 = vpack.c.b16 %v42, %v41
  %v46 = vpack.c.b16 %v44, %v43
  %v53 = vunpack.c.l.b16 %v19
  %v54 = vunpack.c.h.b16 %v19
  %v55 = vunpack.c.l.b16 %v20
  %v56 = vunpack.c.h.b16 %v20
  %v57 = vunpack.c.l.b16 %v21
  %v58 = vunpack.c.h.b16 %v21
  %v59 = vunpack.c.l.b16 %v22
  %v60 = vunpack.c.h.b16 %v22
  %v61 = vunpack.c.l.b16 %v23
  %v62 = vunpack.c.h.b16 %v23
  %v63 = vunpack.c.l.b16 %v24
  %v64 = vunpack.c.h.b16 %v24
  %v65 = vpack.c.b16 %v55, %v53
  %v66 = vpack.c.b16 %v56, %v54
  %v67 = vpack.c.b16 %v59, %v57
  %v68 = vpack.c.b16 %v60, %v58
  %v69 = vpack.c.b16 %v63, %v61
  %v70 = vpack.c.b16 %v64, %v62
  %vm77 = vcmask 392192
  %v79 = vsel %vm77, %v45, 0
  %v82 = vsel %vm77, %v46, 0
  %84 = vmatprep.subr.bf16.mxu0 %v66
  %85 = vmatpush1.bf16.msra.mxu0 %v65
  %86 = vmatprep.subr.bf16.mxu0 %v68
  %87 = vmatpush1.bf16.msra.mxu0 %v67
  %88 = vmatprep.subr.bf16.mxu0 %v70
  %89 = vmatpush1.bf16.msra.mxu0 %v69
  %90 = vmatprep.subr.bf16.mxu0 0
  %91 = vmatpush1.bf16.msra.mxu0 0
  %92 = vmatprep.subr.bf16.mxu0 0
  %93 = vmatpush1.bf16.msra.mxu0 0
  %94 = vmatprep.subr.bf16.mxu0 0
  %95 = vmatpush1.bf16.msra.mxu0 0
  %96 = vmatprep.subr.bf16.mxu0 0
  %97 = vmatpush1.bf16.msra.mxu0 0
  %98 = vmatprep.subr.bf16.mxu0 0
  %99 = vmatpush1.bf16.msra.mxu0 0
  %100 = vmatprep.subr.bf16.mxu0 0
  %101 = vmatpush1.bf16.msra.mxu0 0
  %102 = vmatprep.subr.bf16.mxu0 0
  %103 = vmatpush1.bf16.msra.mxu0 0
  %104 = vmatprep.subr.bf16.mxu0 0
  %105 = vmatpush1.bf16.msra.mxu0 0
  %106 = vmatprep.subr.bf16.mxu0 0
  %107 = vmatpush1.bf16.msra.mxu0 0
  %108 = vmatprep.subr.bf16.mxu0 0
  %109 = vmatpush1.bf16.msra.mxu0 0
  %110 = vmatprep.subr.bf16.mxu0 0
  %111 = vmatpush1.bf16.msra.mxu0 0
  %112 = vmatprep.subr.bf16.mxu0 0
  %113 = vmatpush1.bf16.msra.mxu0 0
  %114 = vmatprep.subr.bf16.mxu0 0
  %115 = vmatpush1.bf16.msra.mxu0 0
  %116 = vmatprep.mubr.bf16.mxu0 0
  %117 = vmatmul.mubr.bf16.gmra.mrb[0].mxu0 %v79
  %v118 = vpop.f32.mrb[0].mxu0
  %v119 = vadd.f32 %v30, %v118
  %v120 = vpop.f32.mrb[0].mxu0
  %v121 = vadd.f32 %v34, %v120
  %v122 = vpop.f32.mrb[0].mxu0
  %v123 = vadd.f32 %v30, %v122
  %v124 = vpop.f32.mrb[0].mxu0
  %v125 = vadd.f32 %v34, %v124
  %126 = vmatprep.mubr.bf16.mxu0 0
  %127 = vmatmul.mubr.bf16.gmra.mrb[0].mxu0 %v82
  %v128 = vpop.f32.mrb[0].mxu0
  %v129 = vadd.f32 %v30, %v128
  %v130 = vpop.f32.mrb[0].mxu0
  %v131 = vadd.f32 %v34, %v130
  %v132 = vpop.f32.mrb[0].mxu0
  %v133 = vadd.f32 %v30, %v132
  %v134 = vpop.f32.mrb[0].mxu0
  %v135 = vadd.f32 %v34, %v134
  %136 = vdwg.mxu0
  %v137 = vpack.c.bf16 %v123, %v119
  %v138 = vpack.c.bf16 %v125, %v121
  %v139 = vpack.c.bf16 %v133, %v129
  %v140 = vpack.c.bf16 %v135, %v131
  %v145 = vunpack.c.l.b16 %v137
  %v146 = vunpack.c.l.b16 %v138
  %v147 = vunpack.c.h.b16 %v137
  %v148 = vunpack.c.h.b16 %v138
  %v149 = vunpack.c.l.b16 %v139
  %v150 = vunpack.c.l.b16 %v140
  %v151 = vunpack.c.h.b16 %v139
  %v152 = vunpack.c.h.b16 %v140
  %v153 = vpack.c.b16 %v146, %v145
  %v154 = vpack.c.b16 %v148, %v147
  %v155 = vpack.c.b16 %v150, %v149
  %v156 = vpack.c.b16 %v152, %v151
  %161 = vst [vmem:[%s3] sm:$0xff] %v153
  %162 = vst [vmem:[%s3 + $0x8] sm:$0xff] %v154
  %163 = vst [vmem:[%s3 + $0x10] sm:$0xff] %v155
  %164 = vst [vmem:[%s3 + $0x18] sm:$0xff] %v156
  // Predicated region
  $region14: #{vit_forward.12} parent=0 // pred_check
    _
  $region15: #{vit_forward.12} parent=0 // pred_check_branch
    %166 = sbr.rel (0) target = $region17
  $region16: #{vit_forward.12} parent=0 // pred_region
    _
  $region17: #{vit_forward.12} parent=0 // pred_fallthru
    _
  // Predicated region
  $region18: #{vit_forward.12} parent=0 // pred_check
    _
  $region19: #{vit_forward.12} parent=0 // pred_check_branch
    %168 = sbr.rel (0) target = $region21
  $region20: #{vit_forward.12} parent=0 // pred_region
    _
  $region21: #{vit_forward.12} parent=0 // pred_fallthru
    _

// kernel: vit_forward.14
$region0: #{vit_forward.14}
  #allocation0 [shape = 'u32[]', space=smem, size = 0x4, offset = 0x4, fixed_abs, tag = 'smem constant byte address 0x4 - core index']
  #allocation1 [shape = 'u32[144,128]{1,0:T(1,128)}', space=vmem, size = 0x12000, scoped, tag = 'internal scratch']
  %s0 = inlined_call_operand.vmem [shape: bf16[2,17,768], index: 0, kind: input, shape index: {}, may-alias: {0,1,2}]
  %s1 = inlined_call_operand.vmem [shape: bf16[2,17,768], index: 1, kind: input, shape index: {}, may-alias: {0,1,2}]
  %s2 = inlined_call_operand.vmem [shape: bf16[2,17,768], index: 2, kind: input, shape index: {}, may-alias: {0,1,2}]
  %s3 = inlined_call_operand.vmem [shape: bf16[2,17,256], index: 3, kind: output, shape index: {}]
  %s4 = sld [smem:[#allocation0]]
  $region205: #{vit_forward.14} parent=0
    _
  %s6 = ssub.s32 1, %s4
  %s7 = scalar_select 0, %s6, %s4
  $region1: #{vit_forward.14} parent=0
    #allocation2 [shape = 'u8[12288]{0}', space=vmem, size = 0x3000, scoped, tag = 'input window, operand 0']
    #allocation3 [shape = 'u8[12288]{0}', space=vmem, size = 0x3000, scoped, tag = 'input window, operand 1']
    #allocation4 [shape = 'u8[12288]{0}', space=vmem, size = 0x3000, scoped, tag = 'input window, operand 2']
    #allocation5 [shape = 'u8[12288]{0}', space=vmem, size = 0x3000, scoped, tag = 'output window, operand 0']
    loop: start=0, step=1, limit=6
    $region2: #{vit_forward.14} parent=1 // loop_pre_header
      _
    $region3: #{vit_forward.14} parent=1 // loop_header
      %s9 = sphi 0, %s13
      %p10 = scmp.ge.s32.totalorder %s9, 6
      %s16 = sphi 0, %s28
      %s17 = sphi 0, %s24
      %s18 = sphi 0, %s16
      %s19 = sphi 0, %s17
      %s20 = sphi 0, %s18
      %s21 = sphi 0, %s19
      %s33 = sphi 0, %s35
      %s36 = sphi 0, %s33
      %s37 = sphi 0, %s36
      %s53 = sphi 0, %s37
      %s63 = sphi 0, %s65
      %s66 = sphi 0, %s63
      %s67 = sphi 0, %s66
      %s83 = sphi 0, %s67
      %s93 = sphi 0, %s95
      %s96 = sphi 0, %s93
      %s97 = sphi 0, %s96
      %s113 = sphi 0, %s97
      %s121 = sphi 0, %s123
      %s124 = sphi 0, %s121
      %s125 = sphi 0, %s124
      %s141 = sphi 0, %s125
    $region4: #{vit_forward.14} parent=1 // loop_header_branch
      %12 = sbr.rel (%p10) target = $region8
    $region5: #{vit_forward.14} parent=1 // loop_body
      %s14 = ssub.s32 %s9, 1
      %s15 = ssub.s32 %s9, 2
      %s22 = sadd.s32 1, %s17
      %p23 = scmp.ge.s32.totalorder %s22, 2
      %s24 = scalar_select %p23, 0, %s22
      %s25 = sadd.s32 1, %s16
      %s26 = scalar_select %p23, %s25, %s16
      %p27 = scmp.ge.s32.totalorder %s26, 2
      %s28 = scalar_select %p27, 0, %s26
      %s29 = ssub.s32 %s16, %s28
      %s30 = ssub.s32 %s17, %s24
      %s31 = sor.u32 %s29, %s30
      %p32 = scmp.eq.s32.totalorder %s31, 0
      %s34 = sadd.s32 %s33, 1
      %s35 = scalar_select %p32, %s33, %s34
      %p38 = pneg %p32
      %p39 = scmp.eq.s32.totalorder %s9, 3
      %p40 = por %p38, %p39
      %p41 = scmp.ne.s32.totalorder %s33, %s36
      %p42 = scmp.eq.s32.totalorder %s9, 0
      %p43 = por %p41, %p42
      %p44 = scmp.ne.s32.totalorder %s33, %s36
      %p45 = scmp.eq.s32.totalorder %s14, 3
      %p46 = por %p44, %p45
      %p47 = scmp.ne.s32.totalorder %s36, %s37
      %p48 = scmp.eq.s32.totalorder %s14, 0
      %p49 = por %p47, %p48
      %p50 = scmp.ne.s32.totalorder %s36, %s37
      %p51 = scmp.eq.s32.totalorder %s15, 3
      %p52 = por %p50, %p51
      %p54 = scmp.ne.s32.totalorder %s37, %s53
      %p55 = scmp.eq.s32.totalorder %s15, 0
      %p56 = por %p54, %p55
      %s57 = sadd.s32 %s17, 2
      %s58 = sadd.s32 %s24, 2
      %s59 = ssub.s32 %s16, %s28
      %s60 = ssub.s32 %s57, %s58
      %s61 = sor.u32 %s59, %s60
      %p62 = scmp.eq.s32.totalorder %s61, 0
      %s64 = sadd.s32 %s63, 1
      %s65 = scalar_select %p62, %s63, %s64
      %p68 = pneg %p62
      %p69 = scmp.eq.s32.totalorder %s9, 3
      %p70 = por %p68, %p69
      %p71 = scmp.ne.s32.totalorder %s63, %s66
      %p72 = scmp.eq.s32.totalorder %s9, 0
      %p73 = por %p71, %p72
      %p74 = scmp.ne.s32.totalorder %s63, %s66
      %p75 = scmp.eq.s32.totalorder %s14, 3
      %p76 = por %p74, %p75
      %p77 = scmp.ne.s32.totalorder %s66, %s67
      %p78 = scmp.eq.s32.totalorder %s14, 0
      %p79 = por %p77, %p78
      %p80 = scmp.ne.s32.totalorder %s66, %s67
      %p81 = scmp.eq.s32.totalorder %s15, 3
      %p82 = por %p80, %p81
      %p84 = scmp.ne.s32.totalorder %s67, %s83
      %p85 = scmp.eq.s32.totalorder %s15, 0
      %p86 = por %p84, %p85
      %s87 = sadd.s32 %s17, 4
      %s88 = sadd.s32 %s24, 4
      %s89 = ssub.s32 %s16, %s28
      %s90 = ssub.s32 %s87, %s88
      %s91 = sor.u32 %s89, %s90
      %p92 = scmp.eq.s32.totalorder %s91, 0
      %s94 = sadd.s32 %s93, 1
      %s95 = scalar_select %p92, %s93, %s94
      %p98 = pneg %p92
      %p99 = scmp.eq.s32.totalorder %s9, 3
      %p100 = por %p98, %p99
      %p101 = scmp.ne.s32.totalorder %s93, %s96
      %p102 = scmp.eq.s32.totalorder %s9, 0
      %p103 = por %p101, %p102
      %p104 = scmp.ne.s32.totalorder %s93, %s96
      %p105 = scmp.eq.s32.totalorder %s14, 3
      %p106 = por %p104, %p105
      %p107 = scmp.ne.s32.totalorder %s96, %s97
      %p108 = scmp.eq.s32.totalorder %s14, 0
      %p109 = por %p107, %p108
      %p110 = scmp.ne.s32.totalorder %s96, %s97
      %p111 = scmp.eq.s32.totalorder %s15, 3
      %p112 = por %p110, %p111
      %p114 = scmp.ne.s32.totalorder %s97, %s113
      %p115 = scmp.eq.s32.totalorder %s15, 0
      %p116 = por %p114, %p115
      %s117 = ssub.s32 %s16, %s28
      %s118 = ssub.s32 %s17, %s24
      %s119 = sor.u32 %s117, %s118
      %p120 = scmp.eq.s32.totalorder %s119, 0
      %s122 = sadd.s32 %s121, 1
      %s123 = scalar_select %p120, %s121, %s122
      %p126 = pneg %p120
      %p127 = scmp.eq.s32.totalorder %s9, 3
      %p128 = por %p126, %p127
      %p129 = scmp.ne.s32.totalorder %s121, %s124
      %p130 = scmp.eq.s32.totalorder %s9, 0
      %p131 = por %p129, %p130
      %p132 = scmp.ne.s32.totalorder %s121, %s124
      %p133 = scmp.eq.s32.totalorder %s14, 3
      %p134 = por %p132, %p133
      %p135 = scmp.ne.s32.totalorder %s124, %s125
      %p136 = scmp.eq.s32.totalorder %s14, 0
      %p137 = por %p135, %p136
      %p138 = scmp.ne.s32.totalorder %s124, %s125
      %p139 = scmp.eq.s32.totalorder %s15, 3
      %p140 = por %p138, %p139
      %p142 = scmp.ne.s32.totalorder %s125, %s141
      %p143 = scmp.eq.s32.totalorder %s15, 0
      %p144 = por %p142, %p143
      %p145 = scmp.le.s32.totalorder 1, %s9
      %p146 = scmp.lt.s32.totalorder %s9, 5
      %p147 = pnand %p145, %p146
      %p148 = pneg %p147
      // Predicated region
      $region9: #{vit_forward.14} parent=5 // pred_check
        _
      $region10: #{vit_forward.14} parent=5 // pred_check_branch
        %150 = sbr.rel (%p147) target = $region12
      $region11: #{vit_forward.14} parent=5 // pred_region
        %s151 = ssub.s32 %s9, 1
      $region12: #{vit_forward.14} parent=5 // pred_fallthru
        _
      %p152 = scmp.lt.s32.totalorder %s9, 4
      // Predicated region
      $region13: #{vit_forward.14} parent=5 // pred_check
        %p153 = pneg %p152
      $region14: #{vit_forward.14} parent=5 // pred_check_branch
        %155 = sbr.rel (%p153) target = $region16
      $region15: #{vit_forward.14} parent=5 // pred_region
        // Predicated region
        $region17: #{vit_forward.14} parent=15 // pred_check
          %p156 = pneg %p43
        $region18: #{vit_forward.14} parent=15 // pred_check_branch
          %158 = sbr.rel (%p156) target = $region20
        $region19: #{vit_forward.14} parent=15 // pred_region
          %s159 = sand.u32 %s33, 1
          %s160 = sand.u32 %s33, 1
          %s161 = smul.addr %s160, 12
          %s162 = scalar_lea.vmem [#allocation2], %s161
          %s163 = smul.addr %s16, 18
          %s164 = sadd.s32 %s17, %s163
          %s165 = smul.addr %s164, 4
          %s166 = scalar_lea.vmem %s0, %s165
          // Predicated region
          $region21: #{vit_forward.14} parent=19 // pred_check
            _
          $region22: #{vit_forward.14} parent=19 // pred_check_branch
            %168 = sbr.rel (0) target = $region24
          $region23: #{vit_forward.14} parent=19 // pred_region
            // Predicated region
            $region25: #{vit_forward.14} parent=23 // pred_check
              _
            $region26: #{vit_forward.14} parent=23 // pred_check_branch
              %170 = sbr.rel target = $region28
            $region27: #{vit_forward.14} parent=23 // pred_region
              // Predicated region
              $region40: #{vit_forward.14} parent=27 // pred_check
                _
              $region41: #{vit_forward.14} parent=27 // pred_check_branch
                %189 = sbr.rel (0) target = $region43
              $region42: #{vit_forward.14} parent=27 // pred_region
                loop: start=0, step=1, limit=1
                $region44: #{vit_forward.14} parent=42 // loop_pre_header
                  _
                $region45: #{vit_forward.14} parent=42 // loop_header
                  %s191 = sphi 0, %s195
                  %p192 = scmp.ge.s32.totalorder %s191, 1
                  %s196 = sphi %s166, %s166
                  %s197 = sphi %s162, %s162
                $region46: #{vit_forward.14} parent=42 // loop_header_branch
                  %194 = sbr.rel (%p192) target = $region50
                $region47: #{vit_forward.14} parent=42 // loop_body
                  _
                $region48: #{vit_forward.14} parent=42 // loop_footer
                  %s195 = sadd.s32 1, %s191
                $region49: #{vit_forward.14} parent=42 // loop_footer_branch
                  %190 = sbr.rel target = $region45
                $region50: #{vit_forward.14} parent=42 // loop_exit
                  _
                loop: start=0, step=1, limit=1
                $region51: #{vit_forward.14} parent=42 // loop_pre_header
                  _
                $region52: #{vit_forward.14} parent=42 // loop_header
                  %s200 = sphi 0, %s204
                  %p201 = scmp.ge.s32.totalorder %s200, 1
                  %s205 = sphi %s166, %s166
                  %s206 = sphi %s162, %s162
                $region53: #{vit_forward.14} parent=42 // loop_header_branch
                  %203 = sbr.rel (%p201) target = $region57
                $region54: #{vit_forward.14} parent=42 // loop_body
                  %v207 = vld [vmem:[%s205] sm:$0xf]
                  %208 = vst [vmem:[%s206] sm:$0xf] %v207
                  %v209 = vld [vmem:[%s205 + $0x18] sm:$0xf]
                  %210 = vst [vmem:[%s206 + $0x4] sm:$0xf] %v209
                  %v211 = vld [vmem:[%s205 + $0x30] sm:$0xf]
                  %212 = vst [vmem:[%s206 + $0x8] sm:$0xf] %v211
                $region55: #{vit_forward.14} parent=42 // loop_footer
                  %s204 = sadd.s32 1, %s200
                $region56: #{vit_forward.14} parent=42 // loop_footer_branch
                  %199 = sbr.rel target = $region52
                $region57: #{vit_forward.14} parent=42 // loop_exit
                  _
              $region43: #{vit_forward.14} parent=27 // pred_fallthru
                _
            $region28: #{vit_forward.14} parent=23 // pred_fallthru
              _
            // Predicated region
            $region29: #{vit_forward.14} parent=23 // pred_check
              _
            $region30: #{vit_forward.14} parent=23 // pred_check_branch
              %172 = sbr.rel (0) target = $region32
            $region31: #{vit_forward.14} parent=23 // pred_region
              loop: start=0, step=1, limit=1
              $region33: #{vit_forward.14} parent=31 // loop_pre_header
                _
              $region34: #{vit_forward.14} parent=31 // loop_header
                %s175 = sphi 0, %s179
                %p176 = scmp.ge.s32.totalorder %s175, 1
                %s180 = sphi %s166, %s166
                %s181 = sphi %s162, %s162
              $region35: #{vit_forward.14} parent=31 // loop_header_branch
                %178 = sbr.rel (%p176) target = $region39
              $region36: #{vit_forward.14} parent=31 // loop_body
                %v182 = vld [vmem:[%s180] sm:$0xf]
                %183 = vst [vmem:[%s181] sm:$0xf] %v182
                %v184 = vld [vmem:[%s180 + $0x18] sm:$0xf]
                %185 = vst [vmem:[%s181 + $0x4] sm:$0xf] %v184
                %v186 = vld [vmem:[%s180 + $0x30] sm:$0xf]
                %187 = vst [vmem:[%s181 + $0x8] sm:$0xf] %v186
              $region37: #{vit_forward.14} parent=31 // loop_footer
                %s179 = sadd.s32 1, %s175
              $region38: #{vit_forward.14} parent=31 // loop_footer_branch
                %174 = sbr.rel target = $region34
              $region39: #{vit_forward.14} parent=31 // loop_exit
                _
            $region32: #{vit_forward.14} parent=23 // pred_fallthru
              _
          $region24: #{vit_forward.14} parent=19 // pred_fallthru
            _
          %213 = vnop
        $region20: #{vit_forward.14} parent=15 // pred_fallthru
          _
        // Predicated region
        $region58: #{vit_forward.14} parent=15 // pred_check
          %p214 = pneg %p73
        $region59: #{vit_forward.14} parent=15 // pred_check_branch
          %216 = sbr.rel (%p214) target = $region61
        $region60: #{vit_forward.14} parent=15 // pred_region
          %s217 = sand.u32 %s63, 1
          %s218 = sand.u32 %s63, 1
          %s219 = smul.addr %s218, 12
          %s220 = scalar_lea.vmem [#allocation3], %s219
          %s221 = sadd.s32 %s17, 2
          %s222 = smul.addr %s16, 18
          %s223 = sadd.s32 %s221, %s222
          %s224 = smul.addr %s223, 4
          %s225 = scalar_lea.vmem %s1, %s224
          // Predicated region
          $region62: #{vit_forward.14} parent=60 // pred_check
            _
          $region63: #{vit_forward.14} parent=60 // pred_check_branch
            %227 = sbr.rel (0) target = $region65
          $region64: #{vit_forward.14} parent=60 // pred_region
            // Predicated region
            $region66: #{vit_forward.14} parent=64 // pred_check
              _
            $region67: #{vit_forward.14} parent=64 // pred_check_branch
              %229 = sbr.rel target = $region69
            $region68: #{vit_forward.14} parent=64 // pred_region
              // Predicated region
              $region81: #{vit_forward.14} parent=68 // pred_check
                _
              $region82: #{vit_forward.14} parent=68 // pred_check_branch
                %248 = sbr.rel (0) target = $region84
              $region83: #{vit_forward.14} parent=68 // pred_region
                loop: start=0, step=1, limit=1
                $region85: #{vit_forward.14} parent=83 // loop_pre_header
                  _
                $region86: #{vit_forward.14} parent=83 // loop_header
                  %s250 = sphi 0, %s254
                  %p251 = scmp.ge.s32.totalorder %s250, 1
                  %s255 = sphi %s225, %s225
                  %s256 = sphi %s220, %s220
                $region87: #{vit_forward.14} parent=83 // loop_header_branch
                  %253 = sbr.rel (%p251) target = $region91
                $region88: #{vit_forward.14} parent=83 // loop_body
                  _
                $region89: #{vit_forward.14} parent=83 // loop_footer
                  %s254 = sadd.s32 1, %s250
                $region90: #{vit_forward.14} parent=83 // loop_footer_branch
                  %249 = sbr.rel target = $region86
                $region91: #{vit_forward.14} parent=83 // loop_exit
                  _
                loop: start=0, step=1, limit=1
                $region92: #{vit_forward.14} parent=83 // loop_pre_header
                  _
                $region93: #{vit_forward.14} parent=83 // loop_header
                  %s259 = sphi 0, %s263
                  %p260 = scmp.ge.s32.totalorder %s259, 1
                  %s264 = sphi %s225, %s225
                  %s265 = sphi %s220, %s220
                $region94: #{vit_forward.14} parent=83 // loop_header_branch
                  %262 = sbr.rel (%p260) target = $region98
                $region95: #{vit_forward.14} parent=83 // loop_body
                  %v266 = vld [vmem:[%s264] sm:$0xf]
                  %267 = vst [vmem:[%s265] sm:$0xf] %v266
                  %v268 = vld [vmem:[%s264 + $0x18] sm:$0xf]
                  %269 = vst [vmem:[%s265 + $0x4] sm:$0xf] %v268
                  %v270 = vld [vmem:[%s264 + $0x30] sm:$0xf]
                  %271 = vst [vmem:[%s265 + $0x8] sm:$0xf] %v270
                $region96: #{vit_forward.14} parent=83 // loop_footer
                  %s263 = sadd.s32 1, %s259
                $region97: #{vit_forward.14} parent=83 // loop_footer_branch
                  %258 = sbr.rel target = $region93
                $region98: #{vit_forward.14} parent=83 // loop_exit
                  _
              $region84: #{vit_forward.14} parent=68 // pred_fallthru
                _
            $region69: #{vit_forward.14} parent=64 // pred_fallthru
              _
            // Predicated region
            $region70: #{vit_forward.14} parent=64 // pred_check
              _
            $region71: #{vit_forward.14} parent=64 // pred_check_branch
              %231 = sbr.rel (0) target = $region73
            $region72: #{vit_forward.14} parent=64 // pred_region
              loop: start=0, step=1, limit=1
              $region74: #{vit_forward.14} parent=72 // loop_pre_header
                _
              $region75: #{vit_forward.14} parent=72 // loop_header
                %s234 = sphi 0, %s238
                %p235 = scmp.ge.s32.totalorder %s234, 1
                %s239 = sphi %s225, %s225
                %s240 = sphi %s220, %s220
              $region76: #{vit_forward.14} parent=72 // loop_header_branch
                %237 = sbr.rel (%p235) target = $region80
              $region77: #{vit_forward.14} parent=72 // loop_body
                %v241 = vld [vmem:[%s239] sm:$0xf]
                %242 = vst [vmem:[%s240] sm:$0xf] %v241
                %v243 = vld [vmem:[%s239 + $0x18] sm:$0xf]
                %244 = vst [vmem:[%s240 + $0x4] sm:$0xf] %v243
                %v245 = vld [vmem:[%s239 + $0x30] sm:$0xf]
                %246 = vst [vmem:[%s240 + $0x8] sm:$0xf] %v245
              $region78: #{vit_forward.14} parent=72 // loop_footer
                %s238 = sadd.s32 1, %s234
              $region79: #{vit_forward.14} parent=72 // loop_footer_branch
                %233 = sbr.rel target = $region75
              $region80: #{vit_forward.14} parent=72 // loop_exit
                _
            $region73: #{vit_forward.14} parent=64 // pred_fallthru
              _
          $region65: #{vit_forward.14} parent=60 // pred_fallthru
            _
          %272 = vnop
        $region61: #{vit_forward.14} parent=15 // pred_fallthru
          _
        // Predicated region
        $region99: #{vit_forward.14} parent=15 // pred_check
          %p273 = pneg %p103
        $region100: #{vit_forward.14} parent=15 // pred_check_branch
          %275 = sbr.rel (%p273) target = $region102
        $region101: #{vit_forward.14} parent=15 // pred_region
          %s276 = sand.u32 %s93, 1
          %s277 = sand.u32 %s93, 1
          %s278 = smul.addr %s277, 12
          %s279 = scalar_lea.vmem [#allocation4], %s278
          %s280 = sadd.s32 %s17, 4
          %s281 = smul.addr %s16, 18
          %s282 = sadd.s32 %s280, %s281
          %s283 = smul.addr %s282, 4
          %s284 = scalar_lea.vmem %s2, %s283
          // Predicated region
          $region103: #{vit_forward.14} parent=101 // pred_check
            _
          $region104: #{vit_forward.14} parent=101 // pred_check_branch
            %286 = sbr.rel (0) target = $region106
          $region105: #{vit_forward.14} parent=101 // pred_region
            // Predicated region
            $region107: #{vit_forward.14} parent=105 // pred_check
              _
            $region108: #{vit_forward.14} parent=105 // pred_check_branch
              %288 = sbr.rel target = $region110
            $region109: #{vit_forward.14} parent=105 // pred_region
              // Predicated region
              $region122: #{vit_forward.14} parent=109 // pred_check
                _
              $region123: #{vit_forward.14} parent=109 // pred_check_branch
                %307 = sbr.rel (0) target = $region125
              $region124: #{vit_forward.14} parent=109 // pred_region
                loop: start=0, step=1, limit=1
                $region126: #{vit_forward.14} parent=124 // loop_pre_header
                  _
                $region127: #{vit_forward.14} parent=124 // loop_header
                  %s309 = sphi 0, %s313
                  %p310 = scmp.ge.s32.totalorder %s309, 1
                  %s314 = sphi %s284, %s284
                  %s315 = sphi %s279, %s279
                $region128: #{vit_forward.14} parent=124 // loop_header_branch
                  %312 = sbr.rel (%p310) target = $region132
                $region129: #{vit_forward.14} parent=124 // loop_body
                  _
                $region130: #{vit_forward.14} parent=124 // loop_footer
                  %s313 = sadd.s32 1, %s309
                $region131: #{vit_forward.14} parent=124 // loop_footer_branch
                  %308 = sbr.rel target = $region127
                $region132: #{vit_forward.14} parent=124 // loop_exit
                  _
                loop: start=0, step=1, limit=1
                $region133: #{vit_forward.14} parent=124 // loop_pre_header
                  _
                $region134: #{vit_forward.14} parent=124 // loop_header
                  %s318 = sphi 0, %s322
                  %p319 = scmp.ge.s32.totalorder %s318, 1
                  %s323 = sphi %s284, %s284
                  %s324 = sphi %s279, %s279
                $region135: #{vit_forward.14} parent=124 // loop_header_branch
                  %321 = sbr.rel (%p319) target = $region139
                $region136: #{vit_forward.14} parent=124 // loop_body
                  %v325 = vld [vmem:[%s323] sm:$0xf]
                  %326 = vst [vmem:[%s324] sm:$0xf] %v325
                  %v327 = vld [vmem:[%s323 + $0x18] sm:$0xf]
                  %328 = vst [vmem:[%s324 + $0x4] sm:$0xf] %v327
                  %v329 = vld [vmem:[%s323 + $0x30] sm:$0xf]
                  %330 = vst [vmem:[%s324 + $0x8] sm:$0xf] %v329
                $region137: #{vit_forward.14} parent=124 // loop_footer
                  %s322 = sadd.s32 1, %s318
                $region138: #{vit_forward.14} parent=124 // loop_footer_branch
                  %317 = sbr.rel target = $region134
                $region139: #{vit_forward.14} parent=124 // loop_exit
                  _
              $region125: #{vit_forward.14} parent=109 // pred_fallthru
                _
            $region110: #{vit_forward.14} parent=105 // pred_fallthru
              _
            // Predicated region
            $region111: #{vit_forward.14} parent=105 // pred_check
              _
            $region112: #{vit_forward.14} parent=105 // pred_check_branch
              %290 = sbr.rel (0) target = $region114
            $region113: #{vit_forward.14} parent=105 // pred_region
              loop: start=0, step=1, limit=1
              $region115: #{vit_forward.14} parent=113 // loop_pre_header
                _
              $region116: #{vit_forward.14} parent=113 // loop_header
                %s293 = sphi 0, %s297
                %p294 = scmp.ge.s32.totalorder %s293, 1
                %s298 = sphi %s284, %s284
                %s299 = sphi %s279, %s279
              $region117: #{vit_forward.14} parent=113 // loop_header_branch
                %296 = sbr.rel (%p294) target = $region121
              $region118: #{vit_forward.14} parent=113 // loop_body
                %v300 = vld [vmem:[%s298] sm:$0xf]
                %301 = vst [vmem:[%s299] sm:$0xf] %v300
                %v302 = vld [vmem:[%s298 + $0x18] sm:$0xf]
                %303 = vst [vmem:[%s299 + $0x4] sm:$0xf] %v302
                %v304 = vld [vmem:[%s298 + $0x30] sm:$0xf]
                %305 = vst [vmem:[%s299 + $0x8] sm:$0xf] %v304
              $region119: #{vit_forward.14} parent=113 // loop_footer
                %s297 = sadd.s32 1, %s293
              $region120: #{vit_forward.14} parent=113 // loop_footer_branch
                %292 = sbr.rel target = $region116
              $region121: #{vit_forward.14} parent=113 // loop_exit
                _
            $region114: #{vit_forward.14} parent=105 // pred_fallthru
              _
          $region106: #{vit_forward.14} parent=101 // pred_fallthru
            _
          %331 = vnop
        $region102: #{vit_forward.14} parent=15 // pred_fallthru
          _
      $region16: #{vit_forward.14} parent=5 // pred_fallthru
        _
      %p332 = scmp.le.s32.totalorder 1, %s9
      %p333 = scmp.lt.s32.totalorder %s9, 5
      %p334 = pnand %p332, %p333
      %p335 = pneg %p334
      // Predicated region
      $region140: #{vit_forward.14} parent=5 // pred_check
        _
      $region141: #{vit_forward.14} parent=5 // pred_check_branch
        %337 = sbr.rel (%p334) target = $region143
      $region142: #{vit_forward.14} parent=5 // pred_region
        %s338 = ssub.s32 %s9, 1
        %s339 = sand.u32 %s36, 1
        %s340 = sand.u32 %s36, 1
        %s341 = smul.addr %s340, 12
        %s342 = scalar_lea.vmem [#allocation2], %s341
        // Predicated region
        $region144: #{vit_forward.14} parent=142 // pred_check
          %p343 = pneg %p49
        $region145: #{vit_forward.14} parent=142 // pred_check_branch
          %345 = sbr.rel (%p343) target = $region147
        $region146: #{vit_forward.14} parent=142 // pred_region
          _
        $region147: #{vit_forward.14} parent=142 // pred_fallthru
          _
        %s346 = sand.u32 %s66, 1
        %s347 = sand.u32 %s66, 1
        %s348 = smul.addr %s347, 12
        %s349 = scalar_lea.vmem [#allocation3], %s348
        // Predicated region
        $region148: #{vit_forward.14} parent=142 // pred_check
          %p350 = pneg %p79
        $region149: #{vit_forward.14} parent=142 // pred_check_branch
          %352 = sbr.rel (%p350) target = $region151
        $region150: #{vit_forward.14} parent=142 // pred_region
          _
        $region151: #{vit_forward.14} parent=142 // pred_fallthru
          _
        %s353 = sand.u32 %s96, 1
        %s354 = sand.u32 %s96, 1
        %s355 = smul.addr %s354, 12
        %s356 = scalar_lea.vmem [#allocation4], %s355
        // Predicated region
        $region152: #{vit_forward.14} parent=142 // pred_check
          %p357 = pneg %p109
        $region153: #{vit_forward.14} parent=142 // pred_check_branch
          %359 = sbr.rel (%p357) target = $region155
        $region154: #{vit_forward.14} parent=142 // pred_region
          _
        $region155: #{vit_forward.14} parent=142 // pred_fallthru
          _
        %s360 = sand.u32 %s36, 1
        %s361 = sand.u32 %s36, 1
        %s362 = smul.addr %s361, 12
        %s363 = scalar_lea.vmem [#allocation2], %s362
        %p364 = pneg %p49
        %p365 = pneg %p46
        %s366 = sand.u32 %s66, 1
        %s367 = sand.u32 %s66, 1
        %s368 = smul.addr %s367, 12
        %s369 = scalar_lea.vmem [#allocation3], %s368
        %p370 = pneg %p79
        %p371 = pneg %p76
        %s372 = sand.u32 %s96, 1
        %s373 = sand.u32 %s96, 1
        %s374 = smul.addr %s373, 12
        %s375 = scalar_lea.vmem [#allocation4], %s374
        %p376 = pneg %p109
        %p377 = pneg %p106
        %p378 = pneg %p137
        %p379 = pneg %p134
        %s380 = sand.u32 %s124, 1
        %s381 = sand.u32 %s124, 1
        %s382 = smul.addr %s381, 12
        %s383 = scalar_lea.vmem [#allocation5], %s382
        %s384 = sadd.s32 %s19, 2
        %s385 = sadd.s32 %s19, 4
        %v388 = vld [vmem:[%s342] sm:$0xf]
        %v389 = vld [vmem:[%s342 + $0x4] sm:$0xf]
        %v390 = vld [vmem:[%s342 + $0x8] sm:$0x1]
        %v391 = vmul.bf16 %v388, 1040203264
        %v392 = vmul.bf16 %v389, 1040203264
        %v393 = vmul.bf16 %v390, 1040203264
        %v394 = vld [vmem:[%s349] sm:$0xf]
        %v395 = vld [vmem:[%s349 + $0x4] sm:$0xf]
        %v396 = vld [vmem:[%s349 + $0x8] sm:$0x1]
        %v397 = vld [vmem:[%s356] sm:$0xf]
        %v398 = vld [vmem:[%s356 + $0x4] sm:$0xf]
        %v399 = vld [vmem:[%s356 + $0x8] sm:$0x1]
        %v403 = vunpack.c.l.b16 %v391
        %v404 = vunpack.c.l.b16 %v392
        %v405 = vunpack.c.l.b16 %v393
        %v406 = vpack.c.b16 %v404, %v403
        %v407 = vpack.c.b16 %v405, %v405
        %v411 = vunpack.c.l.b16 %v394
        %v412 = vunpack.c.l.b16 %v395
        %v413 = vunpack.c.l.b16 %v396
        %v414 = vpack.c.b16 %v412, %v411
        %v415 = vpack.c.b16 %v413, %v413
        %vm416 = vcmask 523264
        %v418 = vsel %vm416, %v406, 0
        %v421 = vsel %vm416, %v407, 0
        %v424 = vsel %vm416, %v414, 0
        %v427 = vsel %vm416, %v415, 0
        %429 = vmatprep.subr.bf16.mxu0 0
        %430 = vmatpush1.bf16.xpose.msra.mxu0 %v424
        %431 = vmatprep.subr.bf16.mxu0 0
        %432 = vmatpush1.bf16.xpose.msra.mxu0 %v427
        %433 = vmatprep.subr.bf16.mxu0 0
        %434 = vmatpush1.bf16.xpose.msra.mxu0 0
        %435 = vmatprep.subr.bf16.mxu0 0
        %436 = vmatpush1.bf16.xpose.msra.mxu0 0
        %437 = vmatprep.subr.bf16.mxu0 0
        %438 = vmatpush1.bf16.xpose.msra.mxu0 0
        %439 = vmatprep.subr.bf16.mxu0 0
        %440 = vmatpush1.bf16.xpose.msra.mxu0 0
        %441 = vmatprep.subr.bf16.mxu0 0
        %442 = vmatpush1.bf16.xpose.msra.mxu0 0
        %443 = vmatprep.subr.bf16.mxu0 0
        %444 = vmatpush1.bf16.xpose.msra.mxu0 0
        %445 = vmatprep.subr.bf16.mxu0 0
        %446 = vmatpush1.bf16.xpose.msra.mxu0 0
        %447 = vmatprep.subr.bf16.mxu0 0
        %448 = vmatpush1.bf16.xpose.msra.mxu0 0
        %449 = vmatprep.subr.bf16.mxu0 0
        %450 = vmatpush1.bf16.xpose.msra.mxu0 0
        %451 = vmatprep.subr.bf16.mxu0 0
        %452 = vmatpush1.bf16.xpose.msra.mxu0 0
        %453 = vmatprep.subr.bf16.mxu0 0
        %454 = vmatpush1.bf16.xpose.msra.mxu0 0
        %455 = vmatprep.subr.bf16.mxu0 0
        %456 = vmatpush1.bf16.xpose.msra.mxu0 0
        %457 = vmatprep.subr.bf16.mxu0 0
        %458 = vmatpush1.bf16.xpose.msra.mxu0 0
        %459 = vmatprep.subr.bf16.mxu0 0
        %460 = vmatpush1.bf16.xpose.msra.mxu0 0
        %461 = vmatprep.mubr.bf16.mxu0 0
        %462 = vmatmul.mubr.bf16.gmra.mrb[0].mxu0 %v418
        %v463 = vpop.f32.mrb[0].mxu0
        %v464 = vadd.f32 0.0, %v463
        %v465 = vpop.f32.mrb[0].mxu0
        %v466 = vpop.f32.mrb[0].mxu0
        %v467 = vadd.f32 0.0, %v466
        %v468 = vpop.f32.mrb[0].mxu0
        %469 = vmatprep.mubr.bf16.mxu0 0
        %470 = vmatmul.mubr.bf16.gmra.mrb[0].mxu0 %v421
        %v471 = vpop.f32.mrb[0].mxu0
        %v472 = vadd.f32 0.0, %v471
        %v473 = vpop.f32.mrb[0].mxu0
        %v474 = vpop.f32.mrb[0].mxu0
        %v475 = vpop.f32.mrb[0].mxu0
        %476 = vdwg.mxu0
        %vm477 = vcmask 138240
        %v478 = vsel %vm477, %v464, -inf
        %479 = vmax.xlane.f32.xlu0 %v478
        %v480 = vpop.xlane.xlu0 %479
        %v481 = vsel %vm477, %v467, -inf
        %482 = vmax.xlane.f32.xlu0 %v481
        %v483 = vpop.xlane.xlu0 %482
        %vm484 = vcmask 131072
        %v485 = vsel %vm484, %v472, -inf
        %486 = vmax.xlane.f32.xlu0 %v485
        %v487 = vpop.xlane.xlu0 %486
        %v488 = vsub.f32 %v464, %v480
        %v489 = vsub.f32 %v467, %v483
        %v490 = vsub.f32 %v472, %v487
        %v491 = vmul.f32 %v488, 1.442695
        %v492 = vpow.pop %v491
        %v493 = vmul.f32 %v489, 1.442695
        %v494 = vpow.pop %v493
        %v495 = vmul.f32 %v490, 1.442695
        %v496 = vpow.pop %v495
        %v497 = vsel %vm477, %v492, 0.0
        %498 = vadd.xlane.f32.xlu0 %v497
        %v499 = vpop.xlane.xlu0 %498
        %v500 = vsel %vm477, %v494, 0.0
        %501 = vadd.xlane.f32.xlu0 %v500
        %v502 = vpop.xlane.xlu0 %501
        %v503 = vsel %vm484, %v496, 0.0
        %504 = vadd.xlane.f32.xlu0 %v503
        %v505 = vpop.xlane.xlu0 %504
        %v506 = vrcp.pop %v499
        %v507 = vrcp.pop %v502
        %v508 = vrcp.pop %v505
        %v509 = vmul.f32 %v492, %v506
        %v510 = vmul.f32 %v494, %v507
        %v511 = vmul.f32 %v496, %v508
        %v512 = vpack.c.bf16 %v510, %v509
        %v513 = vpack.c.bf16 %v511, %v511
        %v517 = vunpack.c.l.b16 %v397
        %v518 = vunpack.c.l.b16 %v398
        %v519 = vunpack.c.l.b16 %v399
        %v520 = vpack.c.b16 %v518, %v517
        %v521 = vpack.c.b16 %v519, %v519
        %v524 = vsel %vm477, %v512, 0
        %v527 = vsel %vm477, %v513, 0
        %vm529 = vcmask 1040384
        %v530 = vsel 0, 4294967295, 65535
        %v531 = vsel %vm529, %v530, 0
        %v533 = vand.u32 %v521, %v531
        %535 = vmatprep.subr.bf16.mxu0 0
        %536 = vmatpush1.bf16.msra.mxu0 %v520
        %537 = vmatprep.subr.bf16.mxu0 0
        %538 = vmatpush1.bf16.msra.mxu0 %v533
        %539 = vmatprep.subr.bf16.mxu0 0
        %540 = vmatpush1.bf16.msra.mxu0 0
        %541 = vmatprep.subr.bf16.mxu0 0
        %542 = vmatpush1.bf16.msra.mxu0 0
        %543 = vmatprep.subr.bf16.mxu0 0
        %544 = vmatpush1.bf16.msra.mxu0 0
        %545 = vmatprep.subr.bf16.mxu0 0
        %546 = vmatpush1.bf16.msra.mxu0 0
        %547 = vmatprep.subr.bf16.mxu0 0
        %548 = vmatpush1.bf16.msra.mxu0 0
        %549 = vmatprep.subr.bf16.mxu0 0
        %550 = vmatpush1.bf16.msra.mxu0 0
        %551 = vmatprep.subr.bf16.mxu0 0
        %552 = vmatpush1.bf16.msra.mxu0 0
        %553 = vmatprep.subr.bf16.mxu0 0
        %554 = vmatpush1.bf16.msra.mxu0 0
        %555 = vmatprep.subr.bf16.mxu0 0
        %556 = vmatpush1.bf16.msra.mxu0 0
        %557 = vmatprep.subr.bf16.mxu0 0
        %558 = vmatpush1.bf16.msra.mxu0 0
        %559 = vmatprep.subr.bf16.mxu0 0
        %560 = vmatpush1.bf16.msra.mxu0 0
        %561 = vmatprep.subr.bf16.mxu0 0
        %562 = vmatpush1.bf16.msra.mxu0 0
        %563 = vmatprep.subr.bf16.mxu0 0
        %564 = vmatpush1.bf16.msra.mxu0 0
        %565 = vmatprep.subr.bf16.mxu0 0
        %566 = vmatpush1.bf16.msra.mxu0 0
        %567 = vmatprep.mubr.bf16.mxu0 0
        %568 = vmatmul.mubr.bf16.gmra.mrb[0].mxu0 %v524
        %v569 = vpop.f32.mrb[0].mxu0
        %v570 = vadd.f32 0.0, %v569
        %v571 = vpop.f32.mrb[0].mxu0
        %v572 = vpop.f32.mrb[0].mxu0
        %v573 = vadd.f32 0.0, %v572
        %v574 = vpop.f32.mrb[0].mxu0
        %575 = vmatprep.mubr.bf16.mxu0 0
        %576 = vmatmul.mubr.bf16.gmra.mrb[0].mxu0 %v527
        %v577 = vpop.f32.mrb[0].mxu0
        %v578 = vadd.f32 0.0, %v577
        %v579 = vpop.f32.mrb[0].mxu0
        %v580 = vpop.f32.mrb[0].mxu0
        %v581 = vpop.f32.mrb[0].mxu0
        %582 = vdwg.mxu0
        %v583 = vpack.c.bf16 %v573, %v570
        %v584 = vpack.c.bf16 %v578, %v578
        %v587 = vunpack.c.l.b16 %v583
        %v588 = vunpack.c.h.b16 %v583
        %v589 = vunpack.c.l.b16 %v584
        %v590 = vpack.c.b16 %v587, %v587
        %v591 = vpack.c.b16 %v588, %v588
        %v592 = vpack.c.b16 %v589, %v589
        %vm596 = vcmask 519168
        %597 = vst.msk [vmem:[%s383] sm:$0xf] %vm596, %v590
        %598 = vst.msk [vmem:[%s383 + $0x4] sm:$0xf] %vm596, %v591
        %vm599 = vcmask 516096
        %vm600 = vsmask.f32 256
        %vm601 = vmand %vm599, %vm600
        %v602 = vld [vmem:[%s383 + $0x8] sm:$0x1]
        %v603 = vsel %vm601, %v592, %v602
        %604 = vst [vmem:[%s383 + $0x8] sm:$0x1] %v603
        %v605 = vld [vmem:[%s342] sm:$0xf]
        %v606 = vld [vmem:[%s342 + $0x4] sm:$0xf]
        %v607 = vld [vmem:[%s342 + $0x8] sm:$0x1]
        %v608 = vmul.bf16 %v605, 1040203264
        %v609 = vmul.bf16 %v606, 1040203264
        %v610 = vmul.bf16 %v607, 1040203264
        %v611 = vld [vmem:[%s349] sm:$0xf]
        %v612 = vld [vmem:[%s349 + $0x4] sm:$0xf]
        %v613 = vld [vmem:[%s349 + $0x8] sm:$0x1]
        %v614 = vld [vmem:[%s356] sm:$0xf]
        %v615 = vld [vmem:[%s356 + $0x4] sm:$0xf]
        %v616 = vld [vmem:[%s356 + $0x8] sm:$0x1]
        %v620 = vunpack.c.l.b16 %v608
        %v621 = vunpack.c.l.b16 %v609
        %v622 = vunpack.c.l.b16 %v610
        %v623 = vpack.c.b16 %v621, %v620
        %v624 = vpack.c.b16 %v622, %v622
        %625 = vrot.lane.b32.xlu0 %v623, 64
        %v626 = vpop.permute.xlu0 %625
        %627 = vrot.lane.b32.xlu0 %v624, 64
        %v628 = vpop.permute.xlu0 %627
        %v632 = vunpack.c.l.b16 %v611
        %v633 = vunpack.c.l.b16 %v612
        %v634 = vunpack.c.l.b16 %v613
        %v635 = vpack.c.b16 %v633, %v632
        %v636 = vpack.c.b16 %v634, %v634
        %637 = vrot.lane.b32.xlu0 %v635, 64
        %v638 = vpop.permute.xlu0 %637
        %639 = vrot.lane.b32.xlu0 %v636, 64
        %v640 = vpop.permute.xlu0 %639
        %v642 = vsel %vm416, %v626, 0
        %v645 = vsel %vm416, %v628, 0
        %v648 = vsel %vm416, %v638, 0
        %v651 = vsel %vm416, %v640, 0
        %653 = vmatprep.subr.bf16.mxu0 0
        %654 = vmatpush1.bf16.xpose.msra.mxu0 %v648
        %655 = vmatprep.subr.bf16.mxu0 0
        %656 = vmatpush1.bf16.xpose.msra.mxu0 %v651
        %657 = vmatprep.subr.bf16.mxu0 0
        %658 = vmatpush1.bf16.xpose.msra.mxu0 0
        %659 = vmatprep.subr.bf16.mxu0 0
        %660 = vmatpush1.bf16.xpose.msra.mxu0 0
        %661 = vmatprep.subr.bf16.mxu0 0
        %662 = vmatpush1.bf16.xpose.msra.mxu0 0
        %663 = vmatprep.subr.bf16.mxu0 0
        %664 = vmatpush1.bf16.xpose.msra.mxu0 0
        %665 = vmatprep.subr.bf16.mxu0 0
        %666 = vmatpush1.bf16.xpose.msra.mxu0 0
        %667 = vmatprep.subr.bf16.mxu0 0
        %668 = vmatpush1.bf16.xpose.msra.mxu0 0
        %669 = vmatprep.subr.bf16.mxu0 0
        %670 = vmatpush1.bf16.xpose.msra.mxu0 0
        %671 = vmatprep.subr.bf16.mxu0 0
        %672 = vmatpush1.bf16.xpose.msra.mxu0 0
        %673 = vmatprep.subr.bf16.mxu0 0
        %674 = vmatpush1.bf16.xpose.msra.mxu0 0
        %675 = vmatprep.subr.bf16.mxu0 0
        %676 = vmatpush1.bf16.xpose.msra.mxu0 0
        %677 = vmatprep.subr.bf16.mxu0 0
        %678 = vmatpush1.bf16.xpose.msra.mxu0 0
        %679 = vmatprep.subr.bf16.mxu0 0
        %680 = vmatpush1.bf16.xpose.msra.mxu0 0
        %681 = vmatprep.subr.bf16.mxu0 0
        %682 = vmatpush1.bf16.xpose.msra.mxu0 0
        %683 = vmatprep.subr.bf16.mxu0 0
        %684 = vmatpush1.bf16.xpose.msra.mxu0 0
        %685 = vmatprep.mubr.bf16.mxu0 0
        %686 = vmatmul.mubr.bf16.gmra.mrb[0].mxu0 %v642
        %v687 = vpop.f32.mrb[0].mxu0
        %v688 = vadd.f32 0.0, %v687
        %v689 = vpop.f32.mrb[0].mxu0
        %v690 = vpop.f32.mrb[0].mxu0
        %v691 = vadd.f32 0.0, %v690
        %v692 = vpop.f32.mrb[0].mxu0
        %693 = vmatprep.mubr.bf16.mxu0 0
        %694 = vmatmul.mubr.bf16.gmra.mrb[0].mxu0 %v645
        %v695 = vpop.f32.mrb[0].mxu0
        %v696 = vadd.f32 0.0, %v695
        %v697 = vpop.f32.mrb[0].mxu0
        %v698 = vpop.f32.mrb[0].mxu0
        %v699 = vpop.f32.mrb[0].mxu0
        %700 = vdwg.mxu0
        %v701 = vsel %vm477, %v688, -inf
        %702 = vmax.xlane.f32.xlu0 %v701
        %v703 = vpop.xlane.xlu0 %702
        %v704 = vsel %vm477, %v691, -inf
        %705 = vmax.xlane.f32.xlu0 %v704
        %v706 = vpop.xlane.xlu0 %705
        %v707 = vsel %vm484, %v696, -inf
        %708 = vmax.xlane.f32.xlu0 %v707
        %v709 = vpop.xlane.xlu0 %708
        %v710 = vsub.f32 %v688, %v703
        %v711 = vsub.f32 %v691, %v706
        %v712 = vsub.f32 %v696, %v709
        %v713 = vmul.f32 %v710, 1.442695
        %v714 = vpow.pop %v713
        %v715 = vmul.f32 %v711, 1.442695
        %v716 = vpow.pop %v715
        %v717 = vmul.f32 %v712, 1.442695
        %v718 = vpow.pop %v717
        %v719 = vsel %vm477, %v714, 0.0
        %720 = vadd.xlane.f32.xlu0 %v719
        %v721 = vpop.xlane.xlu0 %720
        %v722 = vsel %vm477, %v716, 0.0
        %723 = vadd.xlane.f32.xlu0 %v722
        %v724 = vpop.xlane.xlu0 %723
        %v725 = vsel %vm484, %v718, 0.0
        %726 = vadd.xlane.f32.xlu0 %v725
        %v727 = vpop.xlane.xlu0 %726
        %v728 = vrcp.pop %v721
        %v729 = vrcp.pop %v724
        %v730 = vrcp.pop %v727
        %v731 = vmul.f32 %v714, %v728
        %v732 = vmul.f32 %v716, %v729
        %v733 = vmul.f32 %v718, %v730
        %v734 = vpack.c.bf16 %v732, %v731
        %v735 = vpack.c.bf16 %v733, %v733
        %v739 = vunpack.c.l.b16 %v614
        %v740 = vunpack.c.l.b16 %v615
        %v741 = vunpack.c.l.b16 %v616
        %v742 = vpack.c.b16 %v740, %v739
        %v743 = vpack.c.b16 %v741, %v741
        %744 = vrot.lane.b32.xlu0 %v742, 64
        %v745 = vpop.permute.xlu0 %744
        %746 = vrot.lane.b32.xlu0 %v743, 64
        %v747 = vpop.permute.xlu0 %746
        %v750 = vsel %vm477, %v734, 0
        %v753 = vsel %vm477, %v735, 0
        %v756 = vand.u32 %v747, %v531
        %758 = vmatprep.subr.bf16.mxu0 0
        %759 = vmatpush1.bf16.msra.mxu0 %v745
        %760 = vmatprep.subr.bf16.mxu0 0
        %761 = vmatpush1.bf16.msra.mxu0 %v756
        %762 = vmatprep.subr.bf16.mxu0 0
        %763 = vmatpush1.bf16.msra.mxu0 0
        %764 = vmatprep.subr.bf16.mxu0 0
        %765 = vmatpush1.bf16.msra.mxu0 0
        %766 = vmatprep.subr.bf16.mxu0 0
        %767 = vmatpush1.bf16.msra.mxu0 0
        %768 = vmatprep.subr.bf16.mxu0 0
        %769 = vmatpush1.bf16.msra.mxu0 0
        %770 = vmatprep.subr.bf16.mxu0 0
        %771 = vmatpush1.bf16.msra.mxu0 0
        %772 = vmatprep.subr.bf16.mxu0 0
        %773 = vmatpush1.bf16.msra.mxu0 0
        %774 = vmatprep.subr.bf16.mxu0 0
        %775 = vmatpush1.bf16.msra.mxu0 0
        %776 = vmatprep.subr.bf16.mxu0 0
        %777 = vmatpush1.bf16.msra.mxu0 0
        %778 = vmatprep.subr.bf16.mxu0 0
        %779 = vmatpush1.bf16.msra.mxu0 0
        %780 = vmatprep.subr.bf16.mxu0 0
        %781 = vmatpush1.bf16.msra.mxu0 0
        %782 = vmatprep.subr.bf16.mxu0 0
        %783 = vmatpush1.bf16.msra.mxu0 0
        %784 = vmatprep.subr.bf16.mxu0 0
        %785 = vmatpush1.bf16.msra.mxu0 0
        %786 = vmatprep.subr.bf16.mxu0 0
        %787 = vmatpush1.bf16.msra.mxu0 0
        %788 = vmatprep.subr.bf16.mxu0 0
        %789 = vmatpush1.bf16.msra.mxu0 0
        %790 = vmatprep.mubr.bf16.mxu0 0
        %791 = vmatmul.mubr.bf16.gmra.mrb[0].mxu0 %v750
        %v792 = vpop.f32.mrb[0].mxu0
        %v793 = vadd.f32 0.0, %v792
        %v794 = vpop.f32.mrb[0].mxu0
        %v795 = vpop.f32.mrb[0].mxu0
        %v796 = vadd.f32 0.0, %v795
        %v797 = vpop.f32.mrb[0].mxu0
        %798 = vmatprep.mubr.bf16.mxu0 0
        %799 = vmatmul.mubr.bf16.gmra.mrb[0].mxu0 %v753
        %v800 = vpop.f32.mrb[0].mxu0
        %v801 = vadd.f32 0.0, %v800
        %v802 = vpop.f32.mrb[0].mxu0
        %v803 = vpop.f32.mrb[0].mxu0
        %v804 = vpop.f32.mrb[0].mxu0
        %805 = vdwg.mxu0
        %v806 = vpack.c.bf16 %v796, %v793
        %v807 = vpack.c.bf16 %v801, %v801
        %v810 = vunpack.c.l.b16 %v806
        %v811 = vunpack.c.h.b16 %v806
        %v812 = vunpack.c.l.b16 %v807
        %v813 = vpack.c.b16 %v810, %v810
        %v814 = vpack.c.b16 %v811, %v811
        %v815 = vpack.c.b16 %v812, %v812
        %816 = vrot.lane.b32.xlu0 %v813, 64
        %v817 = vpop.permute.xlu0 %816
        %818 = vrot.lane.b32.xlu0 %v814, 64
        %v819 = vpop.permute.xlu0 %818
        %820 = vrot.lane.b32.xlu0 %v815, 64
        %v821 = vpop.permute.xlu0 %820
        %vm825 = vcmask 1043968
        %826 = vst.msk [vmem:[%s383] sm:$0xf] %vm825, %v817
        %827 = vst.msk [vmem:[%s383 + $0x4] sm:$0xf] %vm825, %v819
        %vm828 = vcmask 1040896
        %vm829 = vmand %vm828, %vm600
        %v830 = vld [vmem:[%s383 + $0x8] sm:$0x1]
        %v831 = vsel %vm829, %v821, %v830
        %832 = vst [vmem:[%s383 + $0x8] sm:$0x1] %v831
        %s833 = sand.u32 %s124, 1
        %s834 = sand.u32 %s124, 1
        %s835 = smul.addr %s834, 12
        %s836 = scalar_lea.vmem [#allocation5], %s835
        // Predicated region
        $region156: #{vit_forward.14} parent=142 // pred_check
          %p837 = pneg %p134
        $region157: #{vit_forward.14} parent=142 // pred_check_branch
          %839 = sbr.rel (%p837) target = $region159
        $region158: #{vit_forward.14} parent=142 // pred_region
          %s840 = smul.addr %s18, 6
          %s841 = sadd.s32 %s19, %s840
          %s842 = smul.addr %s841, 4
          %s843 = scalar_lea.vmem %s3, %s842
          // Predicated region
          $region160: #{vit_forward.14} parent=158 // pred_check
            _
          $region161: #{vit_forward.14} parent=158 // pred_check_branch
            %845 = sbr.rel (0) target = $region163
          $region162: #{vit_forward.14} parent=158 // pred_region
            // Predicated region
            $region164: #{vit_forward.14} parent=162 // pred_check
              _
            $region165: #{vit_forward.14} parent=162 // pred_check_branch
              %847 = sbr.rel target = $region167
            $region166: #{vit_forward.14} parent=162 // pred_region
              // Predicated region
              $region179: #{vit_forward.14} parent=166 // pred_check
                _
              $region180: #{vit_forward.14} parent=166 // pred_check_branch
                %866 = sbr.rel (0) target = $region182
              $region181: #{vit_forward.14} parent=166 // pred_region
                loop: start=0, step=1, limit=1
                $region183: #{vit_forward.14} parent=181 // loop_pre_header
                  _
                $region184: #{vit_forward.14} parent=181 // loop_header
                  %s868 = sphi 0, %s872
                  %p869 = scmp.ge.s32.totalorder %s868, 1
                  %s873 = sphi %s836, %s836
                  %s874 = sphi %s843, %s843
                $region185: #{vit_forward.14} parent=181 // loop_header_branch
                  %871 = sbr.rel (%p869) target = $region189
                $region186: #{vit_forward.14} parent=181 // loop_body
                  _
                $region187: #{vit_forward.14} parent=181 // loop_footer
                  %s872 = sadd.s32 1, %s868
                $region188: #{vit_forward.14} parent=181 // loop_footer_branch
                  %867 = sbr.rel target = $region184
                $region189: #{vit_forward.14} parent=181 // loop_exit
                  _
                loop: start=0, step=1, limit=1
                $region190: #{vit_forward.14} parent=181 // loop_pre_header
                  _
                $region191: #{vit_forward.14} parent=181 // loop_header
                  %s877 = sphi 0, %s881
                  %p878 = scmp.ge.s32.totalorder %s877, 1
                  %s882 = sphi %s836, %s836
                  %s883 = sphi %s843, %s843
                $region192: #{vit_forward.14} parent=181 // loop_header_branch
                  %880 = sbr.rel (%p878) target = $region196
                $region193: #{vit_forward.14} parent=181 // loop_body
                  %v884 = vld [vmem:[%s882] sm:$0xf]
                  %885 = vst [vmem:[%s883] sm:$0xf] %v884
                  %v886 = vld [vmem:[%s882 + $0x4] sm:$0xf]
                  %887 = vst [vmem:[%s883 + $0x8] sm:$0xf] %v886
                  %v888 = vld [vmem:[%s882 + $0x8] sm:$0xf]
                  %889 = vst [vmem:[%s883 + $0x10] sm:$0xf] %v888
                $region194: #{vit_forward.14} parent=181 // loop_footer
                  %s881 = sadd.s32 1, %s877
                $region195: #{vit_forward.14} parent=181 // loop_footer_branch
                  %876 = sbr.rel target = $region191
                $region196: #{vit_forward.14} parent=181 // loop_exit
                  _
              $region182: #{vit_forward.14} parent=166 // pred_fallthru
                _
            $region167: #{vit_forward.14} parent=162 // pred_fallthru
              _
            // Predicated region
            $region168: #{vit_forward.14} parent=162 // pred_check
              _
            $region169: #{vit_forward.14} parent=162 // pred_check_branch
              %849 = sbr.rel (0) target = $region171
            $region170: #{vit_forward.14} parent=162 // pred_region
              loop: start=0, step=1, limit=1
              $region172: #{vit_forward.14} parent=170 // loop_pre_header
                _
              $region173: #{vit_forward.14} parent=170 // loop_header
                %s852 = sphi 0, %s856
                %p853 = scmp.ge.s32.totalorder %s852, 1
                %s857 = sphi %s836, %s836
                %s858 = sphi %s843, %s843
              $region174: #{vit_forward.14} parent=170 // loop_header_branch
                %855 = sbr.rel (%p853) target = $region178
              $region175: #{vit_forward.14} parent=170 // loop_body
                %v859 = vld [vmem:[%s857] sm:$0xf]
                %860 = vst [vmem:[%s858] sm:$0xf] %v859
                %v861 = vld [vmem:[%s857 + $0x4] sm:$0xf]
                %862 = vst [vmem:[%s858 + $0x8] sm:$0xf] %v861
                %v863 = vld [vmem:[%s857 + $0x8] sm:$0xf]
                %864 = vst [vmem:[%s858 + $0x10] sm:$0xf] %v863
              $region176: #{vit_forward.14} parent=170 // loop_footer
                %s856 = sadd.s32 1, %s852
              $region177: #{vit_forward.14} parent=170 // loop_footer_branch
                %851 = sbr.rel target = $region173
              $region178: #{vit_forward.14} parent=170 // loop_exit
                _
            $region171: #{vit_forward.14} parent=162 // pred_fallthru
              _
          $region163: #{vit_forward.14} parent=158 // pred_fallthru
            _
          %890 = vnop
        $region159: #{vit_forward.14} parent=142 // pred_fallthru
          _
      $region143: #{vit_forward.14} parent=5 // pred_fallthru
        _
      %p891 = scmp.le.s32.totalorder 2, %s9
      // Predicated region
      $region197: #{vit_forward.14} parent=5 // pred_check
        %p892 = pneg %p891
      $region198: #{vit_forward.14} parent=5 // pred_check_branch
        %894 = sbr.rel (%p892) target = $region200
      $region199: #{vit_forward.14} parent=5 // pred_region
        %s895 = ssub.s32 %s9, 2
        // Predicated region
        $region201: #{vit_forward.14} parent=199 // pred_check
          %p896 = pneg %p140
        $region202: #{vit_forward.14} parent=199 // pred_check_branch
          %898 = sbr.rel (%p896) target = $region204
        $region203: #{vit_forward.14} parent=199 // pred_region
          %s899 = sand.u32 %s125, 1
          %s900 = sand.u32 %s125, 1
          %s901 = smul.addr %s900, 12
          %s902 = scalar_lea.vmem [#allocation5], %s901
        $region204: #{vit_forward.14} parent=199 // pred_fallthru
          _
      $region200: #{vit_forward.14} parent=5 // pred_fallthru
        _
    $region6: #{vit_forward.14} parent=1 // loop_footer
      %s13 = sadd.s32 1, %s9
    $region7: #{vit_forward.14} parent=1 // loop_footer_branch
      %8 = sbr.rel target = $region3
    $region8: #{vit_forward.14} parent=1 // loop_exit
      _

// kernel: vit_forward.15
$region0: #{vit_forward.15}
  #allocation0 [shape = 'u32[]', space=smem, size = 0x4, offset = 0x4, fixed_abs, tag = 'smem constant byte address 0x4 - core index']
  #allocation1 [shape = 'u32[144,128]{1,0:T(1,128)}', space=vmem, size = 0x12000, scoped, tag = 'internal scratch']
  %s0 = inlined_call_operand.vmem [shape: bf16[34,256], index: 0, kind: input, shape index: {}]
  %s1 = inlined_call_operand.vmem [shape: bf16[256,256], index: 1, kind: input, shape index: {}]
  %s2 = inlined_call_operand.vmem [shape: f32[1,256], index: 2, kind: input, shape index: {}]
  %s3 = inlined_call_operand.vmem [shape: bf16[34,256], index: 3, kind: input, shape index: {}]
  %s4 = inlined_call_operand.vmem [shape: bf16[34,256], index: 4, kind: output, shape index: {}]
  %s5 = sld [smem:[#allocation0]]
  $region26: #{vit_forward.15} parent=0
    _
  %s7 = ssub.s32 1, %s5
  %s8 = scalar_select 0, %s7, %s5
  // Predicated region
  $region2: #{vit_forward.15} parent=0 // pred_check
    _
  $region3: #{vit_forward.15} parent=0 // pred_check_branch
    %10 = sbr.rel (0) target = $region5
  $region4: #{vit_forward.15} parent=0 // pred_region
    _
  $region5: #{vit_forward.15} parent=0 // pred_fallthru
    _
  // Predicated region
  $region6: #{vit_forward.15} parent=0 // pred_check
    _
  $region7: #{vit_forward.15} parent=0 // pred_check_branch
    %12 = sbr.rel (0) target = $region9
  $region8: #{vit_forward.15} parent=0 // pred_region
    _
  $region9: #{vit_forward.15} parent=0 // pred_fallthru
    _
  // Predicated region
  $region10: #{vit_forward.15} parent=0 // pred_check
    _
  $region11: #{vit_forward.15} parent=0 // pred_check_branch
    %14 = sbr.rel (0) target = $region13
  $region12: #{vit_forward.15} parent=0 // pred_region
    _
  $region13: #{vit_forward.15} parent=0 // pred_fallthru
    _
  // Predicated region
  $region14: #{vit_forward.15} parent=0 // pred_check
    _
  $region15: #{vit_forward.15} parent=0 // pred_check_branch
    %16 = sbr.rel (0) target = $region17
  $region16: #{vit_forward.15} parent=0 // pred_region
    _
  $region17: #{vit_forward.15} parent=0 // pred_fallthru
    _
  %v17 = vld [vmem:[%s0] sm:$0xff]
  %v18 = vld [vmem:[%s0 + $0x8] sm:$0xff]
  %v19 = vld [vmem:[%s0 + $0x10] sm:$0xff]
  %v20 = vld [vmem:[%s0 + $0x18] sm:$0xff]
  %v21 = vld [vmem:[%s0 + $0x20] sm:$0x11]
  %v22 = vld [vmem:[%s1] sm:$0xff]
  %v23 = vld [vmem:[%s1 + $0x8] sm:$0xff]
  %v24 = vld [vmem:[%s1 + $0x10] sm:$0xff]
  %v25 = vld [vmem:[%s1 + $0x18] sm:$0xff]
  %v26 = vld [vmem:[%s1 + $0x20] sm:$0xff]
  %v27 = vld [vmem:[%s1 + $0x28] sm:$0xff]
  %v28 = vld [vmem:[%s1 + $0x30] sm:$0xff]
  %v29 = vld [vmem:[%s1 + $0x38] sm:$0xff]
  %v30 = vld [vmem:[%s1 + $0x40] sm:$0xff]
  %v31 = vld [vmem:[%s1 + $0x48] sm:$0xff]
  %v32 = vld [vmem:[%s1 + $0x50] sm:$0xff]
  %v33 = vld [vmem:[%s1 + $0x58] sm:$0xff]
  %v34 = vld [vmem:[%s1 + $0x60] sm:$0xff]
  %v35 = vld [vmem:[%s1 + $0x68] sm:$0xff]
  %v36 = vld [vmem:[%s1 + $0x70] sm:$0xff]
  %v37 = vld [vmem:[%s1 + $0x78] sm:$0xff]
  %v38 = vld [vmem:[%s1 + $0x80] sm:$0xff]
  %v39 = vld [vmem:[%s1 + $0x88] sm:$0xff]
  %v40 = vld [vmem:[%s1 + $0x90] sm:$0xff]
  %v41 = vld [vmem:[%s1 + $0x98] sm:$0xff]
  %v42 = vld [vmem:[%s1 + $0xa0] sm:$0xff]
  %v43 = vld [vmem:[%s1 + $0xa8] sm:$0xff]
  %v44 = vld [vmem:[%s1 + $0xb0] sm:$0xff]
  %v45 = vld [vmem:[%s1 + $0xb8] sm:$0xff]
  %v46 = vld [vmem:[%s1 + $0xc0] sm:$0xff]
  %v47 = vld [vmem:[%s1 + $0xc8] sm:$0xff]
  %v48 = vld [vmem:[%s1 + $0xd0] sm:$0xff]
  %v49 = vld [vmem:[%s1 + $0xd8] sm:$0xff]
  %v50 = vld [vmem:[%s1 + $0xe0] sm:$0xff]
  %v51 = vld [vmem:[%s1 + $0xe8] sm:$0xff]
  %v52 = vld [vmem:[%s1 + $0xf0] sm:$0xff]
  %v53 = vld [vmem:[%s1 + $0xf8] sm:$0xff]
  %v54 = vld [vmem:[%s2] sm:$0x3]
  %v56 = vlaneseq
  %v57 = vshrl.u32 %v56, 7
  %v58 = vsub.s32 0, %v57
  %v59 = vrot.slane %v54, %v58
  %v60 = vlaneseq
  %v61 = vshrl.u32 %v60, 7
  %v62 = vsub.s32 1, %v61
  %v63 = vrot.slane %v54, %v62
  %v71 = vunpack.c.l.b16 %v17
  %v72 = vunpack.c.h.b16 %v17
  %v73 = vunpack.c.l.b16 %v18
  %v74 = vunpack.c.h.b16 %v18
  %v75 = vunpack.c.l.b16 %v19
  %v76 = vunpack.c.h.b16 %v19
  %v77 = vunpack.c.l.b16 %v20
  %v78 = vunpack.c.h.b16 %v20
  %v79 = vunpack.c.l.b16 %v21
  %v80 = vunpack.c.h.b16 %v21
  %v81 = vpack.c.b16 %v73, %v71
  %v82 = vpack.c.b16 %v74, %v72
  %v83 = vpack.c.b16 %v77, %v75
  %v84 = vpack.c.b16 %v78, %v76
  %v85 = vpack.c.b16 %v79, %v79
  %v86 = vpack.c.b16 %v80, %v80
  %v125 = vunpack.c.l.b16 %v22
  %v126 = vunpack.c.h.b16 %v22
  %v127 = vunpack.c.l.b16 %v23
  %v128 = vunpack.c.h.b16 %v23
  %v129 = vunpack.c.l.b16 %v24
  %v130 = vunpack.c.h.b16 %v24
  %v131 = vunpack.c.l.b16 %v25
  %v132 = vunpack.c.h.b16 %v25
  %v133 = vunpack.c.l.b16 %v26
  %v134 = vunpack.c.h.b16 %v26
  %v135 = vunpack.c.l.b16 %v27
  %v136 = vunpack.c.h.b16 %v27
  %v137 = vunpack.c.l.b16 %v28
  %v138 = vunpack.c.h.b16 %v28
  %v139 = vunpack.c.l.b16 %v29
  %v140 = vunpack.c.h.b16 %v29
  %v141 = vunpack.c.l.b16 %v30
  %v142 = vunpack.c.h.b16 %v30
  %v143 = vunpack.c.l.b16 %v31
  %v144 = vunpack.c.h.b16 %v31
  %v145 = vunpack.c.l.b16 %v32
  %v146 = vunpack.c.h.b16 %v32
  %v147 = vunpack.c.l.b16 %v33
  %v148 = vunpack.c.h.b16 %v33
  %v149 = vunpack.c.l.b16 %v34
  %v150 = vunpack.c.h.b16 %v34
  %v151 = vunpack.c.l.b16 %v35
  %v152 = vunpack.c.h.b16 %v35
  %v153 = vunpack.c.l.b16 %v36
  %v154 = vunpack.c.h.b16 %v36
  %v155 = vunpack.c.l.b16 %v37
  %v156 = vunpack.c.h.b16 %v37
  %v157 = vunpack.c.l.b16 %v38
  %v158 = vunpack.c.h.b16 %v38
  %v159 = vunpack.c.l.b16 %v39
  %v160 = vunpack.c.h.b16 %v39
  %v161 = vunpack.c.l.b16 %v40
  %v162 = vunpack.c.h.b16 %v40
  %v163 = vunpack.c.l.b16 %v41
  %v164 = vunpack.c.h.b16 %v41
  %v165 = vunpack.c.l.b16 %v42
  %v166 = vunpack.c.h.b16 %v42
  %v167 = vunpack.c.l.b16 %v43
  %v168 = vunpack.c.h.b16 %v43
  %v169 = vunpack.c.l.b16 %v44
  %v170 = vunpack.c.h.b16 %v44
  %v171 = vunpack.c.l.b16 %v45
  %v172 = vunpack.c.h.b16 %v45
  %v173 = vunpack.c.l.b16 %v46
  %v174 = vunpack.c.h.b16 %v46
  %v175 = vunpack.c.l.b16 %v47
  %v176 = vunpack.c.h.b16 %v47
  %v177 = vunpack.c.l.b16 %v48
  %v178 = vunpack.c.h.b16 %v48
  %v179 = vunpack.c.l.b16 %v49
  %v180 = vunpack.c.h.b16 %v49
  %v181 = vunpack.c.l.b16 %v50
  %v182 = vunpack.c.h.b16 %v50
  %v183 = vunpack.c.l.b16 %v51
  %v184 = vunpack.c.h.b16 %v51
  %v185 = vunpack.c.l.b16 %v52
  %v186 = vunpack.c.h.b16 %v52
  %v187 = vunpack.c.l.b16 %v53
  %v188 = vunpack.c.h.b16 %v53
  %v189 = vpack.c.b16 %v127, %v125
  %v190 = vpack.c.b16 %v128, %v126
  %v191 = vpack.c.b16 %v131, %v129
  %v192 = vpack.c.b16 %v132, %v130
  %v193 = vpack.c.b16 %v135, %v133
  %v194 = vpack.c.b16 %v136, %v134
  %v195 = vpack.c.b16 %v139, %v137
  %v196 = vpack.c.b16 %v140, %v138
  %v197 = vpack.c.b16 %v143, %v141
  %v198 = vpack.c.b16 %v144, %v142
  %v199 = vpack.c.b16 %v147, %v145
  %v200 = vpack.c.b16 %v148, %v146
  %v201 = vpack.c.b16 %v151, %v149
  %v202 = vpack.c.b16 %v152, %v150
  %v203 = vpack.c.b16 %v155, %v153
  %v204 = vpack.c.b16 %v156, %v154
  %v205 = vpack.c.b16 %v159, %v157
  %v206 = vpack.c.b16 %v160, %v158
  %v207 = vpack.c.b16 %v163, %v161
  %v208 = vpack.c.b16 %v164, %v162
  %v209 = vpack.c.b16 %v167, %v165
  %v210 = vpack.c.b16 %v168, %v166
  %v211 = vpack.c.b16 %v171, %v169
  %v212 = vpack.c.b16 %v172, %v170
  %v213 = vpack.c.b16 %v175, %v173
  %v214 = vpack.c.b16 %v176, %v174
  %v215 = vpack.c.b16 %v179, %v177
  %v216 = vpack.c.b16 %v180, %v178
  %v217 = vpack.c.b16 %v183, %v181
  %v218 = vpack.c.b16 %v184, %v182
  %v219 = vpack.c.b16 %v187, %v185
  %v220 = vpack.c.b16 %v188, %v186
  %253 = vmatprep.subr.bf16.mxu0 %v190
  %254 = vmatpush1.bf16.msra.mxu0 %v189
  %255 = vmatprep.subr.bf16.mxu0 %v192
  %256 = vmatpush1.bf16.msra.mxu0 %v191
  %257 = vmatprep.subr.bf16.mxu0 %v194
  %258 = vmatpush1.bf16.msra.mxu0 %v193
  %259 = vmatprep.subr.bf16.mxu0 %v196
  %260 = vmatpush1.bf16.msra.mxu0 %v195
  %261 = vmatprep.subr.bf16.mxu0 %v198
  %262 = vmatpush1.bf16.msra.mxu0 %v197
  %263 = vmatprep.subr.bf16.mxu0 %v200
  %264 = vmatpush1.bf16.msra.mxu0 %v199
  %265 = vmatprep.subr.bf16.mxu0 %v202
  %266 = vmatpush1.bf16.msra.mxu0 %v201
  %267 = vmatprep.subr.bf16.mxu0 %v204
  %268 = vmatpush1.bf16.msra.mxu0 %v203
  %269 = vmatprep.subr.bf16.mxu0 %v206
  %270 = vmatpush1.bf16.msra.mxu0 %v205
  %271 = vmatprep.subr.bf16.mxu0 %v208
  %272 = vmatpush1.bf16.msra.mxu0 %v207
  %273 = vmatprep.subr.bf16.mxu0 %v210
  %274 = vmatpush1.bf16.msra.mxu0 %v209
  %275 = vmatprep.subr.bf16.mxu0 %v212
  %276 = vmatpush1.bf16.msra.mxu0 %v211
  %277 = vmatprep.subr.bf16.mxu0 %v214
  %278 = vmatpush1.bf16.msra.mxu0 %v213
  %279 = vmatprep.subr.bf16.mxu0 %v216
  %280 = vmatpush1.bf16.msra.mxu0 %v215
  %281 = vmatprep.subr.bf16.mxu0 %v218
  %282 = vmatpush1.bf16.msra.mxu0 %v217
  %283 = vmatprep.subr.bf16.mxu0 %v220
  %284 = vmatpush1.bf16.msra.mxu0 %v219
  %285 = vmatprep.mubr.bf16.mxu0 %v82
  %286 = vmatmul.mubr.bf16.gmra.mrb[0].mxu0 %v81
  %v287 = vpop.f32.mrb[0].mxu0
  %v288 = vadd.f32 %v59, %v287
  %v289 = vpop.f32.mrb[0].mxu0
  %v290 = vadd.f32 %v63, %v289
  %v291 = vpop.f32.mrb[0].mxu0
  %v292 = vadd.f32 %v59, %v291
  %v293 = vpop.f32.mrb[0].mxu0
  %v294 = vadd.f32 %v63, %v293
  %295 = vmatprep.mubr.bf16.mxu0 %v84
  %296 = vmatmul.mubr.bf16.gmra.mrb[0].mxu0 %v83
  %v297 = vpop.f32.mrb[0].mxu0
  %v298 = vadd.f32 %v59, %v297
  %v299 = vpop.f32.mrb[0].mxu0
  %v300 = vadd.f32 %v63, %v299
  %v301 = vpop.f32.mrb[0].mxu0
  %v302 = vadd.f32 %v59, %v301
  %v303 = vpop.f32.mrb[0].mxu0
  %v304 = vadd.f32 %v63, %v303
  %305 = vmatprep.mubr.bf16.mxu0 %v86
  %306 = vmatmul.mubr.bf16.gmra.mrb[0].mxu0 %v85
  %v307 = vpop.f32.mrb[0].mxu0
  %v308 = vadd.f32 %v59, %v307
  %v309 = vpop.f32.mrb[0].mxu0
  %v310 = vadd.f32 %v63, %v309
  %v311 = vpop.f32.mrb[0].mxu0
  %v312 = vpop.f32.mrb[0].mxu0
  %313 = vdwg.mxu0
  %v314 = vld [vmem:[%s3] sm:$0xff]
  %v315 = vld [vmem:[%s3 + $0x8] sm:$0xff]
  %v316 = vld [vmem:[%s3 + $0x10] sm:$0xff]
  %v317 = vld [vmem:[%s3 + $0x18] sm:$0xff]
  %v318 = vld [vmem:[%s3 + $0x20] sm:$0x11]
  %v319 = vunpack.c.l.bf16 %v314
  %v320 = vunpack.c.h.bf16 %v314
  %v321 = vunpack.c.l.bf16 %v315
  %v322 = vunpack.c.h.bf16 %v315
  %v323 = vunpack.c.l.bf16 %v316
  %v324 = vunpack.c.h.bf16 %v316
  %v325 = vunpack.c.l.bf16 %v317
  %v326 = vunpack.c.h.bf16 %v317
  %v327 = vunpack.c.l.bf16 %v318
  %v328 = vunpack.c.h.bf16 %v318
  %v329 = vadd.f32 %v288, %v319
  %v330 = vadd.f32 %v290, %v320
  %v331 = vadd.f32 %v292, %v321
  %v332 = vadd.f32 %v294, %v322
  %v333 = vadd.f32 %v298, %v323
  %v334 = vadd.f32 %v300, %v324
  %v335 = vadd.f32 %v302, %v325
  %v336 = vadd.f32 %v304, %v326
  %v337 = vadd.f32 %v308, %v327
  %v338 = vadd.f32 %v310, %v328
  %v339 = vpack.c.bf16 %v331, %v329
  %v340 = vpack.c.bf16 %v332, %v330
  %v341 = vpack.c.bf16 %v335, %v333
  %v342 = vpack.c.bf16 %v336, %v334
  %v343 = vpack.c.bf16 %v337, %v337
  %v344 = vpack.c.bf16 %v338, %v338
  %v351 = vunpack.c.l.b16 %v339
  %v352 = vunpack.c.l.b16 %v340
  %v353 = vunpack.c.h.b16 %v339
  %v354 = vunpack.c.h.b16 %v340
  %v355 = vunpack.c.l.b16 %v341
  %v356 = vunpack.c.l.b16 %v342
  %v357 = vunpack.c.h.b16 %v341
  %v358 = vunpack.c.h.b16 %v342
  %v359 = vunpack.c.l.b16 %v343
  %v360 = vunpack.c.l.b16 %v344
  %v361 = vpack.c.b16 %v352, %v351
  %v362 = vpack.c.b16 %v354, %v353
  %v363 = vpack.c.b16 %v356, %v355
  %v364 = vpack.c.b16 %v358, %v357
  %v365 = vpack.c.b16 %v360, %v359
  %371 = vst [vmem:[%s4] sm:$0xff] %v361
  %372 = vst [vmem:[%s4 + $0x8] sm:$0xff] %v362
  %373 = vst [vmem:[%s4 + $0x10] sm:$0xff] %v363
  %374 = vst [vmem:[%s4 + $0x18] sm:$0xff] %v364
  %375 = vst [vmem:[%s4 + $0x20] sm:$0x11] %v365
  // Predicated region
  $region18: #{vit_forward.15} parent=0 // pred_check
    _
  $region19: #{vit_forward.15} parent=0 // pred_check_branch
    %377 = sbr.rel (0) target = $region21
  $region20: #{vit_forward.15} parent=0 // pred_region
    _
  $region21: #{vit_forward.15} parent=0 // pred_fallthru
    _
  // Predicated region
  $region22: #{vit_forward.15} parent=0 // pred_check
    _
  $region23: #{vit_forward.15} parent=0 // pred_check_branch
    %379 = sbr.rel (0) target = $region25
  $region24: #{vit_forward.15} parent=0 // pred_region
    _
  $region25: #{vit_forward.15} parent=0 // pred_fallthru
    _

// kernel: vit_forward.13
$region0: #{vit_forward.13}
  #allocation0 [shape = 'u32[]', space=smem, size = 0x4, offset = 0x4, fixed_abs, tag = 'smem constant byte address 0x4 - core index']
  #allocation1 [shape = 'u32[144,128]{1,0:T(1,128)}', space=vmem, size = 0x12000, scoped, tag = 'internal scratch']
  %s0 = inlined_call_operand.vmem [shape: bf16[34,256], index: 0, kind: input, shape index: {}]
  %s1 = inlined_call_operand.vmem [shape: bf16[256,768], index: 1, kind: input, shape index: {}]
  %s2 = inlined_call_operand.vmem [shape: f32[1,768], index: 2, kind: input, shape index: {}]
  %s3 = inlined_call_operand.vmem [shape: f32[1,256], index: 3, kind: input, shape index: {}]
  %s4 = inlined_call_operand.vmem [shape: f32[1,256], index: 4, kind: input, shape index: {}]
  %s5 = inlined_call_operand.vmem [shape: bf16[34,768], index: 5, kind: output, shape index: {}]
  %s6 = sld [smem:[#allocation0]]
  $region181: #{vit_forward.13} parent=0
    _
  %s8 = ssub.s32 1, %s6
  %s9 = scalar_select 0, %s8, %s6
  $region1: #{vit_forward.13} parent=0
    #allocation2 [shape = 'u8[524288]{0}', space=vmem, size = 0x80000, scoped, tag = 'input window, operand 1']
    #allocation3 [shape = 'u8[81920]{0}', space=vmem, size = 0x14000, scoped, tag = 'output window, operand 0']
    loop: start=0, step=1, limit=4
    $region2: #{vit_forward.13} parent=1 // loop_pre_header
      _
    $region3: #{vit_forward.13} parent=1 // loop_header
      %s11 = sphi 0, %s15
      %p12 = scmp.ge.s32.totalorder %s11, 4
      %s18 = sphi 0, %s30
      %s19 = sphi 0, %s26
      %s20 = sphi 0, %s18
      %s21 = sphi 0, %s19
      %s22 = sphi 0, %s20
      %s23 = sphi 0, %s21
      %s33 = sphi 0, %s35
      %s36 = sphi 0, %s33
      %s37 = sphi 0, %s36
      %s53 = sphi 0, %s37
      %s59 = sphi 0, %s61
      %s62 = sphi 0, %s59
      %s63 = sphi 0, %s62
      %s79 = sphi 0, %s63
      %s85 = sphi 0, %s87
      %s88 = sphi 0, %s85
      %s89 = sphi 0, %s88
      %s105 = sphi 0, %s89
      %s109 = sphi 0, %s109
      %s111 = sphi 0, %s109
      %s112 = sphi 0, %s111
      %s126 = sphi 0, %s112
      %s130 = sphi 0, %s130
      %s132 = sphi 0, %s130
      %s133 = sphi 0, %s132
      %s147 = sphi 0, %s133
      %s155 = sphi 0, %s157
      %s158 = sphi 0, %s155
      %s159 = sphi 0, %s158
      %s175 = sphi 0, %s159
    $region4: #{vit_forward.13} parent=1 // loop_header_branch
      %14 = sbr.rel (%p12) target = $region8
    $region5: #{vit_forward.13} parent=1 // loop_body
      %s16 = ssub.s32 %s11, 1
      %s17 = ssub.s32 %s11, 2
      %s24 = sadd.s32 1, %s19
      %p25 = scmp.ge.s32.totalorder %s24, 2
      %s26 = scalar_select %p25, 0, %s24
      %s27 = sadd.s32 1, %s18
      %s28 = scalar_select %p25, %s27, %s18
      %p29 = scmp.ge.s32.totalorder %s28, 1
      %s30 = scalar_select %p29, 0, %s28
      %s31 = ssub.s32 %s18, %s30
      %p32 = scmp.eq.s32.totalorder %s31, 0
      %s34 = sadd.s32 %s33, 1
      %s35 = scalar_select %p32, %s33, %s34
      %p38 = pneg %p32
      %p39 = scmp.eq.s32.totalorder %s11, 1
      %p40 = por %p38, %p39
      %p41 = scmp.ne.s32.totalorder %s33, %s36
      %p42 = scmp.eq.s32.totalorder %s11, 0
      %p43 = por %p41, %p42
      %p44 = scmp.ne.s32.totalorder %s33, %s36
      %p45 = scmp.eq.s32.totalorder %s16, 1
      %p46 = por %p44, %p45
      %p47 = scmp.ne.s32.totalorder %s36, %s37
      %p48 = scmp.eq.s32.totalorder %s16, 0
      %p49 = por %p47, %p48
      %p50 = scmp.ne.s32.totalorder %s36, %s37
      %p51 = scmp.eq.s32.totalorder %s17, 1
      %p52 = por %p50, %p51
      %p54 = scmp.ne.s32.totalorder %s37, %s53
      %p55 = scmp.eq.s32.totalorder %s17, 0
      %p56 = por %p54, %p55
      %s57 = ssub.s32 %s19, %s26
      %p58 = scmp.eq.s32.totalorder %s57, 0
      %s60 = sadd.s32 %s59, 1
      %s61 = scalar_select %p58, %s59, %s60
      %p64 = pneg %p58
      %p65 = scmp.eq.s32.totalorder %s11, 1
      %p66 = por %p64, %p65
      %p67 = scmp.ne.s32.totalorder %s59, %s62
      %p68 = scmp.eq.s32.totalorder %s11, 0
      %p69 = por %p67, %p68
      %p70 = scmp.ne.s32.totalorder %s59, %s62
      %p71 = scmp.eq.s32.totalorder %s16, 1
      %p72 = por %p70, %p71
      %p73 = scmp.ne.s32.totalorder %s62, %s63
      %p74 = scmp.eq.s32.totalorder %s16, 0
      %p75 = por %p73, %p74
      %p76 = scmp.ne.s32.totalorder %s62, %s63
      %p77 = scmp.eq.s32.totalorder %s17, 1
      %p78 = por %p76, %p77
      %p80 = scmp.ne.s32.totalorder %s63, %s79
      %p81 = scmp.eq.s32.totalorder %s17, 0
      %p82 = por %p80, %p81
      %s83 = ssub.s32 %s19, %s26
      %p84 = scmp.eq.s32.totalorder %s83, 0
      %s86 = sadd.s32 %s85, 1
      %s87 = scalar_select %p84, %s85, %s86
      %p90 = pneg %p84
      %p91 = scmp.eq.s32.totalorder %s11, 1
      %p92 = por %p90, %p91
      %p93 = scmp.ne.s32.totalorder %s85, %s88
      %p94 = scmp.eq.s32.totalorder %s11, 0
      %p95 = por %p93, %p94
      %p96 = scmp.ne.s32.totalorder %s85, %s88
      %p97 = scmp.eq.s32.totalorder %s16, 1
      %p98 = por %p96, %p97
      %p99 = scmp.ne.s32.totalorder %s88, %s89
      %p100 = scmp.eq.s32.totalorder %s16, 0
      %p101 = por %p99, %p100
      %p102 = scmp.ne.s32.totalorder %s88, %s89
      %p103 = scmp.eq.s32.totalorder %s17, 1
      %p104 = por %p102, %p103
      %p106 = scmp.ne.s32.totalorder %s89, %s105
      %p107 = scmp.eq.s32.totalorder %s17, 0
      %p108 = por %p106, %p107
      %s110 = sadd.s32 %s109, 1
      %p113 = scmp.eq.s32.totalorder %s11, 1
      %p114 = scmp.ne.s32.totalorder %s109, %s111
      %p115 = scmp.eq.s32.totalorder %s11, 0
      %p116 = por %p114, %p115
      %p117 = scmp.ne.s32.totalorder %s109, %s111
      %p118 = scmp.eq.s32.totalorder %s16, 1
      %p119 = por %p117, %p118
      %p120 = scmp.ne.s32.totalorder %s111, %s112
      %p121 = scmp.eq.s32.totalorder %s16, 0
      %p122 = por %p120, %p121
      %p123 = scmp.ne.s32.totalorder %s111, %s112
      %p124 = scmp.eq.s32.totalorder %s17, 1
      %p125 = por %p123, %p124
      %p127 = scmp.ne.s32.totalorder %s112, %s126
      %p128 = scmp.eq.s32.totalorder %s17, 0
      %p129 = por %p127, %p128
      %s131 = sadd.s32 %s130, 1
      %p134 = scmp.eq.s32.totalorder %s11, 1
      %p135 = scmp.ne.s32.totalorder %s130, %s132
      %p136 = scmp.eq.s32.totalorder %s11, 0
      %p137 = por %p135, %p136
      %p138 = scmp.ne.s32.totalorder %s130, %s132
      %p139 = scmp.eq.s32.totalorder %s16, 1
      %p140 = por %p138, %p139
      %p141 = scmp.ne.s32.totalorder %s132, %s133
      %p142 = scmp.eq.s32.totalorder %s16, 0
      %p143 = por %p141, %p142
      %p144 = scmp.ne.s32.totalorder %s132, %s133
      %p145 = scmp.eq.s32.totalorder %s17, 1
      %p146 = por %p144, %p145
      %p148 = scmp.ne.s32.totalorder %s133, %s147
      %p149 = scmp.eq.s32.totalorder %s17, 0
      %p150 = por %p148, %p149
      %s151 = ssub.s32 %s18, %s30
      %s152 = ssub.s32 %s19, %s26
      %s153 = sor.u32 %s151, %s152
      %p154 = scmp.eq.s32.totalorder %s153, 0
      %s156 = sadd.s32 %s155, 1
      %s157 = scalar_select %p154, %s155, %s156
      %p160 = pneg %p154
      %p161 = scmp.eq.s32.totalorder %s11, 1
      %p162 = por %p160, %p161
      %p163 = scmp.ne.s32.totalorder %s155, %s158
      %p164 = scmp.eq.s32.totalorder %s11, 0
      %p165 = por %p163, %p164
      %p166 = scmp.ne.s32.totalorder %s155, %s158
      %p167 = scmp.eq.s32.totalorder %s16, 1
      %p168 = por %p166, %p167
      %p169 = scmp.ne.s32.totalorder %s158, %s159
      %p170 = scmp.eq.s32.totalorder %s16, 0
      %p171 = por %p169, %p170
      %p172 = scmp.ne.s32.totalorder %s158, %s159
      %p173 = scmp.eq.s32.totalorder %s17, 1
      %p174 = por %p172, %p173
      %p176 = scmp.ne.s32.totalorder %s159, %s175
      %p177 = scmp.eq.s32.totalorder %s17, 0
      %p178 = por %p176, %p177
      %p179 = scmp.le.s32.totalorder 1, %s11
      %p180 = scmp.lt.s32.totalorder %s11, 3
      %p181 = pnand %p179, %p180
      %p182 = pneg %p181
      // Predicated region
      $region9: #{vit_forward.13} parent=5 // pred_check
        _
      $region10: #{vit_forward.13} parent=5 // pred_check_branch
        %184 = sbr.rel (%p181) target = $region12
      $region11: #{vit_forward.13} parent=5 // pred_region
        %s185 = ssub.s32 %s11, 1
        // Predicated region
        $region13: #{vit_forward.13} parent=11 // pred_check
          %p186 = pneg %p49
        $region14: #{vit_forward.13} parent=11 // pred_check_branch
          %188 = sbr.rel (%p186) target = $region16
        $region15: #{vit_forward.13} parent=11 // pred_region
          %s189 = smul.u32 5, %s20
          %p190 = scmp.lt.s32.totalorder %s189, 4
          %s191 = scalar_select %p190, %s189, 4
          %s192 = smul.addr %s191, 2
          %s193 = smul.addr %s192, 4
          %s194 = scalar_lea.vmem %s0, %s193
          %s195 = smul.u32 5, %s20
        $region16: #{vit_forward.13} parent=11 // pred_fallthru
          _
        // Predicated region
        $region17: #{vit_forward.13} parent=11 // pred_check
          %p196 = pneg %p122
        $region18: #{vit_forward.13} parent=11 // pred_check_branch
          %198 = sbr.rel (%p196) target = $region20
        $region19: #{vit_forward.13} parent=11 // pred_region
          _
        $region20: #{vit_forward.13} parent=11 // pred_fallthru
          _
        // Predicated region
        $region21: #{vit_forward.13} parent=11 // pred_check
          %p199 = pneg %p143
        $region22: #{vit_forward.13} parent=11 // pred_check_branch
          %201 = sbr.rel (%p199) target = $region24
        $region23: #{vit_forward.13} parent=11 // pred_region
          _
        $region24: #{vit_forward.13} parent=11 // pred_fallthru
          _
      $region12: #{vit_forward.13} parent=5 // pred_fallthru
        _
      %p202 = scmp.lt.s32.totalorder %s11, 2
      // Predicated region
      $region25: #{vit_forward.13} parent=5 // pred_check
        %p203 = pneg %p202
      $region26: #{vit_forward.13} parent=5 // pred_check_branch
        %205 = sbr.rel (%p203) target = $region28
      $region27: #{vit_forward.13} parent=5 // pred_region
        // Predicated region
        $region29: #{vit_forward.13} parent=27 // pred_check
          %p206 = pneg %p69
        $region30: #{vit_forward.13} parent=27 // pred_check_branch
          %208 = sbr.rel (%p206) target = $region32
        $region31: #{vit_forward.13} parent=27 // pred_region
          %s209 = sand.u32 %s59, 1
          %s210 = sand.u32 %s59, 1
          %s211 = smul.addr %s210, 512
          %s212 = scalar_lea.vmem [#allocation2], %s211
          %s213 = smul.u32 4, %s19
          %s214 = ssub.s32 6, %s213
          %p215 = scmp.lt.s32.totalorder %s214, 4
          %s216 = scalar_select %p215, %s214, 4
          %s217 = smul.u32 2048, %s216
          %p218 = scmp.ne.s32.totalorder 0, %s217
          %s219 = smul.addr %s213, 4
          %s220 = scalar_lea.vmem %s1, %s219
          %s221 = smul.u32 %s216, 4
          // Predicated region
          $region33: #{vit_forward.13} parent=31 // pred_check
            %p222 = pneg %p218
          $region34: #{vit_forward.13} parent=31 // pred_check_branch
            %224 = sbr.rel (%p222) target = $region36
          $region35: #{vit_forward.13} parent=31 // pred_region
            %p225 = scmp.lt.u32.totalorder %s221, 8
            %p226 = pneg %p225
            // Predicated region
            $region37: #{vit_forward.13} parent=35 // pred_check
              _
            $region38: #{vit_forward.13} parent=35 // pred_check_branch
              %228 = sbr.rel (%p225) target = $region40
            $region39: #{vit_forward.13} parent=35 // pred_region
              %s305 = sand.u32 %s221, 7
              %p306 = scmp.eq.s32.totalorder %s305, 0
              // Predicated region
              $region52: #{vit_forward.13} parent=39 // pred_check
                %p307 = pneg %p306
              $region53: #{vit_forward.13} parent=39 // pred_check_branch
                %309 = sbr.rel (%p307) target = $region55
              $region54: #{vit_forward.13} parent=39 // pred_region
                %s310 = sshrl.u32 %s221, 3
                %s311 = sshrl.u32 %s310, 1
                // While loop
                $region56: #{vit_forward.13} parent=54 // loop_pre_header
                  _
                $region57: #{vit_forward.13} parent=54 // loop_header
                  %s315 = sphi 0, %s317
                  %p316 = scmp.ge.s32.totalorder %s315, %s311
                  %s320 = sphi 0, %s453
                  %s321 = sphi %s220, %s456
                  %s322 = sphi %s212, %s457
                $region58: #{vit_forward.13} parent=54 // loop_header_branch
                  %319 = sbr.rel (%p316) target = $region62
                $region59: #{vit_forward.13} parent=54 // loop_body
                  %v323 = vld [vmem:[%s321] sm:$0xff]
                  %324 = vst [vmem:[%s322] sm:$0xff] %v323
                  %v325 = vld [vmem:[%s321 + $0x8] sm:$0xff]
                  %326 = vst [vmem:[%s322 + $0x8] sm:$0xff] %v325
                  %v327 = vld [vmem:[%s321 + $0x18] sm:$0xff]
                  %328 = vst [vmem:[%s322 + $0x10] sm:$0xff] %v327
                  %v329 = vld [vmem:[%s321 + $0x20] sm:$0xff]
                  %330 = vst [vmem:[%s322 + $0x18] sm:$0xff] %v329
                  %v331 = vld [vmem:[%s321 + $0x30] sm:$0xff]
                  %332 = vst [vmem:[%s322 + $0x20] sm:$0xff] %v331
                  %v333 = vld [vmem:[%s321 + $0x38] sm:$0xff]
                  %334 = vst [vmem:[%s322 + $0x28] sm:$0xff] %v333
                  %v335 = vld [vmem:[%s321 + $0x48] sm:$0xff]
                  %336 = vst [vmem:[%s322 + $0x30] sm:$0xff] %v335
                  %v337 = vld [vmem:[%s321 + $0x50] sm:$0xff]
                  %338 = vst [vmem:[%s322 + $0x38] sm:$0xff] %v337
                  %v339 = vld [vmem:[%s321 + $0x60] sm:$0xff]
                  %340 = vst [vmem:[%s322 + $0x40] sm:$0xff] %v339
                  %v341 = vld [vmem:[%s321 + $0x68] sm:$0xff]
                  %342 = vst [vmem:[%s322 + $0x48] sm:$0xff] %v341
                  %v343 = vld [vmem:[%s321 + $0x78] sm:$0xff]
                  %344 = vst [vmem:[%s322 + $0x50] sm:$0xff] %v343
                  %v345 = vld [vmem:[%s321 + $0x80] sm:$0xff]
                  %346 = vst [vmem:[%s322 + $0x58] sm:$0xff] %v345
                  %v347 = vld [vmem:[%s321 + $0x90] sm:$0xff]
                  %348 = vst [vmem:[%s322 + $0x60] sm:$0xff] %v347
                  %v349 = vld [vmem:[%s321 + $0x98] sm:$0xff]
                  %350 = vst [vmem:[%s322 + $0x68] sm:$0xff] %v349
                  %v351 = vld [vmem:[%s321 + $0xa8] sm:$0xff]
                  %352 = vst [vmem:[%s322 + $0x70] sm:$0xff] %v351
                  %v353 = vld [vmem:[%s321 + $0xb0] sm:$0xff]
                  %354 = vst [vmem:[%s322 + $0x78] sm:$0xff] %v353
                  %v355 = vld [vmem:[%s321 + $0xc0] sm:$0xff]
                  %356 = vst [vmem:[%s322 + $0x80] sm:$0xff] %v355
                  %v357 = vld [vmem:[%s321 + $0xc8] sm:$0xff]
                  %358 = vst [vmem:[%s322 + $0x88] sm:$0xff] %v357
                  %v359 = vld [vmem:[%s321 + $0xd8] sm:$0xff]
                  %360 = vst [vmem:[%s322 + $0x90] sm:$0xff] %v359
                  %v361 = vld [vmem:[%s321 + $0xe0] sm:$0xff]
                  %362 = vst [vmem:[%s322 + $0x98] sm:$0xff] %v361
                  %v363 = vld [vmem:[%s321 + $0xf0] sm:$0xff]
                  %364 = vst [vmem:[%s322 + $0xa0] sm:$0xff] %v363
                  %v365 = vld [vmem:[%s321 + $0xf8] sm:$0xff]
                  %366 = vst [vmem:[%s322 + $0xa8] sm:$0xff] %v365
                  %v367 = vld [vmem:[%s321 + $0x108] sm:$0xff]
                  %368 = vst [vmem:[%s322 + $0xb0] sm:$0xff] %v367
                  %v369 = vld [vmem:[%s321 + $0x110] sm:$0xff]
                  %370 = vst [vmem:[%s322 + $0xb8] sm:$0xff] %v369
                  %v371 = vld [vmem:[%s321 + $0x120] sm:$0xff]
                  %372 = vst [vmem:[%s322 + $0xc0] sm:$0xff] %v371
                  %v373 = vld [vmem:[%s321 + $0x128] sm:$0xff]
                  %374 = vst [vmem:[%s322 + $0xc8] sm:$0xff] %v373
                  %v375 = vld [vmem:[%s321 + $0x138] sm:$0xff]
                  %376 = vst [vmem:[%s322 + $0xd0] sm:$0xff] %v375
                  %v377 = vld [vmem:[%s321 + $0x140] sm:$0xff]
                  %378 = vst [vmem:[%s322 + $0xd8] sm:$0xff] %v377
                  %v379 = vld [vmem:[%s321 + $0x150] sm:$0xff]
                  %380 = vst [vmem:[%s322 + $0xe0] sm:$0xff] %v379
                  %v381 = vld [vmem:[%s321 + $0x158] sm:$0xff]
                  %382 = vst [vmem:[%s322 + $0xe8] sm:$0xff] %v381
                  %v383 = vld [vmem:[%s321 + $0x168] sm:$0xff]
                  %384 = vst [vmem:[%s322 + $0xf0] sm:$0xff] %v383
                  %v385 = vld [vmem:[%s321 + $0x170] sm:$0xff]
                  %386 = vst [vmem:[%s322 + $0xf8] sm:$0xff] %v385
                  %v387 = vld [vmem:[%s321 + $0x180] sm:$0xff]
                  %388 = vst [vmem:[%s322 + $0x100] sm:$0xff] %v387
                  %v389 = vld [vmem:[%s321 + $0x188] sm:$0xff]
                  %390 = vst [vmem:[%s322 + $0x108] sm:$0xff] %v389
                  %v391 = vld [vmem:[%s321 + $0x198] sm:$0xff]
                  %392 = vst [vmem:[%s322 + $0x110] sm:$0xff] %v391
                  %v393 = vld [vmem:[%s321 + $0x1a0] sm:$0xff]
                  %394 = vst [vmem:[%s322 + $0x118] sm:$0xff] %v393
                  %v395 = vld [vmem:[%s321 + $0x1b0] sm:$0xff]
                  %396 = vst [vmem:[%s322 + $0x120] sm:$0xff] %v395
                  %v397 = vld [vmem:[%s321 + $0x1b8] sm:$0xff]
                  %398 = vst [vmem:[%s322 + $0x128] sm:$0xff] %v397
                  %v399 = vld [vmem:[%s321 + $0x1c8] sm:$0xff]
                  %400 = vst [vmem:[%s322 + $0x130] sm:$0xff] %v399
                  %v401 = vld [vmem:[%s321 + $0x1d0] sm:$0xff]
                  %402 = vst [vmem:[%s322 + $0x138] sm:$0xff] %v401
                  %v403 = vld [vmem:[%s321 + $0x1e0] sm:$0xff]
                  %404 = vst [vmem:[%s322 + $0x140] sm:$0xff] %v403
                  %v405 = vld [vmem:[%s321 + $0x1e8] sm:$0xff]
                  %406 = vst [vmem:[%s322 + $0x148] sm:$0xff] %v405
                  %v407 = vld [vmem:[%s321 + $0x1f8] sm:$0xff]
                  %408 = vst [vmem:[%s322 + $0x150] sm:$0xff] %v407
                  %v409 = vld [vmem:[%s321 + $0x200] sm:$0xff]
                  %410 = vst [vmem:[%s322 + $0x158] sm:$0xff] %v409
                  %v411 = vld [vmem:[%s321 + $0x210] sm:$0xff]
                  %412 = vst [vmem:[%s322 + $0x160] sm:$0xff] %v411
                  %v413 = vld [vmem:[%s321 + $0x218] sm:$0xff]
                  %414 = vst [vmem:[%s322 + $0x168] sm:$0xff] %v413
                  %v415 = vld [vmem:[%s321 + $0x228] sm:$0xff]
                  %416 = vst [vmem:[%s322 + $0x170] sm:$0xff] %v415
                  %v417 = vld [vmem:[%s321 + $0x230] sm:$0xff]
                  %418 = vst [vmem:[%s322 + $0x178] sm:$0xff] %v417
                  %v419 = vld [vmem:[%s321 + $0x240] sm:$0xff]
                  %420 = vst [vmem:[%s322 + $0x180] sm:$0xff] %v419
                  %v421 = vld [vmem:[%s321 + $0x248] sm:$0xff]
                  %422 = vst [vmem:[%s322 + $0x188] sm:$0xff] %v421
                  %v423 = vld [vmem:[%s321 + $0x258] sm:$0xff]
                  %424 = vst [vmem:[%s322 + $0x190] sm:$0xff] %v423
                  %v425 = vld [vmem:[%s321 + $0x260] sm:$0xff]
                  %426 = vst [vmem:[%s322 + $0x198] sm:$0xff] %v425
                  %v427 = vld [vmem:[%s321 + $0x270] sm:$0xff]
                  %428 = vst [vmem:[%s322 + $0x1a0] sm:$0xff] %v427
                  %v429 = vld [vmem:[%s321 + $0x278] sm:$0xff]
                  %430 = vst [vmem:[%s322 + $0x1a8] sm:$0xff] %v429
                  %v431 = vld [vmem:[%s321 + $0x288] sm:$0xff]
                  %432 = vst [vmem:[%s322 + $0x1b0] sm:$0xff] %v431
                  %v433 = vld [vmem:[%s321 + $0x290] sm:$0xff]
                  %434 = vst [vmem:[%s322 + $0x1b8] sm:$0xff] %v433
                  %v435 = vld [vmem:[%s321 + $0x2a0] sm:$0xff]
                  %436 = vst [vmem:[%s322 + $0x1c0] sm:$0xff] %v435
                  %v437 = vld [vmem:[%s321 + $0x2a8] sm:$0xff]
                  %438 = vst [vmem:[%s322 + $0x1c8] sm:$0xff] %v437
                  %v439 = vld [vmem:[%s321 + $0x2b8] sm:$0xff]
                  %440 = vst [vmem:[%s322 + $0x1d0] sm:$0xff] %v439
                  %v441 = vld [vmem:[%s321 + $0x2c0] sm:$0xff]
                  %442 = vst [vmem:[%s322 + $0x1d8] sm:$0xff] %v441
                  %v443 = vld [vmem:[%s321 + $0x2d0] sm:$0xff]
                  %444 = vst [vmem:[%s322 + $0x1e0] sm:$0xff] %v443
                  %v445 = vld [vmem:[%s321 + $0x2d8] sm:$0xff]
                  %446 = vst [vmem:[%s322 + $0x1e8] sm:$0xff] %v445
                  %v447 = vld [vmem:[%s321 + $0x2e8] sm:$0xff]
                  %448 = vst [vmem:[%s322 + $0x1f0] sm:$0xff] %v447
                  %v449 = vld [vmem:[%s321 + $0x2f0] sm:$0xff]
                  %450 = vst [vmem:[%s322 + $0x1f8] sm:$0xff] %v449
                  %s451 = sadd.s32 1, %s320
                  %p452 = scmp.ge.s32.totalorder %s451, %s311
                  %s453 = scalar_select %p452, 0, %s451
                  %s454 = smul.u32 %s453, 16
                  %s455 = smul.u32 %s453, 16
                  %s456 = scalar_lea.vmem %s220, %s454
                  %s457 = scalar_lea.vmem %s212, %s455 [#allocation2]
                $region60: #{vit_forward.13} parent=54 // loop_footer
                  %s317 = sadd.s32 %s315, 1
                $region61: #{vit_forward.13} parent=54 // loop_footer_branch
                  %314 = sbr.rel target = $region57
                $region62: #{vit_forward.13} parent=54 // loop_exit
                  _
                %s458 = sshrl.u32 %s310, 1
                %s459 = sand.u32 %s310, 1
                %s460 = smul.u32 %s458, 2
                %s461 = smul.u32 128, %s460
                %s462 = sshra.s32 %s461, 4
                %s463 = scalar_lea.vmem %s220, %s462
                %s464 = smul.u32 128, %s460
                %s465 = sshra.s32 %s464, 4
                %s466 = scalar_lea.vmem %s212, %s465 [#allocation2]
                // While loop
                $region63: #{vit_forward.13} parent=54 // loop_pre_header
                  _
                $region64: #{vit_forward.13} parent=54 // loop_header
                  %s470 = sphi 0, %s472
                  %p471 = scmp.ge.s32.totalorder %s470, %s459
                  %s475 = sphi 0, %s544
                  %s476 = sphi %s463, %s547
                  %s477 = sphi %s466, %s548
                $region65: #{vit_forward.13} parent=54 // loop_header_branch
                  %474 = sbr.rel (%p471) target = $region69
                $region66: #{vit_forward.13} parent=54 // loop_body
                  %v478 = vld [vmem:[%s476] sm:$0xff]
                  %479 = vst [vmem:[%s477] sm:$0xff] %v478
                  %v480 = vld [vmem:[%s476 + $0x18] sm:$0xff]
                  %481 = vst [vmem:[%s477 + $0x10] sm:$0xff] %v480
                  %v482 = vld [vmem:[%s476 + $0x30] sm:$0xff]
                  %483 = vst [vmem:[%s477 + $0x20] sm:$0xff] %v482
                  %v484 = vld [vmem:[%s476 + $0x48] sm:$0xff]
                  %485 = vst [vmem:[%s477 + $0x30] sm:$0xff] %v484
                  %v486 = vld [vmem:[%s476 + $0x60] sm:$0xff]
                  %487 = vst [vmem:[%s477 + $0x40] sm:$0xff] %v486
                  %v488 = vld [vmem:[%s476 + $0x78] sm:$0xff]
                  %489 = vst [vmem:[%s477 + $0x50] sm:$0xff] %v488
                  %v490 = vld [vmem:[%s476 + $0x90] sm:$0xff]
                  %491 = vst [vmem:[%s477 + $0x60] sm:$0xff] %v490
                  %v492 = vld [vmem:[%s476 + $0xa8] sm:$0xff]
                  %493 = vst [vmem:[%s477 + $0x70] sm:$0xff] %v492
                  %v494 = vld [vmem:[%s476 + $0xc0] sm:$0xff]
                  %495 = vst [vmem:[%s477 + $0x80] sm:$0xff] %v494
                  %v496 = vld [vmem:[%s476 + $0xd8] sm:$0xff]
                  %497 = vst [vmem:[%s477 + $0x90] sm:$0xff] %v496
                  %v498 = vld [vmem:[%s476 + $0xf0] sm:$0xff]
                  %499 = vst [vmem:[%s477 + $0xa0] sm:$0xff] %v498
                  %v500 = vld [vmem:[%s476 + $0x108] sm:$0xff]
                  %501 = vst [vmem:[%s477 + $0xb0] sm:$0xff] %v500
                  %v502 = vld [vmem:[%s476 + $0x120] sm:$0xff]
                  %503 = vst [vmem:[%s477 + $0xc0] sm:$0xff] %v502
                  %v504 = vld [vmem:[%s476 + $0x138] sm:$0xff]
                  %505 = vst [vmem:[%s477 + $0xd0] sm:$0xff] %v504
                  %v506 = vld [vmem:[%s476 + $0x150] sm:$0xff]
                  %507 = vst [vmem:[%s477 + $0xe0] sm:$0xff] %v506
                  %v508 = vld [vmem:[%s476 + $0x168] sm:$0xff]
                  %509 = vst [vmem:[%s477 + $0xf0] sm:$0xff] %v508
                  %v510 = vld [vmem:[%s476 + $0x180] sm:$0xff]
                  %511 = vst [vmem:[%s477 + $0x100] sm:$0xff] %v510
                  %v512 = vld [vmem:[%s476 + $0x198] sm:$0xff]
                  %513 = vst [vmem:[%s477 + $0x110] sm:$0xff] %v512
                  %v514 = vld [vmem:[%s476 + $0x1b0] sm:$0xff]
                  %515 = vst [vmem:[%s477 + $0x120] sm:$0xff] %v514
                  %v516 = vld [vmem:[%s476 + $0x1c8] sm:$0xff]
                  %517 = vst [vmem:[%s477 + $0x130] sm:$0xff] %v516
                  %v518 = vld [vmem:[%s476 + $0x1e0] sm:$0xff]
                  %519 = vst [vmem:[%s477 + $0x140] sm:$0xff] %v518
                  %v520 = vld [vmem:[%s476 + $0x1f8] sm:$0xff]
                  %521 = vst [vmem:[%s477 + $0x150] sm:$0xff] %v520
                  %v522 = vld [vmem:[%s476 + $0x210] sm:$0xff]
                  %523 = vst [vmem:[%s477 + $0x160] sm:$0xff] %v522
                  %v524 = vld [vmem:[%s476 + $0x228] sm:$0xff]
                  %525 = vst [vmem:[%s477 + $0x170] sm:$0xff] %v524
                  %v526 = vld [vmem:[%s476 + $0x240] sm:$0xff]
                  %527 = vst [vmem:[%s477 + $0x180] sm:$0xff] %v526
                  %v528 = vld [vmem:[%s476 + $0x258] sm:$0xff]
                  %529 = vst [vmem:[%s477 + $0x190] sm:$0xff] %v528
                  %v530 = vld [vmem:[%s476 + $0x270] sm:$0xff]
                  %531 = vst [vmem:[%s477 + $0x1a0] sm:$0xff] %v530
                  %v532 = vld [vmem:[%s476 + $0x288] sm:$0xff]
                  %533 = vst [vmem:[%s477 + $0x1b0] sm:$0xff] %v532
                  %v534 = vld [vmem:[%s476 + $0x2a0] sm:$0xff]
                  %535 = vst [vmem:[%s477 + $0x1c0] sm:$0xff] %v534
                  %v536 = vld [vmem:[%s476 + $0x2b8] sm:$0xff]
                  %537 = vst [vmem:[%s477 + $0x1d0] sm:$0xff] %v536
                  %v538 = vld [vmem:[%s476 + $0x2d0] sm:$0xff]
                  %539 = vst [vmem:[%s477 + $0x1e0] sm:$0xff] %v538
                  %v540 = vld [vmem:[%s476 + $0x2e8] sm:$0xff]
                  %541 = vst [vmem:[%s477 + $0x1f0] sm:$0xff] %v540
                  %s542 = sadd.s32 1, %s475
                  %p543 = scmp.ge.s32.totalorder %s542, %s459
                  %s544 = scalar_select %p543, 0, %s542
                  %s545 = smul.u32 %s544, 8
                  %s546 = smul.u32 %s544, 8
                  %s547 = scalar_lea.vmem %s463, %s545
                  %s548 = scalar_lea.vmem %s466, %s546 [#allocation2]
                $region67: #{vit_forward.13} parent=54 // loop_footer
                  %s472 = sadd.s32 %s470, 1
                $region68: #{vit_forward.13} parent=54 // loop_footer_branch
                  %469 = sbr.rel target = $region64
                $region69: #{vit_forward.13} parent=54 // loop_exit
                  _
              $region55: #{vit_forward.13} parent=39 // pred_fallthru
                _
              %p549 = pneg %p306
              // Predicated region
              $region70: #{vit_forward.13} parent=39 // pred_check
                _
              $region71: #{vit_forward.13} parent=39 // pred_check_branch
                %551 = sbr.rel (%p306) target = $region73
              $region72: #{vit_forward.13} parent=39 // pred_region
                %s552 = sand.u32 %s221, 7
                %s553 = ssub.s32 %s221, %s552
                %s554 = scalar_lea.vmem %s220, %s553
                %s555 = ssub.s32 %s221, %s552
                %s556 = scalar_lea.vmem %s212, %s555 [#allocation2]
                %s557 = sshrl.u32 %s221, 3
                %s558 = sshrl.u32 %s557, 1
                // While loop
                $region74: #{vit_forward.13} parent=72 // loop_pre_header
                  _
                $region75: #{vit_forward.13} parent=72 // loop_header
                  %s562 = sphi 0, %s564
                  %p563 = scmp.ge.s32.totalorder %s562, %s558
                  %s567 = sphi 0, %s700
                  %s568 = sphi %s220, %s703
                  %s569 = sphi %s212, %s704
                $region76: #{vit_forward.13} parent=72 // loop_header_branch
                  %566 = sbr.rel (%p563) target = $region80
                $region77: #{vit_forward.13} parent=72 // loop_body
                  %v570 = vld [vmem:[%s568] sm:$0xff]
                  %571 = vst [vmem:[%s569] sm:$0xff] %v570
                  %v572 = vld [vmem:[%s568 + $0x8] sm:$0xff]
                  %573 = vst [vmem:[%s569 + $0x8] sm:$0xff] %v572
                  %v574 = vld [vmem:[%s568 + $0x18] sm:$0xff]
                  %575 = vst [vmem:[%s569 + $0x10] sm:$0xff] %v574
                  %v576 = vld [vmem:[%s568 + $0x20] sm:$0xff]
                  %577 = vst [vmem:[%s569 + $0x18] sm:$0xff] %v576
                  %v578 = vld [vmem:[%s568 + $0x30] sm:$0xff]
                  %579 = vst [vmem:[%s569 + $0x20] sm:$0xff] %v578
                  %v580 = vld [vmem:[%s568 + $0x38] sm:$0xff]
                  %581 = vst [vmem:[%s569 + $0x28] sm:$0xff] %v580
                  %v582 = vld [vmem:[%s568 + $0x48] sm:$0xff]
                  %583 = vst [vmem:[%s569 + $0x30] sm:$0xff] %v582
                  %v584 = vld [vmem:[%s568 + $0x50] sm:$0xff]
                  %585 = vst [vmem:[%s569 + $0x38] sm:$0xff] %v584
                  %v586 = vld [vmem:[%s568 + $0x60] sm:$0xff]
                  %587 = vst [vmem:[%s569 + $0x40] sm:$0xff] %v586
                  %v588 = vld [vmem:[%s568 + $0x68] sm:$0xff]
                  %589 = vst [vmem:[%s569 + $0x48] sm:$0xff] %v588
                  %v590 = vld [vmem:[%s568 + $0x78] sm:$0xff]
                  %591 = vst [vmem:[%s569 + $0x50] sm:$0xff] %v590
                  %v592 = vld [vmem:[%s568 + $0x80] sm:$0xff]
                  %593 = vst [vmem:[%s569 + $0x58] sm:$0xff] %v592
                  %v594 = vld [vmem:[%s568 + $0x90] sm:$0xff]
                  %595 = vst [vmem:[%s569 + $0x60] sm:$0xff] %v594
                  %v596 = vld [vmem:[%s568 + $0x98] sm:$0xff]
                  %597 = vst [vmem:[%s569 + $0x68] sm:$0xff] %v596
                  %v598 = vld [vmem:[%s568 + $0xa8] sm:$0xff]
                  %599 = vst [vmem:[%s569 + $0x70] sm:$0xff] %v598
                  %v600 = vld [vmem:[%s568 + $0xb0] sm:$0xff]
                  %601 = vst [vmem:[%s569 + $0x78] sm:$0xff] %v600
                  %v602 = vld [vmem:[%s568 + $0xc0] sm:$0xff]
                  %603 = vst [vmem:[%s569 + $0x80] sm:$0xff] %v602
                  %v604 = vld [vmem:[%s568 + $0xc8] sm:$0xff]
                  %605 = vst [vmem:[%s569 + $0x88] sm:$0xff] %v604
                  %v606 = vld [vmem:[%s568 + $0xd8] sm:$0xff]
                  %607 = vst [vmem:[%s569 + $0x90] sm:$0xff] %v606
                  %v608 = vld [vmem:[%s568 + $0xe0] sm:$0xff]
                  %609 = vst [vmem:[%s569 + $0x98] sm:$0xff] %v608
                  %v610 = vld [vmem:[%s568 + $0xf0] sm:$0xff]
                  %611 = vst [vmem:[%s569 + $0xa0] sm:$0xff] %v610
                  %v612 = vld [vmem:[%s568 + $0xf8] sm:$0xff]
                  %613 = vst [vmem:[%s569 + $0xa8] sm:$0xff] %v612
                  %v614 = vld [vmem:[%s568 + $0x108] sm:$0xff]
                  %615 = vst [vmem:[%s569 + $0xb0] sm:$0xff] %v614
                  %v616 = vld [vmem:[%s568 + $0x110] sm:$0xff]
                  %617 = vst [vmem:[%s569 + $0xb8] sm:$0xff] %v616
                  %v618 = vld [vmem:[%s568 + $0x120] sm:$0xff]
                  %619 = vst [vmem:[%s569 + $0xc0] sm:$0xff] %v618
                  %v620 = vld [vmem:[%s568 + $0x128] sm:$0xff]
                  %621 = vst [vmem:[%s569 + $0xc8] sm:$0xff] %v620
                  %v622 = vld [vmem:[%s568 + $0x138] sm:$0xff]
                  %623 = vst [vmem:[%s569 + $0xd0] sm:$0xff] %v622
                  %v624 = vld [vmem:[%s568 + $0x140] sm:$0xff]
                  %625 = vst [vmem:[%s569 + $0xd8] sm:$0xff] %v624
                  %v626 = vld [vmem:[%s568 + $0x150] sm:$0xff]
                  %627 = vst [vmem:[%s569 + $0xe0] sm:$0xff] %v626
                  %v628 = vld [vmem:[%s568 + $0x158] sm:$0xff]
                  %629 = vst [vmem:[%s569 + $0xe8] sm:$0xff] %v628
                  %v630 = vld [vmem:[%s568 + $0x168] sm:$0xff]
                  %631 = vst [vmem:[%s569 + $0xf0] sm:$0xff] %v630
                  %v632 = vld [vmem:[%s568 + $0x170] sm:$0xff]
                  %633 = vst [vmem:[%s569 + $0xf8] sm:$0xff] %v632
                  %v634 = vld [vmem:[%s568 + $0x180] sm:$0xff]
                  %635 = vst [vmem:[%s569 + $0x100] sm:$0xff] %v634
                  %v636 = vld [vmem:[%s568 + $0x188] sm:$0xff]
                  %637 = vst [vmem:[%s569 + $0x108] sm:$0xff] %v636
                  %v638 = vld [vmem:[%s568 + $0x198] sm:$0xff]
                  %639 = vst [vmem:[%s569 + $0x110] sm:$0xff] %v638
                  %v640 = vld [vmem:[%s568 + $0x1a0] sm:$0xff]
                  %641 = vst [vmem:[%s569 + $0x118] sm:$0xff] %v640
                  %v642 = vld [vmem:[%s568 + $0x1b0] sm:$0xff]
                  %643 = vst [vmem:[%s569 + $0x120] sm:$0xff] %v642
                  %v644 = vld [vmem:[%s568 + $0x1b8] sm:$0xff]
                  %645 = vst [vmem:[%s569 + $0x128] sm:$0xff] %v644
                  %v646 = vld [vmem:[%s568 + $0x1c8] sm:$0xff]
                  %647 = vst [vmem:[%s569 + $0x130] sm:$0xff] %v646
                  %v648 = vld [vmem:[%s568 + $0x1d0] sm:$0xff]
                  %649 = vst [vmem:[%s569 + $0x138] sm:$0xff] %v648
                  %v650 = vld [vmem:[%s568 + $0x1e0] sm:$0xff]
                  %651 = vst [vmem:[%s569 + $0x140] sm:$0xff] %v650
                  %v652 = vld [vmem:[%s568 + $0x1e8] sm:$0xff]
                  %653 = vst [vmem:[%s569 + $0x148] sm:$0xff] %v652
                  %v654 = vld [vmem:[%s568 + $0x1f8] sm:$0xff]
                  %655 = vst [vmem:[%s569 + $0x150] sm:$0xff] %v654
                  %v656 = vld [vmem:[%s568 + $0x200] sm:$0xff]
                  %657 = vst [vmem:[%s569 + $0x158] sm:$0xff] %v656
                  %v658 = vld [vmem:[%s568 + $0x210] sm:$0xff]
                  %659 = vst [vmem:[%s569 + $0x160] sm:$0xff] %v658
                  %v660 = vld [vmem:[%s568 + $0x218] sm:$0xff]
                  %661 = vst [vmem:[%s569 + $0x168] sm:$0xff] %v660
                  %v662 = vld [vmem:[%s568 + $0x228] sm:$0xff]
                  %663 = vst [vmem:[%s569 + $0x170] sm:$0xff] %v662
                  %v664 = vld [vmem:[%s568 + $0x230] sm:$0xff]
                  %665 = vst [vmem:[%s569 + $0x178] sm:$0xff] %v664
                  %v666 = vld [vmem:[%s568 + $0x240] sm:$0xff]
                  %667 = vst [vmem:[%s569 + $0x180] sm:$0xff] %v666
                  %v668 = vld [vmem:[%s568 + $0x248] sm:$0xff]
                  %669 = vst [vmem:[%s569 + $0x188] sm:$0xff] %v668
                  %v670 = vld [vmem:[%s568 + $0x258] sm:$0xff]
                  %671 = vst [vmem:[%s569 + $0x190] sm:$0xff] %v670
                  %v672 = vld [vmem:[%s568 + $0x260] sm:$0xff]
                  %673 = vst [vmem:[%s569 + $0x198] sm:$0xff] %v672
                  %v674 = vld [vmem:[%s568 + $0x270] sm:$0xff]
                  %675 = vst [vmem:[%s569 + $0x1a0] sm:$0xff] %v674
                  %v676 = vld [vmem:[%s568 + $0x278] sm:$0xff]
                  %677 = vst [vmem:[%s569 + $0x1a8] sm:$0xff] %v676
                  %v678 = vld [vmem:[%s568 + $0x288] sm:$0xff]
                  %679 = vst [vmem:[%s569 + $0x1b0] sm:$0xff] %v678
                  %v680 = vld [vmem:[%s568 + $0x290] sm:$0xff]
                  %681 = vst [vmem:[%s569 + $0x1b8] sm:$0xff] %v680
                  %v682 = vld [vmem:[%s568 + $0x2a0] sm:$0xff]
                  %683 = vst [vmem:[%s569 + $0x1c0] sm:$0xff] %v682
                  %v684 = vld [vmem:[%s568 + $0x2a8] sm:$0xff]
                  %685 = vst [vmem:[%s569 + $0x1c8] sm:$0xff] %v684
                  %v686 = vld [vmem:[%s568 + $0x2b8] sm:$0xff]
                  %687 = vst [vmem:[%s569 + $0x1d0] sm:$0xff] %v686
                  %v688 = vld [vmem:[%s568 + $0x2c0] sm:$0xff]
                  %689 = vst [vmem:[%s569 + $0x1d8] sm:$0xff] %v688
                  %v690 = vld [vmem:[%s568 + $0x2d0] sm:$0xff]
                  %691 = vst [vmem:[%s569 + $0x1e0] sm:$0xff] %v690
                  %v692 = vld [vmem:[%s568 + $0x2d8] sm:$0xff]
                  %693 = vst [vmem:[%s569 + $0x1e8] sm:$0xff] %v692
                  %v694 = vld [vmem:[%s568 + $0x2e8] sm:$0xff]
                  %695 = vst [vmem:[%s569 + $0x1f0] sm:$0xff] %v694
                  %v696 = vld [vmem:[%s568 + $0x2f0] sm:$0xff]
                  %697 = vst [vmem:[%s569 + $0x1f8] sm:$0xff] %v696
                  %s698 = sadd.s32 1, %s567
                  %p699 = scmp.ge.s32.totalorder %s698, %s558
                  %s700 = scalar_select %p699, 0, %s698
                  %s701 = smul.u32 %s700, 16
                  %s702 = smul.u32 %s700, 16
                  %s703 = scalar_lea.vmem %s220, %s701
                  %s704 = scalar_lea.vmem %s212, %s702 [#allocation2]
                $region78: #{vit_forward.13} parent=72 // loop_footer
                  %s564 = sadd.s32 %s562, 1
                $region79: #{vit_forward.13} parent=72 // loop_footer_branch
                  %561 = sbr.rel target = $region75
                $region80: #{vit_forward.13} parent=72 // loop_exit
                  _
                %s705 = sshrl.u32 %s557, 1
                %s706 = sand.u32 %s557, 1
                %s707 = smul.u32 %s705, 2
                %s708 = smul.u32 128, %s707
                %s709 = sshra.s32 %s708, 4
                %s710 = scalar_lea.vmem %s220, %s709
                %s711 = smul.u32 128, %s707
                %s712 = sshra.s32 %s711, 4
                %s713 = scalar_lea.vmem %s212, %s712 [#allocation2]
                // While loop
                $region81: #{vit_forward.13} parent=72 // loop_pre_header
                  _
                $region82: #{vit_forward.13} parent=72 // loop_header
                  %s717 = sphi 0, %s719
                  %p718 = scmp.ge.s32.totalorder %s717, %s706
                  %s722 = sphi 0, %s791
                  %s723 = sphi %s710, %s794
                  %s724 = sphi %s713, %s795
                $region83: #{vit_forward.13} parent=72 // loop_header_branch
                  %721 = sbr.rel (%p718) target = $region87
                $region84: #{vit_forward.13} parent=72 // loop_body
                  %v725 = vld [vmem:[%s723] sm:$0xff]
                  %726 = vst [vmem:[%s724] sm:$0xff] %v725
                  %v727 = vld [vmem:[%s723 + $0x18] sm:$0xff]
                  %728 = vst [vmem:[%s724 + $0x10] sm:$0xff] %v727
                  %v729 = vld [vmem:[%s723 + $0x30] sm:$0xff]
                  %730 = vst [vmem:[%s724 + $0x20] sm:$0xff] %v729
                  %v731 = vld [vmem:[%s723 + $0x48] sm:$0xff]
                  %732 = vst [vmem:[%s724 + $0x30] sm:$0xff] %v731
                  %v733 = vld [vmem:[%s723 + $0x60] sm:$0xff]
                  %734 = vst [vmem:[%s724 + $0x40] sm:$0xff] %v733
                  %v735 = vld [vmem:[%s723 + $0x78] sm:$0xff]
                  %736 = vst [vmem:[%s724 + $0x50] sm:$0xff] %v735
                  %v737 = vld [vmem:[%s723 + $0x90] sm:$0xff]
                  %738 = vst [vmem:[%s724 + $0x60] sm:$0xff] %v737
                  %v739 = vld [vmem:[%s723 + $0xa8] sm:$0xff]
                  %740 = vst [vmem:[%s724 + $0x70] sm:$0xff] %v739
                  %v741 = vld [vmem:[%s723 + $0xc0] sm:$0xff]
                  %742 = vst [vmem:[%s724 + $0x80] sm:$0xff] %v741
                  %v743 = vld [vmem:[%s723 + $0xd8] sm:$0xff]
                  %744 = vst [vmem:[%s724 + $0x90] sm:$0xff] %v743
                  %v745 = vld [vmem:[%s723 + $0xf0] sm:$0xff]
                  %746 = vst [vmem:[%s724 + $0xa0] sm:$0xff] %v745
                  %v747 = vld [vmem:[%s723 + $0x108] sm:$0xff]
                  %748 = vst [vmem:[%s724 + $0xb0] sm:$0xff] %v747
                  %v749 = vld [vmem:[%s723 + $0x120] sm:$0xff]
                  %750 = vst [vmem:[%s724 + $0xc0] sm:$0xff] %v749
                  %v751 = vld [vmem:[%s723 + $0x138] sm:$0xff]
                  %752 = vst [vmem:[%s724 + $0xd0] sm:$0xff] %v751
                  %v753 = vld [vmem:[%s723 + $0x150] sm:$0xff]
                  %754 = vst [vmem:[%s724 + $0xe0] sm:$0xff] %v753
                  %v755 = vld [vmem:[%s723 + $0x168] sm:$0xff]
                  %756 = vst [vmem:[%s724 + $0xf0] sm:$0xff] %v755
                  %v757 = vld [vmem:[%s723 + $0x180] sm:$0xff]
                  %758 = vst [vmem:[%s724 + $0x100] sm:$0xff] %v757
                  %v759 = vld [vmem:[%s723 + $0x198] sm:$0xff]
                  %760 = vst [vmem:[%s724 + $0x110] sm:$0xff] %v759
                  %v761 = vld [vmem:[%s723 + $0x1b0] sm:$0xff]
                  %762 = vst [vmem:[%s724 + $0x120] sm:$0xff] %v761
                  %v763 = vld [vmem:[%s723 + $0x1c8] sm:$0xff]
                  %764 = vst [vmem:[%s724 + $0x130] sm:$0xff] %v763
                  %v765 = vld [vmem:[%s723 + $0x1e0] sm:$0xff]
                  %766 = vst [vmem:[%s724 + $0x140] sm:$0xff] %v765
                  %v767 = vld [vmem:[%s723 + $0x1f8] sm:$0xff]
                  %768 = vst [vmem:[%s724 + $0x150] sm:$0xff] %v767
                  %v769 = vld [vmem:[%s723 + $0x210] sm:$0xff]
                  %770 = vst [vmem:[%s724 + $0x160] sm:$0xff] %v769
                  %v771 = vld [vmem:[%s723 + $0x228] sm:$0xff]
                  %772 = vst [vmem:[%s724 + $0x170] sm:$0xff] %v771
                  %v773 = vld [vmem:[%s723 + $0x240] sm:$0xff]
                  %774 = vst [vmem:[%s724 + $0x180] sm:$0xff] %v773
                  %v775 = vld [vmem:[%s723 + $0x258] sm:$0xff]
                  %776 = vst [vmem:[%s724 + $0x190] sm:$0xff] %v775
                  %v777 = vld [vmem:[%s723 + $0x270] sm:$0xff]
                  %778 = vst [vmem:[%s724 + $0x1a0] sm:$0xff] %v777
                  %v779 = vld [vmem:[%s723 + $0x288] sm:$0xff]
                  %780 = vst [vmem:[%s724 + $0x1b0] sm:$0xff] %v779
                  %v781 = vld [vmem:[%s723 + $0x2a0] sm:$0xff]
                  %782 = vst [vmem:[%s724 + $0x1c0] sm:$0xff] %v781
                  %v783 = vld [vmem:[%s723 + $0x2b8] sm:$0xff]
                  %784 = vst [vmem:[%s724 + $0x1d0] sm:$0xff] %v783
                  %v785 = vld [vmem:[%s723 + $0x2d0] sm:$0xff]
                  %786 = vst [vmem:[%s724 + $0x1e0] sm:$0xff] %v785
                  %v787 = vld [vmem:[%s723 + $0x2e8] sm:$0xff]
                  %788 = vst [vmem:[%s724 + $0x1f0] sm:$0xff] %v787
                  %s789 = sadd.s32 1, %s722
                  %p790 = scmp.ge.s32.totalorder %s789, %s706
                  %s791 = scalar_select %p790, 0, %s789
                  %s792 = smul.u32 %s791, 8
                  %s793 = smul.u32 %s791, 8
                  %s794 = scalar_lea.vmem %s710, %s792
                  %s795 = scalar_lea.vmem %s713, %s793 [#allocation2]
                $region85: #{vit_forward.13} parent=72 // loop_footer
                  %s719 = sadd.s32 %s717, 1
                $region86: #{vit_forward.13} parent=72 // loop_footer_branch
                  %716 = sbr.rel target = $region82
                $region87: #{vit_forward.13} parent=72 // loop_exit
                  _
                %s796 = sshllo.u32 0, %s552
                loop: start=0, step=1, limit=1
                $region88: #{vit_forward.13} parent=72 // loop_pre_header
                  _
                $region89: #{vit_forward.13} parent=72 // loop_header
                  %s798 = sphi 0, %s802
                  %p799 = scmp.ge.s32.totalorder %s798, 1
                  %s803 = sphi %s554, %s554
                  %s804 = sphi %s556, %s556
                $region90: #{vit_forward.13} parent=72 // loop_header_branch
                  %801 = sbr.rel (%p799) target = $region94
                $region91: #{vit_forward.13} parent=72 // loop_body
                  %v805 = vld [vmem:[%s803] sm:%s796]
                  %806 = vst [vmem:[%s804] sm:%s796] %v805
                  %v807 = vld [vmem:[%s803 + $0x18] sm:%s796]
                  %808 = vst [vmem:[%s804 + $0x10] sm:%s796] %v807
                  %v809 = vld [vmem:[%s803 + $0x30] sm:%s796]
                  %810 = vst [vmem:[%s804 + $0x20] sm:%s796] %v809
                  %v811 = vld [vmem:[%s803 + $0x48] sm:%s796]
                  %812 = vst [vmem:[%s804 + $0x30] sm:%s796] %v811
                  %v813 = vld [vmem:[%s803 + $0x60] sm:%s796]
                  %814 = vst [vmem:[%s804 + $0x40] sm:%s796] %v813
                  %v815 = vld [vmem:[%s803 + $0x78] sm:%s796]
                  %816 = vst [vmem:[%s804 + $0x50] sm:%s796] %v815
                  %v817 = vld [vmem:[%s803 + $0x90] sm:%s796]
                  %818 = vst [vmem:[%s804 + $0x60] sm:%s796] %v817
                  %v819 = vld [vmem:[%s803 + $0xa8] sm:%s796]
                  %820 = vst [vmem:[%s804 + $0x70] sm:%s796] %v819
                  %v821 = vld [vmem:[%s803 + $0xc0] sm:%s796]
                  %822 = vst [vmem:[%s804 + $0x80] sm:%s796] %v821
                  %v823 = vld [vmem:[%s803 + $0xd8] sm:%s796]
                  %824 = vst [vmem:[%s804 + $0x90] sm:%s796] %v823
                  %v825 = vld [vmem:[%s803 + $0xf0] sm:%s796]
                  %826 = vst [vmem:[%s804 + $0xa0] sm:%s796] %v825
                  %v827 = vld [vmem:[%s803 + $0x108] sm:%s796]
                  %828 = vst [vmem:[%s804 + $0xb0] sm:%s796] %v827
                  %v829 = vld [vmem:[%s803 + $0x120] sm:%s796]
                  %830 = vst [vmem:[%s804 + $0xc0] sm:%s796] %v829
                  %v831 = vld [vmem:[%s803 + $0x138] sm:%s796]
                  %832 = vst [vmem:[%s804 + $0xd0] sm:%s796] %v831
                  %v833 = vld [vmem:[%s803 + $0x150] sm:%s796]
                  %834 = vst [vmem:[%s804 + $0xe0] sm:%s796] %v833
                  %v835 = vld [vmem:[%s803 + $0x168] sm:%s796]
                  %836 = vst [vmem:[%s804 + $0xf0] sm:%s796] %v835
                  %v837 = vld [vmem:[%s803 + $0x180] sm:%s796]
                  %838 = vst [vmem:[%s804 + $0x100] sm:%s796] %v837
                  %v839 = vld [vmem:[%s803 + $0x198] sm:%s796]
                  %840 = vst [vmem:[%s804 + $0x110] sm:%s796] %v839
                  %v841 = vld [vmem:[%s803 + $0x1b0] sm:%s796]
                  %842 = vst [vmem:[%s804 + $0x120] sm:%s796] %v841
                  %v843 = vld [vmem:[%s803 + $0x1c8] sm:%s796]
                  %844 = vst [vmem:[%s804 + $0x130] sm:%s796] %v843
                  %v845 = vld [vmem:[%s803 + $0x1e0] sm:%s796]
                  %846 = vst [vmem:[%s804 + $0x140] sm:%s796] %v845
                  %v847 = vld [vmem:[%s803 + $0x1f8] sm:%s796]
                  %848 = vst [vmem:[%s804 + $0x150] sm:%s796] %v847
                  %v849 = vld [vmem:[%s803 + $0x210] sm:%s796]
                  %850 = vst [vmem:[%s804 + $0x160] sm:%s796] %v849
                  %v851 = vld [vmem:[%s803 + $0x228] sm:%s796]
                  %852 = vst [vmem:[%s804 + $0x170] sm:%s796] %v851
                  %v853 = vld [vmem:[%s803 + $0x240] sm:%s796]
                  %854 = vst [vmem:[%s804 + $0x180] sm:%s796] %v853
                  %v855 = vld [vmem:[%s803 + $0x258] sm:%s796]
                  %856 = vst [vmem:[%s804 + $0x190] sm:%s796] %v855
                  %v857 = vld [vmem:[%s803 + $0x270] sm:%s796]
                  %858 = vst [vmem:[%s804 + $0x1a0] sm:%s796] %v857
                  %v859 = vld [vmem:[%s803 + $0x288] sm:%s796]
                  %860 = vst [vmem:[%s804 + $0x1b0] sm:%s796] %v859
                  %v861 = vld [vmem:[%s803 + $0x2a0] sm:%s796]
                  %862 = vst [vmem:[%s804 + $0x1c0] sm:%s796] %v861
                  %v863 = vld [vmem:[%s803 + $0x2b8] sm:%s796]
                  %864 = vst [vmem:[%s804 + $0x1d0] sm:%s796] %v863
                  %v865 = vld [vmem:[%s803 + $0x2d0] sm:%s796]
                  %866 = vst [vmem:[%s804 + $0x1e0] sm:%s796] %v865
                  %v867 = vld [vmem:[%s803 + $0x2e8] sm:%s796]
                  %868 = vst [vmem:[%s804 + $0x1f0] sm:%s796] %v867
                $region92: #{vit_forward.13} parent=72 // loop_footer
                  %s802 = sadd.s32 1, %s798
                $region93: #{vit_forward.13} parent=72 // loop_footer_branch
                  %797 = sbr.rel target = $region89
                $region94: #{vit_forward.13} parent=72 // loop_exit
                  _
              $region73: #{vit_forward.13} parent=39 // pred_fallthru
                _
            $region40: #{vit_forward.13} parent=35 // pred_fallthru
              _
            // Predicated region
            $region41: #{vit_forward.13} parent=35 // pred_check
              %p229 = pneg %p225
            $region42: #{vit_forward.13} parent=35 // pred_check_branch
              %231 = sbr.rel (%p229) target = $region44
            $region43: #{vit_forward.13} parent=35 // pred_region
              %s232 = sshllo.u32 0, %s221
              loop: start=0, step=1, limit=1
              $region45: #{vit_forward.13} parent=43 // loop_pre_header
                _
              $region46: #{vit_forward.13} parent=43 // loop_header
                %s234 = sphi 0, %s238
                %p235 = scmp.ge.s32.totalorder %s234, 1
                %s239 = sphi %s220, %s220
                %s240 = sphi %s212, %s212
              $region47: #{vit_forward.13} parent=43 // loop_header_branch
                %237 = sbr.rel (%p235) target = $region51
              $region48: #{vit_forward.13} parent=43 // loop_body
                %v241 = vld [vmem:[%s239] sm:%s232]
                %242 = vst [vmem:[%s240] sm:%s232] %v241
                %v243 = vld [vmem:[%s239 + $0x18] sm:%s232]
                %244 = vst [vmem:[%s240 + $0x10] sm:%s232] %v243
                %v245 = vld [vmem:[%s239 + $0x30] sm:%s232]
                %246 = vst [vmem:[%s240 + $0x20] sm:%s232] %v245
                %v247 = vld [vmem:[%s239 + $0x48] sm:%s232]
                %248 = vst [vmem:[%s240 + $0x30] sm:%s232] %v247
                %v249 = vld [vmem:[%s239 + $0x60] sm:%s232]
                %250 = vst [vmem:[%s240 + $0x40] sm:%s232] %v249
                %v251 = vld [vmem:[%s239 + $0x78] sm:%s232]
                %252 = vst [vmem:[%s240 + $0x50] sm:%s232] %v251
                %v253 = vld [vmem:[%s239 + $0x90] sm:%s232]
                %254 = vst [vmem:[%s240 + $0x60] sm:%s232] %v253
                %v255 = vld [vmem:[%s239 + $0xa8] sm:%s232]
                %256 = vst [vmem:[%s240 + $0x70] sm:%s232] %v255
                %v257 = vld [vmem:[%s239 + $0xc0] sm:%s232]
                %258 = vst [vmem:[%s240 + $0x80] sm:%s232] %v257
                %v259 = vld [vmem:[%s239 + $0xd8] sm:%s232]
                %260 = vst [vmem:[%s240 + $0x90] sm:%s232] %v259
                %v261 = vld [vmem:[%s239 + $0xf0] sm:%s232]
                %262 = vst [vmem:[%s240 + $0xa0] sm:%s232] %v261
                %v263 = vld [vmem:[%s239 + $0x108] sm:%s232]
                %264 = vst [vmem:[%s240 + $0xb0] sm:%s232] %v263
                %v265 = vld [vmem:[%s239 + $0x120] sm:%s232]
                %266 = vst [vmem:[%s240 + $0xc0] sm:%s232] %v265
                %v267 = vld [vmem:[%s239 + $0x138] sm:%s232]
                %268 = vst [vmem:[%s240 + $0xd0] sm:%s232] %v267
                %v269 = vld [vmem:[%s239 + $0x150] sm:%s232]
                %270 = vst [vmem:[%s240 + $0xe0] sm:%s232] %v269
                %v271 = vld [vmem:[%s239 + $0x168] sm:%s232]
                %272 = vst [vmem:[%s240 + $0xf0] sm:%s232] %v271
                %v273 = vld [vmem:[%s239 + $0x180] sm:%s232]
                %274 = vst [vmem:[%s240 + $0x100] sm:%s232] %v273
                %v275 = vld [vmem:[%s239 + $0x198] sm:%s232]
                %276 = vst [vmem:[%s240 + $0x110] sm:%s232] %v275
                %v277 = vld [vmem:[%s239 + $0x1b0] sm:%s232]
                %278 = vst [vmem:[%s240 + $0x120] sm:%s232] %v277
                %v279 = vld [vmem:[%s239 + $0x1c8] sm:%s232]
                %280 = vst [vmem:[%s240 + $0x130] sm:%s232] %v279
                %v281 = vld [vmem:[%s239 + $0x1e0] sm:%s232]
                %282 = vst [vmem:[%s240 + $0x140] sm:%s232] %v281
                %v283 = vld [vmem:[%s239 + $0x1f8] sm:%s232]
                %284 = vst [vmem:[%s240 + $0x150] sm:%s232] %v283
                %v285 = vld [vmem:[%s239 + $0x210] sm:%s232]
                %286 = vst [vmem:[%s240 + $0x160] sm:%s232] %v285
                %v287 = vld [vmem:[%s239 + $0x228] sm:%s232]
                %288 = vst [vmem:[%s240 + $0x170] sm:%s232] %v287
                %v289 = vld [vmem:[%s239 + $0x240] sm:%s232]
                %290 = vst [vmem:[%s240 + $0x180] sm:%s232] %v289
                %v291 = vld [vmem:[%s239 + $0x258] sm:%s232]
                %292 = vst [vmem:[%s240 + $0x190] sm:%s232] %v291
                %v293 = vld [vmem:[%s239 + $0x270] sm:%s232]
                %294 = vst [vmem:[%s240 + $0x1a0] sm:%s232] %v293
                %v295 = vld [vmem:[%s239 + $0x288] sm:%s232]
                %296 = vst [vmem:[%s240 + $0x1b0] sm:%s232] %v295
                %v297 = vld [vmem:[%s239 + $0x2a0] sm:%s232]
                %298 = vst [vmem:[%s240 + $0x1c0] sm:%s232] %v297
                %v299 = vld [vmem:[%s239 + $0x2b8] sm:%s232]
                %300 = vst [vmem:[%s240 + $0x1d0] sm:%s232] %v299
                %v301 = vld [vmem:[%s239 + $0x2d0] sm:%s232]
                %302 = vst [vmem:[%s240 + $0x1e0] sm:%s232] %v301
                %v303 = vld [vmem:[%s239 + $0x2e8] sm:%s232]
                %304 = vst [vmem:[%s240 + $0x1f0] sm:%s232] %v303
              $region49: #{vit_forward.13} parent=43 // loop_footer
                %s238 = sadd.s32 1, %s234
              $region50: #{vit_forward.13} parent=43 // loop_footer_branch
                %233 = sbr.rel target = $region46
              $region51: #{vit_forward.13} parent=43 // loop_exit
                _
            $region44: #{vit_forward.13} parent=35 // pred_fallthru
              _
          $region36: #{vit_forward.13} parent=31 // pred_fallthru
            _
          %869 = vnop
        $region32: #{vit_forward.13} parent=27 // pred_fallthru
          _
        // Predicated region
        $region95: #{vit_forward.13} parent=27 // pred_check
          %p870 = pneg %p95
        $region96: #{vit_forward.13} parent=27 // pred_check_branch
          %872 = sbr.rel (%p870) target = $region98
        $region97: #{vit_forward.13} parent=27 // pred_region
          %s873 = smul.u32 4, %s19
          %s874 = ssub.s32 6, %s873
          %p875 = scmp.lt.s32.totalorder %s874, 4
          %s876 = scalar_select %p875, %s874, 4
          %s877 = smul.u32 16, %s876
          %p878 = scmp.lt.s32.totalorder %s873, 5
          %s879 = scalar_select %p878, %s873, 5
          %s880 = scalar_lea.vmem %s2, %s879
          %s881 = smul.u32 4, %s19
          %s882 = ssub.s32 6, %s881
          %p883 = scmp.lt.s32.totalorder %s882, 4
          %s884 = scalar_select %p883, %s882, 4
          %s885 = smul.u32 16, %s884
        $region98: #{vit_forward.13} parent=27 // pred_fallthru
          _
      $region28: #{vit_forward.13} parent=5 // pred_fallthru
        _
      %p886 = scmp.le.s32.totalorder 1, %s11
      %p887 = scmp.lt.s32.totalorder %s11, 3
      %p888 = pnand %p886, %p887
      %p889 = pneg %p888
      // Predicated region
      $region99: #{vit_forward.13} parent=5 // pred_check
        _
      $region100: #{vit_forward.13} parent=5 // pred_check_branch
        %891 = sbr.rel (%p888) target = $region102
      $region101: #{vit_forward.13} parent=5 // pred_region
        %s892 = ssub.s32 %s11, 1
        %s893 = sand.u32 %s62, 1
        %s894 = sand.u32 %s62, 1
        %s895 = smul.addr %s894, 512
        %s896 = scalar_lea.vmem [#allocation2], %s895
        // Predicated region
        $region103: #{vit_forward.13} parent=101 // pred_check
          %p897 = pneg %p75
        $region104: #{vit_forward.13} parent=101 // pred_check_branch
          %899 = sbr.rel (%p897) target = $region106
        $region105: #{vit_forward.13} parent=101 // pred_region
          _
        $region106: #{vit_forward.13} parent=101 // pred_fallthru
          _
        %s900 = smul.u32 5, %s20
        %p901 = scmp.lt.s32.totalorder %s900, 4
        %s902 = scalar_select %p901, %s900, 4
        %s903 = smul.addr %s902, 2
        %s904 = smul.addr %s903, 4
        %s905 = scalar_lea.vmem %s0, %s904
        %p906 = pneg %p49
        %p907 = pneg %p46
        %s908 = sand.u32 %s62, 1
        %s909 = sand.u32 %s62, 1
        %s910 = smul.addr %s909, 512
        %s911 = scalar_lea.vmem [#allocation2], %s910
        %p912 = pneg %p75
        %p913 = pneg %p72
        %s914 = smul.u32 4, %s21
        %s915 = ssub.s32 6, %s914
        %p916 = scmp.lt.s32.totalorder %s915, 4
        %s917 = scalar_select %p916, %s915, 4
        %s918 = smul.u32 16, %s917
        %p919 = scmp.lt.s32.totalorder %s914, 5
        %s920 = scalar_select %p919, %s914, 5
        %s921 = scalar_lea.vmem %s2, %s920
        %p922 = pneg %p101
        %p923 = pneg %p98
        %p924 = pneg %p122
        %p925 = pneg %p119
        %p926 = pneg %p143
        %p927 = pneg %p140
        %p928 = pneg %p171
        %p929 = pneg %p168
        %s930 = sand.u32 %s158, 1
        %s931 = sand.u32 %s158, 1
        %s932 = smul.addr %s931, 80
        %s933 = scalar_lea.vmem [#allocation3], %s932
        %s934 = smul.u32 5, %s20
        %p935 = scmp.lt.s32.totalorder %s934, 4
        %s936 = scalar_select %p935, %s934, 4
        %s937 = smul.addr %s936, 2
        %s938 = smul.addr %s937, 4
        %s939 = scalar_lea.vmem %s0, %s938
        %s940 = smul.u32 5, %s20
        %s941 = smul.u32 4, %s21
        %s942 = ssub.s32 6, %s941
        %p943 = scmp.lt.s32.totalorder %s942, 4
        %s944 = scalar_select %p943, %s942, 4
        %s945 = smul.u32 2048, %s944
        %s946 = smul.u32 4, %s21
        %s947 = ssub.s32 6, %s946
        %p948 = scmp.lt.s32.totalorder %s947, 4
        %s949 = scalar_select %p948, %s947, 4
        %s950 = smul.u32 16, %s949
        %p951 = scmp.lt.s32.totalorder %s946, 5
        %s952 = scalar_select %p951, %s946, 5
        %s953 = scalar_lea.vmem %s2, %s952
        %s954 = smul.u32 4, %s21
        %s955 = ssub.s32 6, %s954
        %p956 = scmp.lt.s32.totalorder %s955, 4
        %s957 = scalar_select %p956, %s955, 4
        %s958 = smul.u32 16, %s957
        %s959 = smul.u32 5, %s20
        %s960 = smul.u32 4, %s21
        %s961 = ssub.s32 6, %s960
        %p962 = scmp.lt.s32.totalorder %s961, 4
        %s963 = scalar_select %p962, %s961, 4
        %s964 = smul.u32 320, %s963
        %v965 = vld [vmem:[%s939] sm:$0xff]
        %v966 = vld [vmem:[%s939 + $0x8] sm:$0xff]
        %v967 = vld [vmem:[%s939 + $0x10] sm:$0xff]
        %v968 = vld [vmem:[%s939 + $0x18] sm:$0xff]
        %v969 = vld [vmem:[%s939 + $0x20] sm:$0x11]
        %v970 = vunpack.c.l.bf16 %v965
        %v971 = vunpack.c.h.bf16 %v965
        %v972 = vunpack.c.l.bf16 %v966
        %v973 = vunpack.c.h.bf16 %v966
        %v974 = vunpack.c.l.bf16 %v967
        %v975 = vunpack.c.h.bf16 %v967
        %v976 = vunpack.c.l.bf16 %v968
        %v977 = vunpack.c.h.bf16 %v968
        %v978 = vunpack.c.l.bf16 %v969
        %v979 = vunpack.c.h.bf16 %v969
        %v980 = vadd.f32 %v970, %v971
        %981 = vadd.xlane.f32.xlu0 %v980
        %v982 = vpop.xlane.xlu0 %981
        %v983 = vadd.f32 %v972, %v973
        %984 = vadd.xlane.f32.xlu0 %v983
        %v985 = vpop.xlane.xlu0 %984
        %v986 = vadd.f32 %v974, %v975
        %987 = vadd.xlane.f32.xlu0 %v986
        %v988 = vpop.xlane.xlu0 %987
        %v989 = vadd.f32 %v976, %v977
        %990 = vadd.xlane.f32.xlu0 %v989
        %v991 = vpop.xlane.xlu0 %990
        %vm992 = vcmask 1041408
        %v993 = vsel %vm992, %v978, 0.0
        %v994 = vsel %vm992, %v979, 0.0
        %v995 = vadd.f32 %v993, %v994
        %996 = vadd.xlane.f32.xlu0 %v995
        %v997 = vpop.xlane.xlu0 %996
        %v998 = vrcp.pop 256.0
        %v999 = vmul.f32 %v982, %v998
        %v1000 = vmul.f32 %v985, %v998
        %v1001 = vmul.f32 %v988, %v998
        %v1002 = vmul.f32 %v991, %v998
        %v1003 = vmul.f32 %v997, %v998
        %v1004 = vsub.f32 %v970, %v999
        %v1005 = vsub.f32 %v971, %v999
        %v1006 = vsub.f32 %v972, %v1000
        %v1007 = vsub.f32 %v973, %v1000
        %v1008 = vsub.f32 %v974, %v1001
        %v1009 = vsub.f32 %v975, %v1001
        %v1010 = vsub.f32 %v976, %v1002
        %v1011 = vsub.f32 %v977, %v1002
        %v1012 = vsub.f32 %v978, %v1003
        %v1013 = vsub.f32 %v979, %v1003
        %v1014 = vmul.f32 %v1004, %v1004
        %v1015 = vmul.f32 %v1005, %v1005
        %v1016 = vmul.f32 %v1006, %v1006
        %v1017 = vmul.f32 %v1007, %v1007
        %v1018 = vmul.f32 %v1008, %v1008
        %v1019 = vmul.f32 %v1009, %v1009
        %v1020 = vmul.f32 %v1010, %v1010
        %v1021 = vmul.f32 %v1011, %v1011
        %v1022 = vmul.f32 %v1012, %v1012
        %v1023 = vmul.f32 %v1013, %v1013
        %v1024 = vadd.f32 %v1014, %v1015
        %1025 = vadd.xlane.f32.xlu0 %v1024
        %v1026 = vpop.xlane.xlu0 %1025
        %v1027 = vadd.f32 %v1016, %v1017
        %1028 = vadd.xlane.f32.xlu0 %v1027
        %v1029 = vpop.xlane.xlu0 %1028
        %v1030 = vadd.f32 %v1018, %v1019
        %1031 = vadd.xlane.f32.xlu0 %v1030
        %v1032 = vpop.xlane.xlu0 %1031
        %v1033 = vadd.f32 %v1020, %v1021
        %1034 = vadd.xlane.f32.xlu0 %v1033
        %v1035 = vpop.xlane.xlu0 %1034
        %v1036 = vsel %vm992, %v1022, 0.0
        %v1037 = vsel %vm992, %v1023, 0.0
        %v1038 = vadd.f32 %v1036, %v1037
        %1039 = vadd.xlane.f32.xlu0 %v1038
        %v1040 = vpop.xlane.xlu0 %1039
        %v1041 = vmul.f32 %v1026, %v998
        %v1042 = vmul.f32 %v1029, %v998
        %v1043 = vmul.f32 %v1032, %v998
        %v1044 = vmul.f32 %v1035, %v998
        %v1045 = vmul.f32 %v1040, %v998
        %v1046 = vadd.f32 %v1041, 1e-05
        %v1047 = vadd.f32 %v1042, 1e-05
        %v1048 = vadd.f32 %v1043, 1e-05
        %v1049 = vadd.f32 %v1044, 1e-05
        %v1050 = vadd.f32 %v1045, 1e-05
        %v1051 = vrsqrt.pop %v1046
        %v1052 = vrsqrt.pop %v1047
        %v1053 = vrsqrt.pop %v1048
        %v1054 = vrsqrt.pop %v1049
        %v1055 = vrsqrt.pop %v1050
        %v1056 = vmul.f32 %v1004, %v1051
        %v1057 = vmul.f32 %v1005, %v1051
        %v1058 = vmul.f32 %v1006, %v1052
        %v1059 = vmul.f32 %v1007, %v1052
        %v1060 = vmul.f32 %v1008, %v1053
        %v1061 = vmul.f32 %v1009, %v1053
        %v1062 = vmul.f32 %v1010, %v1054
        %v1063 = vmul.f32 %v1011, %v1054
        %v1064 = vmul.f32 %v1012, %v1055
        %v1065 = vmul.f32 %v1013, %v1055
        %v1066 = vld [vmem:[%s3] sm:$0x3]
        %v1068 = vlaneseq
        %v1069 = vshrl.u32 %v1068, 7
        %v1070 = vsub.s32 0, %v1069
        %v1071 = vrot.slane %v1066, %v1070
        %v1072 = vlaneseq
        %v1073 = vshrl.u32 %v1072, 7
        %v1074 = vsub.s32 1, %v1073
        %v1075 = vrot.slane %v1066, %v1074
        %v1078 = vmul.f32 %v1056, %v1071
        %v1079 = vmul.f32 %v1057, %v1075
        %v1080 = vmul.f32 %v1058, %v1071
        %v1081 = vmul.f32 %v1059, %v1075
        %v1082 = vmul.f32 %v1060, %v1071
        %v1083 = vmul.f32 %v1061, %v1075
        %v1084 = vmul.f32 %v1062, %v1071
        %v1085 = vmul.f32 %v1063, %v1075
        %v1086 = vmul.f32 %v1064, %v1071
        %v1087 = vmul.f32 %v1065, %v1075
        %v1088 = vld [vmem:[%s4] sm:$0x3]
        %v1090 = vlaneseq
        %v1091 = vshrl.u32 %v1090, 7
        %v1092 = vsub.s32 0, %v1091
        %v1093 = vrot.slane %v1088, %v1092
        %v1094 = vlaneseq
        %v1095 = vshrl.u32 %v1094, 7
        %v1096 = vsub.s32 1, %v1095
        %v1097 = vrot.slane %v1088, %v1096
        %v1100 = vadd.f32 %v1078, %v1093
        %v1101 = vadd.f32 %v1079, %v1097
        %v1102 = vadd.f32 %v1080, %v1093
        %v1103 = vadd.f32 %v1081, %v1097
        %v1104 = vadd.f32 %v1082, %v1093
        %v1105 = vadd.f32 %v1083, %v1097
        %v1106 = vadd.f32 %v1084, %v1093
        %v1107 = vadd.f32 %v1085, %v1097
        %v1108 = vadd.f32 %v1086, %v1093
        %v1109 = vadd.f32 %v1087, %v1097
        %v1110 = vpack.c.bf16 %v1102, %v1100
        %v1111 = vpack.c.bf16 %v1103, %v1101
        %v1112 = vpack.c.bf16 %v1106, %v1104
        %v1113 = vpack.c.bf16 %v1107, %v1105
        %v1114 = vpack.c.bf16 %v1108, %v1108
        %v1115 = vpack.c.bf16 %v1109, %v1109
        %v1116 = vld [vmem:[%s896] sm:$0xff]
        %v1117 = vld [vmem:[%s896 + $0x8] sm:$0xff]
        %v1118 = vld [vmem:[%s896 + $0x10] sm:$0xff]
        %v1119 = vld [vmem:[%s896 + $0x18] sm:$0xff]
        %v1120 = vld [vmem:[%s896 + $0x20] sm:$0xff]
        %v1121 = vld [vmem:[%s896 + $0x28] sm:$0xff]
        %v1122 = vld [vmem:[%s896 + $0x30] sm:$0xff]
        %v1123 = vld [vmem:[%s896 + $0x38] sm:$0xff]
        %v1124 = vld [vmem:[%s896 + $0x40] sm:$0xff]
        %v1125 = vld [vmem:[%s896 + $0x48] sm:$0xff]
        %v1126 = vld [vmem:[%s896 + $0x50] sm:$0xff]
        %v1127 = vld [vmem:[%s896 + $0x58] sm:$0xff]
        %v1128 = vld [vmem:[%s896 + $0x60] sm:$0xff]
        %v1129 = vld [vmem:[%s896 + $0x68] sm:$0xff]
        %v1130 = vld [vmem:[%s896 + $0x70] sm:$0xff]
        %v1131 = vld [vmem:[%s896 + $0x78] sm:$0xff]
        %v1132 = vld [vmem:[%s896 + $0x80] sm:$0xff]
        %v1133 = vld [vmem:[%s896 + $0x88] sm:$0xff]
        %v1134 = vld [vmem:[%s896 + $0x90] sm:$0xff]
        %v1135 = vld [vmem:[%s896 + $0x98] sm:$0xff]
        %v1136 = vld [vmem:[%s896 + $0xa0] sm:$0xff]
        %v1137 = vld [vmem:[%s896 + $0xa8] sm:$0xff]
        %v1138 = vld [vmem:[%s896 + $0xb0] sm:$0xff]
        %v1139 = vld [vmem:[%s896 + $0xb8] sm:$0xff]
        %v1140 = vld [vmem:[%s896 + $0xc0] sm:$0xff]
        %v1141 = vld [vmem:[%s896 + $0xc8] sm:$0xff]
        %v1142 = vld [vmem:[%s896 + $0xd0] sm:$0xff]
        %v1143 = vld [vmem:[%s896 + $0xd8] sm:$0xff]
        %v1144 = vld [vmem:[%s896 + $0xe0] sm:$0xff]
        %v1145 = vld [vmem:[%s896 + $0xe8] sm:$0xff]
        %v1146 = vld [vmem:[%s896 + $0xf0] sm:$0xff]
        %v1147 = vld [vmem:[%s896 + $0xf8] sm:$0xff]
        %v1148 = vld [vmem:[%s896 + $0x100] sm:$0xff]
        %v1149 = vld [vmem:[%s896 + $0x108] sm:$0xff]
        %v1150 = vld [vmem:[%s896 + $0x110] sm:$0xff]
        %v1151 = vld [vmem:[%s896 + $0x118] sm:$0xff]
        %v1152 = vld [vmem:[%s896 + $0x120] sm:$0xff]
        %v1153 = vld [vmem:[%s896 + $0x128] sm:$0xff]
        %v1154 = vld [vmem:[%s896 + $0x130] sm:$0xff]
        %v1155 = vld [vmem:[%s896 + $0x138] sm:$0xff]
        %v1156 = vld [vmem:[%s896 + $0x140] sm:$0xff]
        %v1157 = vld [vmem:[%s896 + $0x148] sm:$0xff]
        %v1158 = vld [vmem:[%s896 + $0x150] sm:$0xff]
        %v1159 = vld [vmem:[%s896 + $0x158] sm:$0xff]
        %v1160 = vld [vmem:[%s896 + $0x160] sm:$0xff]
        %v1161 = vld [vmem:[%s896 + $0x168] sm:$0xff]
        %v1162 = vld [vmem:[%s896 + $0x170] sm:$0xff]
        %v1163 = vld [vmem:[%s896 + $0x178] sm:$0xff]
        %v1164 = vld [vmem:[%s896 + $0x180] sm:$0xff]
        %v1165 = vld [vmem:[%s896 + $0x188] sm:$0xff]
        %v1166 = vld [vmem:[%s896 + $0x190] sm:$0xff]
        %v1167 = vld [vmem:[%s896 + $0x198] sm:$0xff]
        %v1168 = vld [vmem:[%s896 + $0x1a0] sm:$0xff]
        %v1169 = vld [vmem:[%s896 + $0x1a8] sm:$0xff]
        %v1170 = vld [vmem:[%s896 + $0x1b0] sm:$0xff]
        %v1171 = vld [vmem:[%s896 + $0x1b8] sm:$0xff]
        %v1172 = vld [vmem:[%s896 + $0x1c0] sm:$0xff]
        %v1173 = vld [vmem:[%s896 + $0x1c8] sm:$0xff]
        %v1174 = vld [vmem:[%s896 + $0x1d0] sm:$0xff]
        %v1175 = vld [vmem:[%s896 + $0x1d8] sm:$0xff]
        %v1176 = vld [vmem:[%s896 + $0x1e0] sm:$0xff]
        %v1177 = vld [vmem:[%s896 + $0x1e8] sm:$0xff]
        %v1178 = vld [vmem:[%s896 + $0x1f0] sm:$0xff]
        %v1179 = vld [vmem:[%s896 + $0x1f8] sm:$0xff]
        %v1180 = vld [vmem:[%s953] sm:$0xf]
        %v1182 = vlaneseq
        %v1183 = vshrl.u32 %v1182, 7
        %v1184 = vsub.s32 0, %v1183
        %v1185 = vrot.slane %v1180, %v1184
        %v1186 = vlaneseq
        %v1187 = vshrl.u32 %v1186, 7
        %v1188 = vsub.s32 1, %v1187
        %v1189 = vrot.slane %v1180, %v1188
        %v1190 = vlaneseq
        %v1191 = vshrl.u32 %v1190, 7
        %v1192 = vsub.s32 2, %v1191
        %v1193 = vrot.slane %v1180, %v1192
        %v1194 = vlaneseq
        %v1195 = vshrl.u32 %v1194, 7
        %v1196 = vsub.s32 3, %v1195
        %v1197 = vrot.slane %v1180, %v1196
        %v1266 = vunpack.c.l.b16 %v1116
        %v1267 = vunpack.c.h.b16 %v1116
        %v1268 = vunpack.c.l.b16 %v1117
        %v1269 = vunpack.c.h.b16 %v1117
        %v1270 = vunpack.c.l.b16 %v1118
        %v1271 = vunpack.c.h.b16 %v1118
        %v1272 = vunpack.c.l.b16 %v1119
        %v1273 = vunpack.c.h.b16 %v1119
        %v1274 = vunpack.c.l.b16 %v1120
        %v1275 = vunpack.c.h.b16 %v1120
        %v1276 = vunpack.c.l.b16 %v1121
        %v1277 = vunpack.c.h.b16 %v1121
        %v1278 = vunpack.c.l.b16 %v1122
        %v1279 = vunpack.c.h.b16 %v1122
        %v1280 = vunpack.c.l.b16 %v1123
        %v1281 = vunpack.c.h.b16 %v1123
        %v1282 = vunpack.c.l.b16 %v1124
        %v1283 = vunpack.c.h.b16 %v1124
        %v1284 = vunpack.c.l.b16 %v1125
        %v1285 = vunpack.c.h.b16 %v1125
        %v1286 = vunpack.c.l.b16 %v1126
        %v1287 = vunpack.c.h.b16 %v1126
        %v1288 = vunpack.c.l.b16 %v1127
        %v1289 = vunpack.c.h.b16 %v1127
        %v1290 = vunpack.c.l.b16 %v1128
        %v1291 = vunpack.c.h.b16 %v1128
        %v1292 = vunpack.c.l.b16 %v1129
        %v1293 = vunpack.c.h.b16 %v1129
        %v1294 = vunpack.c.l.b16 %v1130
        %v1295 = vunpack.c.h.b16 %v1130
        %v1296 = vunpack.c.l.b16 %v1131
        %v1297 = vunpack.c.h.b16 %v1131
        %v1298 = vunpack.c.l.b16 %v1132
        %v1299 = vunpack.c.h.b16 %v1132
        %v1300 = vunpack.c.l.b16 %v1133
        %v1301 = vunpack.c.h.b16 %v1133
        %v1302 = vunpack.c.l.b16 %v1134
        %v1303 = vunpack.c.h.b16 %v1134
        %v1304 = vunpack.c.l.b16 %v1135
        %v1305 = vunpack.c.h.b16 %v1135
        %v1306 = vunpack.c.l.b16 %v1136
        %v1307 = vunpack.c.h.b16 %v1136
        %v1308 = vunpack.c.l.b16 %v1137
        %v1309 = vunpack.c.h.b16 %v1137
        %v1310 = vunpack.c.l.b16 %v1138
        %v1311 = vunpack.c.h.b16 %v1138
        %v1312 = vunpack.c.l.b16 %v1139
        %v1313 = vunpack.c.h.b16 %v1139
        %v1314 = vunpack.c.l.b16 %v1140
        %v1315 = vunpack.c.h.b16 %v1140
        %v1316 = vunpack.c.l.b16 %v1141
        %v1317 = vunpack.c.h.b16 %v1141
        %v1318 = vunpack.c.l.b16 %v1142
        %v1319 = vunpack.c.h.b16 %v1142
        %v1320 = vunpack.c.l.b16 %v1143
        %v1321 = vunpack.c.h.b16 %v1143
        %v1322 = vunpack.c.l.b16 %v1144
        %v1323 = vunpack.c.h.b16 %v1144
        %v1324 = vunpack.c.l.b16 %v1145
        %v1325 = vunpack.c.h.b16 %v1145
        %v1326 = vunpack.c.l.b16 %v1146
        %v1327 = vunpack.c.h.b16 %v1146
        %v1328 = vunpack.c.l.b16 %v1147
        %v1329 = vunpack.c.h.b16 %v1147
        %v1330 = vunpack.c.l.b16 %v1148
        %v1331 = vunpack.c.h.b16 %v1148
        %v1332 = vunpack.c.l.b16 %v1149
        %v1333 = vunpack.c.h.b16 %v1149
        %v1334 = vunpack.c.l.b16 %v1150
        %v1335 = vunpack.c.h.b16 %v1150
        %v1336 = vunpack.c.l.b16 %v1151
        %v1337 = vunpack.c.h.b16 %v1151
        %v1338 = vunpack.c.l.b16 %v1152
        %v1339 = vunpack.c.h.b16 %v1152
        %v1340 = vunpack.c.l.b16 %v1153
        %v1341 = vunpack.c.h.b16 %v1153
        %v1342 = vunpack.c.l.b16 %v1154
        %v1343 = vunpack.c.h.b16 %v1154
        %v1344 = vunpack.c.l.b16 %v1155
        %v1345 = vunpack.c.h.b16 %v1155
        %v1346 = vunpack.c.l.b16 %v1156
        %v1347 = vunpack.c.h.b16 %v1156
        %v1348 = vunpack.c.l.b16 %v1157
        %v1349 = vunpack.c.h.b16 %v1157
        %v1350 = vunpack.c.l.b16 %v1158
        %v1351 = vunpack.c.h.b16 %v1158
        %v1352 = vunpack.c.l.b16 %v1159
        %v1353 = vunpack.c.h.b16 %v1159
        %v1354 = vunpack.c.l.b16 %v1160
        %v1355 = vunpack.c.h.b16 %v1160
        %v1356 = vunpack.c.l.b16 %v1161
        %v1357 = vunpack.c.h.b16 %v1161
        %v1358 = vunpack.c.l.b16 %v1162
        %v1359 = vunpack.c.h.b16 %v1162
        %v1360 = vunpack.c.l.b16 %v1163
        %v1361 = vunpack.c.h.b16 %v1163
        %v1362 = vunpack.c.l.b16 %v1164
        %v1363 = vunpack.c.h.b16 %v1164
        %v1364 = vunpack.c.l.b16 %v1165
        %v1365 = vunpack.c.h.b16 %v1165
        %v1366 = vunpack.c.l.b16 %v1166
        %v1367 = vunpack.c.h.b16 %v1166
        %v1368 = vunpack.c.l.b16 %v1167
        %v1369 = vunpack.c.h.b16 %v1167
        %v1370 = vunpack.c.l.b16 %v1168
        %v1371 = vunpack.c.h.b16 %v1168
        %v1372 = vunpack.c.l.b16 %v1169
        %v1373 = vunpack.c.h.b16 %v1169
        %v1374 = vunpack.c.l.b16 %v1170
        %v1375 = vunpack.c.h.b16 %v1170
        %v1376 = vunpack.c.l.b16 %v1171
        %v1377 = vunpack.c.h.b16 %v1171
        %v1378 = vunpack.c.l.b16 %v1172
        %v1379 = vunpack.c.h.b16 %v1172
        %v1380 = vunpack.c.l.b16 %v1173
        %v1381 = vunpack.c.h.b16 %v1173
        %v1382 = vunpack.c.l.b16 %v1174
        %v1383 = vunpack.c.h.b16 %v1174
        %v1384 = vunpack.c.l.b16 %v1175
        %v1385 = vunpack.c.h.b16 %v1175
        %v1386 = vunpack.c.l.b16 %v1176
        %v1387 = vunpack.c.h.b16 %v1176
        %v1388 = vunpack.c.l.b16 %v1177
        %v1389 = vunpack.c.h.b16 %v1177
        %v1390 = vunpack.c.l.b16 %v1178
        %v1391 = vunpack.c.h.b16 %v1178
        %v1392 = vunpack.c.l.b16 %v1179
        %v1393 = vunpack.c.h.b16 %v1179
        %v1394 = vpack.c.b16 %v1270, %v1266
        %v1395 = vpack.c.b16 %v1271, %v1267
        %v1396 = vpack.c.b16 %v1272, %v1268
        %v1397 = vpack.c.b16 %v1273, %v1269
        %v1398 = vpack.c.b16 %v1278, %v1274
        %v1399 = vpack.c.b16 %v1279, %v1275
        %v1400 = vpack.c.b16 %v1280, %v1276
        %v1401 = vpack.c.b16 %v1281, %v1277
        %v1402 = vpack.c.b16 %v1286, %v1282
        %v1403 = vpack.c.b16 %v1287, %v1283
        %v1404 = vpack.c.b16 %v1288, %v1284
        %v1405 = vpack.c.b16 %v1289, %v1285
        %v1406 = vpack.c.b16 %v1294, %v1290
        %v1407 = vpack.c.b16 %v1295, %v1291
        %v1408 = vpack.c.b16 %v1296, %v1292
        %v1409 = vpack.c.b16 %v1297, %v1293
        %v1410 = vpack.c.b16 %v1302, %v1298
        %v1411 = vpack.c.b16 %v1303, %v1299
        %v1412 = vpack.c.b16 %v1304, %v1300
        %v1413 = vpack.c.b16 %v1305, %v1301
        %v1414 = vpack.c.b16 %v1310, %v1306
        %v1415 = vpack.c.b16 %v1311, %v1307
        %v1416 = vpack.c.b16 %v1312, %v1308
        %v1417 = vpack.c.b16 %v1313, %v1309
        %v1418 = vpack.c.b16 %v1318, %v1314
        %v1419 = vpack.c.b16 %v1319, %v1315
        %v1420 = vpack.c.b16 %v1320, %v1316
        %v1421 = vpack.c.b16 %v1321, %v1317
        %v1422 = vpack.c.b16 %v1326, %v1322
        %v1423 = vpack.c.b16 %v1327, %v1323
        %v1424 = vpack.c.b16 %v1328, %v1324
        %v1425 = vpack.c.b16 %v1329, %v1325
        %v1426 = vpack.c.b16 %v1334, %v1330
        %v1427 = vpack.c.b16 %v1335, %v1331
        %v1428 = vpack.c.b16 %v1336, %v1332
        %v1429 = vpack.c.b16 %v1337, %v1333
        %v1430 = vpack.c.b16 %v1342, %v1338
        %v1431 = vpack.c.b16 %v1343, %v1339
        %v1432 = vpack.c.b16 %v1344, %v1340
        %v1433 = vpack.c.b16 %v1345, %v1341
        %v1434 = vpack.c.b16 %v1350, %v1346
        %v1435 = vpack.c.b16 %v1351, %v1347
        %v1436 = vpack.c.b16 %v1352, %v1348
        %v1437 = vpack.c.b16 %v1353, %v1349
        %v1438 = vpack.c.b16 %v1358, %v1354
        %v1439 = vpack.c.b16 %v1359, %v1355
        %v1440 = vpack.c.b16 %v1360, %v1356
        %v1441 = vpack.c.b16 %v1361, %v1357
        %v1442 = vpack.c.b16 %v1366, %v1362
        %v1443 = vpack.c.b16 %v1367, %v1363
        %v1444 = vpack.c.b16 %v1368, %v1364
        %v1445 = vpack.c.b16 %v1369, %v1365
        %v1446 = vpack.c.b16 %v1374, %v1370
        %v1447 = vpack.c.b16 %v1375, %v1371
        %v1448 = vpack.c.b16 %v1376, %v1372
        %v1449 = vpack.c.b16 %v1377, %v1373
        %v1450 = vpack.c.b16 %v1382, %v1378
        %v1451 = vpack.c.b16 %v1383, %v1379
        %v1452 = vpack.c.b16 %v1384, %v1380
        %v1453 = vpack.c.b16 %v1385, %v1381
        %v1454 = vpack.c.b16 %v1390, %v1386
        %v1455 = vpack.c.b16 %v1391, %v1387
        %v1456 = vpack.c.b16 %v1392, %v1388
        %v1457 = vpack.c.b16 %v1393, %v1389
        %1522 = vmatprep.subr.bf16.mxu0 %v1395
        %1523 = vmatpush1.bf16.msra.mxu0 %v1394
        %1524 = vmatprep.subr.bf16.mxu0 %v1399
        %1525 = vmatpush1.bf16.msra.mxu0 %v1398
        %1526 = vmatprep.subr.bf16.mxu0 %v1403
        %1527 = vmatpush1.bf16.msra.mxu0 %v1402
        %1528 = vmatprep.subr.bf16.mxu0 %v1407
        %1529 = vmatpush1.bf16.msra.mxu0 %v1406
        %1530 = vmatprep.subr.bf16.mxu0 %v1411
        %1531 = vmatpush1.bf16.msra.mxu0 %v1410
        %1532 = vmatprep.subr.bf16.mxu0 %v1415
        %1533 = vmatpush1.bf16.msra.mxu0 %v1414
        %1534 = vmatprep.subr.bf16.mxu0 %v1419
        %1535 = vmatpush1.bf16.msra.mxu0 %v1418
        %1536 = vmatprep.subr.bf16.mxu0 %v1423
        %1537 = vmatpush1.bf16.msra.mxu0 %v1422
        %1538 = vmatprep.subr.bf16.mxu0 %v1427
        %1539 = vmatpush1.bf16.msra.mxu0 %v1426
        %1540 = vmatprep.subr.bf16.mxu0 %v1431
        %1541 = vmatpush1.bf16.msra.mxu0 %v1430
        %1542 = vmatprep.subr.bf16.mxu0 %v1435
        %1543 = vmatpush1.bf16.msra.mxu0 %v1434
        %1544 = vmatprep.subr.bf16.mxu0 %v1439
        %1545 = vmatpush1.bf16.msra.mxu0 %v1438
        %1546 = vmatprep.subr.bf16.mxu0 %v1443
        %1547 = vmatpush1.bf16.msra.mxu0 %v1442
        %1548 = vmatprep.subr.bf16.mxu0 %v1447
        %1549 = vmatpush1.bf16.msra.mxu0 %v1446
        %1550 = vmatprep.subr.bf16.mxu0 %v1451
        %1551 = vmatpush1.bf16.msra.mxu0 %v1450
        %1552 = vmatprep.subr.bf16.mxu0 %v1455
        %1553 = vmatpush1.bf16.msra.mxu0 %v1454
        %1554 = vmatprep.mubr.bf16.mxu0 %v1111
        %1555 = vmatmul.mubr.bf16.gmra.mrb[0].mxu0 %v1110
        %v1556 = vpop.f32.mrb[0].mxu0
        %v1557 = vadd.f32 %v1185, %v1556
        %v1558 = vpop.f32.mrb[0].mxu0
        %v1559 = vadd.f32 %v1189, %v1558
        %v1560 = vpop.f32.mrb[0].mxu0
        %v1561 = vadd.f32 %v1185, %v1560
        %v1562 = vpop.f32.mrb[0].mxu0
        %v1563 = vadd.f32 %v1189, %v1562
        %1564 = vmatprep.mubr.bf16.mxu0 %v1113
        %1565 = vmatmul.mubr.bf16.gmra.mrb[0].mxu0 %v1112
        %v1566 = vpop.f32.mrb[0].mxu0
        %v1567 = vadd.f32 %v1185, %v1566
        %v1568 = vpop.f32.mrb[0].mxu0
        %v1569 = vadd.f32 %v1189, %v1568
        %v1570 = vpop.f32.mrb[0].mxu0
        %v1571 = vadd.f32 %v1185, %v1570
        %v1572 = vpop.f32.mrb[0].mxu0
        %v1573 = vadd.f32 %v1189, %v1572
        %1574 = vmatprep.mubr.bf16.mxu0 %v1115
        %1575 = vmatmul.mubr.bf16.gmra.mrb[0].mxu0 %v1114
        %v1576 = vpop.f32.mrb[0].mxu0
        %v1577 = vadd.f32 %v1185, %v1576
        %v1578 = vpop.f32.mrb[0].mxu0
        %v1579 = vadd.f32 %v1189, %v1578
        %v1580 = vpop.f32.mrb[0].mxu0
        %v1581 = vpop.f32.mrb[0].mxu0
        %1582 = vdwg.mxu0
        %1583 = vmatprep.subr.bf16.mxu0 %v1397
        %1584 = vmatpush1.bf16.msra.mxu0 %v1396
        %1585 = vmatprep.subr.bf16.mxu0 %v1401
        %1586 = vmatpush1.bf16.msra.mxu0 %v1400
        %1587 = vmatprep.subr.bf16.mxu0 %v1405
        %1588 = vmatpush1.bf16.msra.mxu0 %v1404
        %1589 = vmatprep.subr.bf16.mxu0 %v1409
        %1590 = vmatpush1.bf16.msra.mxu0 %v1408
        %1591 = vmatprep.subr.bf16.mxu0 %v1413
        %1592 = vmatpush1.bf16.msra.mxu0 %v1412
        %1593 = vmatprep.subr.bf16.mxu0 %v1417
        %1594 = vmatpush1.bf16.msra.mxu0 %v1416
        %1595 = vmatprep.subr.bf16.mxu0 %v1421
        %1596 = vmatpush1.bf16.msra.mxu0 %v1420
        %1597 = vmatprep.subr.bf16.mxu0 %v1425
        %1598 = vmatpush1.bf16.msra.mxu0 %v1424
        %1599 = vmatprep.subr.bf16.mxu0 %v1429
        %1600 = vmatpush1.bf16.msra.mxu0 %v1428
        %1601 = vmatprep.subr.bf16.mxu0 %v1433
        %1602 = vmatpush1.bf16.msra.mxu0 %v1432
        %1603 = vmatprep.subr.bf16.mxu0 %v1437
        %1604 = vmatpush1.bf16.msra.mxu0 %v1436
        %1605 = vmatprep.subr.bf16.mxu0 %v1441
        %1606 = vmatpush1.bf16.msra.mxu0 %v1440
        %1607 = vmatprep.subr.bf16.mxu0 %v1445
        %1608 = vmatpush1.bf16.msra.mxu0 %v1444
        %1609 = vmatprep.subr.bf16.mxu0 %v1449
        %1610 = vmatpush1.bf16.msra.mxu0 %v1448
        %1611 = vmatprep.subr.bf16.mxu0 %v1453
        %1612 = vmatpush1.bf16.msra.mxu0 %v1452
        %1613 = vmatprep.subr.bf16.mxu0 %v1457
        %1614 = vmatpush1.bf16.msra.mxu0 %v1456
        %1615 = vmatprep.mubr.bf16.mxu0 %v1111
        %1616 = vmatmul.mubr.bf16.gmra.mrb[0].mxu0 %v1110
        %v1617 = vpop.f32.mrb[0].mxu0
        %v1618 = vadd.f32 %v1193, %v1617
        %v1619 = vpop.f32.mrb[0].mxu0
        %v1620 = vadd.f32 %v1197, %v1619
        %v1621 = vpop.f32.mrb[0].mxu0
        %v1622 = vadd.f32 %v1193, %v1621
        %v1623 = vpop.f32.mrb[0].mxu0
        %v1624 = vadd.f32 %v1197, %v1623
        %1625 = vmatprep.mubr.bf16.mxu0 %v1113
        %1626 = vmatmul.mubr.bf16.gmra.mrb[0].mxu0 %v1112
        %v1627 = vpop.f32.mrb[0].mxu0
        %v1628 = vadd.f32 %v1193, %v1627
        %v1629 = vpop.f32.mrb[0].mxu0
        %v1630 = vadd.f32 %v1197, %v1629
        %v1631 = vpop.f32.mrb[0].mxu0
        %v1632 = vadd.f32 %v1193, %v1631
        %v1633 = vpop.f32.mrb[0].mxu0
        %v1634 = vadd.f32 %v1197, %v1633
        %1635 = vmatprep.mubr.bf16.mxu0 %v1115
        %1636 = vmatmul.mubr.bf16.gmra.mrb[0].mxu0 %v1114
        %v1637 = vpop.f32.mrb[0].mxu0
        %v1638 = vadd.f32 %v1193, %v1637
        %v1639 = vpop.f32.mrb[0].mxu0
        %v1640 = vadd.f32 %v1197, %v1639
        %v1641 = vpop.f32.mrb[0].mxu0
        %v1642 = vpop.f32.mrb[0].mxu0
        %1643 = vdwg.mxu0
        %v1644 = vpack.c.bf16 %v1561, %v1557
        %v1645 = vpack.c.bf16 %v1563, %v1559
        %v1646 = vpack.c.bf16 %v1622, %v1618
        %v1647 = vpack.c.bf16 %v1624, %v1620
        %v1648 = vpack.c.bf16 %v1571, %v1567
        %v1649 = vpack.c.bf16 %v1573, %v1569
        %v1650 = vpack.c.bf16 %v1632, %v1628
        %v1651 = vpack.c.bf16 %v1634, %v1630
        %v1652 = vpack.c.bf16 %v1577, %v1577
        %v1653 = vpack.c.bf16 %v1579, %v1579
        %v1654 = vpack.c.bf16 %v1638, %v1638
        %v1655 = vpack.c.bf16 %v1640, %v1640
        %v1668 = vunpack.c.l.b16 %v1644
        %v1669 = vunpack.c.l.b16 %v1645
        %v1670 = vunpack.c.l.b16 %v1646
        %v1671 = vunpack.c.l.b16 %v1647
        %v1672 = vunpack.c.h.b16 %v1644
        %v1673 = vunpack.c.h.b16 %v1645
        %v1674 = vunpack.c.h.b16 %v1646
        %v1675 = vunpack.c.h.b16 %v1647
        %v1676 = vunpack.c.l.b16 %v1648
        %v1677 = vunpack.c.l.b16 %v1649
        %v1678 = vunpack.c.l.b16 %v1650
        %v1679 = vunpack.c.l.b16 %v1651
        %v1680 = vunpack.c.h.b16 %v1648
        %v1681 = vunpack.c.h.b16 %v1649
        %v1682 = vunpack.c.h.b16 %v1650
        %v1683 = vunpack.c.h.b16 %v1651
        %v1684 = vunpack.c.l.b16 %v1652
        %v1685 = vunpack.c.l.b16 %v1653
        %v1686 = vunpack.c.l.b16 %v1654
        %v1687 = vunpack.c.l.b16 %v1655
        %v1688 = vpack.c.b16 %v1669, %v1668
        %v1689 = vpack.c.b16 %v1671, %v1670
        %v1690 = vpack.c.b16 %v1673, %v1672
        %v1691 = vpack.c.b16 %v1675, %v1674
        %v1692 = vpack.c.b16 %v1677, %v1676
        %v1693 = vpack.c.b16 %v1679, %v1678
        %v1694 = vpack.c.b16 %v1681, %v1680
        %v1695 = vpack.c.b16 %v1683, %v1682
        %v1696 = vpack.c.b16 %v1685, %v1684
        %v1697 = vpack.c.b16 %v1687, %v1686
        %1708 = vst [vmem:[%s933] sm:$0xff] %v1688
        %1709 = vst [vmem:[%s933 + $0x8] sm:$0xff] %v1689
        %1710 = vst [vmem:[%s933 + $0x10] sm:$0xff] %v1690
        %1711 = vst [vmem:[%s933 + $0x18] sm:$0xff] %v1691
        %1712 = vst [vmem:[%s933 + $0x20] sm:$0xff] %v1692
        %1713 = vst [vmem:[%s933 + $0x28] sm:$0xff] %v1693
        %1714 = vst [vmem:[%s933 + $0x30] sm:$0xff] %v1694
        %1715 = vst [vmem:[%s933 + $0x38] sm:$0xff] %v1695
        %1716 = vst [vmem:[%s933 + $0x40] sm:$0x11] %v1696
        %1717 = vst [vmem:[%s933 + $0x48] sm:$0x11] %v1697
        %s1718 = sand.u32 %s158, 1
        %s1719 = sand.u32 %s158, 1
        %s1720 = smul.addr %s1719, 80
        %s1721 = scalar_lea.vmem [#allocation3], %s1720
        // Predicated region
        $region107: #{vit_forward.13} parent=101 // pred_check
          %p1722 = pneg %p168
        $region108: #{vit_forward.13} parent=101 // pred_check_branch
          %1724 = sbr.rel (%p1722) target = $region110
        $region109: #{vit_forward.13} parent=101 // pred_region
          %s1725 = smul.u32 5, %s20
          %s1726 = smul.u32 4, %s21
          %s1727 = ssub.s32 6, %s1726
          %p1728 = scmp.lt.s32.totalorder %s1727, 4
          %s1729 = scalar_select %p1728, %s1727, 4
          %s1730 = smul.u32 320, %s1729
          %p1731 = scmp.ne.s32.totalorder 0, %s1730
          %s1732 = smul.addr %s1725, 6
          %s1733 = sadd.s32 %s1726, %s1732
          %s1734 = smul.addr %s1733, 4
          %s1735 = scalar_lea.vmem %s5, %s1734
          %s1736 = smul.u32 %s1729, 4
          // Predicated region
          $region111: #{vit_forward.13} parent=109 // pred_check
            %p1737 = pneg %p1731
          $region112: #{vit_forward.13} parent=109 // pred_check_branch
            %1739 = sbr.rel (%p1737) target = $region114
          $region113: #{vit_forward.13} parent=109 // pred_region
            %p1740 = scmp.lt.u32.totalorder %s1736, 8
            %p1741 = pneg %p1740
            // Predicated region
            $region115: #{vit_forward.13} parent=113 // pred_check
              _
            $region116: #{vit_forward.13} parent=113 // pred_check_branch
              %1743 = sbr.rel (%p1740) target = $region118
            $region117: #{vit_forward.13} parent=113 // pred_region
              %s1766 = sand.u32 %s1736, 7
              %p1767 = scmp.eq.s32.totalorder %s1766, 0
              // Predicated region
              $region130: #{vit_forward.13} parent=117 // pred_check
                %p1768 = pneg %p1767
              $region131: #{vit_forward.13} parent=117 // pred_check_branch
                %1770 = sbr.rel (%p1768) target = $region133
              $region132: #{vit_forward.13} parent=117 // pred_region
                %s1771 = sshrl.u32 %s1736, 3
                %s1772 = sshrl.u32 %s1771, 4
                // While loop
                $region134: #{vit_forward.13} parent=132 // loop_pre_header
                  _
                $region135: #{vit_forward.13} parent=132 // loop_header
                  %s1776 = sphi 0, %s1778
                  %p1777 = scmp.ge.s32.totalorder %s1776, %s1772
                  %s1781 = sphi 0, %s1946
                  %s1782 = sphi %s1721, %s1949
                  %s1783 = sphi %s1735, %s1950
                $region136: #{vit_forward.13} parent=132 // loop_header_branch
                  %1780 = sbr.rel (%p1777) target = $region140
                $region137: #{vit_forward.13} parent=132 // loop_body
                  %v1784 = vld [vmem:[%s1782] sm:$0xff]
                  %1785 = vst [vmem:[%s1783] sm:$0xff] %v1784
                  %v1786 = vld [vmem:[%s1782 + $0x8] sm:$0xff]
                  %1787 = vst [vmem:[%s1783 + $0x8] sm:$0xff] %v1786
                  %v1788 = vld [vmem:[%s1782 + $0x10] sm:$0xff]
                  %1789 = vst [vmem:[%s1783 + $0x10] sm:$0xff] %v1788
                  %v1790 = vld [vmem:[%s1782 + $0x18] sm:$0xff]
                  %1791 = vst [vmem:[%s1783 + $0x18] sm:$0xff] %v1790
                  %v1792 = vld [vmem:[%s1782 + $0x20] sm:$0xff]
                  %1793 = vst [vmem:[%s1783 + $0x20] sm:$0xff] %v1792
                  %v1794 = vld [vmem:[%s1782 + $0x28] sm:$0xff]
                  %1795 = vst [vmem:[%s1783 + $0x28] sm:$0xff] %v1794
                  %v1796 = vld [vmem:[%s1782 + $0x30] sm:$0xff]
                  %1797 = vst [vmem:[%s1783 + $0x30] sm:$0xff] %v1796
                  %v1798 = vld [vmem:[%s1782 + $0x38] sm:$0xff]
                  %1799 = vst [vmem:[%s1783 + $0x38] sm:$0xff] %v1798
                  %v1800 = vld [vmem:[%s1782 + $0x40] sm:$0xff]
                  %1801 = vst [vmem:[%s1783 + $0x40] sm:$0xff] %v1800
                  %v1802 = vld [vmem:[%s1782 + $0x48] sm:$0xff]
                  %1803 = vst [vmem:[%s1783 + $0x48] sm:$0xff] %v1802
                  %v1804 = vld [vmem:[%s1782 + $0x50] sm:$0xff]
                  %1805 = vst [vmem:[%s1783 + $0x50] sm:$0xff] %v1804
                  %v1806 = vld [vmem:[%s1782 + $0x58] sm:$0xff]
                  %1807 = vst [vmem:[%s1783 + $0x58] sm:$0xff] %v1806
                  %v1808 = vld [vmem:[%s1782 + $0x60] sm:$0xff]
                  %1809 = vst [vmem:[%s1783 + $0x60] sm:$0xff] %v1808
                  %v1810 = vld [vmem:[%s1782 + $0x68] sm:$0xff]
                  %1811 = vst [vmem:[%s1783 + $0x68] sm:$0xff] %v1810
                  %v1812 = vld [vmem:[%s1782 + $0x70] sm:$0xff]
                  %1813 = vst [vmem:[%s1783 + $0x70] sm:$0xff] %v1812
                  %v1814 = vld [vmem:[%s1782 + $0x78] sm:$0xff]
                  %1815 = vst [vmem:[%s1783 + $0x78] sm:$0xff] %v1814
                  %v1816 = vld [vmem:[%s1782 + $0x10] sm:$0xff]
                  %1817 = vst [vmem:[%s1783 + $0x18] sm:$0xff] %v1816
                  %v1818 = vld [vmem:[%s1782 + $0x18] sm:$0xff]
                  %1819 = vst [vmem:[%s1783 + $0x20] sm:$0xff] %v1818
                  %v1820 = vld [vmem:[%s1782 + $0x20] sm:$0xff]
                  %1821 = vst [vmem:[%s1783 + $0x28] sm:$0xff] %v1820
                  %v1822 = vld [vmem:[%s1782 + $0x28] sm:$0xff]
                  %1823 = vst [vmem:[%s1783 + $0x30] sm:$0xff] %v1822
                  %v1824 = vld [vmem:[%s1782 + $0x30] sm:$0xff]
                  %1825 = vst [vmem:[%s1783 + $0x38] sm:$0xff] %v1824
                  %v1826 = vld [vmem:[%s1782 + $0x38] sm:$0xff]
                  %1827 = vst [vmem:[%s1783 + $0x40] sm:$0xff] %v1826
                  %v1828 = vld [vmem:[%s1782 + $0x40] sm:$0xff]
                  %1829 = vst [vmem:[%s1783 + $0x48] sm:$0xff] %v1828
                  %v1830 = vld [vmem:[%s1782 + $0x48] sm:$0xff]
                  %1831 = vst [vmem:[%s1783 + $0x50] sm:$0xff] %v1830
                  %v1832 = vld [vmem:[%s1782 + $0x50] sm:$0xff]
                  %1833 = vst [vmem:[%s1783 + $0x58] sm:$0xff] %v1832
                  %v1834 = vld [vmem:[%s1782 + $0x58] sm:$0xff]
                  %1835 = vst [vmem:[%s1783 + $0x60] sm:$0xff] %v1834
                  %v1836 = vld [vmem:[%s1782 + $0x60] sm:$0xff]
                  %1837 = vst [vmem:[%s1783 + $0x68] sm:$0xff] %v1836
                  %v1838 = vld [vmem:[%s1782 + $0x68] sm:$0xff]
                  %1839 = vst [vmem:[%s1783 + $0x70] sm:$0xff] %v1838
                  %v1840 = vld [vmem:[%s1782 + $0x70] sm:$0xff]
                  %1841 = vst [vmem:[%s1783 + $0x78] sm:$0xff] %v1840
                  %v1842 = vld [vmem:[%s1782 + $0x78] sm:$0xff]
                  %1843 = vst [vmem:[%s1783 + $0x80] sm:$0xff] %v1842
                  %v1844 = vld [vmem:[%s1782 + $0x80] sm:$0xff]
                  %1845 = vst [vmem:[%s1783 + $0x88] sm:$0xff] %v1844
                  %v1846 = vld [vmem:[%s1782 + $0x88] sm:$0xff]
                  %1847 = vst [vmem:[%s1783 + $0x90] sm:$0xff] %v1846
                  %v1848 = vld [vmem:[%s1782 + $0x20] sm:$0xff]
                  %1849 = vst [vmem:[%s1783 + $0x30] sm:$0xff] %v1848
                  %v1850 = vld [vmem:[%s1782 + $0x28] sm:$0xff]
                  %1851 = vst [vmem:[%s1783 + $0x38] sm:$0xff] %v1850
                  %v1852 = vld [vmem:[%s1782 + $0x30] sm:$0xff]
                  %1853 = vst [vmem:[%s1783 + $0x40] sm:$0xff] %v1852
                  %v1854 = vld [vmem:[%s1782 + $0x38] sm:$0xff]
                  %1855 = vst [vmem:[%s1783 + $0x48] sm:$0xff] %v1854
                  %v1856 = vld [vmem:[%s1782 + $0x40] sm:$0xff]
                  %1857 = vst [vmem:[%s1783 + $0x50] sm:$0xff] %v1856
                  %v1858 = vld [vmem:[%s1782 + $0x48] sm:$0xff]
                  %1859 = vst [vmem:[%s1783 + $0x58] sm:$0xff] %v1858
                  %v1860 = vld [vmem:[%s1782 + $0x50] sm:$0xff]
                  %1861 = vst [vmem:[%s1783 + $0x60] sm:$0xff] %v1860
                  %v1862 = vld [vmem:[%s1782 + $0x58] sm:$0xff]
                  %1863 = vst [vmem:[%s1783 + $0x68] sm:$0xff] %v1862
                  %v1864 = vld [vmem:[%s1782 + $0x60] sm:$0xff]
                  %1865 = vst [vmem:[%s1783 + $0x70] sm:$0xff] %v1864
                  %v1866 = vld [vmem:[%s1782 + $0x68] sm:$0xff]
                  %1867 = vst [vmem:[%s1783 + $0x78] sm:$0xff] %v1866
                  %v1868 = vld [vmem:[%s1782 + $0x70] sm:$0xff]
                  %1869 = vst [vmem:[%s1783 + $0x80] sm:$0xff] %v1868
                  %v1870 = vld [vmem:[%s1782 + $0x78] sm:$0xff]
                  %1871 = vst [vmem:[%s1783 + $0x88] sm:$0xff] %v1870
                  %v1872 = vld [vmem:[%s1782 + $0x80] sm:$0xff]
                  %1873 = vst [vmem:[%s1783 + $0x90] sm:$0xff] %v1872
                  %v1874 = vld [vmem:[%s1782 + $0x88] sm:$0xff]
                  %1875 = vst [vmem:[%s1783 + $0x98] sm:$0xff] %v1874
                  %v1876 = vld [vmem:[%s1782 + $0x90] sm:$0xff]
                  %1877 = vst [vmem:[%s1783 + $0xa0] sm:$0xff] %v1876
                  %v1878 = vld [vmem:[%s1782 + $0x98] sm:$0xff]
                  %1879 = vst [vmem:[%s1783 + $0xa8] sm:$0xff] %v1878
                  %v1880 = vld [vmem:[%s1782 + $0x30] sm:$0xff]
                  %1881 = vst [vmem:[%s1783 + $0x48] sm:$0xff] %v1880
                  %v1882 = vld [vmem:[%s1782 + $0x38] sm:$0xff]
                  %1883 = vst [vmem:[%s1783 + $0x50] sm:$0xff] %v1882
                  %v1884 = vld [vmem:[%s1782 + $0x40] sm:$0xff]
                  %1885 = vst [vmem:[%s1783 + $0x58] sm:$0xff] %v1884
                  %v1886 = vld [vmem:[%s1782 + $0x48] sm:$0xff]
                  %1887 = vst [vmem:[%s1783 + $0x60] sm:$0xff] %v1886
                  %v1888 = vld [vmem:[%s1782 + $0x50] sm:$0xff]
                  %1889 = vst [vmem:[%s1783 + $0x68] sm:$0xff] %v1888
                  %v1890 = vld [vmem:[%s1782 + $0x58] sm:$0xff]
                  %1891 = vst [vmem:[%s1783 + $0x70] sm:$0xff] %v1890
                  %v1892 = vld [vmem:[%s1782 + $0x60] sm:$0xff]
                  %1893 = vst [vmem:[%s1783 + $0x78] sm:$0xff] %v1892
                  %v1894 = vld [vmem:[%s1782 + $0x68] sm:$0xff]
                  %1895 = vst [vmem:[%s1783 + $0x80] sm:$0xff] %v1894
                  %v1896 = vld [vmem:[%s1782 + $0x70] sm:$0xff]
                  %1897 = vst [vmem:[%s1783 + $0x88] sm:$0xff] %v1896
                  %v1898 = vld [vmem:[%s1782 + $0x78] sm:$0xff]
                  %1899 = vst [vmem:[%s1783 + $0x90] sm:$0xff] %v1898
                  %v1900 = vld [vmem:[%s1782 + $0x80] sm:$0xff]
                  %1901 = vst [vmem:[%s1783 + $0x98] sm:$0xff] %v1900
                  %v1902 = vld [vmem:[%s1782 + $0x88] sm:$0xff]
                  %1903 = vst [vmem:[%s1783 + $0xa0] sm:$0xff] %v1902
                  %v1904 = vld [vmem:[%s1782 + $0x90] sm:$0xff]
                  %1905 = vst [vmem:[%s1783 + $0xa8] sm:$0xff] %v1904
                  %v1906 = vld [vmem:[%s1782 + $0x98] sm:$0xff]
                  %1907 = vst [vmem:[%s1783 + $0xb0] sm:$0xff] %v1906
                  %v1908 = vld [vmem:[%s1782 + $0xa0] sm:$0xff]
                  %1909 = vst [vmem:[%s1783 + $0xb8] sm:$0xff] %v1908
                  %v1910 = vld [vmem:[%s1782 + $0xa8] sm:$0xff]
                  %1911 = vst [vmem:[%s1783 + $0xc0] sm:$0xff] %v1910
                  %v1912 = vld [vmem:[%s1782 + $0x40] sm:$0xff]
                  %1913 = vst [vmem:[%s1783 + $0x60] sm:$0xff] %v1912
                  %v1914 = vld [vmem:[%s1782 + $0x48] sm:$0xff]
                  %1915 = vst [vmem:[%s1783 + $0x68] sm:$0xff] %v1914
                  %v1916 = vld [vmem:[%s1782 + $0x50] sm:$0xff]
                  %1917 = vst [vmem:[%s1783 + $0x70] sm:$0xff] %v1916
                  %v1918 = vld [vmem:[%s1782 + $0x58] sm:$0xff]
                  %1919 = vst [vmem:[%s1783 + $0x78] sm:$0xff] %v1918
                  %v1920 = vld [vmem:[%s1782 + $0x60] sm:$0xff]
                  %1921 = vst [vmem:[%s1783 + $0x80] sm:$0xff] %v1920
                  %v1922 = vld [vmem:[%s1782 + $0x68] sm:$0xff]
                  %1923 = vst [vmem:[%s1783 + $0x88] sm:$0xff] %v1922
                  %v1924 = vld [vmem:[%s1782 + $0x70] sm:$0xff]
                  %1925 = vst [vmem:[%s1783 + $0x90] sm:$0xff] %v1924
                  %v1926 = vld [vmem:[%s1782 + $0x78] sm:$0xff]
                  %1927 = vst [vmem:[%s1783 + $0x98] sm:$0xff] %v1926
                  %v1928 = vld [vmem:[%s1782 + $0x80] sm:$0xff]
                  %1929 = vst [vmem:[%s1783 + $0xa0] sm:$0xff] %v1928
                  %v1930 = vld [vmem:[%s1782 + $0x88] sm:$0xff]
                  %1931 = vst [vmem:[%s1783 + $0xa8] sm:$0xff] %v1930
                  %v1932 = vld [vmem:[%s1782 + $0x90] sm:$0xff]
                  %1933 = vst [vmem:[%s1783 + $0xb0] sm:$0xff] %v1932
                  %v1934 = vld [vmem:[%s1782 + $0x98] sm:$0xff]
                  %1935 = vst [vmem:[%s1783 + $0xb8] sm:$0xff] %v1934
                  %v1936 = vld [vmem:[%s1782 + $0xa0] sm:$0xff]
                  %1937 = vst [vmem:[%s1783 + $0xc0] sm:$0xff] %v1936
                  %v1938 = vld [vmem:[%s1782 + $0xa8] sm:$0xff]
                  %1939 = vst [vmem:[%s1783 + $0xc8] sm:$0xff] %v1938
                  %v1940 = vld [vmem:[%s1782 + $0xb0] sm:$0xff]
                  %1941 = vst [vmem:[%s1783 + $0xd0] sm:$0xff] %v1940
                  %v1942 = vld [vmem:[%s1782 + $0xb8] sm:$0xff]
                  %1943 = vst [vmem:[%s1783 + $0xd8] sm:$0xff] %v1942
                  %s1944 = sadd.s32 1, %s1781
                  %p1945 = scmp.ge.s32.totalorder %s1944, %s1772
                  %s1946 = scalar_select %p1945, 0, %s1944
                  %s1947 = smul.u32 %s1946, 128
                  %s1948 = smul.u32 %s1946, 128
                  %s1949 = scalar_lea.vmem %s1721, %s1947 [#allocation3]
                  %s1950 = scalar_lea.vmem %s1735, %s1948
                $region138: #{vit_forward.13} parent=132 // loop_footer
                  %s1778 = sadd.s32 %s1776, 1
                $region139: #{vit_forward.13} parent=132 // loop_footer_branch
                  %1775 = sbr.rel target = $region135
                $region140: #{vit_forward.13} parent=132 // loop_exit
                  _
                %s1951 = sshrl.u32 %s1771, 4
                %s1952 = sand.u32 %s1771, 15
                %s1953 = smul.u32 %s1951, 16
                %s1954 = smul.u32 128, %s1953
                %s1955 = sshra.s32 %s1954, 4
                %s1956 = scalar_lea.vmem %s1721, %s1955 [#allocation3]
                %s1957 = smul.u32 128, %s1953
                %s1958 = sshra.s32 %s1957, 4
                %s1959 = scalar_lea.vmem %s1735, %s1958
                // While loop
                $region141: #{vit_forward.13} parent=132 // loop_pre_header
                  _
                $region142: #{vit_forward.13} parent=132 // loop_header
                  %s1963 = sphi 0, %s1965
                  %p1964 = scmp.ge.s32.totalorder %s1963, %s1952
                  %s1968 = sphi 0, %s1983
                  %s1969 = sphi %s1956, %s1986
                  %s1970 = sphi %s1959, %s1987
                $region143: #{vit_forward.13} parent=132 // loop_header_branch
                  %1967 = sbr.rel (%p1964) target = $region147
                $region144: #{vit_forward.13} parent=132 // loop_body
                  %v1971 = vld [vmem:[%s1969] sm:$0xff]
                  %1972 = vst [vmem:[%s1970] sm:$0xff] %v1971
                  %v1973 = vld [vmem:[%s1969 + $0x10] sm:$0xff]
                  %1974 = vst [vmem:[%s1970 + $0x18] sm:$0xff] %v1973
                  %v1975 = vld [vmem:[%s1969 + $0x20] sm:$0xff]
                  %1976 = vst [vmem:[%s1970 + $0x30] sm:$0xff] %v1975
                  %v1977 = vld [vmem:[%s1969 + $0x30] sm:$0xff]
                  %1978 = vst [vmem:[%s1970 + $0x48] sm:$0xff] %v1977
                  %v1979 = vld [vmem:[%s1969 + $0x40] sm:$0xff]
                  %1980 = vst [vmem:[%s1970 + $0x60] sm:$0xff] %v1979
                  %s1981 = sadd.s32 1, %s1968
                  %p1982 = scmp.ge.s32.totalorder %s1981, %s1952
                  %s1983 = scalar_select %p1982, 0, %s1981
                  %s1984 = smul.u32 %s1983, 8
                  %s1985 = smul.u32 %s1983, 8
                  %s1986 = scalar_lea.vmem %s1956, %s1984 [#allocation3]
                  %s1987 = scalar_lea.vmem %s1959, %s1985
                $region145: #{vit_forward.13} parent=132 // loop_footer
                  %s1965 = sadd.s32 %s1963, 1
                $region146: #{vit_forward.13} parent=132 // loop_footer_branch
                  %1962 = sbr.rel target = $region142
                $region147: #{vit_forward.13} parent=132 // loop_exit
                  _
              $region133: #{vit_forward.13} parent=117 // pred_fallthru
                _
              %p1988 = pneg %p1767
              // Predicated region
              $region148: #{vit_forward.13} parent=117 // pred_check
                _
              $region149: #{vit_forward.13} parent=117 // pred_check_branch
                %1990 = sbr.rel (%p1767) target = $region151
              $region150: #{vit_forward.13} parent=117 // pred_region
                %s1991 = sand.u32 %s1736, 7
                %s1992 = ssub.s32 %s1736, %s1991
                %s1993 = scalar_lea.vmem %s1721, %s1992 [#allocation3]
                %s1994 = ssub.s32 %s1736, %s1991
                %s1995 = scalar_lea.vmem %s1735, %s1994
                %s1996 = sshrl.u32 %s1736, 3
                %s1997 = sshrl.u32 %s1996, 4
                // While loop
                $region152: #{vit_forward.13} parent=150 // loop_pre_header
                  _
                $region153: #{vit_forward.13} parent=150 // loop_header
                  %s2001 = sphi 0, %s2003
                  %p2002 = scmp.ge.s32.totalorder %s2001, %s1997
                  %s2006 = sphi 0, %s2171
                  %s2007 = sphi %s1721, %s2174
                  %s2008 = sphi %s1735, %s2175
                $region154: #{vit_forward.13} parent=150 // loop_header_branch
                  %2005 = sbr.rel (%p2002) target = $region158
                $region155: #{vit_forward.13} parent=150 // loop_body
                  %v2009 = vld [vmem:[%s2007] sm:$0xff]
                  %2010 = vst [vmem:[%s2008] sm:$0xff] %v2009
                  %v2011 = vld [vmem:[%s2007 + $0x8] sm:$0xff]
                  %2012 = vst [vmem:[%s2008 + $0x8] sm:$0xff] %v2011
                  %v2013 = vld [vmem:[%s2007 + $0x10] sm:$0xff]
                  %2014 = vst [vmem:[%s2008 + $0x10] sm:$0xff] %v2013
                  %v2015 = vld [vmem:[%s2007 + $0x18] sm:$0xff]
                  %2016 = vst [vmem:[%s2008 + $0x18] sm:$0xff] %v2015
                  %v2017 = vld [vmem:[%s2007 + $0x20] sm:$0xff]
                  %2018 = vst [vmem:[%s2008 + $0x20] sm:$0xff] %v2017
                  %v2019 = vld [vmem:[%s2007 + $0x28] sm:$0xff]
                  %2020 = vst [vmem:[%s2008 + $0x28] sm:$0xff] %v2019
                  %v2021 = vld [vmem:[%s2007 + $0x30] sm:$0xff]
                  %2022 = vst [vmem:[%s2008 + $0x30] sm:$0xff] %v2021
                  %v2023 = vld [vmem:[%s2007 + $0x38] sm:$0xff]
                  %2024 = vst [vmem:[%s2008 + $0x38] sm:$0xff] %v2023
                  %v2025 = vld [vmem:[%s2007 + $0x40] sm:$0xff]
                  %2026 = vst [vmem:[%s2008 + $0x40] sm:$0xff] %v2025
                  %v2027 = vld [vmem:[%s2007 + $0x48] sm:$0xff]
                  %2028 = vst [vmem:[%s2008 + $0x48] sm:$0xff] %v2027
                  %v2029 = vld [vmem:[%s2007 + $0x50] sm:$0xff]
                  %2030 = vst [vmem:[%s2008 + $0x50] sm:$0xff] %v2029
                  %v2031 = vld [vmem:[%s2007 + $0x58] sm:$0xff]
                  %2032 = vst [vmem:[%s2008 + $0x58] sm:$0xff] %v2031
                  %v2033 = vld [vmem:[%s2007 + $0x60] sm:$0xff]
                  %2034 = vst [vmem:[%s2008 + $0x60] sm:$0xff] %v2033
                  %v2035 = vld [vmem:[%s2007 + $0x68] sm:$0xff]
                  %2036 = vst [vmem:[%s2008 + $0x68] sm:$0xff] %v2035
                  %v2037 = vld [vmem:[%s2007 + $0x70] sm:$0xff]
                  %2038 = vst [vmem:[%s2008 + $0x70] sm:$0xff] %v2037
                  %v2039 = vld [vmem:[%s2007 + $0x78] sm:$0xff]
                  %2040 = vst [vmem:[%s2008 + $0x78] sm:$0xff] %v2039
                  %v2041 = vld [vmem:[%s2007 + $0x10] sm:$0xff]
                  %2042 = vst [vmem:[%s2008 + $0x18] sm:$0xff] %v2041
                  %v2043 = vld [vmem:[%s2007 + $0x18] sm:$0xff]
                  %2044 = vst [vmem:[%s2008 + $0x20] sm:$0xff] %v2043
                  %v2045 = vld [vmem:[%s2007 + $0x20] sm:$0xff]
                  %2046 = vst [vmem:[%s2008 + $0x28] sm:$0xff] %v2045
                  %v2047 = vld [vmem:[%s2007 + $0x28] sm:$0xff]
                  %2048 = vst [vmem:[%s2008 + $0x30] sm:$0xff] %v2047
                  %v2049 = vld [vmem:[%s2007 + $0x30] sm:$0xff]
                  %2050 = vst [vmem:[%s2008 + $0x38] sm:$0xff] %v2049
                  %v2051 = vld [vmem:[%s2007 + $0x38] sm:$0xff]
                  %2052 = vst [vmem:[%s2008 + $0x40] sm:$0xff] %v2051
                  %v2053 = vld [vmem:[%s2007 + $0x40] sm:$0xff]
                  %2054 = vst [vmem:[%s2008 + $0x48] sm:$0xff] %v2053
                  %v2055 = vld [vmem:[%s2007 + $0x48] sm:$0xff]
                  %2056 = vst [vmem:[%s2008 + $0x50] sm:$0xff] %v2055
                  %v2057 = vld [vmem:[%s2007 + $0x50] sm:$0xff]
                  %2058 = vst [vmem:[%s2008 + $0x58] sm:$0xff] %v2057
                  %v2059 = vld [vmem:[%s2007 + $0x58] sm:$0xff]
                  %2060 = vst [vmem:[%s2008 + $0x60] sm:$0xff] %v2059
                  %v2061 = vld [vmem:[%s2007 + $0x60] sm:$0xff]
                  %2062 = vst [vmem:[%s2008 + $0x68] sm:$0xff] %v2061
                  %v2063 = vld [vmem:[%s2007 + $0x68] sm:$0xff]
                  %2064 = vst [vmem:[%s2008 + $0x70] sm:$0xff] %v2063
                  %v2065 = vld [vmem:[%s2007 + $0x70] sm:$0xff]
                  %2066 = vst [vmem:[%s2008 + $0x78] sm:$0xff] %v2065
                  %v2067 = vld [vmem:[%s2007 + $0x78] sm:$0xff]
                  %2068 = vst [vmem:[%s2008 + $0x80] sm:$0xff] %v2067
                  %v2069 = vld [vmem:[%s2007 + $0x80] sm:$0xff]
                  %2070 = vst [vmem:[%s2008 + $0x88] sm:$0xff] %v2069
                  %v2071 = vld [vmem:[%s2007 + $0x88] sm:$0xff]
                  %2072 = vst [vmem:[%s2008 + $0x90] sm:$0xff] %v2071
                  %v2073 = vld [vmem:[%s2007 + $0x20] sm:$0xff]
                  %2074 = vst [vmem:[%s2008 + $0x30] sm:$0xff] %v2073
                  %v2075 = vld [vmem:[%s2007 + $0x28] sm:$0xff]
                  %2076 = vst [vmem:[%s2008 + $0x38] sm:$0xff] %v2075
                  %v2077 = vld [vmem:[%s2007 + $0x30] sm:$0xff]
                  %2078 = vst [vmem:[%s2008 + $0x40] sm:$0xff] %v2077
                  %v2079 = vld [vmem:[%s2007 + $0x38] sm:$0xff]
                  %2080 = vst [vmem:[%s2008 + $0x48] sm:$0xff] %v2079
                  %v2081 = vld [vmem:[%s2007 + $0x40] sm:$0xff]
                  %2082 = vst [vmem:[%s2008 + $0x50] sm:$0xff] %v2081
                  %v2083 = vld [vmem:[%s2007 + $0x48] sm:$0xff]
                  %2084 = vst [vmem:[%s2008 + $0x58] sm:$0xff] %v2083
                  %v2085 = vld [vmem:[%s2007 + $0x50] sm:$0xff]
                  %2086 = vst [vmem:[%s2008 + $0x60] sm:$0xff] %v2085
                  %v2087 = vld [vmem:[%s2007 + $0x58] sm:$0xff]
                  %2088 = vst [vmem:[%s2008 + $0x68] sm:$0xff] %v2087
                  %v2089 = vld [vmem:[%s2007 + $0x60] sm:$0xff]
                  %2090 = vst [vmem:[%s2008 + $0x70] sm:$0xff] %v2089
                  %v2091 = vld [vmem:[%s2007 + $0x68] sm:$0xff]
                  %2092 = vst [vmem:[%s2008 + $0x78] sm:$0xff] %v2091
                  %v2093 = vld [vmem:[%s2007 + $0x70] sm:$0xff]
                  %2094 = vst [vmem:[%s2008 + $0x80] sm:$0xff] %v2093
                  %v2095 = vld [vmem:[%s2007 + $0x78] sm:$0xff]
                  %2096 = vst [vmem:[%s2008 + $0x88] sm:$0xff] %v2095
                  %v2097 = vld [vmem:[%s2007 + $0x80] sm:$0xff]
                  %2098 = vst [vmem:[%s2008 + $0x90] sm:$0xff] %v2097
                  %v2099 = vld [vmem:[%s2007 + $0x88] sm:$0xff]
                  %2100 = vst [vmem:[%s2008 + $0x98] sm:$0xff] %v2099
                  %v2101 = vld [vmem:[%s2007 + $0x90] sm:$0xff]
                  %2102 = vst [vmem:[%s2008 + $0xa0] sm:$0xff] %v2101
                  %v2103 = vld [vmem:[%s2007 + $0x98] sm:$0xff]
                  %2104 = vst [vmem:[%s2008 + $0xa8] sm:$0xff] %v2103
                  %v2105 = vld [vmem:[%s2007 + $0x30] sm:$0xff]
                  %2106 = vst [vmem:[%s2008 + $0x48] sm:$0xff] %v2105
                  %v2107 = vld [vmem:[%s2007 + $0x38] sm:$0xff]
                  %2108 = vst [vmem:[%s2008 + $0x50] sm:$0xff] %v2107
                  %v2109 = vld [vmem:[%s2007 + $0x40] sm:$0xff]
                  %2110 = vst [vmem:[%s2008 + $0x58] sm:$0xff] %v2109
                  %v2111 = vld [vmem:[%s2007 + $0x48] sm:$0xff]
                  %2112 = vst [vmem:[%s2008 + $0x60] sm:$0xff] %v2111
                  %v2113 = vld [vmem:[%s2007 + $0x50] sm:$0xff]
                  %2114 = vst [vmem:[%s2008 + $0x68] sm:$0xff] %v2113
                  %v2115 = vld [vmem:[%s2007 + $0x58] sm:$0xff]
                  %2116 = vst [vmem:[%s2008 + $0x70] sm:$0xff] %v2115
                  %v2117 = vld [vmem:[%s2007 + $0x60] sm:$0xff]
                  %2118 = vst [vmem:[%s2008 + $0x78] sm:$0xff] %v2117
                  %v2119 = vld [vmem:[%s2007 + $0x68] sm:$0xff]
                  %2120 = vst [vmem:[%s2008 + $0x80] sm:$0xff] %v2119
                  %v2121 = vld [vmem:[%s2007 + $0x70] sm:$0xff]
                  %2122 = vst [vmem:[%s2008 + $0x88] sm:$0xff] %v2121
                  %v2123 = vld [vmem:[%s2007 + $0x78] sm:$0xff]
                  %2124 = vst [vmem:[%s2008 + $0x90] sm:$0xff] %v2123
                  %v2125 = vld [vmem:[%s2007 + $0x80] sm:$0xff]
                  %2126 = vst [vmem:[%s2008 + $0x98] sm:$0xff] %v2125
                  %v2127 = vld [vmem:[%s2007 + $0x88] sm:$0xff]
                  %2128 = vst [vmem:[%s2008 + $0xa0] sm:$0xff] %v2127
                  %v2129 = vld [vmem:[%s2007 + $0x90] sm:$0xff]
                  %2130 = vst [vmem:[%s2008 + $0xa8] sm:$0xff] %v2129
                  %v2131 = vld [vmem:[%s2007 + $0x98] sm:$0xff]
                  %2132 = vst [vmem:[%s2008 + $0xb0] sm:$0xff] %v2131
                  %v2133 = vld [vmem:[%s2007 + $0xa0] sm:$0xff]
                  %2134 = vst [vmem:[%s2008 + $0xb8] sm:$0xff] %v2133
                  %v2135 = vld [vmem:[%s2007 + $0xa8] sm:$0xff]
                  %2136 = vst [vmem:[%s2008 + $0xc0] sm:$0xff] %v2135
                  %v2137 = vld [vmem:[%s2007 + $0x40] sm:$0xff]
                  %2138 = vst [vmem:[%s2008 + $0x60] sm:$0xff] %v2137
                  %v2139 = vld [vmem:[%s2007 + $0x48] sm:$0xff]
                  %2140 = vst [vmem:[%s2008 + $0x68] sm:$0xff] %v2139
                  %v2141 = vld [vmem:[%s2007 + $0x50] sm:$0xff]
                  %2142 = vst [vmem:[%s2008 + $0x70] sm:$0xff] %v2141
                  %v2143 = vld [vmem:[%s2007 + $0x58] sm:$0xff]
                  %2144 = vst [vmem:[%s2008 + $0x78] sm:$0xff] %v2143
                  %v2145 = vld [vmem:[%s2007 + $0x60] sm:$0xff]
                  %2146 = vst [vmem:[%s2008 + $0x80] sm:$0xff] %v2145
                  %v2147 = vld [vmem:[%s2007 + $0x68] sm:$0xff]
                  %2148 = vst [vmem:[%s2008 + $0x88] sm:$0xff] %v2147
                  %v2149 = vld [vmem:[%s2007 + $0x70] sm:$0xff]
                  %2150 = vst [vmem:[%s2008 + $0x90] sm:$0xff] %v2149
                  %v2151 = vld [vmem:[%s2007 + $0x78] sm:$0xff]
                  %2152 = vst [vmem:[%s2008 + $0x98] sm:$0xff] %v2151
                  %v2153 = vld [vmem:[%s2007 + $0x80] sm:$0xff]
                  %2154 = vst [vmem:[%s2008 + $0xa0] sm:$0xff] %v2153
                  %v2155 = vld [vmem:[%s2007 + $0x88] sm:$0xff]
                  %2156 = vst [vmem:[%s2008 + $0xa8] sm:$0xff] %v2155
                  %v2157 = vld [vmem:[%s2007 + $0x90] sm:$0xff]
                  %2158 = vst [vmem:[%s2008 + $0xb0] sm:$0xff] %v2157
                  %v2159 = vld [vmem:[%s2007 + $0x98] sm:$0xff]
                  %2160 = vst [vmem:[%s2008 + $0xb8] sm:$0xff] %v2159
                  %v2161 = vld [vmem:[%s2007 + $0xa0] sm:$0xff]
                  %2162 = vst [vmem:[%s2008 + $0xc0] sm:$0xff] %v2161
                  %v2163 = vld [vmem:[%s2007 + $0xa8] sm:$0xff]
                  %2164 = vst [vmem:[%s2008 + $0xc8] sm:$0xff] %v2163
                  %v2165 = vld [vmem:[%s2007 + $0xb0] sm:$0xff]
                  %2166 = vst [vmem:[%s2008 + $0xd0] sm:$0xff] %v2165
                  %v2167 = vld [vmem:[%s2007 + $0xb8] sm:$0xff]
                  %2168 = vst [vmem:[%s2008 + $0xd8] sm:$0xff] %v2167
                  %s2169 = sadd.s32 1, %s2006
                  %p2170 = scmp.ge.s32.totalorder %s2169, %s1997
                  %s2171 = scalar_select %p2170, 0, %s2169
                  %s2172 = smul.u32 %s2171, 128
                  %s2173 = smul.u32 %s2171, 128
                  %s2174 = scalar_lea.vmem %s1721, %s2172 [#allocation3]
                  %s2175 = scalar_lea.vmem %s1735, %s2173
                $region156: #{vit_forward.13} parent=150 // loop_footer
                  %s2003 = sadd.s32 %s2001, 1
                $region157: #{vit_forward.13} parent=150 // loop_footer_branch
                  %2000 = sbr.rel target = $region153
                $region158: #{vit_forward.13} parent=150 // loop_exit
                  _
                %s2176 = sshrl.u32 %s1996, 4
                %s2177 = sand.u32 %s1996, 15
                %s2178 = smul.u32 %s2176, 16
                %s2179 = smul.u32 128, %s2178
                %s2180 = sshra.s32 %s2179, 4
                %s2181 = scalar_lea.vmem %s1721, %s2180 [#allocation3]
                %s2182 = smul.u32 128, %s2178
                %s2183 = sshra.s32 %s2182, 4
                %s2184 = scalar_lea.vmem %s1735, %s2183
                // While loop
                $region159: #{vit_forward.13} parent=150 // loop_pre_header
                  _
                $region160: #{vit_forward.13} parent=150 // loop_header
                  %s2188 = sphi 0, %s2190
                  %p2189 = scmp.ge.s32.totalorder %s2188, %s2177
                  %s2193 = sphi 0, %s2208
                  %s2194 = sphi %s2181, %s2211
                  %s2195 = sphi %s2184, %s2212
                $region161: #{vit_forward.13} parent=150 // loop_header_branch
                  %2192 = sbr.rel (%p2189) target = $region165
                $region162: #{vit_forward.13} parent=150 // loop_body
                  %v2196 = vld [vmem:[%s2194] sm:$0xff]
                  %2197 = vst [vmem:[%s2195] sm:$0xff] %v2196
                  %v2198 = vld [vmem:[%s2194 + $0x10] sm:$0xff]
                  %2199 = vst [vmem:[%s2195 + $0x18] sm:$0xff] %v2198
                  %v2200 = vld [vmem:[%s2194 + $0x20] sm:$0xff]
                  %2201 = vst [vmem:[%s2195 + $0x30] sm:$0xff] %v2200
                  %v2202 = vld [vmem:[%s2194 + $0x30] sm:$0xff]
                  %2203 = vst [vmem:[%s2195 + $0x48] sm:$0xff] %v2202
                  %v2204 = vld [vmem:[%s2194 + $0x40] sm:$0xff]
                  %2205 = vst [vmem:[%s2195 + $0x60] sm:$0xff] %v2204
                  %s2206 = sadd.s32 1, %s2193
                  %p2207 = scmp.ge.s32.totalorder %s2206, %s2177
                  %s2208 = scalar_select %p2207, 0, %s2206
                  %s2209 = smul.u32 %s2208, 8
                  %s2210 = smul.u32 %s2208, 8
                  %s2211 = scalar_lea.vmem %s2181, %s2209 [#allocation3]
                  %s2212 = scalar_lea.vmem %s2184, %s2210
                $region163: #{vit_forward.13} parent=150 // loop_footer
                  %s2190 = sadd.s32 %s2188, 1
                $region164: #{vit_forward.13} parent=150 // loop_footer_branch
                  %2187 = sbr.rel target = $region160
                $region165: #{vit_forward.13} parent=150 // loop_exit
                  _
                %s2213 = sshllo.u32 0, %s1991
                loop: start=0, step=1, limit=1
                $region166: #{vit_forward.13} parent=150 // loop_pre_header
                  _
                $region167: #{vit_forward.13} parent=150 // loop_header
                  %s2215 = sphi 0, %s2219
                  %p2216 = scmp.ge.s32.totalorder %s2215, 1
                  %s2220 = sphi %s1993, %s1993
                  %s2221 = sphi %s1995, %s1995
                $region168: #{vit_forward.13} parent=150 // loop_header_branch
                  %2218 = sbr.rel (%p2216) target = $region172
                $region169: #{vit_forward.13} parent=150 // loop_body
                  %v2222 = vld [vmem:[%s2220] sm:%s2213]
                  %2223 = vst [vmem:[%s2221] sm:%s2213] %v2222
                  %v2224 = vld [vmem:[%s2220 + $0x10] sm:%s2213]
                  %2225 = vst [vmem:[%s2221 + $0x18] sm:%s2213] %v2224
                  %v2226 = vld [vmem:[%s2220 + $0x20] sm:%s2213]
                  %2227 = vst [vmem:[%s2221 + $0x30] sm:%s2213] %v2226
                  %v2228 = vld [vmem:[%s2220 + $0x30] sm:%s2213]
                  %2229 = vst [vmem:[%s2221 + $0x48] sm:%s2213] %v2228
                  %v2230 = vld [vmem:[%s2220 + $0x40] sm:%s2213]
                  %2231 = vst [vmem:[%s2221 + $0x60] sm:%s2213] %v2230
                $region170: #{vit_forward.13} parent=150 // loop_footer
                  %s2219 = sadd.s32 1, %s2215
                $region171: #{vit_forward.13} parent=150 // loop_footer_branch
                  %2214 = sbr.rel target = $region167
                $region172: #{vit_forward.13} parent=150 // loop_exit
                  _
              $region151: #{vit_forward.13} parent=117 // pred_fallthru
                _
            $region118: #{vit_forward.13} parent=113 // pred_fallthru
              _
            // Predicated region
            $region119: #{vit_forward.13} parent=113 // pred_check
              %p1744 = pneg %p1740
            $region120: #{vit_forward.13} parent=113 // pred_check_branch
              %1746 = sbr.rel (%p1744) target = $region122
            $region121: #{vit_forward.13} parent=113 // pred_region
              %s1747 = sshllo.u32 0, %s1736
              loop: start=0, step=1, limit=1
              $region123: #{vit_forward.13} parent=121 // loop_pre_header
                _
              $region124: #{vit_forward.13} parent=121 // loop_header
                %s1749 = sphi 0, %s1753
                %p1750 = scmp.ge.s32.totalorder %s1749, 1
                %s1754 = sphi %s1721, %s1721
                %s1755 = sphi %s1735, %s1735
              $region125: #{vit_forward.13} parent=121 // loop_header_branch
                %1752 = sbr.rel (%p1750) target = $region129
              $region126: #{vit_forward.13} parent=121 // loop_body
                %v1756 = vld [vmem:[%s1754] sm:%s1747]
                %1757 = vst [vmem:[%s1755] sm:%s1747] %v1756
                %v1758 = vld [vmem:[%s1754 + $0x10] sm:%s1747]
                %1759 = vst [vmem:[%s1755 + $0x18] sm:%s1747] %v1758
                %v1760 = vld [vmem:[%s1754 + $0x20] sm:%s1747]
                %1761 = vst [vmem:[%s1755 + $0x30] sm:%s1747] %v1760
                %v1762 = vld [vmem:[%s1754 + $0x30] sm:%s1747]
                %1763 = vst [vmem:[%s1755 + $0x48] sm:%s1747] %v1762
                %v1764 = vld [vmem:[%s1754 + $0x40] sm:%s1747]
                %1765 = vst [vmem:[%s1755 + $0x60] sm:%s1747] %v1764
              $region127: #{vit_forward.13} parent=121 // loop_footer
                %s1753 = sadd.s32 1, %s1749
              $region128: #{vit_forward.13} parent=121 // loop_footer_branch
                %1748 = sbr.rel target = $region124
              $region129: #{vit_forward.13} parent=121 // loop_exit
                _
            $region122: #{vit_forward.13} parent=113 // pred_fallthru
              _
          $region114: #{vit_forward.13} parent=109 // pred_fallthru
            _
          %2232 = vnop
        $region110: #{vit_forward.13} parent=101 // pred_fallthru
          _
      $region102: #{vit_forward.13} parent=5 // pred_fallthru
        _
      %p2233 = scmp.le.s32.totalorder 2, %s11
      // Predicated region
      $region173: #{vit_forward.13} parent=5 // pred_check
        %p2234 = pneg %p2233
      $region174: #{vit_forward.13} parent=5 // pred_check_branch
        %2236 = sbr.rel (%p2234) target = $region176
      $region175: #{vit_forward.13} parent=5 // pred_region
        %s2237 = ssub.s32 %s11, 2
        // Predicated region
        $region177: #{vit_forward.13} parent=175 // pred_check
          %p2238 = pneg %p174
        $region178: #{vit_forward.13} parent=175 // pred_check_branch
          %2240 = sbr.rel (%p2238) target = $region180
        $region179: #{vit_forward.13} parent=175 // pred_region
          %s2241 = sand.u32 %s159, 1
          %s2242 = sand.u32 %s159, 1
          %s2243 = smul.addr %s2242, 80
          %s2244 = scalar_lea.vmem [#allocation3], %s2243
        $region180: #{vit_forward.13} parent=175 // pred_fallthru
          _
      $region176: #{vit_forward.13} parent=5 // pred_fallthru
        _
    $region6: #{vit_forward.13} parent=1 // loop_footer
      %s15 = sadd.s32 1, %s11
    $region7: #{vit_forward.13} parent=1 // loop_footer_branch
      %10 = sbr.rel target = $region3
    $region8: #{vit_forward.13} parent=1 // loop_exit
      _

// kernel: vit_forward.16
$region0: #{vit_forward.16}
  #allocation0 [shape = 'u32[]', space=smem, size = 0x4, offset = 0x4, fixed_abs, tag = 'smem constant byte address 0x4 - core index']
  #allocation1 [shape = 'u32[144,128]{1,0:T(1,128)}', space=vmem, size = 0x12000, scoped, tag = 'internal scratch']
  %s0 = inlined_call_operand.vmem [shape: bf16[34,256], index: 0, kind: input, shape index: {}]
  %s1 = inlined_call_operand.vmem [shape: bf16[256,512], index: 1, kind: input, shape index: {}]
  %s2 = inlined_call_operand.vmem [shape: f32[1,512], index: 2, kind: input, shape index: {}]
  %s3 = inlined_call_operand.vmem [shape: f32[1,256], index: 3, kind: input, shape index: {}]
  %s4 = inlined_call_operand.vmem [shape: f32[1,256], index: 4, kind: input, shape index: {}]
  %s5 = inlined_call_operand.vmem [shape: bf16[34,512], index: 5, kind: output, shape index: {}]
  %s6 = sld [smem:[#allocation0]]
  $region30: #{vit_forward.16} parent=0
    _
  %s8 = ssub.s32 1, %s6
  %s9 = scalar_select 0, %s8, %s6
  // Predicated region
  $region2: #{vit_forward.16} parent=0 // pred_check
    _
  $region3: #{vit_forward.16} parent=0 // pred_check_branch
    %11 = sbr.rel (0) target = $region5
  $region4: #{vit_forward.16} parent=0 // pred_region
    _
  $region5: #{vit_forward.16} parent=0 // pred_fallthru
    _
  // Predicated region
  $region6: #{vit_forward.16} parent=0 // pred_check
    _
  $region7: #{vit_forward.16} parent=0 // pred_check_branch
    %13 = sbr.rel (0) target = $region9
  $region8: #{vit_forward.16} parent=0 // pred_region
    _
  $region9: #{vit_forward.16} parent=0 // pred_fallthru
    _
  // Predicated region
  $region10: #{vit_forward.16} parent=0 // pred_check
    _
  $region11: #{vit_forward.16} parent=0 // pred_check_branch
    %15 = sbr.rel (0) target = $region13
  $region12: #{vit_forward.16} parent=0 // pred_region
    _
  $region13: #{vit_forward.16} parent=0 // pred_fallthru
    _
  // Predicated region
  $region14: #{vit_forward.16} parent=0 // pred_check
    _
  $region15: #{vit_forward.16} parent=0 // pred_check_branch
    %17 = sbr.rel (0) target = $region17
  $region16: #{vit_forward.16} parent=0 // pred_region
    _
  $region17: #{vit_forward.16} parent=0 // pred_fallthru
    _
  // Predicated region
  $region18: #{vit_forward.16} parent=0 // pred_check
    _
  $region19: #{vit_forward.16} parent=0 // pred_check_branch
    %19 = sbr.rel (0) target = $region21
  $region20: #{vit_forward.16} parent=0 // pred_region
    _
  $region21: #{vit_forward.16} parent=0 // pred_fallthru
    _
  %v20 = vld [vmem:[%s0] sm:$0xff]
  %v21 = vld [vmem:[%s0 + $0x8] sm:$0xff]
  %v22 = vld [vmem:[%s0 + $0x10] sm:$0xff]
  %v23 = vld [vmem:[%s0 + $0x18] sm:$0xff]
  %v24 = vld [vmem:[%s0 + $0x20] sm:$0x11]
  %v25 = vunpack.c.l.bf16 %v20
  %v26 = vunpack.c.h.bf16 %v20
  %v27 = vunpack.c.l.bf16 %v21
  %v28 = vunpack.c.h.bf16 %v21
  %v29 = vunpack.c.l.bf16 %v22
  %v30 = vunpack.c.h.bf16 %v22
  %v31 = vunpack.c.l.bf16 %v23
  %v32 = vunpack.c.h.bf16 %v23
  %v33 = vunpack.c.l.bf16 %v24
  %v34 = vunpack.c.h.bf16 %v24
  %v35 = vadd.f32 %v25, %v26
  %36 = vadd.xlane.f32.xlu0 %v35
  %v37 = vpop.xlane.xlu0 %36
  %v38 = vadd.f32 %v27, %v28
  %39 = vadd.xlane.f32.xlu0 %v38
  %v40 = vpop.xlane.xlu0 %39
  %v41 = vadd.f32 %v29, %v30
  %42 = vadd.xlane.f32.xlu0 %v41
  %v43 = vpop.xlane.xlu0 %42
  %v44 = vadd.f32 %v31, %v32
  %45 = vadd.xlane.f32.xlu0 %v44
  %v46 = vpop.xlane.xlu0 %45
  %vm47 = vcmask 1041408
  %v48 = vsel %vm47, %v33, 0.0
  %v49 = vsel %vm47, %v34, 0.0
  %v50 = vadd.f32 %v48, %v49
  %51 = vadd.xlane.f32.xlu0 %v50
  %v52 = vpop.xlane.xlu0 %51
  %v53 = vrcp.pop 256.0
  %v54 = vmul.f32 %v37, %v53
  %v55 = vmul.f32 %v40, %v53
  %v56 = vmul.f32 %v43, %v53
  %v57 = vmul.f32 %v46, %v53
  %v58 = vmul.f32 %v52, %v53
  %v59 = vsub.f32 %v25, %v54
  %v60 = vsub.f32 %v26, %v54
  %v61 = vsub.f32 %v27, %v55
  %v62 = vsub.f32 %v28, %v55
  %v63 = vsub.f32 %v29, %v56
  %v64 = vsub.f32 %v30, %v56
  %v65 = vsub.f32 %v31, %v57
  %v66 = vsub.f32 %v32, %v57
  %v67 = vsub.f32 %v33, %v58
  %v68 = vsub.f32 %v34, %v58
  %v69 = vmul.f32 %v59, %v59
  %v70 = vmul.f32 %v60, %v60
  %v71 = vmul.f32 %v61, %v61
  %v72 = vmul.f32 %v62, %v62
  %v73 = vmul.f32 %v63, %v63
  %v74 = vmul.f32 %v64, %v64
  %v75 = vmul.f32 %v65, %v65
  %v76 = vmul.f32 %v66, %v66
  %v77 = vmul.f32 %v67, %v67
  %v78 = vmul.f32 %v68, %v68
  %v79 = vadd.f32 %v69, %v70
  %80 = vadd.xlane.f32.xlu0 %v79
  %v81 = vpop.xlane.xlu0 %80
  %v82 = vadd.f32 %v71, %v72
  %83 = vadd.xlane.f32.xlu0 %v82
  %v84 = vpop.xlane.xlu0 %83
  %v85 = vadd.f32 %v73, %v74
  %86 = vadd.xlane.f32.xlu0 %v85
  %v87 = vpop.xlane.xlu0 %86
  %v88 = vadd.f32 %v75, %v76
  %89 = vadd.xlane.f32.xlu0 %v88
  %v90 = vpop.xlane.xlu0 %89
  %v91 = vsel %vm47, %v77, 0.0
  %v92 = vsel %vm47, %v78, 0.0
  %v93 = vadd.f32 %v91, %v92
  %94 = vadd.xlane.f32.xlu0 %v93
  %v95 = vpop.xlane.xlu0 %94
  %v96 = vmul.f32 %v81, %v53
  %v97 = vmul.f32 %v84, %v53
  %v98 = vmul.f32 %v87, %v53
  %v99 = vmul.f32 %v90, %v53
  %v100 = vmul.f32 %v95, %v53
  %v101 = vadd.f32 %v96, 1e-05
  %v102 = vadd.f32 %v97, 1e-05
  %v103 = vadd.f32 %v98, 1e-05
  %v104 = vadd.f32 %v99, 1e-05
  %v105 = vadd.f32 %v100, 1e-05
  %v106 = vrsqrt.pop %v101
  %v107 = vrsqrt.pop %v102
  %v108 = vrsqrt.pop %v103
  %v109 = vrsqrt.pop %v104
  %v110 = vrsqrt.pop %v105
  %v111 = vmul.f32 %v59, %v106
  %v112 = vmul.f32 %v60, %v106
  %v113 = vmul.f32 %v61, %v107
  %v114 = vmul.f32 %v62, %v107
  %v115 = vmul.f32 %v63, %v108
  %v116 = vmul.f32 %v64, %v108
  %v117 = vmul.f32 %v65, %v109
  %v118 = vmul.f32 %v66, %v109
  %v119 = vmul.f32 %v67, %v110
  %v120 = vmul.f32 %v68, %v110
  %v121 = vld [vmem:[%s3] sm:$0x3]
  %v123 = vlaneseq
  %v124 = vshrl.u32 %v123, 7
  %v125 = vsub.s32 0, %v124
  %v126 = vrot.slane %v121, %v125
  %v127 = vlaneseq
  %v128 = vshrl.u32 %v127, 7
  %v129 = vsub.s32 1, %v128
  %v130 = vrot.slane %v121, %v129
  %v133 = vmul.f32 %v111, %v126
  %v134 = vmul.f32 %v112, %v130
  %v135 = vmul.f32 %v113, %v126
  %v136 = vmul.f32 %v114, %v130
  %v137 = vmul.f32 %v115, %v126
  %v138 = vmul.f32 %v116, %v130
  %v139 = vmul.f32 %v117, %v126
  %v140 = vmul.f32 %v118, %v130
  %v141 = vmul.f32 %v119, %v126
  %v142 = vmul.f32 %v120, %v130
  %v143 = vld [vmem:[%s4] sm:$0x3]
  %v145 = vlaneseq
  %v146 = vshrl.u32 %v145, 7
  %v147 = vsub.s32 0, %v146
  %v148 = vrot.slane %v143, %v147
  %v149 = vlaneseq
  %v150 = vshrl.u32 %v149, 7
  %v151 = vsub.s32 1, %v150
  %v152 = vrot.slane %v143, %v151
  %v155 = vadd.f32 %v133, %v148
  %v156 = vadd.f32 %v134, %v152
  %v157 = vadd.f32 %v135, %v148
  %v158 = vadd.f32 %v136, %v152
  %v159 = vadd.f32 %v137, %v148
  %v160 = vadd.f32 %v138, %v152
  %v161 = vadd.f32 %v139, %v148
  %v162 = vadd.f32 %v140, %v152
  %v163 = vadd.f32 %v141, %v148
  %v164 = vadd.f32 %v142, %v152
  %v165 = vpack.c.bf16 %v157, %v155
  %v166 = vpack.c.bf16 %v158, %v156
  %v167 = vpack.c.bf16 %v161, %v159
  %v168 = vpack.c.bf16 %v162, %v160
  %v169 = vpack.c.bf16 %v163, %v163
  %v170 = vpack.c.bf16 %v164, %v164
  %v171 = vld [vmem:[%s1] sm:$0xff]
  %v172 = vld [vmem:[%s1 + $0x8] sm:$0xff]
  %v173 = vld [vmem:[%s1 + $0x10] sm:$0xff]
  %v174 = vld [vmem:[%s1 + $0x18] sm:$0xff]
  %v175 = vld [vmem:[%s1 + $0x20] sm:$0xff]
  %v176 = vld [vmem:[%s1 + $0x28] sm:$0xff]
  %v177 = vld [vmem:[%s1 + $0x30] sm:$0xff]
  %v178 = vld [vmem:[%s1 + $0x38] sm:$0xff]
  %v179 = vld [vmem:[%s1 + $0x40] sm:$0xff]
  %v180 = vld [vmem:[%s1 + $0x48] sm:$0xff]
  %v181 = vld [vmem:[%s1 + $0x50] sm:$0xff]
  %v182 = vld [vmem:[%s1 + $0x58] sm:$0xff]
  %v183 = vld [vmem:[%s1 + $0x60] sm:$0xff]
  %v184 = vld [vmem:[%s1 + $0x68] sm:$0xff]
  %v185 = vld [vmem:[%s1 + $0x70] sm:$0xff]
  %v186 = vld [vmem:[%s1 + $0x78] sm:$0xff]
  %v187 = vld [vmem:[%s1 + $0x80] sm:$0xff]
  %v188 = vld [vmem:[%s1 + $0x88] sm:$0xff]
  %v189 = vld [vmem:[%s1 + $0x90] sm:$0xff]
  %v190 = vld [vmem:[%s1 + $0x98] sm:$0xff]
  %v191 = vld [vmem:[%s1 + $0xa0] sm:$0xff]
  %v192 = vld [vmem:[%s1 + $0xa8] sm:$0xff]
  %v193 = vld [vmem:[%s1 + $0xb0] sm:$0xff]
  %v194 = vld [vmem:[%s1 + $0xb8] sm:$0xff]
  %v195 = vld [vmem:[%s1 + $0xc0] sm:$0xff]
  %v196 = vld [vmem:[%s1 + $0xc8] sm:$0xff]
  %v197 = vld [vmem:[%s1 + $0xd0] sm:$0xff]
  %v198 = vld [vmem:[%s1 + $0xd8] sm:$0xff]
  %v199 = vld [vmem:[%s1 + $0xe0] sm:$0xff]
  %v200 = vld [vmem:[%s1 + $0xe8] sm:$0xff]
  %v201 = vld [vmem:[%s1 + $0xf0] sm:$0xff]
  %v202 = vld [vmem:[%s1 + $0xf8] sm:$0xff]
  %v203 = vld [vmem:[%s1 + $0x100] sm:$0xff]
  %v204 = vld [vmem:[%s1 + $0x108] sm:$0xff]
  %v205 = vld [vmem:[%s1 + $0x110] sm:$0xff]
  %v206 = vld [vmem:[%s1 + $0x118] sm:$0xff]
  %v207 = vld [vmem:[%s1 + $0x120] sm:$0xff]
  %v208 = vld [vmem:[%s1 + $0x128] sm:$0xff]
  %v209 = vld [vmem:[%s1 + $0x130] sm:$0xff]
  %v210 = vld [vmem:[%s1 + $0x138] sm:$0xff]
  %v211 = vld [vmem:[%s1 + $0x140] sm:$0xff]
  %v212 = vld [vmem:[%s1 + $0x148] sm:$0xff]
  %v213 = vld [vmem:[%s1 + $0x150] sm:$0xff]
  %v214 = vld [vmem:[%s1 + $0x158] sm:$0xff]
  %v215 = vld [vmem:[%s1 + $0x160] sm:$0xff]
  %v216 = vld [vmem:[%s1 + $0x168] sm:$0xff]
  %v217 = vld [vmem:[%s1 + $0x170] sm:$0xff]
  %v218 = vld [vmem:[%s1 + $0x178] sm:$0xff]
  %v219 = vld [vmem:[%s1 + $0x180] sm:$0xff]
  %v220 = vld [vmem:[%s1 + $0x188] sm:$0xff]
  %v221 = vld [vmem:[%s1 + $0x190] sm:$0xff]
  %v222 = vld [vmem:[%s1 + $0x198] sm:$0xff]
  %v223 = vld [vmem:[%s1 + $0x1a0] sm:$0xff]
  %v224 = vld [vmem:[%s1 + $0x1a8] sm:$0xff]
  %v225 = vld [vmem:[%s1 + $0x1b0] sm:$0xff]
  %v226 = vld [vmem:[%s1 + $0x1b8] sm:$0xff]
  %v227 = vld [vmem:[%s1 + $0x1c0] sm:$0xff]
  %v228 = vld [vmem:[%s1 + $0x1c8] sm:$0xff]
  %v229 = vld [vmem:[%s1 + $0x1d0] sm:$0xff]
  %v230 = vld [vmem:[%s1 + $0x1d8] sm:$0xff]
  %v231 = vld [vmem:[%s1 + $0x1e0] sm:$0xff]
  %v232 = vld [vmem:[%s1 + $0x1e8] sm:$0xff]
  %v233 = vld [vmem:[%s1 + $0x1f0] sm:$0xff]
  %v234 = vld [vmem:[%s1 + $0x1f8] sm:$0xff]
  %v235 = vld [vmem:[%s2] sm:$0xf]
  %v237 = vlaneseq
  %v238 = vshrl.u32 %v237, 7
  %v239 = vsub.s32 0, %v238
  %v240 = vrot.slane %v235, %v239
  %v241 = vlaneseq
  %v242 = vshrl.u32 %v241, 7
  %v243 = vsub.s32 1, %v242
  %v244 = vrot.slane %v235, %v243
  %v245 = vlaneseq
  %v246 = vshrl.u32 %v245, 7
  %v247 = vsub.s32 2, %v246
  %v248 = vrot.slane %v235, %v247
  %v249 = vlaneseq
  %v250 = vshrl.u32 %v249, 7
  %v251 = vsub.s32 3, %v250
  %v252 = vrot.slane %v235, %v251
  %v321 = vunpack.c.l.b16 %v171
  %v322 = vunpack.c.h.b16 %v171
  %v323 = vunpack.c.l.b16 %v172
  %v324 = vunpack.c.h.b16 %v172
  %v325 = vunpack.c.l.b16 %v173
  %v326 = vunpack.c.h.b16 %v173
  %v327 = vunpack.c.l.b16 %v174
  %v328 = vunpack.c.h.b16 %v174
  %v329 = vunpack.c.l.b16 %v175
  %v330 = vunpack.c.h.b16 %v175
  %v331 = vunpack.c.l.b16 %v176
  %v332 = vunpack.c.h.b16 %v176
  %v333 = vunpack.c.l.b16 %v177
  %v334 = vunpack.c.h.b16 %v177
  %v335 = vunpack.c.l.b16 %v178
  %v336 = vunpack.c.h.b16 %v178
  %v337 = vunpack.c.l.b16 %v179
  %v338 = vunpack.c.h.b16 %v179
  %v339 = vunpack.c.l.b16 %v180
  %v340 = vunpack.c.h.b16 %v180
  %v341 = vunpack.c.l.b16 %v181
  %v342 = vunpack.c.h.b16 %v181
  %v343 = vunpack.c.l.b16 %v182
  %v344 = vunpack.c.h.b16 %v182
  %v345 = vunpack.c.l.b16 %v183
  %v346 = vunpack.c.h.b16 %v183
  %v347 = vunpack.c.l.b16 %v184
  %v348 = vunpack.c.h.b16 %v184
  %v349 = vunpack.c.l.b16 %v185
  %v350 = vunpack.c.h.b16 %v185
  %v351 = vunpack.c.l.b16 %v186
  %v352 = vunpack.c.h.b16 %v186
  %v353 = vunpack.c.l.b16 %v187
  %v354 = vunpack.c.h.b16 %v187
  %v355 = vunpack.c.l.b16 %v188
  %v356 = vunpack.c.h.b16 %v188
  %v357 = vunpack.c.l.b16 %v189
  %v358 = vunpack.c.h.b16 %v189
  %v359 = vunpack.c.l.b16 %v190
  %v360 = vunpack.c.h.b16 %v190
  %v361 = vunpack.c.l.b16 %v191
  %v362 = vunpack.c.h.b16 %v191
  %v363 = vunpack.c.l.b16 %v192
  %v364 = vunpack.c.h.b16 %v192
  %v365 = vunpack.c.l.b16 %v193
  %v366 = vunpack.c.h.b16 %v193
  %v367 = vunpack.c.l.b16 %v194
  %v368 = vunpack.c.h.b16 %v194
  %v369 = vunpack.c.l.b16 %v195
  %v370 = vunpack.c.h.b16 %v195
  %v371 = vunpack.c.l.b16 %v196
  %v372 = vunpack.c.h.b16 %v196
  %v373 = vunpack.c.l.b16 %v197
  %v374 = vunpack.c.h.b16 %v197
  %v375 = vunpack.c.l.b16 %v198
  %v376 = vunpack.c.h.b16 %v198
  %v377 = vunpack.c.l.b16 %v199
  %v378 = vunpack.c.h.b16 %v199
  %v379 = vunpack.c.l.b16 %v200
  %v380 = vunpack.c.h.b16 %v200
  %v381 = vunpack.c.l.b16 %v201
  %v382 = vunpack.c.h.b16 %v201
  %v383 = vunpack.c.l.b16 %v202
  %v384 = vunpack.c.h.b16 %v202
  %v385 = vunpack.c.l.b16 %v203
  %v386 = vunpack.c.h.b16 %v203
  %v387 = vunpack.c.l.b16 %v204
  %v388 = vunpack.c.h.b16 %v204
  %v389 = vunpack.c.l.b16 %v205
  %v390 = vunpack.c.h.b16 %v205
  %v391 = vunpack.c.l.b16 %v206
  %v392 = vunpack.c.h.b16 %v206
  %v393 = vunpack.c.l.b16 %v207
  %v394 = vunpack.c.h.b16 %v207
  %v395 = vunpack.c.l.b16 %v208
  %v396 = vunpack.c.h.b16 %v208
  %v397 = vunpack.c.l.b16 %v209
  %v398 = vunpack.c.h.b16 %v209
  %v399 = vunpack.c.l.b16 %v210
  %v400 = vunpack.c.h.b16 %v210
  %v401 = vunpack.c.l.b16 %v211
  %v402 = vunpack.c.h.b16 %v211
  %v403 = vunpack.c.l.b16 %v212
  %v404 = vunpack.c.h.b16 %v212
  %v405 = vunpack.c.l.b16 %v213
  %v406 = vunpack.c.h.b16 %v213
  %v407 = vunpack.c.l.b16 %v214
  %v408 = vunpack.c.h.b16 %v214
  %v409 = vunpack.c.l.b16 %v215
  %v410 = vunpack.c.h.b16 %v215
  %v411 = vunpack.c.l.b16 %v216
  %v412 = vunpack.c.h.b16 %v216
  %v413 = vunpack.c.l.b16 %v217
  %v414 = vunpack.c.h.b16 %v217
  %v415 = vunpack.c.l.b16 %v218
  %v416 = vunpack.c.h.b16 %v218
  %v417 = vunpack.c.l.b16 %v219
  %v418 = vunpack.c.h.b16 %v219
  %v419 = vunpack.c.l.b16 %v220
  %v420 = vunpack.c.h.b16 %v220
  %v421 = vunpack.c.l.b16 %v221
  %v422 = vunpack.c.h.b16 %v221
  %v423 = vunpack.c.l.b16 %v222
  %v424 = vunpack.c.h.b16 %v222
  %v425 = vunpack.c.l.b16 %v223
  %v426 = vunpack.c.h.b16 %v223
  %v427 = vunpack.c.l.b16 %v224
  %v428 = vunpack.c.h.b16 %v224
  %v429 = vunpack.c.l.b16 %v225
  %v430 = vunpack.c.h.b16 %v225
  %v431 = vunpack.c.l.b16 %v226
  %v432 = vunpack.c.h.b16 %v226
  %v433 = vunpack.c.l.b16 %v227
  %v434 = vunpack.c.h.b16 %v227
  %v435 = vunpack.c.l.b16 %v228
  %v436 = vunpack.c.h.b16 %v228
  %v437 = vunpack.c.l.b16 %v229
  %v438 = vunpack.c.h.b16 %v229
  %v439 = vunpack.c.l.b16 %v230
  %v440 = vunpack.c.h.b16 %v230
  %v441 = vunpack.c.l.b16 %v231
  %v442 = vunpack.c.h.b16 %v231
  %v443 = vunpack.c.l.b16 %v232
  %v444 = vunpack.c.h.b16 %v232
  %v445 = vunpack.c.l.b16 %v233
  %v446 = vunpack.c.h.b16 %v233
  %v447 = vunpack.c.l.b16 %v234
  %v448 = vunpack.c.h.b16 %v234
  %v449 = vpack.c.b16 %v325, %v321
  %v450 = vpack.c.b16 %v326, %v322
  %v451 = vpack.c.b16 %v327, %v323
  %v452 = vpack.c.b16 %v328, %v324
  %v453 = vpack.c.b16 %v333, %v329
  %v454 = vpack.c.b16 %v334, %v330
  %v455 = vpack.c.b16 %v335, %v331
  %v456 = vpack.c.b16 %v336, %v332
  %v457 = vpack.c.b16 %v341, %v337
  %v458 = vpack.c.b16 %v342, %v338
  %v459 = vpack.c.b16 %v343, %v339
  %v460 = vpack.c.b16 %v344, %v340
  %v461 = vpack.c.b16 %v349, %v345
  %v462 = vpack.c.b16 %v350, %v346
  %v463 = vpack.c.b16 %v351, %v347
  %v464 = vpack.c.b16 %v352, %v348
  %v465 = vpack.c.b16 %v357, %v353
  %v466 = vpack.c.b16 %v358, %v354
  %v467 = vpack.c.b16 %v359, %v355
  %v468 = vpack.c.b16 %v360, %v356
  %v469 = vpack.c.b16 %v365, %v361
  %v470 = vpack.c.b16 %v366, %v362
  %v471 = vpack.c.b16 %v367, %v363
  %v472 = vpack.c.b16 %v368, %v364
  %v473 = vpack.c.b16 %v373, %v369
  %v474 = vpack.c.b16 %v374, %v370
  %v475 = vpack.c.b16 %v375, %v371
  %v476 = vpack.c.b16 %v376, %v372
  %v477 = vpack.c.b16 %v381, %v377
  %v478 = vpack.c.b16 %v382, %v378
  %v479 = vpack.c.b16 %v383, %v379
  %v480 = vpack.c.b16 %v384, %v380
  %v481 = vpack.c.b16 %v389, %v385
  %v482 = vpack.c.b16 %v390, %v386
  %v483 = vpack.c.b16 %v391, %v387
  %v484 = vpack.c.b16 %v392, %v388
  %v485 = vpack.c.b16 %v397, %v393
  %v486 = vpack.c.b16 %v398, %v394
  %v487 = vpack.c.b16 %v399, %v395
  %v488 = vpack.c.b16 %v400, %v396
  %v489 = vpack.c.b16 %v405, %v401
  %v490 = vpack.c.b16 %v406, %v402
  %v491 = vpack.c.b16 %v407, %v403
  %v492 = vpack.c.b16 %v408, %v404
  %v493 = vpack.c.b16 %v413, %v409
  %v494 = vpack.c.b16 %v414, %v410
  %v495 = vpack.c.b16 %v415, %v411
  %v496 = vpack.c.b16 %v416, %v412
  %v497 = vpack.c.b16 %v421, %v417
  %v498 = vpack.c.b16 %v422, %v418
  %v499 = vpack.c.b16 %v423, %v419
  %v500 = vpack.c.b16 %v424, %v420
  %v501 = vpack.c.b16 %v429, %v425
  %v502 = vpack.c.b16 %v430, %v426
  %v503 = vpack.c.b16 %v431, %v427
  %v504 = vpack.c.b16 %v432, %v428
  %v505 = vpack.c.b16 %v437, %v433
  %v506 = vpack.c.b16 %v438, %v434
  %v507 = vpack.c.b16 %v439, %v435
  %v508 = vpack.c.b16 %v440, %v436
  %v509 = vpack.c.b16 %v445, %v441
  %v510 = vpack.c.b16 %v446, %v442
  %v511 = vpack.c.b16 %v447, %v443
  %v512 = vpack.c.b16 %v448, %v444
  %577 = vmatprep.subr.bf16.mxu0 %v450
  %578 = vmatpush1.bf16.msra.mxu0 %v449
  %579 = vmatprep.subr.bf16.mxu0 %v454
  %580 = vmatpush1.bf16.msra.mxu0 %v453
  %581 = vmatprep.subr.bf16.mxu0 %v458
  %582 = vmatpush1.bf16.msra.mxu0 %v457
  %583 = vmatprep.subr.bf16.mxu0 %v462
  %584 = vmatpush1.bf16.msra.mxu0 %v461
  %585 = vmatprep.subr.bf16.mxu0 %v466
  %586 = vmatpush1.bf16.msra.mxu0 %v465
  %587 = vmatprep.subr.bf16.mxu0 %v470
  %588 = vmatpush1.bf16.msra.mxu0 %v469
  %589 = vmatprep.subr.bf16.mxu0 %v474
  %590 = vmatpush1.bf16.msra.mxu0 %v473
  %591 = vmatprep.subr.bf16.mxu0 %v478
  %592 = vmatpush1.bf16.msra.mxu0 %v477
  %593 = vmatprep.subr.bf16.mxu0 %v482
  %594 = vmatpush1.bf16.msra.mxu0 %v481
  %595 = vmatprep.subr.bf16.mxu0 %v486
  %596 = vmatpush1.bf16.msra.mxu0 %v485
  %597 = vmatprep.subr.bf16.mxu0 %v490
  %598 = vmatpush1.bf16.msra.mxu0 %v489
  %599 = vmatprep.subr.bf16.mxu0 %v494
  %600 = vmatpush1.bf16.msra.mxu0 %v493
  %601 = vmatprep.subr.bf16.mxu0 %v498
  %602 = vmatpush1.bf16.msra.mxu0 %v497
  %603 = vmatprep.subr.bf16.mxu0 %v502
  %604 = vmatpush1.bf16.msra.mxu0 %v501
  %605 = vmatprep.subr.bf16.mxu0 %v506
  %606 = vmatpush1.bf16.msra.mxu0 %v505
  %607 = vmatprep.subr.bf16.mxu0 %v510
  %608 = vmatpush1.bf16.msra.mxu0 %v509
  %609 = vmatprep.mubr.bf16.mxu0 %v166
  %610 = vmatmul.mubr.bf16.gmra.mrb[0].mxu0 %v165
  %v611 = vpop.f32.mrb[0].mxu0
  %v612 = vadd.f32 %v240, %v611
  %v613 = vpop.f32.mrb[0].mxu0
  %v614 = vadd.f32 %v244, %v613
  %v615 = vpop.f32.mrb[0].mxu0
  %v616 = vadd.f32 %v240, %v615
  %v617 = vpop.f32.mrb[0].mxu0
  %v618 = vadd.f32 %v244, %v617
  %619 = vmatprep.mubr.bf16.mxu0 %v168
  %620 = vmatmul.mubr.bf16.gmra.mrb[0].mxu0 %v167
  %v621 = vpop.f32.mrb[0].mxu0
  %v622 = vadd.f32 %v240, %v621
  %v623 = vpop.f32.mrb[0].mxu0
  %v624 = vadd.f32 %v244, %v623
  %v625 = vpop.f32.mrb[0].mxu0
  %v626 = vadd.f32 %v240, %v625
  %v627 = vpop.f32.mrb[0].mxu0
  %v628 = vadd.f32 %v244, %v627
  %629 = vmatprep.mubr.bf16.mxu0 %v170
  %630 = vmatmul.mubr.bf16.gmra.mrb[0].mxu0 %v169
  %v631 = vpop.f32.mrb[0].mxu0
  %v632 = vadd.f32 %v240, %v631
  %v633 = vpop.f32.mrb[0].mxu0
  %v634 = vadd.f32 %v244, %v633
  %v635 = vpop.f32.mrb[0].mxu0
  %v636 = vpop.f32.mrb[0].mxu0
  %637 = vdwg.mxu0
  %638 = vmatprep.subr.bf16.mxu0 %v452
  %639 = vmatpush1.bf16.msra.mxu0 %v451
  %640 = vmatprep.subr.bf16.mxu0 %v456
  %641 = vmatpush1.bf16.msra.mxu0 %v455
  %642 = vmatprep.subr.bf16.mxu0 %v460
  %643 = vmatpush1.bf16.msra.mxu0 %v459
  %644 = vmatprep.subr.bf16.mxu0 %v464
  %645 = vmatpush1.bf16.msra.mxu0 %v463
  %646 = vmatprep.subr.bf16.mxu0 %v468
  %647 = vmatpush1.bf16.msra.mxu0 %v467
  %648 = vmatprep.subr.bf16.mxu0 %v472
  %649 = vmatpush1.bf16.msra.mxu0 %v471
  %650 = vmatprep.subr.bf16.mxu0 %v476
  %651 = vmatpush1.bf16.msra.mxu0 %v475
  %652 = vmatprep.subr.bf16.mxu0 %v480
  %653 = vmatpush1.bf16.msra.mxu0 %v479
  %654 = vmatprep.subr.bf16.mxu0 %v484
  %655 = vmatpush1.bf16.msra.mxu0 %v483
  %656 = vmatprep.subr.bf16.mxu0 %v488
  %657 = vmatpush1.bf16.msra.mxu0 %v487
  %658 = vmatprep.subr.bf16.mxu0 %v492
  %659 = vmatpush1.bf16.msra.mxu0 %v491
  %660 = vmatprep.subr.bf16.mxu0 %v496
  %661 = vmatpush1.bf16.msra.mxu0 %v495
  %662 = vmatprep.subr.bf16.mxu0 %v500
  %663 = vmatpush1.bf16.msra.mxu0 %v499
  %664 = vmatprep.subr.bf16.mxu0 %v504
  %665 = vmatpush1.bf16.msra.mxu0 %v503
  %666 = vmatprep.subr.bf16.mxu0 %v508
  %667 = vmatpush1.bf16.msra.mxu0 %v507
  %668 = vmatprep.subr.bf16.mxu0 %v512
  %669 = vmatpush1.bf16.msra.mxu0 %v511
  %670 = vmatprep.mubr.bf16.mxu0 %v166
  %671 = vmatmul.mubr.bf16.gmra.mrb[0].mxu0 %v165
  %v672 = vpop.f32.mrb[0].mxu0
  %v673 = vadd.f32 %v248, %v672
  %v674 = vpop.f32.mrb[0].mxu0
  %v675 = vadd.f32 %v252, %v674
  %v676 = vpop.f32.mrb[0].mxu0
  %v677 = vadd.f32 %v248, %v676
  %v678 = vpop.f32.mrb[0].mxu0
  %v679 = vadd.f32 %v252, %v678
  %680 = vmatprep.mubr.bf16.mxu0 %v168
  %681 = vmatmul.mubr.bf16.gmra.mrb[0].mxu0 %v167
  %v682 = vpop.f32.mrb[0].mxu0
  %v683 = vadd.f32 %v248, %v682
  %v684 = vpop.f32.mrb[0].mxu0
  %v685 = vadd.f32 %v252, %v684
  %v686 = vpop.f32.mrb[0].mxu0
  %v687 = vadd.f32 %v248, %v686
  %v688 = vpop.f32.mrb[0].mxu0
  %v689 = vadd.f32 %v252, %v688
  %690 = vmatprep.mubr.bf16.mxu0 %v170
  %691 = vmatmul.mubr.bf16.gmra.mrb[0].mxu0 %v169
  %v692 = vpop.f32.mrb[0].mxu0
  %v693 = vadd.f32 %v248, %v692
  %v694 = vpop.f32.mrb[0].mxu0
  %v695 = vadd.f32 %v252, %v694
  %v696 = vpop.f32.mrb[0].mxu0
  %v697 = vpop.f32.mrb[0].mxu0
  %698 = vdwg.mxu0
  %v699 = vmul.f32 %v612, 0.5
  %v700 = vmul.f32 %v614, 0.5
  %v701 = vmul.f32 %v673, 0.5
  %v702 = vmul.f32 %v675, 0.5
  %v703 = vmul.f32 %v616, 0.5
  %v704 = vmul.f32 %v618, 0.5
  %v705 = vmul.f32 %v677, 0.5
  %v706 = vmul.f32 %v679, 0.5
  %v707 = vmul.f32 %v622, 0.5
  %v708 = vmul.f32 %v624, 0.5
  %v709 = vmul.f32 %v683, 0.5
  %v710 = vmul.f32 %v685, 0.5
  %v711 = vmul.f32 %v626, 0.5
  %v712 = vmul.f32 %v628, 0.5
  %v713 = vmul.f32 %v687, 0.5
  %v714 = vmul.f32 %v689, 0.5
  %v715 = vmul.f32 %v632, 0.5
  %v716 = vmul.f32 %v634, 0.5
  %v717 = vmul.f32 %v693, 0.5
  %v718 = vmul.f32 %v695, 0.5
  %v719 = vmul.f32 %v612, 0.044715
  %v720 = vmul.f32 %v614, 0.044715
  %v721 = vmul.f32 %v673, 0.044715
  %v722 = vmul.f32 %v675, 0.044715
  %v723 = vmul.f32 %v616, 0.044715
  %v724 = vmul.f32 %v618, 0.044715
  %v725 = vmul.f32 %v677, 0.044715
  %v726 = vmul.f32 %v679, 0.044715
  %v727 = vmul.f32 %v622, 0.044715
  %v728 = vmul.f32 %v624, 0.044715
  %v729 = vmul.f32 %v683, 0.044715
  %v730 = vmul.f32 %v685, 0.044715
  %v731 = vmul.f32 %v626, 0.044715
  %v732 = vmul.f32 %v628, 0.044715
  %v733 = vmul.f32 %v687, 0.044715
  %v734 = vmul.f32 %v689, 0.044715
  %v735 = vmul.f32 %v632, 0.044715
  %v736 = vmul.f32 %v634, 0.044715
  %v737 = vmul.f32 %v693, 0.044715
  %v738 = vmul.f32 %v695, 0.044715
  %v739 = vmul.f32 %v719, %v612
  %v740 = vmul.f32 %v720, %v614
  %v741 = vmul.f32 %v721, %v673
  %v742 = vmul.f32 %v722, %v675
  %v743 = vmul.f32 %v723, %v616
  %v744 = vmul.f32 %v724, %v618
  %v745 = vmul.f32 %v725, %v677
  %v746 = vmul.f32 %v726, %v679
  %v747 = vmul.f32 %v727, %v622
  %v748 = vmul.f32 %v728, %v624
  %v749 = vmul.f32 %v729, %v683
  %v750 = vmul.f32 %v730, %v685
  %v751 = vmul.f32 %v731, %v626
  %v752 = vmul.f32 %v732, %v628
  %v753 = vmul.f32 %v733, %v687
  %v754 = vmul.f32 %v734, %v689
  %v755 = vmul.f32 %v735, %v632
  %v756 = vmul.f32 %v736, %v634
  %v757 = vmul.f32 %v737, %v693
  %v758 = vmul.f32 %v738, %v695
  %v759 = vmul.f32 %v739, %v612
  %v760 = vmul.f32 %v740, %v614
  %v761 = vmul.f32 %v741, %v673
  %v762 = vmul.f32 %v742, %v675
  %v763 = vmul.f32 %v743, %v616
  %v764 = vmul.f32 %v744, %v618
  %v765 = vmul.f32 %v745, %v677
  %v766 = vmul.f32 %v746, %v679
  %v767 = vmul.f32 %v747, %v622
  %v768 = vmul.f32 %v748, %v624
  %v769 = vmul.f32 %v749, %v683
  %v770 = vmul.f32 %v750, %v685
  %v771 = vmul.f32 %v751, %v626
  %v772 = vmul.f32 %v752, %v628
  %v773 = vmul.f32 %v753, %v687
  %v774 = vmul.f32 %v754, %v689
  %v775 = vmul.f32 %v755, %v632
  %v776 = vmul.f32 %v756, %v634
  %v777 = vmul.f32 %v757, %v693
  %v778 = vmul.f32 %v758, %v695
  %v779 = vadd.f32 %v612, %v759
  %v780 = vadd.f32 %v614, %v760
  %v781 = vadd.f32 %v673, %v761
  %v782 = vadd.f32 %v675, %v762
  %v783 = vadd.f32 %v616, %v763
  %v784 = vadd.f32 %v618, %v764
  %v785 = vadd.f32 %v677, %v765
  %v786 = vadd.f32 %v679, %v766
  %v787 = vadd.f32 %v622, %v767
  %v788 = vadd.f32 %v624, %v768
  %v789 = vadd.f32 %v683, %v769
  %v790 = vadd.f32 %v685, %v770
  %v791 = vadd.f32 %v626, %v771
  %v792 = vadd.f32 %v628, %v772
  %v793 = vadd.f32 %v687, %v773
  %v794 = vadd.f32 %v689, %v774
  %v795 = vadd.f32 %v632, %v775
  %v796 = vadd.f32 %v634, %v776
  %v797 = vadd.f32 %v693, %v777
  %v798 = vadd.f32 %v695, %v778
  %v799 = vmul.f32 %v779, 0.7978846
  %v800 = vmul.f32 %v780, 0.7978846
  %v801 = vmul.f32 %v781, 0.7978846
  %v802 = vmul.f32 %v782, 0.7978846
  %v803 = vmul.f32 %v783, 0.7978846
  %v804 = vmul.f32 %v784, 0.7978846
  %v805 = vmul.f32 %v785, 0.7978846
  %v806 = vmul.f32 %v786, 0.7978846
  %v807 = vmul.f32 %v787, 0.7978846
  %v808 = vmul.f32 %v788, 0.7978846
  %v809 = vmul.f32 %v789, 0.7978846
  %v810 = vmul.f32 %v790, 0.7978846
  %v811 = vmul.f32 %v791, 0.7978846
  %v812 = vmul.f32 %v792, 0.7978846
  %v813 = vmul.f32 %v793, 0.7978846
  %v814 = vmul.f32 %v794, 0.7978846
  %v815 = vmul.f32 %v795, 0.7978846
  %v816 = vmul.f32 %v796, 0.7978846
  %v817 = vmul.f32 %v797, 0.7978846
  %v818 = vmul.f32 %v798, 0.7978846
  %v819 = vtanh.pop %v799
  %v820 = vtanh.pop %v800
  %v821 = vtanh.pop %v801
  %v822 = vtanh.pop %v802
  %v823 = vtanh.pop %v803
  %v824 = vtanh.pop %v804
  %v825 = vtanh.pop %v805
  %v826 = vtanh.pop %v806
  %v827 = vtanh.pop %v807
  %v828 = vtanh.pop %v808
  %v829 = vtanh.pop %v809
  %v830 = vtanh.pop %v810
  %v831 = vtanh.pop %v811
  %v832 = vtanh.pop %v812
  %v833 = vtanh.pop %v813
  %v834 = vtanh.pop %v814
  %v835 = vtanh.pop %v815
  %v836 = vtanh.pop %v816
  %v837 = vtanh.pop %v817
  %v838 = vtanh.pop %v818
  %v839 = vadd.f32 %v819, 1.0
  %v840 = vadd.f32 %v820, 1.0
  %v841 = vadd.f32 %v821, 1.0
  %v842 = vadd.f32 %v822, 1.0
  %v843 = vadd.f32 %v823, 1.0
  %v844 = vadd.f32 %v824, 1.0
  %v845 = vadd.f32 %v825, 1.0
  %v846 = vadd.f32 %v826, 1.0
  %v847 = vadd.f32 %v827, 1.0
  %v848 = vadd.f32 %v828, 1.0
  %v849 = vadd.f32 %v829, 1.0
  %v850 = vadd.f32 %v830, 1.0
  %v851 = vadd.f32 %v831, 1.0
  %v852 = vadd.f32 %v832, 1.0
  %v853 = vadd.f32 %v833, 1.0
  %v854 = vadd.f32 %v834, 1.0
  %v855 = vadd.f32 %v835, 1.0
  %v856 = vadd.f32 %v836, 1.0
  %v857 = vadd.f32 %v837, 1.0
  %v858 = vadd.f32 %v838, 1.0
  %v859 = vmul.f32 %v699, %v839
  %v860 = vmul.f32 %v700, %v840
  %v861 = vmul.f32 %v701, %v841
  %v862 = vmul.f32 %v702, %v842
  %v863 = vmul.f32 %v703, %v843
  %v864 = vmul.f32 %v704, %v844
  %v865 = vmul.f32 %v705, %v845
  %v866 = vmul.f32 %v706, %v846
  %v867 = vmul.f32 %v707, %v847
  %v868 = vmul.f32 %v708, %v848
  %v869 = vmul.f32 %v709, %v849
  %v870 = vmul.f32 %v710, %v850
  %v871 = vmul.f32 %v711, %v851
  %v872 = vmul.f32 %v712, %v852
  %v873 = vmul.f32 %v713, %v853
  %v874 = vmul.f32 %v714, %v854
  %v875 = vmul.f32 %v715, %v855
  %v876 = vmul.f32 %v716, %v856
  %v877 = vmul.f32 %v717, %v857
  %v878 = vmul.f32 %v718, %v858
  %v879 = vpack.c.bf16 %v863, %v859
  %v880 = vpack.c.bf16 %v864, %v860
  %v881 = vpack.c.bf16 %v865, %v861
  %v882 = vpack.c.bf16 %v866, %v862
  %v883 = vpack.c.bf16 %v871, %v867
  %v884 = vpack.c.bf16 %v872, %v868
  %v885 = vpack.c.bf16 %v873, %v869
  %v886 = vpack.c.bf16 %v874, %v870
  %v887 = vpack.c.bf16 %v875, %v875
  %v888 = vpack.c.bf16 %v876, %v876
  %v889 = vpack.c.bf16 %v877, %v877
  %v890 = vpack.c.bf16 %v878, %v878
  %v903 = vunpack.c.l.b16 %v879
  %v904 = vunpack.c.l.b16 %v880
  %v905 = vunpack.c.l.b16 %v881
  %v906 = vunpack.c.l.b16 %v882
  %v907 = vunpack.c.h.b16 %v879
  %v908 = vunpack.c.h.b16 %v880
  %v909 = vunpack.c.h.b16 %v881
  %v910 = vunpack.c.h.b16 %v882
  %v911 = vunpack.c.l.b16 %v883
  %v912 = vunpack.c.l.b16 %v884
  %v913 = vunpack.c.l.b16 %v885
  %v914 = vunpack.c.l.b16 %v886
  %v915 = vunpack.c.h.b16 %v883
  %v916 = vunpack.c.h.b16 %v884
  %v917 = vunpack.c.h.b16 %v885
  %v918 = vunpack.c.h.b16 %v886
  %v919 = vunpack.c.l.b16 %v887
  %v920 = vunpack.c.l.b16 %v888
  %v921 = vunpack.c.l.b16 %v889
  %v922 = vunpack.c.l.b16 %v890
  %v923 = vpack.c.b16 %v904, %v903
  %v924 = vpack.c.b16 %v906, %v905
  %v925 = vpack.c.b16 %v908, %v907
  %v926 = vpack.c.b16 %v910, %v909
  %v927 = vpack.c.b16 %v912, %v911
  %v928 = vpack.c.b16 %v914, %v913
  %v929 = vpack.c.b16 %v916, %v915
  %v930 = vpack.c.b16 %v918, %v917
  %v931 = vpack.c.b16 %v920, %v919
  %v932 = vpack.c.b16 %v922, %v921
  %943 = vst [vmem:[%s5] sm:$0xff] %v923
  %944 = vst [vmem:[%s5 + $0x8] sm:$0xff] %v924
  %945 = vst [vmem:[%s5 + $0x10] sm:$0xff] %v925
  %946 = vst [vmem:[%s5 + $0x18] sm:$0xff] %v926
  %947 = vst [vmem:[%s5 + $0x20] sm:$0xff] %v927
  %948 = vst [vmem:[%s5 + $0x28] sm:$0xff] %v928
  %949 = vst [vmem:[%s5 + $0x30] sm:$0xff] %v929
  %950 = vst [vmem:[%s5 + $0x38] sm:$0xff] %v930
  %951 = vst [vmem:[%s5 + $0x40] sm:$0x11] %v931
  %952 = vst [vmem:[%s5 + $0x48] sm:$0x11] %v932
  // Predicated region
  $region22: #{vit_forward.16} parent=0 // pred_check
    _
  $region23: #{vit_forward.16} parent=0 // pred_check_branch
    %954 = sbr.rel (0) target = $region25
  $region24: #{vit_forward.16} parent=0 // pred_region
    _
  $region25: #{vit_forward.16} parent=0 // pred_fallthru
    _
  // Predicated region
  $region26: #{vit_forward.16} parent=0 // pred_check
    _
  $region27: #{vit_forward.16} parent=0 // pred_check_branch
    %956 = sbr.rel (0) target = $region29
  $region28: #{vit_forward.16} parent=0 // pred_region
    _
  $region29: #{vit_forward.16} parent=0 // pred_fallthru
    _

// kernel: vit_forward.17
$region0: #{vit_forward.17}
  #allocation0 [shape = 'u32[]', space=smem, size = 0x4, offset = 0x4, fixed_abs, tag = 'smem constant byte address 0x4 - core index']
  #allocation1 [shape = 'u32[144,128]{1,0:T(1,128)}', space=vmem, size = 0x12000, scoped, tag = 'internal scratch']
  %s0 = inlined_call_operand.vmem [shape: bf16[34,512], index: 0, kind: input, shape index: {}]
  %s1 = inlined_call_operand.vmem [shape: bf16[512,256], index: 1, kind: input, shape index: {}]
  %s2 = inlined_call_operand.vmem [shape: f32[1,256], index: 2, kind: input, shape index: {}]
  %s3 = inlined_call_operand.vmem [shape: bf16[34,256], index: 3, kind: input, shape index: {}]
  %s4 = inlined_call_operand.vmem [shape: bf16[34,256], index: 4, kind: output, shape index: {}]
  %s5 = sld [smem:[#allocation0]]
  $region26: #{vit_forward.17} parent=0
    _
  %s7 = ssub.s32 1, %s5
  %s8 = scalar_select 0, %s7, %s5
  // Predicated region
  $region2: #{vit_forward.17} parent=0 // pred_check
    _
  $region3: #{vit_forward.17} parent=0 // pred_check_branch
    %10 = sbr.rel (0) target = $region5
  $region4: #{vit_forward.17} parent=0 // pred_region
    _
  $region5: #{vit_forward.17} parent=0 // pred_fallthru
    _
  // Predicated region
  $region6: #{vit_forward.17} parent=0 // pred_check
    _
  $region7: #{vit_forward.17} parent=0 // pred_check_branch
    %12 = sbr.rel (0) target = $region9
  $region8: #{vit_forward.17} parent=0 // pred_region
    _
  $region9: #{vit_forward.17} parent=0 // pred_fallthru
    _
  // Predicated region
  $region10: #{vit_forward.17} parent=0 // pred_check
    _
  $region11: #{vit_forward.17} parent=0 // pred_check_branch
    %14 = sbr.rel (0) target = $region13
  $region12: #{vit_forward.17} parent=0 // pred_region
    _
  $region13: #{vit_forward.17} parent=0 // pred_fallthru
    _
  // Predicated region
  $region14: #{vit_forward.17} parent=0 // pred_check
    _
  $region15: #{vit_forward.17} parent=0 // pred_check_branch
    %16 = sbr.rel (0) target = $region17
  $region16: #{vit_forward.17} parent=0 // pred_region
    _
  $region17: #{vit_forward.17} parent=0 // pred_fallthru
    _
  %v17 = vld [vmem:[%s0] sm:$0xff]
  %v18 = vld [vmem:[%s0 + $0x8] sm:$0xff]
  %v19 = vld [vmem:[%s0 + $0x10] sm:$0xff]
  %v20 = vld [vmem:[%s0 + $0x18] sm:$0xff]
  %v21 = vld [vmem:[%s0 + $0x20] sm:$0xff]
  %v22 = vld [vmem:[%s0 + $0x28] sm:$0xff]
  %v23 = vld [vmem:[%s0 + $0x30] sm:$0xff]
  %v24 = vld [vmem:[%s0 + $0x38] sm:$0xff]
  %v25 = vld [vmem:[%s0 + $0x40] sm:$0x11]
  %v26 = vld [vmem:[%s0 + $0x48] sm:$0x11]
  %v27 = vld [vmem:[%s1] sm:$0xff]
  %v28 = vld [vmem:[%s1 + $0x8] sm:$0xff]
  %v29 = vld [vmem:[%s1 + $0x10] sm:$0xff]
  %v30 = vld [vmem:[%s1 + $0x18] sm:$0xff]
  %v31 = vld [vmem:[%s1 + $0x20] sm:$0xff]
  %v32 = vld [vmem:[%s1 + $0x28] sm:$0xff]
  %v33 = vld [vmem:[%s1 + $0x30] sm:$0xff]
  %v34 = vld [vmem:[%s1 + $0x38] sm:$0xff]
  %v35 = vld [vmem:[%s1 + $0x40] sm:$0xff]
  %v36 = vld [vmem:[%s1 + $0x48] sm:$0xff]
  %v37 = vld [vmem:[%s1 + $0x50] sm:$0xff]
  %v38 = vld [vmem:[%s1 + $0x58] sm:$0xff]
  %v39 = vld [vmem:[%s1 + $0x60] sm:$0xff]
  %v40 = vld [vmem:[%s1 + $0x68] sm:$0xff]
  %v41 = vld [vmem:[%s1 + $0x70] sm:$0xff]
  %v42 = vld [vmem:[%s1 + $0x78] sm:$0xff]
  %v43 = vld [vmem:[%s1 + $0x80] sm:$0xff]
  %v44 = vld [vmem:[%s1 + $0x88] sm:$0xff]
  %v45 = vld [vmem:[%s1 + $0x90] sm:$0xff]
  %v46 = vld [vmem:[%s1 + $0x98] sm:$0xff]
  %v47 = vld [vmem:[%s1 + $0xa0] sm:$0xff]
  %v48 = vld [vmem:[%s1 + $0xa8] sm:$0xff]
  %v49 = vld [vmem:[%s1 + $0xb0] sm:$0xff]
  %v50 = vld [vmem:[%s1 + $0xb8] sm:$0xff]
  %v51 = vld [vmem:[%s1 + $0xc0] sm:$0xff]
  %v52 = vld [vmem:[%s1 + $0xc8] sm:$0xff]
  %v53 = vld [vmem:[%s1 + $0xd0] sm:$0xff]
  %v54 = vld [vmem:[%s1 + $0xd8] sm:$0xff]
  %v55 = vld [vmem:[%s1 + $0xe0] sm:$0xff]
  %v56 = vld [vmem:[%s1 + $0xe8] sm:$0xff]
  %v57 = vld [vmem:[%s1 + $0xf0] sm:$0xff]
  %v58 = vld [vmem:[%s1 + $0xf8] sm:$0xff]
  %v59 = vld [vmem:[%s1 + $0x100] sm:$0xff]
  %v60 = vld [vmem:[%s1 + $0x108] sm:$0xff]
  %v61 = vld [vmem:[%s1 + $0x110] sm:$0xff]
  %v62 = vld [vmem:[%s1 + $0x118] sm:$0xff]
  %v63 = vld [vmem:[%s1 + $0x120] sm:$0xff]
  %v64 = vld [vmem:[%s1 + $0x128] sm:$0xff]
  %v65 = vld [vmem:[%s1 + $0x130] sm:$0xff]
  %v66 = vld [vmem:[%s1 + $0x138] sm:$0xff]
  %v67 = vld [vmem:[%s1 + $0x140] sm:$0xff]
  %v68 = vld [vmem:[%s1 + $0x148] sm:$0xff]
  %v69 = vld [vmem:[%s1 + $0x150] sm:$0xff]
  %v70 = vld [vmem:[%s1 + $0x158] sm:$0xff]
  %v71 = vld [vmem:[%s1 + $0x160] sm:$0xff]
  %v72 = vld [vmem:[%s1 + $0x168] sm:$0xff]
  %v73 = vld [vmem:[%s1 + $0x170] sm:$0xff]
  %v74 = vld [vmem:[%s1 + $0x178] sm:$0xff]
  %v75 = vld [vmem:[%s1 + $0x180] sm:$0xff]
  %v76 = vld [vmem:[%s1 + $0x188] sm:$0xff]
  %v77 = vld [vmem:[%s1 + $0x190] sm:$0xff]
  %v78 = vld [vmem:[%s1 + $0x198] sm:$0xff]
  %v79 = vld [vmem:[%s1 + $0x1a0] sm:$0xff]
  %v80 = vld [vmem:[%s1 + $0x1a8] sm:$0xff]
  %v81 = vld [vmem:[%s1 + $0x1b0] sm:$0xff]
  %v82 = vld [vmem:[%s1 + $0x1b8] sm:$0xff]
  %v83 = vld [vmem:[%s1 + $0x1c0] sm:$0xff]
  %v84 = vld [vmem:[%s1 + $0x1c8] sm:$0xff]
  %v85 = vld [vmem:[%s1 + $0x1d0] sm:$0xff]
  %v86 = vld [vmem:[%s1 + $0x1d8] sm:$0xff]
  %v87 = vld [vmem:[%s1 + $0x1e0] sm:$0xff]
  %v88 = vld [vmem:[%s1 + $0x1e8] sm:$0xff]
  %v89 = vld [vmem:[%s1 + $0x1f0] sm:$0xff]
  %v90 = vld [vmem:[%s1 + $0x1f8] sm:$0xff]
  %v91 = vld [vmem:[%s2] sm:$0x3]
  %v93 = vlaneseq
  %v94 = vshrl.u32 %v93, 7
  %v95 = vsub.s32 0, %v94
  %v96 = vrot.slane %v91, %v95
  %v97 = vlaneseq
  %v98 = vshrl.u32 %v97, 7
  %v99 = vsub.s32 1, %v98
  %v100 = vrot.slane %v91, %v99
  %v113 = vunpack.c.l.b16 %v17
  %v114 = vunpack.c.h.b16 %v17
  %v115 = vunpack.c.l.b16 %v18
  %v116 = vunpack.c.h.b16 %v18
  %v117 = vunpack.c.l.b16 %v19
  %v118 = vunpack.c.h.b16 %v19
  %v119 = vunpack.c.l.b16 %v20
  %v120 = vunpack.c.h.b16 %v20
  %v121 = vunpack.c.l.b16 %v21
  %v122 = vunpack.c.h.b16 %v21
  %v123 = vunpack.c.l.b16 %v22
  %v124 = vunpack.c.h.b16 %v22
  %v125 = vunpack.c.l.b16 %v23
  %v126 = vunpack.c.h.b16 %v23
  %v127 = vunpack.c.l.b16 %v24
  %v128 = vunpack.c.h.b16 %v24
  %v129 = vunpack.c.l.b16 %v25
  %v130 = vunpack.c.h.b16 %v25
  %v131 = vunpack.c.l.b16 %v26
  %v132 = vunpack.c.h.b16 %v26
  %v133 = vpack.c.b16 %v117, %v113
  %v134 = vpack.c.b16 %v118, %v114
  %v135 = vpack.c.b16 %v119, %v115
  %v136 = vpack.c.b16 %v120, %v116
  %v137 = vpack.c.b16 %v125, %v121
  %v138 = vpack.c.b16 %v126, %v122
  %v139 = vpack.c.b16 %v127, %v123
  %v140 = vpack.c.b16 %v128, %v124
  %v141 = vpack.c.b16 %v129, %v129
  %v142 = vpack.c.b16 %v130, %v130
  %v143 = vpack.c.b16 %v131, %v131
  %v144 = vpack.c.b16 %v132, %v132
  %v221 = vunpack.c.l.b16 %v27
  %v222 = vunpack.c.h.b16 %v27
  %v223 = vunpack.c.l.b16 %v28
  %v224 = vunpack.c.h.b16 %v28
  %v225 = vunpack.c.l.b16 %v29
  %v226 = vunpack.c.h.b16 %v29
  %v227 = vunpack.c.l.b16 %v30
  %v228 = vunpack.c.h.b16 %v30
  %v229 = vunpack.c.l.b16 %v31
  %v230 = vunpack.c.h.b16 %v31
  %v231 = vunpack.c.l.b16 %v32
  %v232 = vunpack.c.h.b16 %v32
  %v233 = vunpack.c.l.b16 %v33
  %v234 = vunpack.c.h.b16 %v33
  %v235 = vunpack.c.l.b16 %v34
  %v236 = vunpack.c.h.b16 %v34
  %v237 = vunpack.c.l.b16 %v35
  %v238 = vunpack.c.h.b16 %v35
  %v239 = vunpack.c.l.b16 %v36
  %v240 = vunpack.c.h.b16 %v36
  %v241 = vunpack.c.l.b16 %v37
  %v242 = vunpack.c.h.b16 %v37
  %v243 = vunpack.c.l.b16 %v38
  %v244 = vunpack.c.h.b16 %v38
  %v245 = vunpack.c.l.b16 %v39
  %v246 = vunpack.c.h.b16 %v39
  %v247 = vunpack.c.l.b16 %v40
  %v248 = vunpack.c.h.b16 %v40
  %v249 = vunpack.c.l.b16 %v41
  %v250 = vunpack.c.h.b16 %v41
  %v251 = vunpack.c.l.b16 %v42
  %v252 = vunpack.c.h.b16 %v42
  %v253 = vunpack.c.l.b16 %v43
  %v254 = vunpack.c.h.b16 %v43
  %v255 = vunpack.c.l.b16 %v44
  %v256 = vunpack.c.h.b16 %v44
  %v257 = vunpack.c.l.b16 %v45
  %v258 = vunpack.c.h.b16 %v45
  %v259 = vunpack.c.l.b16 %v46
  %v260 = vunpack.c.h.b16 %v46
  %v261 = vunpack.c.l.b16 %v47
  %v262 = vunpack.c.h.b16 %v47
  %v263 = vunpack.c.l.b16 %v48
  %v264 = vunpack.c.h.b16 %v48
  %v265 = vunpack.c.l.b16 %v49
  %v266 = vunpack.c.h.b16 %v49
  %v267 = vunpack.c.l.b16 %v50
  %v268 = vunpack.c.h.b16 %v50
  %v269 = vunpack.c.l.b16 %v51
  %v270 = vunpack.c.h.b16 %v51
  %v271 = vunpack.c.l.b16 %v52
  %v272 = vunpack.c.h.b16 %v52
  %v273 = vunpack.c.l.b16 %v53
  %v274 = vunpack.c.h.b16 %v53
  %v275 = vunpack.c.l.b16 %v54
  %v276 = vunpack.c.h.b16 %v54
  %v277 = vunpack.c.l.b16 %v55
  %v278 = vunpack.c.h.b16 %v55
  %v279 = vunpack.c.l.b16 %v56
  %v280 = vunpack.c.h.b16 %v56
  %v281 = vunpack.c.l.b16 %v57
  %v282 = vunpack.c.h.b16 %v57
  %v283 = vunpack.c.l.b16 %v58
  %v284 = vunpack.c.h.b16 %v58
  %v285 = vunpack.c.l.b16 %v59
  %v286 = vunpack.c.h.b16 %v59
  %v287 = vunpack.c.l.b16 %v60
  %v288 = vunpack.c.h.b16 %v60
  %v289 = vunpack.c.l.b16 %v61
  %v290 = vunpack.c.h.b16 %v61
  %v291 = vunpack.c.l.b16 %v62
  %v292 = vunpack.c.h.b16 %v62
  %v293 = vunpack.c.l.b16 %v63
  %v294 = vunpack.c.h.b16 %v63
  %v295 = vunpack.c.l.b16 %v64
  %v296 = vunpack.c.h.b16 %v64
  %v297 = vunpack.c.l.b16 %v65
  %v298 = vunpack.c.h.b16 %v65
  %v299 = vunpack.c.l.b16 %v66
  %v300 = vunpack.c.h.b16 %v66
  %v301 = vunpack.c.l.b16 %v67
  %v302 = vunpack.c.h.b16 %v67
  %v303 = vunpack.c.l.b16 %v68
  %v304 = vunpack.c.h.b16 %v68
  %v305 = vunpack.c.l.b16 %v69
  %v306 = vunpack.c.h.b16 %v69
  %v307 = vunpack.c.l.b16 %v70
  %v308 = vunpack.c.h.b16 %v70
  %v309 = vunpack.c.l.b16 %v71
  %v310 = vunpack.c.h.b16 %v71
  %v311 = vunpack.c.l.b16 %v72
  %v312 = vunpack.c.h.b16 %v72
  %v313 = vunpack.c.l.b16 %v73
  %v314 = vunpack.c.h.b16 %v73
  %v315 = vunpack.c.l.b16 %v74
  %v316 = vunpack.c.h.b16 %v74
  %v317 = vunpack.c.l.b16 %v75
  %v318 = vunpack.c.h.b16 %v75
  %v319 = vunpack.c.l.b16 %v76
  %v320 = vunpack.c.h.b16 %v76
  %v321 = vunpack.c.l.b16 %v77
  %v322 = vunpack.c.h.b16 %v77
  %v323 = vunpack.c.l.b16 %v78
  %v324 = vunpack.c.h.b16 %v78
  %v325 = vunpack.c.l.b16 %v79
  %v326 = vunpack.c.h.b16 %v79
  %v327 = vunpack.c.l.b16 %v80
  %v328 = vunpack.c.h.b16 %v80
  %v329 = vunpack.c.l.b16 %v81
  %v330 = vunpack.c.h.b16 %v81
  %v331 = vunpack.c.l.b16 %v82
  %v332 = vunpack.c.h.b16 %v82
  %v333 = vunpack.c.l.b16 %v83
  %v334 = vunpack.c.h.b16 %v83
  %v335 = vunpack.c.l.b16 %v84
  %v336 = vunpack.c.h.b16 %v84
  %v337 = vunpack.c.l.b16 %v85
  %v338 = vunpack.c.h.b16 %v85
  %v339 = vunpack.c.l.b16 %v86
  %v340 = vunpack.c.h.b16 %v86
  %v341 = vunpack.c.l.b16 %v87
  %v342 = vunpack.c.h.b16 %v87
  %v343 = vunpack.c.l.b16 %v88
  %v344 = vunpack.c.h.b16 %v88
  %v345 = vunpack.c.l.b16 %v89
  %v346 = vunpack.c.h.b16 %v89
  %v347 = vunpack.c.l.b16 %v90
  %v348 = vunpack.c.h.b16 %v90
  %v349 = vpack.c.b16 %v223, %v221
  %v350 = vpack.c.b16 %v224, %v222
  %v351 = vpack.c.b16 %v227, %v225
  %v352 = vpack.c.b16 %v228, %v226
  %v353 = vpack.c.b16 %v231, %v229
  %v354 = vpack.c.b16 %v232, %v230
  %v355 = vpack.c.b16 %v235, %v233
  %v356 = vpack.c.b16 %v236, %v234
  %v357 = vpack.c.b16 %v239, %v237
  %v358 = vpack.c.b16 %v240, %v238
  %v359 = vpack.c.b16 %v243, %v241
  %v360 = vpack.c.b16 %v244, %v242
  %v361 = vpack.c.b16 %v247, %v245
  %v362 = vpack.c.b16 %v248, %v246
  %v363 = vpack.c.b16 %v251, %v249
  %v364 = vpack.c.b16 %v252, %v250
  %v365 = vpack.c.b16 %v255, %v253
  %v366 = vpack.c.b16 %v256, %v254
  %v367 = vpack.c.b16 %v259, %v257
  %v368 = vpack.c.b16 %v260, %v258
  %v369 = vpack.c.b16 %v263, %v261
  %v370 = vpack.c.b16 %v264, %v262
  %v371 = vpack.c.b16 %v267, %v265
  %v372 = vpack.c.b16 %v268, %v266
  %v373 = vpack.c.b16 %v271, %v269
  %v374 = vpack.c.b16 %v272, %v270
  %v375 = vpack.c.b16 %v275, %v273
  %v376 = vpack.c.b16 %v276, %v274
  %v377 = vpack.c.b16 %v279, %v277
  %v378 = vpack.c.b16 %v280, %v278
  %v379 = vpack.c.b16 %v283, %v281
  %v380 = vpack.c.b16 %v284, %v282
  %v381 = vpack.c.b16 %v287, %v285
  %v382 = vpack.c.b16 %v288, %v286
  %v383 = vpack.c.b16 %v291, %v289
  %v384 = vpack.c.b16 %v292, %v290
  %v385 = vpack.c.b16 %v295, %v293
  %v386 = vpack.c.b16 %v296, %v294
  %v387 = vpack.c.b16 %v299, %v297
  %v388 = vpack.c.b16 %v300, %v298
  %v389 = vpack.c.b16 %v303, %v301
  %v390 = vpack.c.b16 %v304, %v302
  %v391 = vpack.c.b16 %v307, %v305
  %v392 = vpack.c.b16 %v308, %v306
  %v393 = vpack.c.b16 %v311, %v309
  %v394 = vpack.c.b16 %v312, %v310
  %v395 = vpack.c.b16 %v315, %v313
  %v396 = vpack.c.b16 %v316, %v314
  %v397 = vpack.c.b16 %v319, %v317
  %v398 = vpack.c.b16 %v320, %v318
  %v399 = vpack.c.b16 %v323, %v321
  %v400 = vpack.c.b16 %v324, %v322
  %v401 = vpack.c.b16 %v327, %v325
  %v402 = vpack.c.b16 %v328, %v326
  %v403 = vpack.c.b16 %v331, %v329
  %v404 = vpack.c.b16 %v332, %v330
  %v405 = vpack.c.b16 %v335, %v333
  %v406 = vpack.c.b16 %v336, %v334
  %v407 = vpack.c.b16 %v339, %v337
  %v408 = vpack.c.b16 %v340, %v338
  %v409 = vpack.c.b16 %v343, %v341
  %v410 = vpack.c.b16 %v344, %v342
  %v411 = vpack.c.b16 %v347, %v345
  %v412 = vpack.c.b16 %v348, %v346
  %477 = vmatprep.subr.bf16.mxu0 %v350
  %478 = vmatpush1.bf16.msra.mxu0 %v349
  %479 = vmatprep.subr.bf16.mxu0 %v352
  %480 = vmatpush1.bf16.msra.mxu0 %v351
  %481 = vmatprep.subr.bf16.mxu0 %v354
  %482 = vmatpush1.bf16.msra.mxu0 %v353
  %483 = vmatprep.subr.bf16.mxu0 %v356
  %484 = vmatpush1.bf16.msra.mxu0 %v355
  %485 = vmatprep.subr.bf16.mxu0 %v358
  %486 = vmatpush1.bf16.msra.mxu0 %v357
  %487 = vmatprep.subr.bf16.mxu0 %v360
  %488 = vmatpush1.bf16.msra.mxu0 %v359
  %489 = vmatprep.subr.bf16.mxu0 %v362
  %490 = vmatpush1.bf16.msra.mxu0 %v361
  %491 = vmatprep.subr.bf16.mxu0 %v364
  %492 = vmatpush1.bf16.msra.mxu0 %v363
  %493 = vmatprep.subr.bf16.mxu0 %v366
  %494 = vmatpush1.bf16.msra.mxu0 %v365
  %495 = vmatprep.subr.bf16.mxu0 %v368
  %496 = vmatpush1.bf16.msra.mxu0 %v367
  %497 = vmatprep.subr.bf16.mxu0 %v370
  %498 = vmatpush1.bf16.msra.mxu0 %v369
  %499 = vmatprep.subr.bf16.mxu0 %v372
  %500 = vmatpush1.bf16.msra.mxu0 %v371
  %501 = vmatprep.subr.bf16.mxu0 %v374
  %502 = vmatpush1.bf16.msra.mxu0 %v373
  %503 = vmatprep.subr.bf16.mxu0 %v376
  %504 = vmatpush1.bf16.msra.mxu0 %v375
  %505 = vmatprep.subr.bf16.mxu0 %v378
  %506 = vmatpush1.bf16.msra.mxu0 %v377
  %507 = vmatprep.subr.bf16.mxu0 %v380
  %508 = vmatpush1.bf16.msra.mxu0 %v379
  %509 = vmatprep.mubr.bf16.mxu0 %v134
  %510 = vmatmul.mubr.bf16.gmra.mrb[0].mxu0 %v133
  %v511 = vpop.f32.mrb[0].mxu0
  %v512 = vadd.f32 %v96, %v511
  %v513 = vpop.f32.mrb[0].mxu0
  %v514 = vadd.f32 %v100, %v513
  %v515 = vpop.f32.mrb[0].mxu0
  %v516 = vadd.f32 %v96, %v515
  %v517 = vpop.f32.mrb[0].mxu0
  %v518 = vadd.f32 %v100, %v517
  %519 = vmatprep.mubr.bf16.mxu0 %v138
  %520 = vmatmul.mubr.bf16.gmra.mrb[0].mxu0 %v137
  %v521 = vpop.f32.mrb[0].mxu0
  %v522 = vadd.f32 %v96, %v521
  %v523 = vpop.f32.mrb[0].mxu0
  %v524 = vadd.f32 %v100, %v523
  %v525 = vpop.f32.mrb[0].mxu0
  %v526 = vadd.f32 %v96, %v525
  %v527 = vpop.f32.mrb[0].mxu0
  %v528 = vadd.f32 %v100, %v527
  %529 = vmatprep.mubr.bf16.mxu0 %v142
  %530 = vmatmul.mubr.bf16.gmra.mrb[0].mxu0 %v141
  %v531 = vpop.f32.mrb[0].mxu0
  %v532 = vadd.f32 %v96, %v531
  %v533 = vpop.f32.mrb[0].mxu0
  %v534 = vadd.f32 %v100, %v533
  %v535 = vpop.f32.mrb[0].mxu0
  %v536 = vpop.f32.mrb[0].mxu0
  %537 = vdwg.mxu0
  %538 = vmatprep.subr.bf16.mxu0 %v382
  %539 = vmatpush1.bf16.msra.mxu0 %v381
  %540 = vmatprep.subr.bf16.mxu0 %v384
  %541 = vmatpush1.bf16.msra.mxu0 %v383
  %542 = vmatprep.subr.bf16.mxu0 %v386
  %543 = vmatpush1.bf16.msra.mxu0 %v385
  %544 = vmatprep.subr.bf16.mxu0 %v388
  %545 = vmatpush1.bf16.msra.mxu0 %v387
  %546 = vmatprep.subr.bf16.mxu0 %v390
  %547 = vmatpush1.bf16.msra.mxu0 %v389
  %548 = vmatprep.subr.bf16.mxu0 %v392
  %549 = vmatpush1.bf16.msra.mxu0 %v391
  %550 = vmatprep.subr.bf16.mxu0 %v394
  %551 = vmatpush1.bf16.msra.mxu0 %v393
  %552 = vmatprep.subr.bf16.mxu0 %v396
  %553 = vmatpush1.bf16.msra.mxu0 %v395
  %554 = vmatprep.subr.bf16.mxu0 %v398
  %555 = vmatpush1.bf16.msra.mxu0 %v397
  %556 = vmatprep.subr.bf16.mxu0 %v400
  %557 = vmatpush1.bf16.msra.mxu0 %v399
  %558 = vmatprep.subr.bf16.mxu0 %v402
  %559 = vmatpush1.bf16.msra.mxu0 %v401
  %560 = vmatprep.subr.bf16.mxu0 %v404
  %561 = vmatpush1.bf16.msra.mxu0 %v403
  %562 = vmatprep.subr.bf16.mxu0 %v406
  %563 = vmatpush1.bf16.msra.mxu0 %v405
  %564 = vmatprep.subr.bf16.mxu0 %v408
  %565 = vmatpush1.bf16.msra.mxu0 %v407
  %566 = vmatprep.subr.bf16.mxu0 %v410
  %567 = vmatpush1.bf16.msra.mxu0 %v409
  %568 = vmatprep.subr.bf16.mxu0 %v412
  %569 = vmatpush1.bf16.msra.mxu0 %v411
  %570 = vmatprep.mubr.bf16.mxu0 %v136
  %571 = vmatmul.mubr.bf16.gmra.mrb[0].mxu0 %v135
  %v572 = vpop.f32.mrb[0].mxu0
  %v573 = vadd.f32 %v512, %v572
  %v574 = vpop.f32.mrb[0].mxu0
  %v575 = vadd.f32 %v514, %v574
  %v576 = vpop.f32.mrb[0].mxu0
  %v577 = vadd.f32 %v516, %v576
  %v578 = vpop.f32.mrb[0].mxu0
  %v579 = vadd.f32 %v518, %v578
  %580 = vmatprep.mubr.bf16.mxu0 %v140
  %581 = vmatmul.mubr.bf16.gmra.mrb[0].mxu0 %v139
  %v582 = vpop.f32.mrb[0].mxu0
  %v583 = vadd.f32 %v522, %v582
  %v584 = vpop.f32.mrb[0].mxu0
  %v585 = vadd.f32 %v524, %v584
  %v586 = vpop.f32.mrb[0].mxu0
  %v587 = vadd.f32 %v526, %v586
  %v588 = vpop.f32.mrb[0].mxu0
  %v589 = vadd.f32 %v528, %v588
  %590 = vmatprep.mubr.bf16.mxu0 %v144
  %591 = vmatmul.mubr.bf16.gmra.mrb[0].mxu0 %v143
  %v592 = vpop.f32.mrb[0].mxu0
  %v593 = vadd.f32 %v532, %v592
  %v594 = vpop.f32.mrb[0].mxu0
  %v595 = vadd.f32 %v534, %v594
  %v596 = vpop.f32.mrb[0].mxu0
  %v597 = vpop.f32.mrb[0].mxu0
  %598 = vdwg.mxu0
  %v599 = vld [vmem:[%s3] sm:$0xff]
  %v600 = vld [vmem:[%s3 + $0x8] sm:$0xff]
  %v601 = vld [vmem:[%s3 + $0x10] sm:$0xff]
  %v602 = vld [vmem:[%s3 + $0x18] sm:$0xff]
  %v603 = vld [vmem:[%s3 + $0x20] sm:$0x11]
  %v604 = vunpack.c.l.bf16 %v599
  %v605 = vunpack.c.h.bf16 %v599
  %v606 = vunpack.c.l.bf16 %v600
  %v607 = vunpack.c.h.bf16 %v600
  %v608 = vunpack.c.l.bf16 %v601
  %v609 = vunpack.c.h.bf16 %v601
  %v610 = vunpack.c.l.bf16 %v602
  %v611 = vunpack.c.h.bf16 %v602
  %v612 = vunpack.c.l.bf16 %v603
  %v613 = vunpack.c.h.bf16 %v603
  %v614 = vadd.f32 %v573, %v604
  %v615 = vadd.f32 %v575, %v605
  %v616 = vadd.f32 %v577, %v606
  %v617 = vadd.f32 %v579, %v607
  %v618 = vadd.f32 %v583, %v608
  %v619 = vadd.f32 %v585, %v609
  %v620 = vadd.f32 %v587, %v610
  %v621 = vadd.f32 %v589, %v611
  %v622 = vadd.f32 %v593, %v612
  %v623 = vadd.f32 %v595, %v613
  %v624 = vpack.c.bf16 %v616, %v614
  %v625 = vpack.c.bf16 %v617, %v615
  %v626 = vpack.c.bf16 %v620, %v618
  %v627 = vpack.c.bf16 %v621, %v619
  %v628 = vpack.c.bf16 %v622, %v622
  %v629 = vpack.c.bf16 %v623, %v623
  %v636 = vunpack.c.l.b16 %v624
  %v637 = vunpack.c.l.b16 %v625
  %v638 = vunpack.c.h.b16 %v624
  %v639 = vunpack.c.h.b16 %v625
  %v640 = vunpack.c.l.b16 %v626
  %v641 = vunpack.c.l.b16 %v627
  %v642 = vunpack.c.h.b16 %v626
  %v643 = vunpack.c.h.b16 %v627
  %v644 = vunpack.c.l.b16 %v628
  %v645 = vunpack.c.l.b16 %v629
  %v646 = vpack.c.b16 %v637, %v636
  %v647 = vpack.c.b16 %v639, %v638
  %v648 = vpack.c.b16 %v641, %v640
  %v649 = vpack.c.b16 %v643, %v642
  %v650 = vpack.c.b16 %v645, %v644
  %656 = vst [vmem:[%s4] sm:$0xff] %v646
  %657 = vst [vmem:[%s4 + $0x8] sm:$0xff] %v647
  %658 = vst [vmem:[%s4 + $0x10] sm:$0xff] %v648
  %659 = vst [vmem:[%s4 + $0x18] sm:$0xff] %v649
  %660 = vst [vmem:[%s4 + $0x20] sm:$0x11] %v650
  // Predicated region
  $region18: #{vit_forward.17} parent=0 // pred_check
    _
  $region19: #{vit_forward.17} parent=0 // pred_check_branch
    %662 = sbr.rel (0) target = $region21
  $region20: #{vit_forward.17} parent=0 // pred_region
    _
  $region21: #{vit_forward.17} parent=0 // pred_fallthru
    _
  // Predicated region
  $region22: #{vit_forward.17} parent=0 // pred_check
    _
  $region23: #{vit_forward.17} parent=0 // pred_check_branch
    %664 = sbr.rel (0) target = $region25
  $region24: #{vit_forward.17} parent=0 // pred_region
    _
  $region25: #{vit_forward.17} parent=0 // pred_fallthru
    _

// kernel: vit_forward.23
$region0: #{vit_forward.23}
  #allocation0 [shape = 'u32[]', space=smem, size = 0x4, offset = 0x4, fixed_abs, tag = 'smem constant byte address 0x4 - core index']
  #allocation1 [shape = 'u32[144,128]{1,0:T(1,128)}', space=vmem, size = 0x12000, scoped, tag = 'internal scratch']
  %s0 = inlined_call_operand.vmem [shape: bf16[2,256], index: 0, kind: input, shape index: {}]
  %s1 = inlined_call_operand.vmem [shape: bf16[256,128], index: 1, kind: input, shape index: {}]
  %s2 = inlined_call_operand.vmem [shape: f32[1,128], index: 2, kind: input, shape index: {}]
  %s3 = inlined_call_operand.vmem [shape: f32[1,256], index: 3, kind: input, shape index: {}]
  %s4 = inlined_call_operand.vmem [shape: f32[1,256], index: 4, kind: input, shape index: {}]
  %s5 = inlined_call_operand.hbm [shape: f32[2,128], index: 5, kind: output, shape index: {}]
  %s6 = sld [smem:[#allocation0]]
  $region30: #{vit_forward.23} parent=0
    _
  %s8 = ssub.s32 1, %s6
  %s9 = scalar_select 0, %s8, %s6
  $region1: #{vit_forward.23} parent=0
    #allocation2 [shape = 'u8[1024]{0}', space=vmem, size = 0x400, scoped, tag = 'output window, operand 0, single buffered']
    #allocation3 [shape = 's32[1]{0}', space=sflag, size = 0x4, scoped, tag = 'scoped memory for vit_forward.23']
    %10 = vsyncpa [#allocation3], 0
    // Predicated region
    $region2: #{vit_forward.23} parent=1 // pred_check
      _
    $region3: #{vit_forward.23} parent=1 // pred_check_branch
      %12 = sbr.rel (0) target = $region5
    $region4: #{vit_forward.23} parent=1 // pred_region
      _
    $region5: #{vit_forward.23} parent=1 // pred_fallthru
      _
    // Predicated region
    $region6: #{vit_forward.23} parent=1 // pred_check
      _
    $region7: #{vit_forward.23} parent=1 // pred_check_branch
      %14 = sbr.rel (0) target = $region9
    $region8: #{vit_forward.23} parent=1 // pred_region
      _
    $region9: #{vit_forward.23} parent=1 // pred_fallthru
      _
    // Predicated region
    $region10: #{vit_forward.23} parent=1 // pred_check
      _
    $region11: #{vit_forward.23} parent=1 // pred_check_branch
      %16 = sbr.rel (0) target = $region13
    $region12: #{vit_forward.23} parent=1 // pred_region
      _
    $region13: #{vit_forward.23} parent=1 // pred_fallthru
      _
    // Predicated region
    $region14: #{vit_forward.23} parent=1 // pred_check
      _
    $region15: #{vit_forward.23} parent=1 // pred_check_branch
      %18 = sbr.rel (0) target = $region17
    $region16: #{vit_forward.23} parent=1 // pred_region
      _
    $region17: #{vit_forward.23} parent=1 // pred_fallthru
      _
    // Predicated region
    $region18: #{vit_forward.23} parent=1 // pred_check
      _
    $region19: #{vit_forward.23} parent=1 // pred_check_branch
      %20 = sbr.rel (0) target = $region21
    $region20: #{vit_forward.23} parent=1 // pred_region
      _
    $region21: #{vit_forward.23} parent=1 // pred_fallthru
      _
    %v22 = vld [vmem:[%s0] sm:$0x3]
    %v23 = vunpack.c.l.bf16 %v22
    %v26 = vunpack.c.l.s4 1983009808
    %v27 = vunpack.c.0.s8 %v26
    %v28 = vlaneseq
    %v29 = vshrl.u32 %v28, 7
    %v30 = vsub.s32 %v27, %v29
    %v31 = vrot.slane %v23, %v30
    %v32 = vcombine.high %v31, %v31
    %vm35 = vcmask 1041408
    %v36 = vsel %vm35, %v31, 0.0
    %v37 = vsel %vm35, %v32, 0.0
    %v38 = vadd.f32 %v36, %v37
    %39 = vadd.xlane.f32.xlu0 %v38
    %v40 = vpop.xlane.xlu0 %39
    %v41 = vrcp.pop 256.0
    %v42 = vmul.f32 %v40, %v41
    %v45 = vunpack.c.l.s4 269488144
    %v46 = vunpack.c.0.s8 %v45
    %v47 = vlaneseq
    %v48 = vshrl.u32 %v47, 7
    %v49 = vsub.s32 %v46, %v48
    %v50 = vrot.slane %v42, %v49
    %v52 = vsub.f32 %v23, %v50
    %v53 = vmul.f32 %v52, %v52
    %v56 = vunpack.c.l.s4 1983009808
    %v57 = vunpack.c.0.s8 %v56
    %v58 = vlaneseq
    %v59 = vshrl.u32 %v58, 7
    %v60 = vsub.s32 %v57, %v59
    %v61 = vrot.slane %v53, %v60
    %v62 = vcombine.high %v61, %v61
    %v65 = vsel %vm35, %v61, 0.0
    %v66 = vsel %vm35, %v62, 0.0
    %v67 = vadd.f32 %v65, %v66
    %68 = vadd.xlane.f32.xlu0 %v67
    %v69 = vpop.xlane.xlu0 %68
    %v70 = vmul.f32 %v69, %v41
    %v71 = vadd.f32 %v70, 1e-05
    %v72 = vrsqrt.pop %v71
    %v75 = vunpack.c.l.s4 269488144
    %v76 = vunpack.c.0.s8 %v75
    %v77 = vlaneseq
    %v78 = vshrl.u32 %v77, 7
    %v79 = vsub.s32 %v76, %v78
    %v80 = vrot.slane %v72, %v79
    %v82 = vmul.f32 %v52, %v80
    %v83 = vld [vmem:[%s3] sm:$0x3]
    %v85 = vlaneseq
    %v86 = vshrl.u32 %v85, 7
    %v87 = vsub.s32 0, %v86
    %v88 = vrot.slane %v83, %v87
    %v89 = vlaneseq
    %v90 = vshrl.u32 %v89, 7
    %v91 = vsub.s32 1, %v90
    %v92 = vrot.slane %v83, %v91
    %v93 = vcombine.low %v88, %v92
    %v95 = vunpack.c.l.s4 1983009808
    %v96 = vunpack.c.0.s8 %v95
    %v97 = vlaneseq
    %v98 = vshrl.u32 %v97, 7
    %v99 = vsub.s32 %v96, %v98
    %v100 = vrot.slane %v93, %v99
    %v102 = vmul.f32 %v82, %v100
    %v103 = vld [vmem:[%s4] sm:$0x3]
    %v105 = vlaneseq
    %v106 = vshrl.u32 %v105, 7
    %v107 = vsub.s32 0, %v106
    %v108 = vrot.slane %v103, %v107
    %v109 = vlaneseq
    %v110 = vshrl.u32 %v109, 7
    %v111 = vsub.s32 1, %v110
    %v112 = vrot.slane %v103, %v111
    %v113 = vcombine.low %v108, %v112
    %v115 = vunpack.c.l.s4 1983009808
    %v116 = vunpack.c.0.s8 %v115
    %v117 = vlaneseq
    %v118 = vshrl.u32 %v117, 7
    %v119 = vsub.s32 %v116, %v118
    %v120 = vrot.slane %v113, %v119
    %v122 = vadd.f32 %v102, %v120
    %v125 = vunpack.c.l.s4 1983009808
    %v126 = vunpack.c.0.s8 %v125
    %v127 = vlaneseq
    %v128 = vshrl.u32 %v127, 7
    %v129 = vsub.s32 %v126, %v128
    %v130 = vrot.slane %v122, %v129
    %v131 = vcombine.high %v130, %v130
    %v134 = vpack.c.bf16 %v130, %v130
    %v135 = vpack.c.bf16 %v131, %v131
    %v136 = vld [vmem:[%s1] sm:$0xf]
    %v137 = vld [vmem:[%s1 + $0x4] sm:$0xf]
    %v138 = vld [vmem:[%s1 + $0x8] sm:$0xf]
    %v139 = vld [vmem:[%s1 + $0xc] sm:$0xf]
    %v140 = vld [vmem:[%s1 + $0x10] sm:$0xf]
    %v141 = vld [vmem:[%s1 + $0x14] sm:$0xf]
    %v142 = vld [vmem:[%s1 + $0x18] sm:$0xf]
    %v143 = vld [vmem:[%s1 + $0x1c] sm:$0xf]
    %v144 = vld [vmem:[%s1 + $0x20] sm:$0xf]
    %v145 = vld [vmem:[%s1 + $0x24] sm:$0xf]
    %v146 = vld [vmem:[%s1 + $0x28] sm:$0xf]
    %v147 = vld [vmem:[%s1 + $0x2c] sm:$0xf]
    %v148 = vld [vmem:[%s1 + $0x30] sm:$0xf]
    %v149 = vld [vmem:[%s1 + $0x34] sm:$0xf]
    %v150 = vld [vmem:[%s1 + $0x38] sm:$0xf]
    %v151 = vld [vmem:[%s1 + $0x3c] sm:$0xf]
    %v152 = vld [vmem:[%s1 + $0x40] sm:$0xf]
    %v153 = vld [vmem:[%s1 + $0x44] sm:$0xf]
    %v154 = vld [vmem:[%s1 + $0x48] sm:$0xf]
    %v155 = vld [vmem:[%s1 + $0x4c] sm:$0xf]
    %v156 = vld [vmem:[%s1 + $0x50] sm:$0xf]
    %v157 = vld [vmem:[%s1 + $0x54] sm:$0xf]
    %v158 = vld [vmem:[%s1 + $0x58] sm:$0xf]
    %v159 = vld [vmem:[%s1 + $0x5c] sm:$0xf]
    %v160 = vld [vmem:[%s1 + $0x60] sm:$0xf]
    %v161 = vld [vmem:[%s1 + $0x64] sm:$0xf]
    %v162 = vld [vmem:[%s1 + $0x68] sm:$0xf]
    %v163 = vld [vmem:[%s1 + $0x6c] sm:$0xf]
    %v164 = vld [vmem:[%s1 + $0x70] sm:$0xf]
    %v165 = vld [vmem:[%s1 + $0x74] sm:$0xf]
    %v166 = vld [vmem:[%s1 + $0x78] sm:$0xf]
    %v167 = vld [vmem:[%s1 + $0x7c] sm:$0xf]
    %v168 = vld [vmem:[%s2] sm:$0x1]
    %v170 = vlaneseq
    %v171 = vshrl.u32 %v170, 7
    %v172 = vsub.s32 0, %v171
    %v173 = vrot.slane %v168, %v172
    %v207 = vunpack.c.l.b16 %v136
    %v208 = vunpack.c.l.b16 %v137
    %v209 = vunpack.c.l.b16 %v138
    %v210 = vunpack.c.l.b16 %v139
    %v211 = vunpack.c.l.b16 %v140
    %v212 = vunpack.c.l.b16 %v141
    %v213 = vunpack.c.l.b16 %v142
    %v214 = vunpack.c.l.b16 %v143
    %v215 = vunpack.c.l.b16 %v144
    %v216 = vunpack.c.l.b16 %v145
    %v217 = vunpack.c.l.b16 %v146
    %v218 = vunpack.c.l.b16 %v147
    %v219 = vunpack.c.l.b16 %v148
    %v220 = vunpack.c.l.b16 %v149
    %v221 = vunpack.c.l.b16 %v150
    %v222 = vunpack.c.l.b16 %v151
    %v223 = vunpack.c.l.b16 %v152
    %v224 = vunpack.c.l.b16 %v153
    %v225 = vunpack.c.l.b16 %v154
    %v226 = vunpack.c.l.b16 %v155
    %v227 = vunpack.c.l.b16 %v156
    %v228 = vunpack.c.l.b16 %v157
    %v229 = vunpack.c.l.b16 %v158
    %v230 = vunpack.c.l.b16 %v159
    %v231 = vunpack.c.l.b16 %v160
    %v232 = vunpack.c.l.b16 %v161
    %v233 = vunpack.c.l.b16 %v162
    %v234 = vunpack.c.l.b16 %v163
    %v235 = vunpack.c.l.b16 %v164
    %v236 = vunpack.c.l.b16 %v165
    %v237 = vunpack.c.l.b16 %v166
    %v238 = vunpack.c.l.b16 %v167
    %v239 = vpack.c.b16 %v208, %v207
    %v240 = vpack.c.b16 %v210, %v209
    %v241 = vpack.c.b16 %v212, %v211
    %v242 = vpack.c.b16 %v214, %v213
    %v243 = vpack.c.b16 %v216, %v215
    %v244 = vpack.c.b16 %v218, %v217
    %v245 = vpack.c.b16 %v220, %v219
    %v246 = vpack.c.b16 %v222, %v221
    %v247 = vpack.c.b16 %v224, %v223
    %v248 = vpack.c.b16 %v226, %v225
    %v249 = vpack.c.b16 %v228, %v227
    %v250 = vpack.c.b16 %v230, %v229
    %v251 = vpack.c.b16 %v232, %v231
    %v252 = vpack.c.b16 %v234, %v233
    %v253 = vpack.c.b16 %v236, %v235
    %v254 = vpack.c.b16 %v238, %v237
    %271 = vmatprep.subr.bf16.mxu0 0
    %272 = vmatpush1.bf16.msra.mxu0 %v239
    %273 = vmatprep.subr.bf16.mxu0 0
    %274 = vmatpush1.bf16.msra.mxu0 %v240
    %275 = vmatprep.subr.bf16.mxu0 0
    %276 = vmatpush1.bf16.msra.mxu0 %v241
    %277 = vmatprep.subr.bf16.mxu0 0
    %278 = vmatpush1.bf16.msra.mxu0 %v242
    %279 = vmatprep.subr.bf16.mxu0 0
    %280 = vmatpush1.bf16.msra.mxu0 %v243
    %281 = vmatprep.subr.bf16.mxu0 0
    %282 = vmatpush1.bf16.msra.mxu0 %v244
    %283 = vmatprep.subr.bf16.mxu0 0
    %284 = vmatpush1.bf16.msra.mxu0 %v245
    %285 = vmatprep.subr.bf16.mxu0 0
    %286 = vmatpush1.bf16.msra.mxu0 %v246
    %287 = vmatprep.subr.bf16.mxu0 0
    %288 = vmatpush1.bf16.msra.mxu0 %v247
    %289 = vmatprep.subr.bf16.mxu0 0
    %290 = vmatpush1.bf16.msra.mxu0 %v248
    %291 = vmatprep.subr.bf16.mxu0 0
    %292 = vmatpush1.bf16.msra.mxu0 %v249
    %293 = vmatprep.subr.bf16.mxu0 0
    %294 = vmatpush1.bf16.msra.mxu0 %v250
    %295 = vmatprep.subr.bf16.mxu0 0
    %296 = vmatpush1.bf16.msra.mxu0 %v251
    %297 = vmatprep.subr.bf16.mxu0 0
    %298 = vmatpush1.bf16.msra.mxu0 %v252
    %299 = vmatprep.subr.bf16.mxu0 0
    %300 = vmatpush1.bf16.msra.mxu0 %v253
    %301 = vmatprep.subr.bf16.mxu0 0
    %302 = vmatpush1.bf16.msra.mxu0 %v254
    %303 = vmatprep.mubr.bf16.mxu0 %v135
    %304 = vmatmul.mubr.bf16.gmra.mrb[0].mxu0 %v134
    %v305 = vpop.f32.mrb[0].mxu0
    %v306 = vadd.f32 %v173, %v305
    %v307 = vpop.f32.mrb[0].mxu0
    %v308 = vpop.f32.mrb[0].mxu0
    %v309 = vpop.f32.mrb[0].mxu0
    %310 = vdwg.mxu0
    %311 = vst [vmem:[#allocation2] sm:$0x3] %v306
    // Predicated region
    $region22: #{vit_forward.23} parent=1 // pred_check
      _
    $region23: #{vit_forward.23} parent=1 // pred_check_branch
      %313 = sbr.rel (0) target = $region25
    $region24: #{vit_forward.23} parent=1 // pred_region
      %s315 = ssub.s32 32, 32
      %316 = vsyncadd [#allocation3], %s315
      %s318 = sshll.u32 [#allocation2], 4
      %s319 = int_to_ptr.vmem [resolvable:$true] %s318
      %321 = dma.vmem_to_hbm [thread:$0]  %s319, 32, %s5, [#allocation3]
    $region25: #{vit_forward.23} parent=1 // pred_fallthru
      _
    // Predicated region
    $region26: #{vit_forward.23} parent=1 // pred_check
      _
    $region27: #{vit_forward.23} parent=1 // pred_check_branch
      %323 = sbr.rel (0) target = $region29
    $region28: #{vit_forward.23} parent=1 // pred_region
      %324 = dma.done [#allocation3], 32
    $region29: #{vit_forward.23} parent=1 // pred_fallthru
      _
    %325 = vsyncpa [#allocation3], 1

</llo_original>
